<compile_context>
chip_gen: v7x
topology: tpu7x:2x2x1
jax: 0.10.0
libtpu: 0.0.40
codegen_flags: <defaults>
</compile_context>

<pallas_src>
import jax
import jax.numpy as jnp
from jax.experimental import pallas as pl
from jax.experimental.pallas import tpu as pltpu

LANE = 128            # TPU lane width; padded output width is a multiple of this.
DEFAULT_TB = 512      # batch tile; sweep 512-2048 for large-B workloads.


def _round_up(n, m):
    return ((n + m - 1) // m) * m


def _choose_tile(B, tb_req):
    """Pick (tb, nb): tb a multiple of 16 (bf16 sublane packing); nb even when nb > 1
    so the v7x megacore ("parallel" batch axis) gets balanced work on both cores."""
    tb = max(16, _round_up(min(tb_req, B), 16))
    nb = pl.cdiv(B, tb)
    if nb > 1 and nb % 2 == 1:
        nb += 1
    tb = _round_up(pl.cdiv(B, nb), 16)
    return tb, nb


def _vmem_limit_bytes(tb, d, W, out_pad, out_bytes):
    """Explicit VMEM budget: double-buffered x/out tiles + resident weights + f32
    intermediates, with 1.5x slack + 4 MiB headroom, capped at v7x's 64 MiB."""
    x_tile = 2 * tb * d * 2                               # bf16 x, double-buffered
    out_tile = 2 * tb * out_pad * out_bytes               # output tile, double-buffered
    weights = 2 * 2 * (d * W + W * W + W * out_pad)       # bf16 weights (default 2 bufs)
    biases = 2 * 4 * (W + W + out_pad)                    # f32 biases
    interm = 6 * tb * W * 4                               # h1/phi1/h2/phi2/acc in f32
    est = int(1.5 * (x_tile + out_tile + weights + biases + interm)) + (4 << 20)
    return min(est, 64 << 20)


def _mlp_tile(x, w1, b1, w2, b2, w3, b3, bf16_phi):
    """One batch tile of the fused 3-layer RFF MLP. Returns f32 (tb, out_pad).

    Matmuls: bf16 operands, f32 MXU accumulation.  phi = cos (sqrt(2/D) scale is
    already folded into w2/w3).  bf16_phi=True runs cos in bf16 (v6e/v7x only)."""
    h1 = jnp.dot(x, w1, preferred_element_type=jnp.float32) + b1
    phi1 = jnp.cos(h1.astype(jnp.bfloat16)) if bf16_phi else jnp.cos(h1).astype(jnp.bfloat16)
    h2 = jnp.dot(phi1, w2, preferred_element_type=jnp.float32) + b2
    phi2 = jnp.cos(h2.astype(jnp.bfloat16)) if bf16_phi else jnp.cos(h2).astype(jnp.bfloat16)
    return jnp.dot(phi2, w3, preferred_element_type=jnp.float32) + b3


def prepare_kernel_params(params):
    """Fold the RFF scale into w2/w3, cast matmul operands to bf16, pad out_dim to 128 lanes."""
    w1, b1, w2, b2, w3, b3 = params
    rff_width = w1.shape[1]
    out_dim = w3.shape[1]
    scale = jnp.float32(jnp.sqrt(2.0 / rff_width))
    out_pad = _round_up(out_dim, LANE)

    w3s = jnp.pad(w3 * scale, ((0, 0), (0, out_pad - out_dim)))
    b3p = jnp.pad(b3, ((0, 0), (0, out_pad - out_dim)))

    kp = (w1.astype(jnp.bfloat16), b1.astype(jnp.float32),
          (w2 * scale).astype(jnp.bfloat16), b2.astype(jnp.float32),
          w3s.astype(jnp.bfloat16), b3p.astype(jnp.float32))
    return kp, out_dim


def _resident(a):
    """Full-array block, same block index every grid step -> VMEM-resident weights."""
    return pl.BlockSpec(a.shape, lambda i: (0,) * a.ndim)


def rff_net_predict(x, params, *, tb=DEFAULT_TB, out_dtype=jnp.bfloat16, bf16_phi=False):
    """Pallas-fused equivalent of rff_net.predict(x).

    out_dtype defaults to bf16 to halve the (lane-padded) HBM writeback; pass
    jnp.float32 for a full-precision output.  Set bf16_phi=True only on v6e/v7x."""
    (w1, b1, w2, b2, w3p, b3p), out_dim = prepare_kernel_params(params)
    B, d = x.shape
    W = w1.shape[1]
    out_pad = w3p.shape[1]

    tb, nb = _choose_tile(B, tb)
    B_pad = tb * nb
    x_bf16 = x.astype(jnp.bfloat16)
    if B_pad != B:
        x_bf16 = jnp.pad(x_bf16, ((0, B_pad - B), (0, 0)))

    out_bytes = jnp.dtype(out_dtype).itemsize
    flops = 2 * B_pad * (d * W + W * W + W * out_pad)
    transcendentals = 2 * B_pad * W
    bytes_accessed = (x_bf16.size * 2
                      + (w1.size + w2.size + w3p.size) * 2
                      + (b1.size + b2.size + b3p.size) * 4
                      + B_pad * out_pad * out_bytes)

    def kernel(x_ref, w1_ref, b1_ref, w2_ref, b2_ref, w3_ref, b3_ref, out_ref):
        y_hat = _mlp_tile(x_ref[...], w1_ref[...], b1_ref[...], w2_ref[...],
                          b2_ref[...], w3_ref[...], b3_ref[...], bf16_phi)
        out_ref[...] = y_hat.astype(out_ref.dtype)

    y_pad = pl.pallas_call(
        kernel,
        out_shape=jax.ShapeDtypeStruct((B_pad, out_pad), out_dtype),
        grid_spec=pltpu.PrefetchScalarGridSpec(
            num_scalar_prefetch=0,
            grid=(nb,),
            in_specs=[
                pl.BlockSpec((tb, d), lambda i: (i, 0)),   # x: tiled over batch
                _resident(w1), _resident(b1),
                _resident(w2), _resident(b2),
                _resident(w3p), _resident(b3p),
            ],
            out_specs=pl.BlockSpec((tb, out_pad), lambda i: (i, 0)),
        ),
        compiler_params=pltpu.CompilerParams(
            dimension_semantics=("parallel",),             # megacore-shard batch on v7x
            vmem_limit_bytes=_vmem_limit_bytes(tb, d, W, out_pad, out_bytes),
        ),
        cost_estimate=pl.CostEstimate(
            flops=flops, transcendentals=transcendentals, bytes_accessed=bytes_accessed),
    )(x_bf16, w1, b1, w2, b2, w3p, b3p)

    # Slice away batch padding and the lane padding of the output.
    return y_pad[:B, :out_dim]


def rff_net_forward(x, y, params, *, tb=DEFAULT_TB, bf16_phi=False):
    """Equivalent of rff_net.forward(x, y, i) with an MSE loss (regression variant).

    The MSE reduction is fused into the kernel: each grid step emits one (8,128)
    partial-sum tile, so the padded prediction array never hits HBM."""
    (w1, b1, w2, b2, w3p, b3p), out_dim = prepare_kernel_params(params)
    B, d = x.shape
    W = w1.shape[1]
    out_pad = w3p.shape[1]

    tb, nb = _choose_tile(B, tb)
    B_pad = tb * nb
    x_bf16 = x.astype(jnp.bfloat16)
    y_f32 = y.astype(jnp.float32)
    if B_pad != B:
        x_bf16 = jnp.pad(x_bf16, ((0, B_pad - B), (0, 0)))
        y_f32 = jnp.pad(y_f32, ((0, B_pad - B), (0, 0)))

    flops = 2 * B_pad * (d * W + W * W + W * out_pad) + 3 * B_pad * out_dim
    transcendentals = 2 * B_pad * W
    bytes_accessed = (x_bf16.size * 2 + y_f32.size * 4
                      + (w1.size + w2.size + w3p.size) * 2
                      + (b1.size + b2.size + b3p.size) * 4
                      + nb * 8 * LANE * 4)

    def kernel(x_ref, y_ref, w1_ref, b1_ref, w2_ref, b2_ref, w3_ref, b3_ref, out_ref):
        y_hat = _mlp_tile(x_ref[...], w1_ref[...], b1_ref[...], w2_ref[...],
                          b2_ref[...], w3_ref[...], b3_ref[...], bf16_phi)
        err = y_hat[:, :out_dim] - y_ref[...]
        # Mask out zero-padded batch rows (tile-local rows with global index >= B).
        row = jax.lax.broadcasted_iota(jnp.int32, (tb, 1), 0) + pl.program_id(0) * tb
        err = jnp.where(row < B, err, 0.0)
        partial = jnp.sum(err * err)
        sub = jax.lax.broadcasted_iota(jnp.int32, (8, LANE), 0)
        lane = jax.lax.broadcasted_iota(jnp.int32, (8, LANE), 1)
        out_ref[...] = jnp.where((sub == 0) & (lane == 0), partial, 0.0)[None]

    partials = pl.pallas_call(
        kernel,
        out_shape=jax.ShapeDtypeStruct((nb, 8, LANE), jnp.float32),
        grid_spec=pltpu.PrefetchScalarGridSpec(
            num_scalar_prefetch=0,
            grid=(nb,),
            in_specs=[
                pl.BlockSpec((tb, d), lambda i: (i, 0)),        # x: tiled over batch
                pl.BlockSpec((tb, out_dim), lambda i: (i, 0)),  # y: tiled, un-padded lanes
                _resident(w1), _resident(b1),
                _resident(w2), _resident(b2),
                _resident(w3p), _resident(b3p),
            ],
            out_specs=pl.BlockSpec((1, 8, LANE), lambda i: (i, 0, 0)),
        ),
        compiler_params=pltpu.CompilerParams(
            dimension_semantics=("parallel",),
            vmem_limit_bytes=_vmem_limit_bytes(tb, d, W, out_pad, 4),
        ),
        cost_estimate=pl.CostEstimate(
            flops=flops, transcendentals=transcendentals, bytes_accessed=bytes_accessed),
    )(x_bf16, y_f32, w1, b1, w2, b2, w3p, b3p)

    return jnp.sum(partials) / (B * out_dim)


def init_params(key, d, rff_width, out_dim):
    """Deterministic parameter init (shapes match the torch module's Linears).

    Weights are stored as (in_features, out_features), i.e. the transpose of
    torch.nn.Linear.weight, so the kernel computes x @ W + b directly."""
    k1, k2, k3 = jax.random.split(key, 3)

    def linear(k, fan_in, fan_out):
        kw, kb = jax.random.split(k)
        bound = 1.0 / jnp.sqrt(fan_in)  # torch.nn.Linear default init range
        w = jax.random.uniform(kw, (fan_in, fan_out), jnp.float32, -bound, bound)
        b = jax.random.uniform(kb, (1, fan_out), jnp.float32, -bound, bound)
        return w, b

    w1, b1 = linear(k1, d, rff_width)
    w2, b2 = linear(k2, rff_width, rff_width)
    w3, b3 = linear(k3, rff_width, out_dim)
    return (w1, b1, w2, b2, w3, b3)


def _reference_predict_f32(x, params):
    """Plain-JAX f32 reference (canonical formulation, no folding/casting)."""
    w1, b1, w2, b2, w3, b3 = params
    rff_width = w1.shape[1]
    scale = jnp.sqrt(2.0 / rff_width)
    h = scale * jnp.cos(x @ w1 + b1)
    h = scale * jnp.cos(h @ w2 + b2)
    return h @ w3 + b3


def _reference_predict_bf16(x, params):
    """Plain-JAX reference with the same bf16-operand / f32-accumulate semantics."""
    (w1, b1, w2, b2, w3p, b3p), out_dim = prepare_kernel_params(params)
    xb = x.astype(jnp.bfloat16)
    h1 = jnp.dot(xb, w1, preferred_element_type=jnp.float32) + b1
    p1 = jnp.cos(h1)
    h2 = jnp.dot(p1.astype(jnp.bfloat16), w2, preferred_element_type=jnp.float32) + b2
    p2 = jnp.cos(h2)
    y = jnp.dot(p2.astype(jnp.bfloat16), w3p, preferred_element_type=jnp.float32) + b3p
    return y[:, :out_dim]


if __name__ == "__main__":
    # db = {'d': 32, 'RFF_Width': 128, 'out_dim': 8}; B=250 exercises row padding/masking.
    B, d, rff_width, out_dim = 250, 32, 128, 8

    key = jax.random.PRNGKey(0)
    kx, ky, kp = jax.random.split(key, 3)

    x = jax.random.normal(kx, (B, d), jnp.float32)
    y = jax.random.normal(ky, (B, out_dim), jnp.float32)
    params = init_params(kp, d, rff_width, out_dim)

    y_ref_bf16 = _reference_predict_bf16(x, params)
    y_ref_f32 = _reference_predict_f32(x, params)

    # Default path: bf16 output (halved writeback), single tile (nb=1).
    y_hat = jax.block_until_ready(rff_net_predict(x, params))
    assert y_hat.shape == (B, out_dim)
    assert jnp.allclose(y_hat.astype(jnp.float32), y_ref_bf16, atol=2e-3, rtol=1e-2), \
        "bf16-output mismatch vs bf16 reference"
    assert jnp.allclose(y_hat.astype(jnp.float32), y_ref_f32, atol=3e-2, rtol=3e-2), \
        "bf16-output mismatch vs f32 reference"

    # f32 output with a small tile to exercise the multi-step (even) batch grid.
    y_hat_f32 = jax.block_until_ready(rff_net_predict(x, params, tb=64, out_dtype=jnp.float32))
    assert jnp.allclose(y_hat_f32, y_ref_bf16, atol=2e-3, rtol=2e-3), \
        "f32-output mismatch vs bf16 reference"

    # Fused-MSE forward (no big prediction writeback).
    loss = jax.block_until_ready(rff_net_forward(x, y, params))
    loss_small_tile = jax.block_until_ready(rff_net_forward(x, y, params, tb=64))
    loss_ref = jnp.mean((y_ref_bf16 - y) ** 2)
    assert jnp.isfinite(loss), "non-finite loss"
    assert jnp.allclose(loss, loss_ref, atol=1e-3, rtol=1e-3), "fused MSE mismatch"
    assert jnp.allclose(loss_small_tile, loss_ref, atol=1e-3, rtol=1e-3), \
        "fused MSE mismatch (tiled grid)"

    print("KERNEL_OK")
</pallas_src>

<mosaic_0001>
module attributes {stable_mosaic.version = 11 : i64} {
  func.func @kernel(%arg0: i32, %arg1: memref<256x32xbf16, #tpu.memory_space<vmem>>, %arg2: memref<32x128xbf16, #tpu.memory_space<vmem>>, %arg3: memref<1x128xf32, #tpu.memory_space<vmem>>, %arg4: memref<128x128xbf16, #tpu.memory_space<vmem>>, %arg5: memref<1x128xf32, #tpu.memory_space<vmem>>, %arg6: memref<128x128xbf16, #tpu.memory_space<vmem>>, %arg7: memref<1x128xf32, #tpu.memory_space<vmem>>, %arg8: memref<256x128xbf16, #tpu.memory_space<vmem>>) attributes {dimension_semantics = [#tpu.dimension_semantics<parallel>], iteration_bounds = array<i64: 1>, scalar_prefetch = 0 : i64, scratch_operands = 0 : i64, tpu.core_type = #tpu.core_type<tc>, window_params = [{transform_indices = @transform_0, window_bounds = array<i64: 256, 32>}, {pipeline_mode = #tpu.pipeline_mode<synchronous>, transform_indices = @transform_1, window_bounds = array<i64: 32, 128>}, {pipeline_mode = #tpu.pipeline_mode<synchronous>, transform_indices = @transform_2, window_bounds = array<i64: 1, 128>}, {pipeline_mode = #tpu.pipeline_mode<synchronous>, transform_indices = @transform_3, window_bounds = array<i64: 128, 128>}, {pipeline_mode = #tpu.pipeline_mode<synchronous>, transform_indices = @transform_4, window_bounds = array<i64: 1, 128>}, {pipeline_mode = #tpu.pipeline_mode<synchronous>, transform_indices = @transform_5, window_bounds = array<i64: 128, 128>}, {pipeline_mode = #tpu.pipeline_mode<synchronous>, transform_indices = @transform_6, window_bounds = array<i64: 1, 128>}, {transform_indices = @transform_7, window_bounds = array<i64: 256, 128>}]} {
    %c0 = arith.constant 0 : index
    %c0_0 = arith.constant 0 : index
    %0 = vector.load %arg1[%c0, %c0_0] : memref<256x32xbf16, #tpu.memory_space<vmem>>, vector<256x32xbf16>
    %c0_1 = arith.constant 0 : index
    %c0_2 = arith.constant 0 : index
    %1 = vector.load %arg2[%c0_1, %c0_2] : memref<32x128xbf16, #tpu.memory_space<vmem>>, vector<32x128xbf16>
    %c0_3 = arith.constant 0 : index
    %c0_4 = arith.constant 0 : index
    %2 = vector.load %arg3[%c0_3, %c0_4] : memref<1x128xf32, #tpu.memory_space<vmem>>, vector<1x128xf32>
    %c0_5 = arith.constant 0 : index
    %c0_6 = arith.constant 0 : index
    %3 = vector.load %arg4[%c0_5, %c0_6] : memref<128x128xbf16, #tpu.memory_space<vmem>>, vector<128x128xbf16>
    %c0_7 = arith.constant 0 : index
    %c0_8 = arith.constant 0 : index
    %4 = vector.load %arg5[%c0_7, %c0_8] : memref<1x128xf32, #tpu.memory_space<vmem>>, vector<1x128xf32>
    %c0_9 = arith.constant 0 : index
    %c0_10 = arith.constant 0 : index
    %5 = vector.load %arg6[%c0_9, %c0_10] : memref<128x128xbf16, #tpu.memory_space<vmem>>, vector<128x128xbf16>
    %c0_11 = arith.constant 0 : index
    %c0_12 = arith.constant 0 : index
    %6 = vector.load %arg7[%c0_11, %c0_12] : memref<1x128xf32, #tpu.memory_space<vmem>>, vector<1x128xf32>
    %cst = arith.constant dense<0.000000e+00> : vector<256x128xf32>
    %7 = tpu.matmul %0, %1, %cst {dimension_numbers = #tpu.dot_dimension_numbers<[1], [0], [0], [1], [0, 0, 1, 1], [], []>} : vector<256x32xbf16>, vector<32x128xbf16>, vector<256x128xf32> -> vector<256x128xf32>
    %8 = vector.broadcast %2 : vector<1x128xf32> to vector<256x128xf32>
    %9 = arith.addf %7, %8 : vector<256x128xf32>
    %10 = math.cos %9 : vector<256x128xf32>
    %11 = arith.truncf %10 : vector<256x128xf32> to vector<256x128xbf16>
    %cst_13 = arith.constant dense<0.000000e+00> : vector<256x128xf32>
    %12 = tpu.matmul %11, %3, %cst_13 {dimension_numbers = #tpu.dot_dimension_numbers<[1], [0], [0], [1], [0, 0, 1, 1], [], []>} : vector<256x128xbf16>, vector<128x128xbf16>, vector<256x128xf32> -> vector<256x128xf32>
    %13 = vector.broadcast %4 : vector<1x128xf32> to vector<256x128xf32>
    %14 = arith.addf %12, %13 : vector<256x128xf32>
    %15 = math.cos %14 : vector<256x128xf32>
    %16 = arith.truncf %15 : vector<256x128xf32> to vector<256x128xbf16>
    %cst_14 = arith.constant dense<0.000000e+00> : vector<256x128xf32>
    %17 = tpu.matmul %16, %5, %cst_14 {dimension_numbers = #tpu.dot_dimension_numbers<[1], [0], [0], [1], [0, 0, 1, 1], [], []>} : vector<256x128xbf16>, vector<128x128xbf16>, vector<256x128xf32> -> vector<256x128xf32>
    %18 = vector.broadcast %6 : vector<1x128xf32> to vector<256x128xf32>
    %19 = arith.addf %17, %18 : vector<256x128xf32>
    %20 = arith.truncf %19 : vector<256x128xf32> to vector<256x128xbf16>
    %c0_15 = arith.constant 0 : index
    %c0_16 = arith.constant 0 : index
    %21 = vector.load %arg8[%c0_15, %c0_16] : memref<256x128xbf16, #tpu.memory_space<vmem>>, vector<256x128xbf16>
    tpu.vector_store %arg8[%c0_15, %c0_16], %20 {strides = array<i32>} : memref<256x128xbf16, #tpu.memory_space<vmem>>, vector<256x128xbf16>,
    return
  }
  func.func @transform_0(%arg0: i32) -> (i32, i32) {
    %c0_i32 = arith.constant 0 : i32
    %c0_i32_0 = arith.constant 0 : i32
    return %arg0, %c0_i32 : i32, i32
  }
  func.func @transform_1(%arg0: i32) -> (i32, i32) {
    %c0_i32 = arith.constant 0 : i32
    %c0_i32_0 = arith.constant 0 : i32
    %c0_i32_1 = arith.constant 0 : i32
    return %c0_i32, %c0_i32_0 : i32, i32
  }
  func.func @transform_2(%arg0: i32) -> (i32, i32) {
    %c0_i32 = arith.constant 0 : i32
    %c0_i32_0 = arith.constant 0 : i32
    %c0_i32_1 = arith.constant 0 : i32
    return %c0_i32, %c0_i32_0 : i32, i32
  }
  func.func @transform_3(%arg0: i32) -> (i32, i32) {
    %c0_i32 = arith.constant 0 : i32
    %c0_i32_0 = arith.constant 0 : i32
    %c0_i32_1 = arith.constant 0 : i32
    return %c0_i32, %c0_i32_0 : i32, i32
  }
  func.func @transform_4(%arg0: i32) -> (i32, i32) {
    %c0_i32 = arith.constant 0 : i32
    %c0_i32_0 = arith.constant 0 : i32
    %c0_i32_1 = arith.constant 0 : i32
    return %c0_i32, %c0_i32_0 : i32, i32
  }
  func.func @transform_5(%arg0: i32) -> (i32, i32) {
    %c0_i32 = arith.constant 0 : i32
    %c0_i32_0 = arith.constant 0 : i32
    %c0_i32_1 = arith.constant 0 : i32
    return %c0_i32, %c0_i32_0 : i32, i32
  }
  func.func @transform_6(%arg0: i32) -> (i32, i32) {
    %c0_i32 = arith.constant 0 : i32
    %c0_i32_0 = arith.constant 0 : i32
    %c0_i32_1 = arith.constant 0 : i32
    return %c0_i32, %c0_i32_0 : i32, i32
  }
  func.func @transform_7(%arg0: i32) -> (i32, i32) {
    %c0_i32 = arith.constant 0 : i32
    %c0_i32_0 = arith.constant 0 : i32
    return %arg0, %c0_i32 : i32, i32
  }
}

</mosaic_0001>

<llo_original>
// kernel: tpu_custom_call.1
$region0: #{tpu_custom_call.1}
  #allocation0 [shape = 'u32[]', space=smem, size = 0x4, offset = 0x4, fixed_abs, tag = 'smem constant byte address 0x4 - core index']
  #allocation1 [shape = 'u32[144,128]{1,0:T(1,128)}', space=vmem, size = 0x12000, scoped, tag = 'internal scratch']
  %s0 = inlined_call_operand.vmem [shape: bf16[256,32], index: 0, kind: input, shape index: {}]
  %s1 = inlined_call_operand.vmem [shape: bf16[32,128], index: 1, kind: input, shape index: {}]
  %s2 = inlined_call_operand.vmem [shape: f32[1,128], index: 2, kind: input, shape index: {}]
  %s3 = inlined_call_operand.vmem [shape: bf16[128,128], index: 3, kind: input, shape index: {}]
  %s4 = inlined_call_operand.vmem [shape: f32[1,128], index: 4, kind: input, shape index: {}]
  %s5 = inlined_call_operand.vmem [shape: bf16[128,128], index: 5, kind: input, shape index: {}]
  %s6 = inlined_call_operand.vmem [shape: f32[1,128], index: 6, kind: input, shape index: {}]
  %s7 = inlined_call_operand.hbm [shape: bf16[256,128], index: 7, kind: output, shape index: {}]
  %s8 = sld [smem:[#allocation0]]
  $region38: #{tpu_custom_call.1} parent=0
    _
  %s10 = ssub.s32 1, %s8
  %s11 = scalar_select 0, %s10, %s8
  $region1: #{tpu_custom_call.1} parent=0
    #allocation2 [shape = 'u8[65536]{0}', space=vmem, size = 0x10000, scoped, tag = 'output window, operand 0, single buffered']
    #allocation3 [shape = 's32[1]{0}', space=sflag, size = 0x4, scoped, tag = 'scoped memory for tpu_custom_call.1']
    %12 = vsyncpa [#allocation3], 0
    // Predicated region
    $region2: #{tpu_custom_call.1} parent=1 // pred_check
      _
    $region3: #{tpu_custom_call.1} parent=1 // pred_check_branch
      %14 = sbr.rel (0) target = $region5
    $region4: #{tpu_custom_call.1} parent=1 // pred_region
      _
    $region5: #{tpu_custom_call.1} parent=1 // pred_fallthru
      _
    // Predicated region
    $region6: #{tpu_custom_call.1} parent=1 // pred_check
      _
    $region7: #{tpu_custom_call.1} parent=1 // pred_check_branch
      %16 = sbr.rel (0) target = $region9
    $region8: #{tpu_custom_call.1} parent=1 // pred_region
      _
    $region9: #{tpu_custom_call.1} parent=1 // pred_fallthru
      _
    // Predicated region
    $region10: #{tpu_custom_call.1} parent=1 // pred_check
      _
    $region11: #{tpu_custom_call.1} parent=1 // pred_check_branch
      %18 = sbr.rel (0) target = $region13
    $region12: #{tpu_custom_call.1} parent=1 // pred_region
      _
    $region13: #{tpu_custom_call.1} parent=1 // pred_fallthru
      _
    // Predicated region
    $region14: #{tpu_custom_call.1} parent=1 // pred_check
      _
    $region15: #{tpu_custom_call.1} parent=1 // pred_check_branch
      %20 = sbr.rel (0) target = $region17
    $region16: #{tpu_custom_call.1} parent=1 // pred_region
      _
    $region17: #{tpu_custom_call.1} parent=1 // pred_fallthru
      _
    // Predicated region
    $region18: #{tpu_custom_call.1} parent=1 // pred_check
      _
    $region19: #{tpu_custom_call.1} parent=1 // pred_check_branch
      %22 = sbr.rel (0) target = $region21
    $region20: #{tpu_custom_call.1} parent=1 // pred_region
      _
    $region21: #{tpu_custom_call.1} parent=1 // pred_fallthru
      _
    // Predicated region
    $region22: #{tpu_custom_call.1} parent=1 // pred_check
      _
    $region23: #{tpu_custom_call.1} parent=1 // pred_check_branch
      %24 = sbr.rel (0) target = $region25
    $region24: #{tpu_custom_call.1} parent=1 // pred_region
      _
    $region25: #{tpu_custom_call.1} parent=1 // pred_fallthru
      _
    // Predicated region
    $region26: #{tpu_custom_call.1} parent=1 // pred_check
      _
    $region27: #{tpu_custom_call.1} parent=1 // pred_check_branch
      %26 = sbr.rel (0) target = $region29
    $region28: #{tpu_custom_call.1} parent=1 // pred_region
      _
    $region29: #{tpu_custom_call.1} parent=1 // pred_fallthru
      _
    %v28 = vld [vmem:[%s0] sm:$0xf]
    %v29 = vld [vmem:[%s0 + $0x4] sm:$0xf]
    %v30 = vld [vmem:[%s0 + $0x8] sm:$0xf]
    %v31 = vld [vmem:[%s0 + $0xc] sm:$0xf]
    %v32 = vld [vmem:[%s0 + $0x10] sm:$0xf]
    %v33 = vld [vmem:[%s0 + $0x14] sm:$0xf]
    %v34 = vld [vmem:[%s0 + $0x18] sm:$0xf]
    %v35 = vld [vmem:[%s0 + $0x1c] sm:$0xf]
    %v36 = vld [vmem:[%s0 + $0x20] sm:$0xf]
    %v37 = vld [vmem:[%s0 + $0x24] sm:$0xf]
    %v38 = vld [vmem:[%s0 + $0x28] sm:$0xf]
    %v39 = vld [vmem:[%s0 + $0x2c] sm:$0xf]
    %v40 = vld [vmem:[%s0 + $0x30] sm:$0xf]
    %v41 = vld [vmem:[%s0 + $0x34] sm:$0xf]
    %v42 = vld [vmem:[%s0 + $0x38] sm:$0xf]
    %v43 = vld [vmem:[%s0 + $0x3c] sm:$0xf]
    %v44 = vld [vmem:[%s0 + $0x40] sm:$0xf]
    %v45 = vld [vmem:[%s0 + $0x44] sm:$0xf]
    %v46 = vld [vmem:[%s0 + $0x48] sm:$0xf]
    %v47 = vld [vmem:[%s0 + $0x4c] sm:$0xf]
    %v48 = vld [vmem:[%s0 + $0x50] sm:$0xf]
    %v49 = vld [vmem:[%s0 + $0x54] sm:$0xf]
    %v50 = vld [vmem:[%s0 + $0x58] sm:$0xf]
    %v51 = vld [vmem:[%s0 + $0x5c] sm:$0xf]
    %v52 = vld [vmem:[%s0 + $0x60] sm:$0xf]
    %v53 = vld [vmem:[%s0 + $0x64] sm:$0xf]
    %v54 = vld [vmem:[%s0 + $0x68] sm:$0xf]
    %v55 = vld [vmem:[%s0 + $0x6c] sm:$0xf]
    %v56 = vld [vmem:[%s0 + $0x70] sm:$0xf]
    %v57 = vld [vmem:[%s0 + $0x74] sm:$0xf]
    %v58 = vld [vmem:[%s0 + $0x78] sm:$0xf]
    %v59 = vld [vmem:[%s0 + $0x7c] sm:$0xf]
    %v60 = vld [vmem:[%s1] sm:$0xf]
    %v61 = vld [vmem:[%s1 + $0x4] sm:$0xf]
    %v62 = vld [vmem:[%s1 + $0x8] sm:$0xf]
    %v63 = vld [vmem:[%s1 + $0xc] sm:$0xf]
    %v64 = vld [vmem:[%s2] sm:$0x1]
    %v65 = vld [vmem:[%s3] sm:$0xf]
    %v66 = vld [vmem:[%s3 + $0x4] sm:$0xf]
    %v67 = vld [vmem:[%s3 + $0x8] sm:$0xf]
    %v68 = vld [vmem:[%s3 + $0xc] sm:$0xf]
    %v69 = vld [vmem:[%s3 + $0x10] sm:$0xf]
    %v70 = vld [vmem:[%s3 + $0x14] sm:$0xf]
    %v71 = vld [vmem:[%s3 + $0x18] sm:$0xf]
    %v72 = vld [vmem:[%s3 + $0x1c] sm:$0xf]
    %v73 = vld [vmem:[%s3 + $0x20] sm:$0xf]
    %v74 = vld [vmem:[%s3 + $0x24] sm:$0xf]
    %v75 = vld [vmem:[%s3 + $0x28] sm:$0xf]
    %v76 = vld [vmem:[%s3 + $0x2c] sm:$0xf]
    %v77 = vld [vmem:[%s3 + $0x30] sm:$0xf]
    %v78 = vld [vmem:[%s3 + $0x34] sm:$0xf]
    %v79 = vld [vmem:[%s3 + $0x38] sm:$0xf]
    %v80 = vld [vmem:[%s3 + $0x3c] sm:$0xf]
    %v81 = vld [vmem:[%s4] sm:$0x1]
    %v82 = vld [vmem:[%s5] sm:$0xf]
    %v83 = vld [vmem:[%s5 + $0x4] sm:$0xf]
    %v84 = vld [vmem:[%s5 + $0x8] sm:$0xf]
    %v85 = vld [vmem:[%s5 + $0xc] sm:$0xf]
    %v86 = vld [vmem:[%s5 + $0x10] sm:$0xf]
    %v87 = vld [vmem:[%s5 + $0x14] sm:$0xf]
    %v88 = vld [vmem:[%s5 + $0x18] sm:$0xf]
    %v89 = vld [vmem:[%s5 + $0x1c] sm:$0xf]
    %v90 = vld [vmem:[%s5 + $0x20] sm:$0xf]
    %v91 = vld [vmem:[%s5 + $0x24] sm:$0xf]
    %v92 = vld [vmem:[%s5 + $0x28] sm:$0xf]
    %v93 = vld [vmem:[%s5 + $0x2c] sm:$0xf]
    %v94 = vld [vmem:[%s5 + $0x30] sm:$0xf]
    %v95 = vld [vmem:[%s5 + $0x34] sm:$0xf]
    %v96 = vld [vmem:[%s5 + $0x38] sm:$0xf]
    %v97 = vld [vmem:[%s5 + $0x3c] sm:$0xf]
    %v98 = vld [vmem:[%s6] sm:$0x1]
    %v100 = vlaneseq
    %v101 = vshrl.u32 %v100, 7
    %v102 = vsub.s32 0, %v101
    %v103 = vrot.slane %v64, %v102
    %v137 = vunpack.c.l.b16 %v28
    %v138 = vunpack.c.l.b16 %v29
    %v139 = vunpack.c.l.b16 %v30
    %v140 = vunpack.c.l.b16 %v31
    %v141 = vunpack.c.l.b16 %v32
    %v142 = vunpack.c.l.b16 %v33
    %v143 = vunpack.c.l.b16 %v34
    %v144 = vunpack.c.l.b16 %v35
    %v145 = vunpack.c.l.b16 %v36
    %v146 = vunpack.c.l.b16 %v37
    %v147 = vunpack.c.l.b16 %v38
    %v148 = vunpack.c.l.b16 %v39
    %v149 = vunpack.c.l.b16 %v40
    %v150 = vunpack.c.l.b16 %v41
    %v151 = vunpack.c.l.b16 %v42
    %v152 = vunpack.c.l.b16 %v43
    %v153 = vunpack.c.l.b16 %v44
    %v154 = vunpack.c.l.b16 %v45
    %v155 = vunpack.c.l.b16 %v46
    %v156 = vunpack.c.l.b16 %v47
    %v157 = vunpack.c.l.b16 %v48
    %v158 = vunpack.c.l.b16 %v49
    %v159 = vunpack.c.l.b16 %v50
    %v160 = vunpack.c.l.b16 %v51
    %v161 = vunpack.c.l.b16 %v52
    %v162 = vunpack.c.l.b16 %v53
    %v163 = vunpack.c.l.b16 %v54
    %v164 = vunpack.c.l.b16 %v55
    %v165 = vunpack.c.l.b16 %v56
    %v166 = vunpack.c.l.b16 %v57
    %v167 = vunpack.c.l.b16 %v58
    %v168 = vunpack.c.l.b16 %v59
    %v169 = vpack.c.b16 %v138, %v137
    %v170 = vpack.c.b16 %v140, %v139
    %v171 = vpack.c.b16 %v142, %v141
    %v172 = vpack.c.b16 %v144, %v143
    %v173 = vpack.c.b16 %v146, %v145
    %v174 = vpack.c.b16 %v148, %v147
    %v175 = vpack.c.b16 %v150, %v149
    %v176 = vpack.c.b16 %v152, %v151
    %v177 = vpack.c.b16 %v154, %v153
    %v178 = vpack.c.b16 %v156, %v155
    %v179 = vpack.c.b16 %v158, %v157
    %v180 = vpack.c.b16 %v160, %v159
    %v181 = vpack.c.b16 %v162, %v161
    %v182 = vpack.c.b16 %v164, %v163
    %v183 = vpack.c.b16 %v166, %v165
    %v184 = vpack.c.b16 %v168, %v167
    %v189 = vunpack.c.l.b16 %v60
    %v190 = vunpack.c.l.b16 %v61
    %v191 = vunpack.c.l.b16 %v62
    %v192 = vunpack.c.l.b16 %v63
    %v193 = vpack.c.b16 %v190, %v189
    %v194 = vpack.c.b16 %v192, %v191
    %vm197 = vcmask 261120
    %v199 = vsel %vm197, %v169, 0
    %v202 = vsel %vm197, %v170, 0
    %v205 = vsel %vm197, %v171, 0
    %v208 = vsel %vm197, %v172, 0
    %v211 = vsel %vm197, %v173, 0
    %v214 = vsel %vm197, %v174, 0
    %v217 = vsel %vm197, %v175, 0
    %v220 = vsel %vm197, %v176, 0
    %v223 = vsel %vm197, %v177, 0
    %v226 = vsel %vm197, %v178, 0
    %v229 = vsel %vm197, %v179, 0
    %v232 = vsel %vm197, %v180, 0
    %v235 = vsel %vm197, %v181, 0
    %v238 = vsel %vm197, %v182, 0
    %v241 = vsel %vm197, %v183, 0
    %v244 = vsel %vm197, %v184, 0
    %246 = vmatprep.subr.bf16.mxu0 0
    %247 = vmatpush1.bf16.msra.mxu0 %v193
    %248 = vmatprep.subr.bf16.mxu0 0
    %249 = vmatpush1.bf16.msra.mxu0 %v194
    %250 = vmatprep.subr.bf16.mxu0 0
    %251 = vmatpush1.bf16.msra.mxu0 0
    %252 = vmatprep.subr.bf16.mxu0 0
    %253 = vmatpush1.bf16.msra.mxu0 0
    %254 = vmatprep.subr.bf16.mxu0 0
    %255 = vmatpush1.bf16.msra.mxu0 0
    %256 = vmatprep.subr.bf16.mxu0 0
    %257 = vmatpush1.bf16.msra.mxu0 0
    %258 = vmatprep.subr.bf16.mxu0 0
    %259 = vmatpush1.bf16.msra.mxu0 0
    %260 = vmatprep.subr.bf16.mxu0 0
    %261 = vmatpush1.bf16.msra.mxu0 0
    %262 = vmatprep.subr.bf16.mxu0 0
    %263 = vmatpush1.bf16.msra.mxu0 0
    %264 = vmatprep.subr.bf16.mxu0 0
    %265 = vmatpush1.bf16.msra.mxu0 0
    %266 = vmatprep.subr.bf16.mxu0 0
    %267 = vmatpush1.bf16.msra.mxu0 0
    %268 = vmatprep.subr.bf16.mxu0 0
    %269 = vmatpush1.bf16.msra.mxu0 0
    %270 = vmatprep.subr.bf16.mxu0 0
    %271 = vmatpush1.bf16.msra.mxu0 0
    %272 = vmatprep.subr.bf16.mxu0 0
    %273 = vmatpush1.bf16.msra.mxu0 0
    %274 = vmatprep.subr.bf16.mxu0 0
    %275 = vmatpush1.bf16.msra.mxu0 0
    %276 = vmatprep.subr.bf16.mxu0 0
    %277 = vmatpush1.bf16.msra.mxu0 0
    %278 = vmatprep.mubr.bf16.mxu0 0
    %279 = vmatmul.mubr.bf16.gmra.mrb[0].mxu0 %v199
    %v280 = vpop.f32.mrb[0].mxu0
    %v281 = vadd.f32 %v103, %v280
    %v282 = vpop.f32.mrb[0].mxu0
    %v283 = vpop.f32.mrb[0].mxu0
    %v284 = vadd.f32 %v103, %v283
    %v285 = vpop.f32.mrb[0].mxu0
    %286 = vmatprep.mubr.bf16.mxu0 0
    %287 = vmatmul.mubr.bf16.gmra.mrb[0].mxu0 %v202
    %v288 = vpop.f32.mrb[0].mxu0
    %v289 = vadd.f32 %v103, %v288
    %v290 = vpop.f32.mrb[0].mxu0
    %v291 = vpop.f32.mrb[0].mxu0
    %v292 = vadd.f32 %v103, %v291
    %v293 = vpop.f32.mrb[0].mxu0
    %294 = vmatprep.mubr.bf16.mxu0 0
    %295 = vmatmul.mubr.bf16.gmra.mrb[0].mxu0 %v205
    %v296 = vpop.f32.mrb[0].mxu0
    %v297 = vadd.f32 %v103, %v296
    %v298 = vpop.f32.mrb[0].mxu0
    %v299 = vpop.f32.mrb[0].mxu0
    %v300 = vadd.f32 %v103, %v299
    %v301 = vpop.f32.mrb[0].mxu0
    %302 = vmatprep.mubr.bf16.mxu0 0
    %303 = vmatmul.mubr.bf16.gmra.mrb[0].mxu0 %v208
    %v304 = vpop.f32.mrb[0].mxu0
    %v305 = vadd.f32 %v103, %v304
    %v306 = vpop.f32.mrb[0].mxu0
    %v307 = vpop.f32.mrb[0].mxu0
    %v308 = vadd.f32 %v103, %v307
    %v309 = vpop.f32.mrb[0].mxu0
    %310 = vmatprep.mubr.bf16.mxu0 0
    %311 = vmatmul.mubr.bf16.gmra.mrb[0].mxu0 %v211
    %v312 = vpop.f32.mrb[0].mxu0
    %v313 = vadd.f32 %v103, %v312
    %v314 = vpop.f32.mrb[0].mxu0
    %v315 = vpop.f32.mrb[0].mxu0
    %v316 = vadd.f32 %v103, %v315
    %v317 = vpop.f32.mrb[0].mxu0
    %318 = vmatprep.mubr.bf16.mxu0 0
    %319 = vmatmul.mubr.bf16.gmra.mrb[0].mxu0 %v214
    %v320 = vpop.f32.mrb[0].mxu0
    %v321 = vadd.f32 %v103, %v320
    %v322 = vpop.f32.mrb[0].mxu0
    %v323 = vpop.f32.mrb[0].mxu0
    %v324 = vadd.f32 %v103, %v323
    %v325 = vpop.f32.mrb[0].mxu0
    %326 = vmatprep.mubr.bf16.mxu0 0
    %327 = vmatmul.mubr.bf16.gmra.mrb[0].mxu0 %v217
    %v328 = vpop.f32.mrb[0].mxu0
    %v329 = vadd.f32 %v103, %v328
    %v330 = vpop.f32.mrb[0].mxu0
    %v331 = vpop.f32.mrb[0].mxu0
    %v332 = vadd.f32 %v103, %v331
    %v333 = vpop.f32.mrb[0].mxu0
    %334 = vmatprep.mubr.bf16.mxu0 0
    %335 = vmatmul.mubr.bf16.gmra.mrb[0].mxu0 %v220
    %v336 = vpop.f32.mrb[0].mxu0
    %v337 = vadd.f32 %v103, %v336
    %v338 = vpop.f32.mrb[0].mxu0
    %v339 = vpop.f32.mrb[0].mxu0
    %v340 = vadd.f32 %v103, %v339
    %v341 = vpop.f32.mrb[0].mxu0
    %342 = vmatprep.mubr.bf16.mxu0 0
    %343 = vmatmul.mubr.bf16.gmra.mrb[0].mxu0 %v223
    %v344 = vpop.f32.mrb[0].mxu0
    %v345 = vadd.f32 %v103, %v344
    %v346 = vpop.f32.mrb[0].mxu0
    %v347 = vpop.f32.mrb[0].mxu0
    %v348 = vadd.f32 %v103, %v347
    %v349 = vpop.f32.mrb[0].mxu0
    %350 = vmatprep.mubr.bf16.mxu0 0
    %351 = vmatmul.mubr.bf16.gmra.mrb[0].mxu0 %v226
    %v352 = vpop.f32.mrb[0].mxu0
    %v353 = vadd.f32 %v103, %v352
    %v354 = vpop.f32.mrb[0].mxu0
    %v355 = vpop.f32.mrb[0].mxu0
    %v356 = vadd.f32 %v103, %v355
    %v357 = vpop.f32.mrb[0].mxu0
    %358 = vmatprep.mubr.bf16.mxu0 0
    %359 = vmatmul.mubr.bf16.gmra.mrb[0].mxu0 %v229
    %v360 = vpop.f32.mrb[0].mxu0
    %v361 = vadd.f32 %v103, %v360
    %v362 = vpop.f32.mrb[0].mxu0
    %v363 = vpop.f32.mrb[0].mxu0
    %v364 = vadd.f32 %v103, %v363
    %v365 = vpop.f32.mrb[0].mxu0
    %366 = vmatprep.mubr.bf16.mxu0 0
    %367 = vmatmul.mubr.bf16.gmra.mrb[0].mxu0 %v232
    %v368 = vpop.f32.mrb[0].mxu0
    %v369 = vadd.f32 %v103, %v368
    %v370 = vpop.f32.mrb[0].mxu0
    %v371 = vpop.f32.mrb[0].mxu0
    %v372 = vadd.f32 %v103, %v371
    %v373 = vpop.f32.mrb[0].mxu0
    %374 = vmatprep.mubr.bf16.mxu0 0
    %375 = vmatmul.mubr.bf16.gmra.mrb[0].mxu0 %v235
    %v376 = vpop.f32.mrb[0].mxu0
    %v377 = vadd.f32 %v103, %v376
    %v378 = vpop.f32.mrb[0].mxu0
    %v379 = vpop.f32.mrb[0].mxu0
    %v380 = vadd.f32 %v103, %v379
    %v381 = vpop.f32.mrb[0].mxu0
    %382 = vmatprep.mubr.bf16.mxu0 0
    %383 = vmatmul.mubr.bf16.gmra.mrb[0].mxu0 %v238
    %v384 = vpop.f32.mrb[0].mxu0
    %v385 = vadd.f32 %v103, %v384
    %v386 = vpop.f32.mrb[0].mxu0
    %v387 = vpop.f32.mrb[0].mxu0
    %v388 = vadd.f32 %v103, %v387
    %v389 = vpop.f32.mrb[0].mxu0
    %390 = vmatprep.mubr.bf16.mxu0 0
    %391 = vmatmul.mubr.bf16.gmra.mrb[0].mxu0 %v241
    %v392 = vpop.f32.mrb[0].mxu0
    %v393 = vadd.f32 %v103, %v392
    %v394 = vpop.f32.mrb[0].mxu0
    %v395 = vpop.f32.mrb[0].mxu0
    %v396 = vadd.f32 %v103, %v395
    %v397 = vpop.f32.mrb[0].mxu0
    %398 = vmatprep.mubr.bf16.mxu0 0
    %399 = vmatmul.mubr.bf16.gmra.mrb[0].mxu0 %v244
    %v400 = vpop.f32.mrb[0].mxu0
    %v401 = vadd.f32 %v103, %v400
    %v402 = vpop.f32.mrb[0].mxu0
    %v403 = vpop.f32.mrb[0].mxu0
    %v404 = vadd.f32 %v103, %v403
    %v405 = vpop.f32.mrb[0].mxu0
    %406 = vdwg.mxu0
    %v407 = vand.u32 2147483647, %v281
    %vm408 = vcmp.le.f32.partialorder %v407, 0.7853982
    %vm409 = vcmp.lt.s32.totalorder %v281, 0
    %v410 = vand.u32 %v281, 2139095040
    %v411 = vshrl.u32 %v410, 23
    %v412 = vsub.s32 %v411, 127
    %v413 = vand.u32 2147483647, %v281
    %v414 = vand.u32 %v413, 8388607
    %v415 = vor.u32 %v414, 8388608
    %v416 = vsub.s32 0, %v415
    %v417 = vadd.s32 %v412, 1
    %vm418 = vcmp.gt.s32.totalorder %v417, 0
    %v419 = vsel %vm418, %v417, 0
    %v420 = vshrl.u32 %v419, 5
    %v421 = vand.u32 %v419, 31
    %v422 = vsub.s32 32, %v421
    %v423 = vshrl.u32 683565275, %v422
    %v424 = vshll.u32 683565275, %v421
    %v425 = vshrl.u32 2475754826, %v422
    %v426 = vor.u32 %v424, %v425
    %v427 = vshll.u32 2475754826, %v421
    %v428 = vshrl.u32 2131351028, %v422
    %v429 = vor.u32 %v427, %v428
    %v430 = vshll.u32 2131351028, %v421
    %v431 = vshrl.u32 2102212464, %v422
    %v432 = vor.u32 %v430, %v431
    %v433 = vshll.u32 2102212464, %v421
    %v434 = vshrl.u32 920167782, %v422
    %v435 = vor.u32 %v433, %v434
    %v436 = vshll.u32 920167782, %v421
    %v437 = vshrl.u32 1326507024, %v422
    %v438 = vor.u32 %v436, %v437
    %vm439 = vcmp.lt.s32.totalorder %v420, 1
    %vm440 = vcmp.lt.s32.totalorder %v420, 2
    %vm441 = vcmp.lt.s32.totalorder %v420, 3
    %vm442 = vcmp.lt.s32.totalorder %v420, 4
    %v443 = vsel %vm439, %v423, %v426
    %v444 = vsel %vm442, %v432, 2102212464
    %v445 = vsel %vm441, %v429, %v444
    %v446 = vsel %vm440, %v443, %v445
    %v447 = vsel %vm439, %v426, %v429
    %v448 = vsel %vm442, %v435, 920167782
    %v449 = vsel %vm441, %v432, %v448
    %v450 = vsel %vm440, %v447, %v449
    %v451 = vsel %vm439, %v429, %v432
    %v452 = vsel %vm442, %v438, 1326507024
    %v453 = vsel %vm441, %v435, %v452
    %v454 = vsel %vm440, %v451, %v453
    %v455 = vshll.u32 %v415, 8
    %v456 = vmul.u32.u64.compose %v455, %v454
    %v457 = vextract.low.u32 %v456
    %v458 = vextract.high.u32 %v456
    %v459 = vmul.u32.u64.compose %v455, %v450
    %v460 = vextract.low.u32 %v459
    %v461 = vextract.high.u32 %v459
    %v462 = vmul.u32 %v455, %v446
    %v463 = vadd.s32 %v458, %v460
    %vm464 = vc.u32 %v458, %v460
    %v465 = vadd.s32 %v461, 1
    %v466 = vsel %vm464, %v465, %v461
    %v467 = vadd.s32 %v462, %v466
    %v468 = vadd.s32 %v467, 536870912
    %v469 = vshrl.u32 %v468, 30
    %v470 = vshll.u32 %v469, 30
    %v471 = vsub.s32 %v467, %v470
    %vm472 = vcmp.lt.s32.totalorder %v471, 0
    %v473 = vsub.s32 0, %v471
    %v474 = vsel %vm472, %v473, %v471
    %v475 = vclz %v474
    %v476 = vsub.s32 %v475, 2
    %vm477 = vcmp.gt.s32.totalorder 0, %v476
    %v478 = vsel %vm477, 0, %v476
    %v479 = vsub.s32 32, %v478
    %v480 = vshll.u32 %v471, %v478
    %v481 = vshrl.u32 %v463, %v479
    %v482 = vor.u32 %v480, %v481
    %v483 = vsub.s32 4294967266, %v478
    %v484 = vadd.s32 %v483, 127
    %v485 = vshll.u32 %v484, 23
    %v486 = vor.u32 4788187, %v485
    %v487 = vand.u32 2147483647, %v486
    %v489 = vcvt.s32.f32 %v482
    %v490 = vmul.f32 %v489, %v487
    %v491 = vxor.u32 %v490, 2147483648
    %v492 = vsel %vm409, %v491, %v490
    %v493 = vsub.s32 4, %v469
    %v494 = vsel %vm409, %v493, %v469
    %v495 = vsel %vm408, %v281, %v492
    %v496 = vsel %vm408, 0, %v494
    %v497 = vcosq.f32.pop %v495
    %v498 = vsinq.f32.pop %v495
    %vm499 = vweird.f32 %v281
    %v500 = vand.u32 %v496, 3
    %vm501 = vcmp.lt.s32.totalorder %v500, 2
    %vm502 = vcmp.eq.s32.totalorder %v500, 0
    %v503 = vxor.u32 %v498, 2147483648
    %v504 = vsel %vm502, %v497, %v503
    %vm505 = vcmp.eq.s32.totalorder %v500, 2
    %v506 = vxor.u32 %v497, 2147483648
    %v507 = vsel %vm505, %v506, %v498
    %v508 = vsel %vm501, %v504, %v507
    %v509 = vsel %vm499, nan, %v508
    %v510 = vand.u32 2147483647, %v284
    %vm511 = vcmp.le.f32.partialorder %v510, 0.7853982
    %vm512 = vcmp.lt.s32.totalorder %v284, 0
    %v513 = vand.u32 %v284, 2139095040
    %v514 = vshrl.u32 %v513, 23
    %v515 = vsub.s32 %v514, 127
    %v516 = vand.u32 2147483647, %v284
    %v517 = vand.u32 %v516, 8388607
    %v518 = vor.u32 %v517, 8388608
    %v519 = vsub.s32 0, %v518
    %v520 = vadd.s32 %v515, 1
    %vm521 = vcmp.gt.s32.totalorder %v520, 0
    %v522 = vsel %vm521, %v520, 0
    %v523 = vshrl.u32 %v522, 5
    %v524 = vand.u32 %v522, 31
    %v525 = vsub.s32 32, %v524
    %v526 = vshrl.u32 683565275, %v525
    %v527 = vshll.u32 683565275, %v524
    %v528 = vshrl.u32 2475754826, %v525
    %v529 = vor.u32 %v527, %v528
    %v530 = vshll.u32 2475754826, %v524
    %v531 = vshrl.u32 2131351028, %v525
    %v532 = vor.u32 %v530, %v531
    %v533 = vshll.u32 2131351028, %v524
    %v534 = vshrl.u32 2102212464, %v525
    %v535 = vor.u32 %v533, %v534
    %v536 = vshll.u32 2102212464, %v524
    %v537 = vshrl.u32 920167782, %v525
    %v538 = vor.u32 %v536, %v537
    %v539 = vshll.u32 920167782, %v524
    %v540 = vshrl.u32 1326507024, %v525
    %v541 = vor.u32 %v539, %v540
    %vm542 = vcmp.lt.s32.totalorder %v523, 1
    %vm543 = vcmp.lt.s32.totalorder %v523, 2
    %vm544 = vcmp.lt.s32.totalorder %v523, 3
    %vm545 = vcmp.lt.s32.totalorder %v523, 4
    %v546 = vsel %vm542, %v526, %v529
    %v547 = vsel %vm545, %v535, 2102212464
    %v548 = vsel %vm544, %v532, %v547
    %v549 = vsel %vm543, %v546, %v548
    %v550 = vsel %vm542, %v529, %v532
    %v551 = vsel %vm545, %v538, 920167782
    %v552 = vsel %vm544, %v535, %v551
    %v553 = vsel %vm543, %v550, %v552
    %v554 = vsel %vm542, %v532, %v535
    %v555 = vsel %vm545, %v541, 1326507024
    %v556 = vsel %vm544, %v538, %v555
    %v557 = vsel %vm543, %v554, %v556
    %v558 = vshll.u32 %v518, 8
    %v559 = vmul.u32.u64.compose %v558, %v557
    %v560 = vextract.low.u32 %v559
    %v561 = vextract.high.u32 %v559
    %v562 = vmul.u32.u64.compose %v558, %v553
    %v563 = vextract.low.u32 %v562
    %v564 = vextract.high.u32 %v562
    %v565 = vmul.u32 %v558, %v549
    %v566 = vadd.s32 %v561, %v563
    %vm567 = vc.u32 %v561, %v563
    %v568 = vadd.s32 %v564, 1
    %v569 = vsel %vm567, %v568, %v564
    %v570 = vadd.s32 %v565, %v569
    %v571 = vadd.s32 %v570, 536870912
    %v572 = vshrl.u32 %v571, 30
    %v573 = vshll.u32 %v572, 30
    %v574 = vsub.s32 %v570, %v573
    %vm575 = vcmp.lt.s32.totalorder %v574, 0
    %v576 = vsub.s32 0, %v574
    %v577 = vsel %vm575, %v576, %v574
    %v578 = vclz %v577
    %v579 = vsub.s32 %v578, 2
    %vm580 = vcmp.gt.s32.totalorder 0, %v579
    %v581 = vsel %vm580, 0, %v579
    %v582 = vsub.s32 32, %v581
    %v583 = vshll.u32 %v574, %v581
    %v584 = vshrl.u32 %v566, %v582
    %v585 = vor.u32 %v583, %v584
    %v586 = vsub.s32 4294967266, %v581
    %v587 = vadd.s32 %v586, 127
    %v588 = vshll.u32 %v587, 23
    %v589 = vor.u32 4788187, %v588
    %v590 = vand.u32 2147483647, %v589
    %v592 = vcvt.s32.f32 %v585
    %v593 = vmul.f32 %v592, %v590
    %v594 = vxor.u32 %v593, 2147483648
    %v595 = vsel %vm512, %v594, %v593
    %v596 = vsub.s32 4, %v572
    %v597 = vsel %vm512, %v596, %v572
    %v598 = vsel %vm511, %v284, %v595
    %v599 = vsel %vm511, 0, %v597
    %v600 = vcosq.f32.pop %v598
    %v601 = vsinq.f32.pop %v598
    %vm602 = vweird.f32 %v284
    %v603 = vand.u32 %v599, 3
    %vm604 = vcmp.lt.s32.totalorder %v603, 2
    %vm605 = vcmp.eq.s32.totalorder %v603, 0
    %v606 = vxor.u32 %v601, 2147483648
    %v607 = vsel %vm605, %v600, %v606
    %vm608 = vcmp.eq.s32.totalorder %v603, 2
    %v609 = vxor.u32 %v600, 2147483648
    %v610 = vsel %vm608, %v609, %v601
    %v611 = vsel %vm604, %v607, %v610
    %v612 = vsel %vm602, nan, %v611
    %v613 = vand.u32 2147483647, %v289
    %vm614 = vcmp.le.f32.partialorder %v613, 0.7853982
    %vm615 = vcmp.lt.s32.totalorder %v289, 0
    %v616 = vand.u32 %v289, 2139095040
    %v617 = vshrl.u32 %v616, 23
    %v618 = vsub.s32 %v617, 127
    %v619 = vand.u32 2147483647, %v289
    %v620 = vand.u32 %v619, 8388607
    %v621 = vor.u32 %v620, 8388608
    %v622 = vsub.s32 0, %v621
    %v623 = vadd.s32 %v618, 1
    %vm624 = vcmp.gt.s32.totalorder %v623, 0
    %v625 = vsel %vm624, %v623, 0
    %v626 = vshrl.u32 %v625, 5
    %v627 = vand.u32 %v625, 31
    %v628 = vsub.s32 32, %v627
    %v629 = vshrl.u32 683565275, %v628
    %v630 = vshll.u32 683565275, %v627
    %v631 = vshrl.u32 2475754826, %v628
    %v632 = vor.u32 %v630, %v631
    %v633 = vshll.u32 2475754826, %v627
    %v634 = vshrl.u32 2131351028, %v628
    %v635 = vor.u32 %v633, %v634
    %v636 = vshll.u32 2131351028, %v627
    %v637 = vshrl.u32 2102212464, %v628
    %v638 = vor.u32 %v636, %v637
    %v639 = vshll.u32 2102212464, %v627
    %v640 = vshrl.u32 920167782, %v628
    %v641 = vor.u32 %v639, %v640
    %v642 = vshll.u32 920167782, %v627
    %v643 = vshrl.u32 1326507024, %v628
    %v644 = vor.u32 %v642, %v643
    %vm645 = vcmp.lt.s32.totalorder %v626, 1
    %vm646 = vcmp.lt.s32.totalorder %v626, 2
    %vm647 = vcmp.lt.s32.totalorder %v626, 3
    %vm648 = vcmp.lt.s32.totalorder %v626, 4
    %v649 = vsel %vm645, %v629, %v632
    %v650 = vsel %vm648, %v638, 2102212464
    %v651 = vsel %vm647, %v635, %v650
    %v652 = vsel %vm646, %v649, %v651
    %v653 = vsel %vm645, %v632, %v635
    %v654 = vsel %vm648, %v641, 920167782
    %v655 = vsel %vm647, %v638, %v654
    %v656 = vsel %vm646, %v653, %v655
    %v657 = vsel %vm645, %v635, %v638
    %v658 = vsel %vm648, %v644, 1326507024
    %v659 = vsel %vm647, %v641, %v658
    %v660 = vsel %vm646, %v657, %v659
    %v661 = vshll.u32 %v621, 8
    %v662 = vmul.u32.u64.compose %v661, %v660
    %v663 = vextract.low.u32 %v662
    %v664 = vextract.high.u32 %v662
    %v665 = vmul.u32.u64.compose %v661, %v656
    %v666 = vextract.low.u32 %v665
    %v667 = vextract.high.u32 %v665
    %v668 = vmul.u32 %v661, %v652
    %v669 = vadd.s32 %v664, %v666
    %vm670 = vc.u32 %v664, %v666
    %v671 = vadd.s32 %v667, 1
    %v672 = vsel %vm670, %v671, %v667
    %v673 = vadd.s32 %v668, %v672
    %v674 = vadd.s32 %v673, 536870912
    %v675 = vshrl.u32 %v674, 30
    %v676 = vshll.u32 %v675, 30
    %v677 = vsub.s32 %v673, %v676
    %vm678 = vcmp.lt.s32.totalorder %v677, 0
    %v679 = vsub.s32 0, %v677
    %v680 = vsel %vm678, %v679, %v677
    %v681 = vclz %v680
    %v682 = vsub.s32 %v681, 2
    %vm683 = vcmp.gt.s32.totalorder 0, %v682
    %v684 = vsel %vm683, 0, %v682
    %v685 = vsub.s32 32, %v684
    %v686 = vshll.u32 %v677, %v684
    %v687 = vshrl.u32 %v669, %v685
    %v688 = vor.u32 %v686, %v687
    %v689 = vsub.s32 4294967266, %v684
    %v690 = vadd.s32 %v689, 127
    %v691 = vshll.u32 %v690, 23
    %v692 = vor.u32 4788187, %v691
    %v693 = vand.u32 2147483647, %v692
    %v695 = vcvt.s32.f32 %v688
    %v696 = vmul.f32 %v695, %v693
    %v697 = vxor.u32 %v696, 2147483648
    %v698 = vsel %vm615, %v697, %v696
    %v699 = vsub.s32 4, %v675
    %v700 = vsel %vm615, %v699, %v675
    %v701 = vsel %vm614, %v289, %v698
    %v702 = vsel %vm614, 0, %v700
    %v703 = vcosq.f32.pop %v701
    %v704 = vsinq.f32.pop %v701
    %vm705 = vweird.f32 %v289
    %v706 = vand.u32 %v702, 3
    %vm707 = vcmp.lt.s32.totalorder %v706, 2
    %vm708 = vcmp.eq.s32.totalorder %v706, 0
    %v709 = vxor.u32 %v704, 2147483648
    %v710 = vsel %vm708, %v703, %v709
    %vm711 = vcmp.eq.s32.totalorder %v706, 2
    %v712 = vxor.u32 %v703, 2147483648
    %v713 = vsel %vm711, %v712, %v704
    %v714 = vsel %vm707, %v710, %v713
    %v715 = vsel %vm705, nan, %v714
    %v716 = vand.u32 2147483647, %v292
    %vm717 = vcmp.le.f32.partialorder %v716, 0.7853982
    %vm718 = vcmp.lt.s32.totalorder %v292, 0
    %v719 = vand.u32 %v292, 2139095040
    %v720 = vshrl.u32 %v719, 23
    %v721 = vsub.s32 %v720, 127
    %v722 = vand.u32 2147483647, %v292
    %v723 = vand.u32 %v722, 8388607
    %v724 = vor.u32 %v723, 8388608
    %v725 = vsub.s32 0, %v724
    %v726 = vadd.s32 %v721, 1
    %vm727 = vcmp.gt.s32.totalorder %v726, 0
    %v728 = vsel %vm727, %v726, 0
    %v729 = vshrl.u32 %v728, 5
    %v730 = vand.u32 %v728, 31
    %v731 = vsub.s32 32, %v730
    %v732 = vshrl.u32 683565275, %v731
    %v733 = vshll.u32 683565275, %v730
    %v734 = vshrl.u32 2475754826, %v731
    %v735 = vor.u32 %v733, %v734
    %v736 = vshll.u32 2475754826, %v730
    %v737 = vshrl.u32 2131351028, %v731
    %v738 = vor.u32 %v736, %v737
    %v739 = vshll.u32 2131351028, %v730
    %v740 = vshrl.u32 2102212464, %v731
    %v741 = vor.u32 %v739, %v740
    %v742 = vshll.u32 2102212464, %v730
    %v743 = vshrl.u32 920167782, %v731
    %v744 = vor.u32 %v742, %v743
    %v745 = vshll.u32 920167782, %v730
    %v746 = vshrl.u32 1326507024, %v731
    %v747 = vor.u32 %v745, %v746
    %vm748 = vcmp.lt.s32.totalorder %v729, 1
    %vm749 = vcmp.lt.s32.totalorder %v729, 2
    %vm750 = vcmp.lt.s32.totalorder %v729, 3
    %vm751 = vcmp.lt.s32.totalorder %v729, 4
    %v752 = vsel %vm748, %v732, %v735
    %v753 = vsel %vm751, %v741, 2102212464
    %v754 = vsel %vm750, %v738, %v753
    %v755 = vsel %vm749, %v752, %v754
    %v756 = vsel %vm748, %v735, %v738
    %v757 = vsel %vm751, %v744, 920167782
    %v758 = vsel %vm750, %v741, %v757
    %v759 = vsel %vm749, %v756, %v758
    %v760 = vsel %vm748, %v738, %v741
    %v761 = vsel %vm751, %v747, 1326507024
    %v762 = vsel %vm750, %v744, %v761
    %v763 = vsel %vm749, %v760, %v762
    %v764 = vshll.u32 %v724, 8
    %v765 = vmul.u32.u64.compose %v764, %v763
    %v766 = vextract.low.u32 %v765
    %v767 = vextract.high.u32 %v765
    %v768 = vmul.u32.u64.compose %v764, %v759
    %v769 = vextract.low.u32 %v768
    %v770 = vextract.high.u32 %v768
    %v771 = vmul.u32 %v764, %v755
    %v772 = vadd.s32 %v767, %v769
    %vm773 = vc.u32 %v767, %v769
    %v774 = vadd.s32 %v770, 1
    %v775 = vsel %vm773, %v774, %v770
    %v776 = vadd.s32 %v771, %v775
    %v777 = vadd.s32 %v776, 536870912
    %v778 = vshrl.u32 %v777, 30
    %v779 = vshll.u32 %v778, 30
    %v780 = vsub.s32 %v776, %v779
    %vm781 = vcmp.lt.s32.totalorder %v780, 0
    %v782 = vsub.s32 0, %v780
    %v783 = vsel %vm781, %v782, %v780
    %v784 = vclz %v783
    %v785 = vsub.s32 %v784, 2
    %vm786 = vcmp.gt.s32.totalorder 0, %v785
    %v787 = vsel %vm786, 0, %v785
    %v788 = vsub.s32 32, %v787
    %v789 = vshll.u32 %v780, %v787
    %v790 = vshrl.u32 %v772, %v788
    %v791 = vor.u32 %v789, %v790
    %v792 = vsub.s32 4294967266, %v787
    %v793 = vadd.s32 %v792, 127
    %v794 = vshll.u32 %v793, 23
    %v795 = vor.u32 4788187, %v794
    %v796 = vand.u32 2147483647, %v795
    %v798 = vcvt.s32.f32 %v791
    %v799 = vmul.f32 %v798, %v796
    %v800 = vxor.u32 %v799, 2147483648
    %v801 = vsel %vm718, %v800, %v799
    %v802 = vsub.s32 4, %v778
    %v803 = vsel %vm718, %v802, %v778
    %v804 = vsel %vm717, %v292, %v801
    %v805 = vsel %vm717, 0, %v803
    %v806 = vcosq.f32.pop %v804
    %v807 = vsinq.f32.pop %v804
    %vm808 = vweird.f32 %v292
    %v809 = vand.u32 %v805, 3
    %vm810 = vcmp.lt.s32.totalorder %v809, 2
    %vm811 = vcmp.eq.s32.totalorder %v809, 0
    %v812 = vxor.u32 %v807, 2147483648
    %v813 = vsel %vm811, %v806, %v812
    %vm814 = vcmp.eq.s32.totalorder %v809, 2
    %v815 = vxor.u32 %v806, 2147483648
    %v816 = vsel %vm814, %v815, %v807
    %v817 = vsel %vm810, %v813, %v816
    %v818 = vsel %vm808, nan, %v817
    %v819 = vand.u32 2147483647, %v297
    %vm820 = vcmp.le.f32.partialorder %v819, 0.7853982
    %vm821 = vcmp.lt.s32.totalorder %v297, 0
    %v822 = vand.u32 %v297, 2139095040
    %v823 = vshrl.u32 %v822, 23
    %v824 = vsub.s32 %v823, 127
    %v825 = vand.u32 2147483647, %v297
    %v826 = vand.u32 %v825, 8388607
    %v827 = vor.u32 %v826, 8388608
    %v828 = vsub.s32 0, %v827
    %v829 = vadd.s32 %v824, 1
    %vm830 = vcmp.gt.s32.totalorder %v829, 0
    %v831 = vsel %vm830, %v829, 0
    %v832 = vshrl.u32 %v831, 5
    %v833 = vand.u32 %v831, 31
    %v834 = vsub.s32 32, %v833
    %v835 = vshrl.u32 683565275, %v834
    %v836 = vshll.u32 683565275, %v833
    %v837 = vshrl.u32 2475754826, %v834
    %v838 = vor.u32 %v836, %v837
    %v839 = vshll.u32 2475754826, %v833
    %v840 = vshrl.u32 2131351028, %v834
    %v841 = vor.u32 %v839, %v840
    %v842 = vshll.u32 2131351028, %v833
    %v843 = vshrl.u32 2102212464, %v834
    %v844 = vor.u32 %v842, %v843
    %v845 = vshll.u32 2102212464, %v833
    %v846 = vshrl.u32 920167782, %v834
    %v847 = vor.u32 %v845, %v846
    %v848 = vshll.u32 920167782, %v833
    %v849 = vshrl.u32 1326507024, %v834
    %v850 = vor.u32 %v848, %v849
    %vm851 = vcmp.lt.s32.totalorder %v832, 1
    %vm852 = vcmp.lt.s32.totalorder %v832, 2
    %vm853 = vcmp.lt.s32.totalorder %v832, 3
    %vm854 = vcmp.lt.s32.totalorder %v832, 4
    %v855 = vsel %vm851, %v835, %v838
    %v856 = vsel %vm854, %v844, 2102212464
    %v857 = vsel %vm853, %v841, %v856
    %v858 = vsel %vm852, %v855, %v857
    %v859 = vsel %vm851, %v838, %v841
    %v860 = vsel %vm854, %v847, 920167782
    %v861 = vsel %vm853, %v844, %v860
    %v862 = vsel %vm852, %v859, %v861
    %v863 = vsel %vm851, %v841, %v844
    %v864 = vsel %vm854, %v850, 1326507024
    %v865 = vsel %vm853, %v847, %v864
    %v866 = vsel %vm852, %v863, %v865
    %v867 = vshll.u32 %v827, 8
    %v868 = vmul.u32.u64.compose %v867, %v866
    %v869 = vextract.low.u32 %v868
    %v870 = vextract.high.u32 %v868
    %v871 = vmul.u32.u64.compose %v867, %v862
    %v872 = vextract.low.u32 %v871
    %v873 = vextract.high.u32 %v871
    %v874 = vmul.u32 %v867, %v858
    %v875 = vadd.s32 %v870, %v872
    %vm876 = vc.u32 %v870, %v872
    %v877 = vadd.s32 %v873, 1
    %v878 = vsel %vm876, %v877, %v873
    %v879 = vadd.s32 %v874, %v878
    %v880 = vadd.s32 %v879, 536870912
    %v881 = vshrl.u32 %v880, 30
    %v882 = vshll.u32 %v881, 30
    %v883 = vsub.s32 %v879, %v882
    %vm884 = vcmp.lt.s32.totalorder %v883, 0
    %v885 = vsub.s32 0, %v883
    %v886 = vsel %vm884, %v885, %v883
    %v887 = vclz %v886
    %v888 = vsub.s32 %v887, 2
    %vm889 = vcmp.gt.s32.totalorder 0, %v888
    %v890 = vsel %vm889, 0, %v888
    %v891 = vsub.s32 32, %v890
    %v892 = vshll.u32 %v883, %v890
    %v893 = vshrl.u32 %v875, %v891
    %v894 = vor.u32 %v892, %v893
    %v895 = vsub.s32 4294967266, %v890
    %v896 = vadd.s32 %v895, 127
    %v897 = vshll.u32 %v896, 23
    %v898 = vor.u32 4788187, %v897
    %v899 = vand.u32 2147483647, %v898
    %v901 = vcvt.s32.f32 %v894
    %v902 = vmul.f32 %v901, %v899
    %v903 = vxor.u32 %v902, 2147483648
    %v904 = vsel %vm821, %v903, %v902
    %v905 = vsub.s32 4, %v881
    %v906 = vsel %vm821, %v905, %v881
    %v907 = vsel %vm820, %v297, %v904
    %v908 = vsel %vm820, 0, %v906
    %v909 = vcosq.f32.pop %v907
    %v910 = vsinq.f32.pop %v907
    %vm911 = vweird.f32 %v297
    %v912 = vand.u32 %v908, 3
    %vm913 = vcmp.lt.s32.totalorder %v912, 2
    %vm914 = vcmp.eq.s32.totalorder %v912, 0
    %v915 = vxor.u32 %v910, 2147483648
    %v916 = vsel %vm914, %v909, %v915
    %vm917 = vcmp.eq.s32.totalorder %v912, 2
    %v918 = vxor.u32 %v909, 2147483648
    %v919 = vsel %vm917, %v918, %v910
    %v920 = vsel %vm913, %v916, %v919
    %v921 = vsel %vm911, nan, %v920
    %v922 = vand.u32 2147483647, %v300
    %vm923 = vcmp.le.f32.partialorder %v922, 0.7853982
    %vm924 = vcmp.lt.s32.totalorder %v300, 0
    %v925 = vand.u32 %v300, 2139095040
    %v926 = vshrl.u32 %v925, 23
    %v927 = vsub.s32 %v926, 127
    %v928 = vand.u32 2147483647, %v300
    %v929 = vand.u32 %v928, 8388607
    %v930 = vor.u32 %v929, 8388608
    %v931 = vsub.s32 0, %v930
    %v932 = vadd.s32 %v927, 1
    %vm933 = vcmp.gt.s32.totalorder %v932, 0
    %v934 = vsel %vm933, %v932, 0
    %v935 = vshrl.u32 %v934, 5
    %v936 = vand.u32 %v934, 31
    %v937 = vsub.s32 32, %v936
    %v938 = vshrl.u32 683565275, %v937
    %v939 = vshll.u32 683565275, %v936
    %v940 = vshrl.u32 2475754826, %v937
    %v941 = vor.u32 %v939, %v940
    %v942 = vshll.u32 2475754826, %v936
    %v943 = vshrl.u32 2131351028, %v937
    %v944 = vor.u32 %v942, %v943
    %v945 = vshll.u32 2131351028, %v936
    %v946 = vshrl.u32 2102212464, %v937
    %v947 = vor.u32 %v945, %v946
    %v948 = vshll.u32 2102212464, %v936
    %v949 = vshrl.u32 920167782, %v937
    %v950 = vor.u32 %v948, %v949
    %v951 = vshll.u32 920167782, %v936
    %v952 = vshrl.u32 1326507024, %v937
    %v953 = vor.u32 %v951, %v952
    %vm954 = vcmp.lt.s32.totalorder %v935, 1
    %vm955 = vcmp.lt.s32.totalorder %v935, 2
    %vm956 = vcmp.lt.s32.totalorder %v935, 3
    %vm957 = vcmp.lt.s32.totalorder %v935, 4
    %v958 = vsel %vm954, %v938, %v941
    %v959 = vsel %vm957, %v947, 2102212464
    %v960 = vsel %vm956, %v944, %v959
    %v961 = vsel %vm955, %v958, %v960
    %v962 = vsel %vm954, %v941, %v944
    %v963 = vsel %vm957, %v950, 920167782
    %v964 = vsel %vm956, %v947, %v963
    %v965 = vsel %vm955, %v962, %v964
    %v966 = vsel %vm954, %v944, %v947
    %v967 = vsel %vm957, %v953, 1326507024
    %v968 = vsel %vm956, %v950, %v967
    %v969 = vsel %vm955, %v966, %v968
    %v970 = vshll.u32 %v930, 8
    %v971 = vmul.u32.u64.compose %v970, %v969
    %v972 = vextract.low.u32 %v971
    %v973 = vextract.high.u32 %v971
    %v974 = vmul.u32.u64.compose %v970, %v965
    %v975 = vextract.low.u32 %v974
    %v976 = vextract.high.u32 %v974
    %v977 = vmul.u32 %v970, %v961
    %v978 = vadd.s32 %v973, %v975
    %vm979 = vc.u32 %v973, %v975
    %v980 = vadd.s32 %v976, 1
    %v981 = vsel %vm979, %v980, %v976
    %v982 = vadd.s32 %v977, %v981
    %v983 = vadd.s32 %v982, 536870912
    %v984 = vshrl.u32 %v983, 30
    %v985 = vshll.u32 %v984, 30
    %v986 = vsub.s32 %v982, %v985
    %vm987 = vcmp.lt.s32.totalorder %v986, 0
    %v988 = vsub.s32 0, %v986
    %v989 = vsel %vm987, %v988, %v986
    %v990 = vclz %v989
    %v991 = vsub.s32 %v990, 2
    %vm992 = vcmp.gt.s32.totalorder 0, %v991
    %v993 = vsel %vm992, 0, %v991
    %v994 = vsub.s32 32, %v993
    %v995 = vshll.u32 %v986, %v993
    %v996 = vshrl.u32 %v978, %v994
    %v997 = vor.u32 %v995, %v996
    %v998 = vsub.s32 4294967266, %v993
    %v999 = vadd.s32 %v998, 127
    %v1000 = vshll.u32 %v999, 23
    %v1001 = vor.u32 4788187, %v1000
    %v1002 = vand.u32 2147483647, %v1001
    %v1004 = vcvt.s32.f32 %v997
    %v1005 = vmul.f32 %v1004, %v1002
    %v1006 = vxor.u32 %v1005, 2147483648
    %v1007 = vsel %vm924, %v1006, %v1005
    %v1008 = vsub.s32 4, %v984
    %v1009 = vsel %vm924, %v1008, %v984
    %v1010 = vsel %vm923, %v300, %v1007
    %v1011 = vsel %vm923, 0, %v1009
    %v1012 = vcosq.f32.pop %v1010
    %v1013 = vsinq.f32.pop %v1010
    %vm1014 = vweird.f32 %v300
    %v1015 = vand.u32 %v1011, 3
    %vm1016 = vcmp.lt.s32.totalorder %v1015, 2
    %vm1017 = vcmp.eq.s32.totalorder %v1015, 0
    %v1018 = vxor.u32 %v1013, 2147483648
    %v1019 = vsel %vm1017, %v1012, %v1018
    %vm1020 = vcmp.eq.s32.totalorder %v1015, 2
    %v1021 = vxor.u32 %v1012, 2147483648
    %v1022 = vsel %vm1020, %v1021, %v1013
    %v1023 = vsel %vm1016, %v1019, %v1022
    %v1024 = vsel %vm1014, nan, %v1023
    %v1025 = vand.u32 2147483647, %v305
    %vm1026 = vcmp.le.f32.partialorder %v1025, 0.7853982
    %vm1027 = vcmp.lt.s32.totalorder %v305, 0
    %v1028 = vand.u32 %v305, 2139095040
    %v1029 = vshrl.u32 %v1028, 23
    %v1030 = vsub.s32 %v1029, 127
    %v1031 = vand.u32 2147483647, %v305
    %v1032 = vand.u32 %v1031, 8388607
    %v1033 = vor.u32 %v1032, 8388608
    %v1034 = vsub.s32 0, %v1033
    %v1035 = vadd.s32 %v1030, 1
    %vm1036 = vcmp.gt.s32.totalorder %v1035, 0
    %v1037 = vsel %vm1036, %v1035, 0
    %v1038 = vshrl.u32 %v1037, 5
    %v1039 = vand.u32 %v1037, 31
    %v1040 = vsub.s32 32, %v1039
    %v1041 = vshrl.u32 683565275, %v1040
    %v1042 = vshll.u32 683565275, %v1039
    %v1043 = vshrl.u32 2475754826, %v1040
    %v1044 = vor.u32 %v1042, %v1043
    %v1045 = vshll.u32 2475754826, %v1039
    %v1046 = vshrl.u32 2131351028, %v1040
    %v1047 = vor.u32 %v1045, %v1046
    %v1048 = vshll.u32 2131351028, %v1039
    %v1049 = vshrl.u32 2102212464, %v1040
    %v1050 = vor.u32 %v1048, %v1049
    %v1051 = vshll.u32 2102212464, %v1039
    %v1052 = vshrl.u32 920167782, %v1040
    %v1053 = vor.u32 %v1051, %v1052
    %v1054 = vshll.u32 920167782, %v1039
    %v1055 = vshrl.u32 1326507024, %v1040
    %v1056 = vor.u32 %v1054, %v1055
    %vm1057 = vcmp.lt.s32.totalorder %v1038, 1
    %vm1058 = vcmp.lt.s32.totalorder %v1038, 2
    %vm1059 = vcmp.lt.s32.totalorder %v1038, 3
    %vm1060 = vcmp.lt.s32.totalorder %v1038, 4
    %v1061 = vsel %vm1057, %v1041, %v1044
    %v1062 = vsel %vm1060, %v1050, 2102212464
    %v1063 = vsel %vm1059, %v1047, %v1062
    %v1064 = vsel %vm1058, %v1061, %v1063
    %v1065 = vsel %vm1057, %v1044, %v1047
    %v1066 = vsel %vm1060, %v1053, 920167782
    %v1067 = vsel %vm1059, %v1050, %v1066
    %v1068 = vsel %vm1058, %v1065, %v1067
    %v1069 = vsel %vm1057, %v1047, %v1050
    %v1070 = vsel %vm1060, %v1056, 1326507024
    %v1071 = vsel %vm1059, %v1053, %v1070
    %v1072 = vsel %vm1058, %v1069, %v1071
    %v1073 = vshll.u32 %v1033, 8
    %v1074 = vmul.u32.u64.compose %v1073, %v1072
    %v1075 = vextract.low.u32 %v1074
    %v1076 = vextract.high.u32 %v1074
    %v1077 = vmul.u32.u64.compose %v1073, %v1068
    %v1078 = vextract.low.u32 %v1077
    %v1079 = vextract.high.u32 %v1077
    %v1080 = vmul.u32 %v1073, %v1064
    %v1081 = vadd.s32 %v1076, %v1078
    %vm1082 = vc.u32 %v1076, %v1078
    %v1083 = vadd.s32 %v1079, 1
    %v1084 = vsel %vm1082, %v1083, %v1079
    %v1085 = vadd.s32 %v1080, %v1084
    %v1086 = vadd.s32 %v1085, 536870912
    %v1087 = vshrl.u32 %v1086, 30
    %v1088 = vshll.u32 %v1087, 30
    %v1089 = vsub.s32 %v1085, %v1088
    %vm1090 = vcmp.lt.s32.totalorder %v1089, 0
    %v1091 = vsub.s32 0, %v1089
    %v1092 = vsel %vm1090, %v1091, %v1089
    %v1093 = vclz %v1092
    %v1094 = vsub.s32 %v1093, 2
    %vm1095 = vcmp.gt.s32.totalorder 0, %v1094
    %v1096 = vsel %vm1095, 0, %v1094
    %v1097 = vsub.s32 32, %v1096
    %v1098 = vshll.u32 %v1089, %v1096
    %v1099 = vshrl.u32 %v1081, %v1097
    %v1100 = vor.u32 %v1098, %v1099
    %v1101 = vsub.s32 4294967266, %v1096
    %v1102 = vadd.s32 %v1101, 127
    %v1103 = vshll.u32 %v1102, 23
    %v1104 = vor.u32 4788187, %v1103
    %v1105 = vand.u32 2147483647, %v1104
    %v1107 = vcvt.s32.f32 %v1100
    %v1108 = vmul.f32 %v1107, %v1105
    %v1109 = vxor.u32 %v1108, 2147483648
    %v1110 = vsel %vm1027, %v1109, %v1108
    %v1111 = vsub.s32 4, %v1087
    %v1112 = vsel %vm1027, %v1111, %v1087
    %v1113 = vsel %vm1026, %v305, %v1110
    %v1114 = vsel %vm1026, 0, %v1112
    %v1115 = vcosq.f32.pop %v1113
    %v1116 = vsinq.f32.pop %v1113
    %vm1117 = vweird.f32 %v305
    %v1118 = vand.u32 %v1114, 3
    %vm1119 = vcmp.lt.s32.totalorder %v1118, 2
    %vm1120 = vcmp.eq.s32.totalorder %v1118, 0
    %v1121 = vxor.u32 %v1116, 2147483648
    %v1122 = vsel %vm1120, %v1115, %v1121
    %vm1123 = vcmp.eq.s32.totalorder %v1118, 2
    %v1124 = vxor.u32 %v1115, 2147483648
    %v1125 = vsel %vm1123, %v1124, %v1116
    %v1126 = vsel %vm1119, %v1122, %v1125
    %v1127 = vsel %vm1117, nan, %v1126
    %v1128 = vand.u32 2147483647, %v308
    %vm1129 = vcmp.le.f32.partialorder %v1128, 0.7853982
    %vm1130 = vcmp.lt.s32.totalorder %v308, 0
    %v1131 = vand.u32 %v308, 2139095040
    %v1132 = vshrl.u32 %v1131, 23
    %v1133 = vsub.s32 %v1132, 127
    %v1134 = vand.u32 2147483647, %v308
    %v1135 = vand.u32 %v1134, 8388607
    %v1136 = vor.u32 %v1135, 8388608
    %v1137 = vsub.s32 0, %v1136
    %v1138 = vadd.s32 %v1133, 1
    %vm1139 = vcmp.gt.s32.totalorder %v1138, 0
    %v1140 = vsel %vm1139, %v1138, 0
    %v1141 = vshrl.u32 %v1140, 5
    %v1142 = vand.u32 %v1140, 31
    %v1143 = vsub.s32 32, %v1142
    %v1144 = vshrl.u32 683565275, %v1143
    %v1145 = vshll.u32 683565275, %v1142
    %v1146 = vshrl.u32 2475754826, %v1143
    %v1147 = vor.u32 %v1145, %v1146
    %v1148 = vshll.u32 2475754826, %v1142
    %v1149 = vshrl.u32 2131351028, %v1143
    %v1150 = vor.u32 %v1148, %v1149
    %v1151 = vshll.u32 2131351028, %v1142
    %v1152 = vshrl.u32 2102212464, %v1143
    %v1153 = vor.u32 %v1151, %v1152
    %v1154 = vshll.u32 2102212464, %v1142
    %v1155 = vshrl.u32 920167782, %v1143
    %v1156 = vor.u32 %v1154, %v1155
    %v1157 = vshll.u32 920167782, %v1142
    %v1158 = vshrl.u32 1326507024, %v1143
    %v1159 = vor.u32 %v1157, %v1158
    %vm1160 = vcmp.lt.s32.totalorder %v1141, 1
    %vm1161 = vcmp.lt.s32.totalorder %v1141, 2
    %vm1162 = vcmp.lt.s32.totalorder %v1141, 3
    %vm1163 = vcmp.lt.s32.totalorder %v1141, 4
    %v1164 = vsel %vm1160, %v1144, %v1147
    %v1165 = vsel %vm1163, %v1153, 2102212464
    %v1166 = vsel %vm1162, %v1150, %v1165
    %v1167 = vsel %vm1161, %v1164, %v1166
    %v1168 = vsel %vm1160, %v1147, %v1150
    %v1169 = vsel %vm1163, %v1156, 920167782
    %v1170 = vsel %vm1162, %v1153, %v1169
    %v1171 = vsel %vm1161, %v1168, %v1170
    %v1172 = vsel %vm1160, %v1150, %v1153
    %v1173 = vsel %vm1163, %v1159, 1326507024
    %v1174 = vsel %vm1162, %v1156, %v1173
    %v1175 = vsel %vm1161, %v1172, %v1174
    %v1176 = vshll.u32 %v1136, 8
    %v1177 = vmul.u32.u64.compose %v1176, %v1175
    %v1178 = vextract.low.u32 %v1177
    %v1179 = vextract.high.u32 %v1177
    %v1180 = vmul.u32.u64.compose %v1176, %v1171
    %v1181 = vextract.low.u32 %v1180
    %v1182 = vextract.high.u32 %v1180
    %v1183 = vmul.u32 %v1176, %v1167
    %v1184 = vadd.s32 %v1179, %v1181
    %vm1185 = vc.u32 %v1179, %v1181
    %v1186 = vadd.s32 %v1182, 1
    %v1187 = vsel %vm1185, %v1186, %v1182
    %v1188 = vadd.s32 %v1183, %v1187
    %v1189 = vadd.s32 %v1188, 536870912
    %v1190 = vshrl.u32 %v1189, 30
    %v1191 = vshll.u32 %v1190, 30
    %v1192 = vsub.s32 %v1188, %v1191
    %vm1193 = vcmp.lt.s32.totalorder %v1192, 0
    %v1194 = vsub.s32 0, %v1192
    %v1195 = vsel %vm1193, %v1194, %v1192
    %v1196 = vclz %v1195
    %v1197 = vsub.s32 %v1196, 2
    %vm1198 = vcmp.gt.s32.totalorder 0, %v1197
    %v1199 = vsel %vm1198, 0, %v1197
    %v1200 = vsub.s32 32, %v1199
    %v1201 = vshll.u32 %v1192, %v1199
    %v1202 = vshrl.u32 %v1184, %v1200
    %v1203 = vor.u32 %v1201, %v1202
    %v1204 = vsub.s32 4294967266, %v1199
    %v1205 = vadd.s32 %v1204, 127
    %v1206 = vshll.u32 %v1205, 23
    %v1207 = vor.u32 4788187, %v1206
    %v1208 = vand.u32 2147483647, %v1207
    %v1210 = vcvt.s32.f32 %v1203
    %v1211 = vmul.f32 %v1210, %v1208
    %v1212 = vxor.u32 %v1211, 2147483648
    %v1213 = vsel %vm1130, %v1212, %v1211
    %v1214 = vsub.s32 4, %v1190
    %v1215 = vsel %vm1130, %v1214, %v1190
    %v1216 = vsel %vm1129, %v308, %v1213
    %v1217 = vsel %vm1129, 0, %v1215
    %v1218 = vcosq.f32.pop %v1216
    %v1219 = vsinq.f32.pop %v1216
    %vm1220 = vweird.f32 %v308
    %v1221 = vand.u32 %v1217, 3
    %vm1222 = vcmp.lt.s32.totalorder %v1221, 2
    %vm1223 = vcmp.eq.s32.totalorder %v1221, 0
    %v1224 = vxor.u32 %v1219, 2147483648
    %v1225 = vsel %vm1223, %v1218, %v1224
    %vm1226 = vcmp.eq.s32.totalorder %v1221, 2
    %v1227 = vxor.u32 %v1218, 2147483648
    %v1228 = vsel %vm1226, %v1227, %v1219
    %v1229 = vsel %vm1222, %v1225, %v1228
    %v1230 = vsel %vm1220, nan, %v1229
    %v1231 = vand.u32 2147483647, %v313
    %vm1232 = vcmp.le.f32.partialorder %v1231, 0.7853982
    %vm1233 = vcmp.lt.s32.totalorder %v313, 0
    %v1234 = vand.u32 %v313, 2139095040
    %v1235 = vshrl.u32 %v1234, 23
    %v1236 = vsub.s32 %v1235, 127
    %v1237 = vand.u32 2147483647, %v313
    %v1238 = vand.u32 %v1237, 8388607
    %v1239 = vor.u32 %v1238, 8388608
    %v1240 = vsub.s32 0, %v1239
    %v1241 = vadd.s32 %v1236, 1
    %vm1242 = vcmp.gt.s32.totalorder %v1241, 0
    %v1243 = vsel %vm1242, %v1241, 0
    %v1244 = vshrl.u32 %v1243, 5
    %v1245 = vand.u32 %v1243, 31
    %v1246 = vsub.s32 32, %v1245
    %v1247 = vshrl.u32 683565275, %v1246
    %v1248 = vshll.u32 683565275, %v1245
    %v1249 = vshrl.u32 2475754826, %v1246
    %v1250 = vor.u32 %v1248, %v1249
    %v1251 = vshll.u32 2475754826, %v1245
    %v1252 = vshrl.u32 2131351028, %v1246
    %v1253 = vor.u32 %v1251, %v1252
    %v1254 = vshll.u32 2131351028, %v1245
    %v1255 = vshrl.u32 2102212464, %v1246
    %v1256 = vor.u32 %v1254, %v1255
    %v1257 = vshll.u32 2102212464, %v1245
    %v1258 = vshrl.u32 920167782, %v1246
    %v1259 = vor.u32 %v1257, %v1258
    %v1260 = vshll.u32 920167782, %v1245
    %v1261 = vshrl.u32 1326507024, %v1246
    %v1262 = vor.u32 %v1260, %v1261
    %vm1263 = vcmp.lt.s32.totalorder %v1244, 1
    %vm1264 = vcmp.lt.s32.totalorder %v1244, 2
    %vm1265 = vcmp.lt.s32.totalorder %v1244, 3
    %vm1266 = vcmp.lt.s32.totalorder %v1244, 4
    %v1267 = vsel %vm1263, %v1247, %v1250
    %v1268 = vsel %vm1266, %v1256, 2102212464
    %v1269 = vsel %vm1265, %v1253, %v1268
    %v1270 = vsel %vm1264, %v1267, %v1269
    %v1271 = vsel %vm1263, %v1250, %v1253
    %v1272 = vsel %vm1266, %v1259, 920167782
    %v1273 = vsel %vm1265, %v1256, %v1272
    %v1274 = vsel %vm1264, %v1271, %v1273
    %v1275 = vsel %vm1263, %v1253, %v1256
    %v1276 = vsel %vm1266, %v1262, 1326507024
    %v1277 = vsel %vm1265, %v1259, %v1276
    %v1278 = vsel %vm1264, %v1275, %v1277
    %v1279 = vshll.u32 %v1239, 8
    %v1280 = vmul.u32.u64.compose %v1279, %v1278
    %v1281 = vextract.low.u32 %v1280
    %v1282 = vextract.high.u32 %v1280
    %v1283 = vmul.u32.u64.compose %v1279, %v1274
    %v1284 = vextract.low.u32 %v1283
    %v1285 = vextract.high.u32 %v1283
    %v1286 = vmul.u32 %v1279, %v1270
    %v1287 = vadd.s32 %v1282, %v1284
    %vm1288 = vc.u32 %v1282, %v1284
    %v1289 = vadd.s32 %v1285, 1
    %v1290 = vsel %vm1288, %v1289, %v1285
    %v1291 = vadd.s32 %v1286, %v1290
    %v1292 = vadd.s32 %v1291, 536870912
    %v1293 = vshrl.u32 %v1292, 30
    %v1294 = vshll.u32 %v1293, 30
    %v1295 = vsub.s32 %v1291, %v1294
    %vm1296 = vcmp.lt.s32.totalorder %v1295, 0
    %v1297 = vsub.s32 0, %v1295
    %v1298 = vsel %vm1296, %v1297, %v1295
    %v1299 = vclz %v1298
    %v1300 = vsub.s32 %v1299, 2
    %vm1301 = vcmp.gt.s32.totalorder 0, %v1300
    %v1302 = vsel %vm1301, 0, %v1300
    %v1303 = vsub.s32 32, %v1302
    %v1304 = vshll.u32 %v1295, %v1302
    %v1305 = vshrl.u32 %v1287, %v1303
    %v1306 = vor.u32 %v1304, %v1305
    %v1307 = vsub.s32 4294967266, %v1302
    %v1308 = vadd.s32 %v1307, 127
    %v1309 = vshll.u32 %v1308, 23
    %v1310 = vor.u32 4788187, %v1309
    %v1311 = vand.u32 2147483647, %v1310
    %v1313 = vcvt.s32.f32 %v1306
    %v1314 = vmul.f32 %v1313, %v1311
    %v1315 = vxor.u32 %v1314, 2147483648
    %v1316 = vsel %vm1233, %v1315, %v1314
    %v1317 = vsub.s32 4, %v1293
    %v1318 = vsel %vm1233, %v1317, %v1293
    %v1319 = vsel %vm1232, %v313, %v1316
    %v1320 = vsel %vm1232, 0, %v1318
    %v1321 = vcosq.f32.pop %v1319
    %v1322 = vsinq.f32.pop %v1319
    %vm1323 = vweird.f32 %v313
    %v1324 = vand.u32 %v1320, 3
    %vm1325 = vcmp.lt.s32.totalorder %v1324, 2
    %vm1326 = vcmp.eq.s32.totalorder %v1324, 0
    %v1327 = vxor.u32 %v1322, 2147483648
    %v1328 = vsel %vm1326, %v1321, %v1327
    %vm1329 = vcmp.eq.s32.totalorder %v1324, 2
    %v1330 = vxor.u32 %v1321, 2147483648
    %v1331 = vsel %vm1329, %v1330, %v1322
    %v1332 = vsel %vm1325, %v1328, %v1331
    %v1333 = vsel %vm1323, nan, %v1332
    %v1334 = vand.u32 2147483647, %v316
    %vm1335 = vcmp.le.f32.partialorder %v1334, 0.7853982
    %vm1336 = vcmp.lt.s32.totalorder %v316, 0
    %v1337 = vand.u32 %v316, 2139095040
    %v1338 = vshrl.u32 %v1337, 23
    %v1339 = vsub.s32 %v1338, 127
    %v1340 = vand.u32 2147483647, %v316
    %v1341 = vand.u32 %v1340, 8388607
    %v1342 = vor.u32 %v1341, 8388608
    %v1343 = vsub.s32 0, %v1342
    %v1344 = vadd.s32 %v1339, 1
    %vm1345 = vcmp.gt.s32.totalorder %v1344, 0
    %v1346 = vsel %vm1345, %v1344, 0
    %v1347 = vshrl.u32 %v1346, 5
    %v1348 = vand.u32 %v1346, 31
    %v1349 = vsub.s32 32, %v1348
    %v1350 = vshrl.u32 683565275, %v1349
    %v1351 = vshll.u32 683565275, %v1348
    %v1352 = vshrl.u32 2475754826, %v1349
    %v1353 = vor.u32 %v1351, %v1352
    %v1354 = vshll.u32 2475754826, %v1348
    %v1355 = vshrl.u32 2131351028, %v1349
    %v1356 = vor.u32 %v1354, %v1355
    %v1357 = vshll.u32 2131351028, %v1348
    %v1358 = vshrl.u32 2102212464, %v1349
    %v1359 = vor.u32 %v1357, %v1358
    %v1360 = vshll.u32 2102212464, %v1348
    %v1361 = vshrl.u32 920167782, %v1349
    %v1362 = vor.u32 %v1360, %v1361
    %v1363 = vshll.u32 920167782, %v1348
    %v1364 = vshrl.u32 1326507024, %v1349
    %v1365 = vor.u32 %v1363, %v1364
    %vm1366 = vcmp.lt.s32.totalorder %v1347, 1
    %vm1367 = vcmp.lt.s32.totalorder %v1347, 2
    %vm1368 = vcmp.lt.s32.totalorder %v1347, 3
    %vm1369 = vcmp.lt.s32.totalorder %v1347, 4
    %v1370 = vsel %vm1366, %v1350, %v1353
    %v1371 = vsel %vm1369, %v1359, 2102212464
    %v1372 = vsel %vm1368, %v1356, %v1371
    %v1373 = vsel %vm1367, %v1370, %v1372
    %v1374 = vsel %vm1366, %v1353, %v1356
    %v1375 = vsel %vm1369, %v1362, 920167782
    %v1376 = vsel %vm1368, %v1359, %v1375
    %v1377 = vsel %vm1367, %v1374, %v1376
    %v1378 = vsel %vm1366, %v1356, %v1359
    %v1379 = vsel %vm1369, %v1365, 1326507024
    %v1380 = vsel %vm1368, %v1362, %v1379
    %v1381 = vsel %vm1367, %v1378, %v1380
    %v1382 = vshll.u32 %v1342, 8
    %v1383 = vmul.u32.u64.compose %v1382, %v1381
    %v1384 = vextract.low.u32 %v1383
    %v1385 = vextract.high.u32 %v1383
    %v1386 = vmul.u32.u64.compose %v1382, %v1377
    %v1387 = vextract.low.u32 %v1386
    %v1388 = vextract.high.u32 %v1386
    %v1389 = vmul.u32 %v1382, %v1373
    %v1390 = vadd.s32 %v1385, %v1387
    %vm1391 = vc.u32 %v1385, %v1387
    %v1392 = vadd.s32 %v1388, 1
    %v1393 = vsel %vm1391, %v1392, %v1388
    %v1394 = vadd.s32 %v1389, %v1393
    %v1395 = vadd.s32 %v1394, 536870912
    %v1396 = vshrl.u32 %v1395, 30
    %v1397 = vshll.u32 %v1396, 30
    %v1398 = vsub.s32 %v1394, %v1397
    %vm1399 = vcmp.lt.s32.totalorder %v1398, 0
    %v1400 = vsub.s32 0, %v1398
    %v1401 = vsel %vm1399, %v1400, %v1398
    %v1402 = vclz %v1401
    %v1403 = vsub.s32 %v1402, 2
    %vm1404 = vcmp.gt.s32.totalorder 0, %v1403
    %v1405 = vsel %vm1404, 0, %v1403
    %v1406 = vsub.s32 32, %v1405
    %v1407 = vshll.u32 %v1398, %v1405
    %v1408 = vshrl.u32 %v1390, %v1406
    %v1409 = vor.u32 %v1407, %v1408
    %v1410 = vsub.s32 4294967266, %v1405
    %v1411 = vadd.s32 %v1410, 127
    %v1412 = vshll.u32 %v1411, 23
    %v1413 = vor.u32 4788187, %v1412
    %v1414 = vand.u32 2147483647, %v1413
    %v1416 = vcvt.s32.f32 %v1409
    %v1417 = vmul.f32 %v1416, %v1414
    %v1418 = vxor.u32 %v1417, 2147483648
    %v1419 = vsel %vm1336, %v1418, %v1417
    %v1420 = vsub.s32 4, %v1396
    %v1421 = vsel %vm1336, %v1420, %v1396
    %v1422 = vsel %vm1335, %v316, %v1419
    %v1423 = vsel %vm1335, 0, %v1421
    %v1424 = vcosq.f32.pop %v1422
    %v1425 = vsinq.f32.pop %v1422
    %vm1426 = vweird.f32 %v316
    %v1427 = vand.u32 %v1423, 3
    %vm1428 = vcmp.lt.s32.totalorder %v1427, 2
    %vm1429 = vcmp.eq.s32.totalorder %v1427, 0
    %v1430 = vxor.u32 %v1425, 2147483648
    %v1431 = vsel %vm1429, %v1424, %v1430
    %vm1432 = vcmp.eq.s32.totalorder %v1427, 2
    %v1433 = vxor.u32 %v1424, 2147483648
    %v1434 = vsel %vm1432, %v1433, %v1425
    %v1435 = vsel %vm1428, %v1431, %v1434
    %v1436 = vsel %vm1426, nan, %v1435
    %v1437 = vand.u32 2147483647, %v321
    %vm1438 = vcmp.le.f32.partialorder %v1437, 0.7853982
    %vm1439 = vcmp.lt.s32.totalorder %v321, 0
    %v1440 = vand.u32 %v321, 2139095040
    %v1441 = vshrl.u32 %v1440, 23
    %v1442 = vsub.s32 %v1441, 127
    %v1443 = vand.u32 2147483647, %v321
    %v1444 = vand.u32 %v1443, 8388607
    %v1445 = vor.u32 %v1444, 8388608
    %v1446 = vsub.s32 0, %v1445
    %v1447 = vadd.s32 %v1442, 1
    %vm1448 = vcmp.gt.s32.totalorder %v1447, 0
    %v1449 = vsel %vm1448, %v1447, 0
    %v1450 = vshrl.u32 %v1449, 5
    %v1451 = vand.u32 %v1449, 31
    %v1452 = vsub.s32 32, %v1451
    %v1453 = vshrl.u32 683565275, %v1452
    %v1454 = vshll.u32 683565275, %v1451
    %v1455 = vshrl.u32 2475754826, %v1452
    %v1456 = vor.u32 %v1454, %v1455
    %v1457 = vshll.u32 2475754826, %v1451
    %v1458 = vshrl.u32 2131351028, %v1452
    %v1459 = vor.u32 %v1457, %v1458
    %v1460 = vshll.u32 2131351028, %v1451
    %v1461 = vshrl.u32 2102212464, %v1452
    %v1462 = vor.u32 %v1460, %v1461
    %v1463 = vshll.u32 2102212464, %v1451
    %v1464 = vshrl.u32 920167782, %v1452
    %v1465 = vor.u32 %v1463, %v1464
    %v1466 = vshll.u32 920167782, %v1451
    %v1467 = vshrl.u32 1326507024, %v1452
    %v1468 = vor.u32 %v1466, %v1467
    %vm1469 = vcmp.lt.s32.totalorder %v1450, 1
    %vm1470 = vcmp.lt.s32.totalorder %v1450, 2
    %vm1471 = vcmp.lt.s32.totalorder %v1450, 3
    %vm1472 = vcmp.lt.s32.totalorder %v1450, 4
    %v1473 = vsel %vm1469, %v1453, %v1456
    %v1474 = vsel %vm1472, %v1462, 2102212464
    %v1475 = vsel %vm1471, %v1459, %v1474
    %v1476 = vsel %vm1470, %v1473, %v1475
    %v1477 = vsel %vm1469, %v1456, %v1459
    %v1478 = vsel %vm1472, %v1465, 920167782
    %v1479 = vsel %vm1471, %v1462, %v1478
    %v1480 = vsel %vm1470, %v1477, %v1479
    %v1481 = vsel %vm1469, %v1459, %v1462
    %v1482 = vsel %vm1472, %v1468, 1326507024
    %v1483 = vsel %vm1471, %v1465, %v1482
    %v1484 = vsel %vm1470, %v1481, %v1483
    %v1485 = vshll.u32 %v1445, 8
    %v1486 = vmul.u32.u64.compose %v1485, %v1484
    %v1487 = vextract.low.u32 %v1486
    %v1488 = vextract.high.u32 %v1486
    %v1489 = vmul.u32.u64.compose %v1485, %v1480
    %v1490 = vextract.low.u32 %v1489
    %v1491 = vextract.high.u32 %v1489
    %v1492 = vmul.u32 %v1485, %v1476
    %v1493 = vadd.s32 %v1488, %v1490
    %vm1494 = vc.u32 %v1488, %v1490
    %v1495 = vadd.s32 %v1491, 1
    %v1496 = vsel %vm1494, %v1495, %v1491
    %v1497 = vadd.s32 %v1492, %v1496
    %v1498 = vadd.s32 %v1497, 536870912
    %v1499 = vshrl.u32 %v1498, 30
    %v1500 = vshll.u32 %v1499, 30
    %v1501 = vsub.s32 %v1497, %v1500
    %vm1502 = vcmp.lt.s32.totalorder %v1501, 0
    %v1503 = vsub.s32 0, %v1501
    %v1504 = vsel %vm1502, %v1503, %v1501
    %v1505 = vclz %v1504
    %v1506 = vsub.s32 %v1505, 2
    %vm1507 = vcmp.gt.s32.totalorder 0, %v1506
    %v1508 = vsel %vm1507, 0, %v1506
    %v1509 = vsub.s32 32, %v1508
    %v1510 = vshll.u32 %v1501, %v1508
    %v1511 = vshrl.u32 %v1493, %v1509
    %v1512 = vor.u32 %v1510, %v1511
    %v1513 = vsub.s32 4294967266, %v1508
    %v1514 = vadd.s32 %v1513, 127
    %v1515 = vshll.u32 %v1514, 23
    %v1516 = vor.u32 4788187, %v1515
    %v1517 = vand.u32 2147483647, %v1516
    %v1519 = vcvt.s32.f32 %v1512
    %v1520 = vmul.f32 %v1519, %v1517
    %v1521 = vxor.u32 %v1520, 2147483648
    %v1522 = vsel %vm1439, %v1521, %v1520
    %v1523 = vsub.s32 4, %v1499
    %v1524 = vsel %vm1439, %v1523, %v1499
    %v1525 = vsel %vm1438, %v321, %v1522
    %v1526 = vsel %vm1438, 0, %v1524
    %v1527 = vcosq.f32.pop %v1525
    %v1528 = vsinq.f32.pop %v1525
    %vm1529 = vweird.f32 %v321
    %v1530 = vand.u32 %v1526, 3
    %vm1531 = vcmp.lt.s32.totalorder %v1530, 2
    %vm1532 = vcmp.eq.s32.totalorder %v1530, 0
    %v1533 = vxor.u32 %v1528, 2147483648
    %v1534 = vsel %vm1532, %v1527, %v1533
    %vm1535 = vcmp.eq.s32.totalorder %v1530, 2
    %v1536 = vxor.u32 %v1527, 2147483648
    %v1537 = vsel %vm1535, %v1536, %v1528
    %v1538 = vsel %vm1531, %v1534, %v1537
    %v1539 = vsel %vm1529, nan, %v1538
    %v1540 = vand.u32 2147483647, %v324
    %vm1541 = vcmp.le.f32.partialorder %v1540, 0.7853982
    %vm1542 = vcmp.lt.s32.totalorder %v324, 0
    %v1543 = vand.u32 %v324, 2139095040
    %v1544 = vshrl.u32 %v1543, 23
    %v1545 = vsub.s32 %v1544, 127
    %v1546 = vand.u32 2147483647, %v324
    %v1547 = vand.u32 %v1546, 8388607
    %v1548 = vor.u32 %v1547, 8388608
    %v1549 = vsub.s32 0, %v1548
    %v1550 = vadd.s32 %v1545, 1
    %vm1551 = vcmp.gt.s32.totalorder %v1550, 0
    %v1552 = vsel %vm1551, %v1550, 0
    %v1553 = vshrl.u32 %v1552, 5
    %v1554 = vand.u32 %v1552, 31
    %v1555 = vsub.s32 32, %v1554
    %v1556 = vshrl.u32 683565275, %v1555
    %v1557 = vshll.u32 683565275, %v1554
    %v1558 = vshrl.u32 2475754826, %v1555
    %v1559 = vor.u32 %v1557, %v1558
    %v1560 = vshll.u32 2475754826, %v1554
    %v1561 = vshrl.u32 2131351028, %v1555
    %v1562 = vor.u32 %v1560, %v1561
    %v1563 = vshll.u32 2131351028, %v1554
    %v1564 = vshrl.u32 2102212464, %v1555
    %v1565 = vor.u32 %v1563, %v1564
    %v1566 = vshll.u32 2102212464, %v1554
    %v1567 = vshrl.u32 920167782, %v1555
    %v1568 = vor.u32 %v1566, %v1567
    %v1569 = vshll.u32 920167782, %v1554
    %v1570 = vshrl.u32 1326507024, %v1555
    %v1571 = vor.u32 %v1569, %v1570
    %vm1572 = vcmp.lt.s32.totalorder %v1553, 1
    %vm1573 = vcmp.lt.s32.totalorder %v1553, 2
    %vm1574 = vcmp.lt.s32.totalorder %v1553, 3
    %vm1575 = vcmp.lt.s32.totalorder %v1553, 4
    %v1576 = vsel %vm1572, %v1556, %v1559
    %v1577 = vsel %vm1575, %v1565, 2102212464
    %v1578 = vsel %vm1574, %v1562, %v1577
    %v1579 = vsel %vm1573, %v1576, %v1578
    %v1580 = vsel %vm1572, %v1559, %v1562
    %v1581 = vsel %vm1575, %v1568, 920167782
    %v1582 = vsel %vm1574, %v1565, %v1581
    %v1583 = vsel %vm1573, %v1580, %v1582
    %v1584 = vsel %vm1572, %v1562, %v1565
    %v1585 = vsel %vm1575, %v1571, 1326507024
    %v1586 = vsel %vm1574, %v1568, %v1585
    %v1587 = vsel %vm1573, %v1584, %v1586
    %v1588 = vshll.u32 %v1548, 8
    %v1589 = vmul.u32.u64.compose %v1588, %v1587
    %v1590 = vextract.low.u32 %v1589
    %v1591 = vextract.high.u32 %v1589
    %v1592 = vmul.u32.u64.compose %v1588, %v1583
    %v1593 = vextract.low.u32 %v1592
    %v1594 = vextract.high.u32 %v1592
    %v1595 = vmul.u32 %v1588, %v1579
    %v1596 = vadd.s32 %v1591, %v1593
    %vm1597 = vc.u32 %v1591, %v1593
    %v1598 = vadd.s32 %v1594, 1
    %v1599 = vsel %vm1597, %v1598, %v1594
    %v1600 = vadd.s32 %v1595, %v1599
    %v1601 = vadd.s32 %v1600, 536870912
    %v1602 = vshrl.u32 %v1601, 30
    %v1603 = vshll.u32 %v1602, 30
    %v1604 = vsub.s32 %v1600, %v1603
    %vm1605 = vcmp.lt.s32.totalorder %v1604, 0
    %v1606 = vsub.s32 0, %v1604
    %v1607 = vsel %vm1605, %v1606, %v1604
    %v1608 = vclz %v1607
    %v1609 = vsub.s32 %v1608, 2
    %vm1610 = vcmp.gt.s32.totalorder 0, %v1609
    %v1611 = vsel %vm1610, 0, %v1609
    %v1612 = vsub.s32 32, %v1611
    %v1613 = vshll.u32 %v1604, %v1611
    %v1614 = vshrl.u32 %v1596, %v1612
    %v1615 = vor.u32 %v1613, %v1614
    %v1616 = vsub.s32 4294967266, %v1611
    %v1617 = vadd.s32 %v1616, 127
    %v1618 = vshll.u32 %v1617, 23
    %v1619 = vor.u32 4788187, %v1618
    %v1620 = vand.u32 2147483647, %v1619
    %v1622 = vcvt.s32.f32 %v1615
    %v1623 = vmul.f32 %v1622, %v1620
    %v1624 = vxor.u32 %v1623, 2147483648
    %v1625 = vsel %vm1542, %v1624, %v1623
    %v1626 = vsub.s32 4, %v1602
    %v1627 = vsel %vm1542, %v1626, %v1602
    %v1628 = vsel %vm1541, %v324, %v1625
    %v1629 = vsel %vm1541, 0, %v1627
    %v1630 = vcosq.f32.pop %v1628
    %v1631 = vsinq.f32.pop %v1628
    %vm1632 = vweird.f32 %v324
    %v1633 = vand.u32 %v1629, 3
    %vm1634 = vcmp.lt.s32.totalorder %v1633, 2
    %vm1635 = vcmp.eq.s32.totalorder %v1633, 0
    %v1636 = vxor.u32 %v1631, 2147483648
    %v1637 = vsel %vm1635, %v1630, %v1636
    %vm1638 = vcmp.eq.s32.totalorder %v1633, 2
    %v1639 = vxor.u32 %v1630, 2147483648
    %v1640 = vsel %vm1638, %v1639, %v1631
    %v1641 = vsel %vm1634, %v1637, %v1640
    %v1642 = vsel %vm1632, nan, %v1641
    %v1643 = vand.u32 2147483647, %v329
    %vm1644 = vcmp.le.f32.partialorder %v1643, 0.7853982
    %vm1645 = vcmp.lt.s32.totalorder %v329, 0
    %v1646 = vand.u32 %v329, 2139095040
    %v1647 = vshrl.u32 %v1646, 23
    %v1648 = vsub.s32 %v1647, 127
    %v1649 = vand.u32 2147483647, %v329
    %v1650 = vand.u32 %v1649, 8388607
    %v1651 = vor.u32 %v1650, 8388608
    %v1652 = vsub.s32 0, %v1651
    %v1653 = vadd.s32 %v1648, 1
    %vm1654 = vcmp.gt.s32.totalorder %v1653, 0
    %v1655 = vsel %vm1654, %v1653, 0
    %v1656 = vshrl.u32 %v1655, 5
    %v1657 = vand.u32 %v1655, 31
    %v1658 = vsub.s32 32, %v1657
    %v1659 = vshrl.u32 683565275, %v1658
    %v1660 = vshll.u32 683565275, %v1657
    %v1661 = vshrl.u32 2475754826, %v1658
    %v1662 = vor.u32 %v1660, %v1661
    %v1663 = vshll.u32 2475754826, %v1657
    %v1664 = vshrl.u32 2131351028, %v1658
    %v1665 = vor.u32 %v1663, %v1664
    %v1666 = vshll.u32 2131351028, %v1657
    %v1667 = vshrl.u32 2102212464, %v1658
    %v1668 = vor.u32 %v1666, %v1667
    %v1669 = vshll.u32 2102212464, %v1657
    %v1670 = vshrl.u32 920167782, %v1658
    %v1671 = vor.u32 %v1669, %v1670
    %v1672 = vshll.u32 920167782, %v1657
    %v1673 = vshrl.u32 1326507024, %v1658
    %v1674 = vor.u32 %v1672, %v1673
    %vm1675 = vcmp.lt.s32.totalorder %v1656, 1
    %vm1676 = vcmp.lt.s32.totalorder %v1656, 2
    %vm1677 = vcmp.lt.s32.totalorder %v1656, 3
    %vm1678 = vcmp.lt.s32.totalorder %v1656, 4
    %v1679 = vsel %vm1675, %v1659, %v1662
    %v1680 = vsel %vm1678, %v1668, 2102212464
    %v1681 = vsel %vm1677, %v1665, %v1680
    %v1682 = vsel %vm1676, %v1679, %v1681
    %v1683 = vsel %vm1675, %v1662, %v1665
    %v1684 = vsel %vm1678, %v1671, 920167782
    %v1685 = vsel %vm1677, %v1668, %v1684
    %v1686 = vsel %vm1676, %v1683, %v1685
    %v1687 = vsel %vm1675, %v1665, %v1668
    %v1688 = vsel %vm1678, %v1674, 1326507024
    %v1689 = vsel %vm1677, %v1671, %v1688
    %v1690 = vsel %vm1676, %v1687, %v1689
    %v1691 = vshll.u32 %v1651, 8
    %v1692 = vmul.u32.u64.compose %v1691, %v1690
    %v1693 = vextract.low.u32 %v1692
    %v1694 = vextract.high.u32 %v1692
    %v1695 = vmul.u32.u64.compose %v1691, %v1686
    %v1696 = vextract.low.u32 %v1695
    %v1697 = vextract.high.u32 %v1695
    %v1698 = vmul.u32 %v1691, %v1682
    %v1699 = vadd.s32 %v1694, %v1696
    %vm1700 = vc.u32 %v1694, %v1696
    %v1701 = vadd.s32 %v1697, 1
    %v1702 = vsel %vm1700, %v1701, %v1697
    %v1703 = vadd.s32 %v1698, %v1702
    %v1704 = vadd.s32 %v1703, 536870912
    %v1705 = vshrl.u32 %v1704, 30
    %v1706 = vshll.u32 %v1705, 30
    %v1707 = vsub.s32 %v1703, %v1706
    %vm1708 = vcmp.lt.s32.totalorder %v1707, 0
    %v1709 = vsub.s32 0, %v1707
    %v1710 = vsel %vm1708, %v1709, %v1707
    %v1711 = vclz %v1710
    %v1712 = vsub.s32 %v1711, 2
    %vm1713 = vcmp.gt.s32.totalorder 0, %v1712
    %v1714 = vsel %vm1713, 0, %v1712
    %v1715 = vsub.s32 32, %v1714
    %v1716 = vshll.u32 %v1707, %v1714
    %v1717 = vshrl.u32 %v1699, %v1715
    %v1718 = vor.u32 %v1716, %v1717
    %v1719 = vsub.s32 4294967266, %v1714
    %v1720 = vadd.s32 %v1719, 127
    %v1721 = vshll.u32 %v1720, 23
    %v1722 = vor.u32 4788187, %v1721
    %v1723 = vand.u32 2147483647, %v1722
    %v1725 = vcvt.s32.f32 %v1718
    %v1726 = vmul.f32 %v1725, %v1723
    %v1727 = vxor.u32 %v1726, 2147483648
    %v1728 = vsel %vm1645, %v1727, %v1726
    %v1729 = vsub.s32 4, %v1705
    %v1730 = vsel %vm1645, %v1729, %v1705
    %v1731 = vsel %vm1644, %v329, %v1728
    %v1732 = vsel %vm1644, 0, %v1730
    %v1733 = vcosq.f32.pop %v1731
    %v1734 = vsinq.f32.pop %v1731
    %vm1735 = vweird.f32 %v329
    %v1736 = vand.u32 %v1732, 3
    %vm1737 = vcmp.lt.s32.totalorder %v1736, 2
    %vm1738 = vcmp.eq.s32.totalorder %v1736, 0
    %v1739 = vxor.u32 %v1734, 2147483648
    %v1740 = vsel %vm1738, %v1733, %v1739
    %vm1741 = vcmp.eq.s32.totalorder %v1736, 2
    %v1742 = vxor.u32 %v1733, 2147483648
    %v1743 = vsel %vm1741, %v1742, %v1734
    %v1744 = vsel %vm1737, %v1740, %v1743
    %v1745 = vsel %vm1735, nan, %v1744
    %v1746 = vand.u32 2147483647, %v332
    %vm1747 = vcmp.le.f32.partialorder %v1746, 0.7853982
    %vm1748 = vcmp.lt.s32.totalorder %v332, 0
    %v1749 = vand.u32 %v332, 2139095040
    %v1750 = vshrl.u32 %v1749, 23
    %v1751 = vsub.s32 %v1750, 127
    %v1752 = vand.u32 2147483647, %v332
    %v1753 = vand.u32 %v1752, 8388607
    %v1754 = vor.u32 %v1753, 8388608
    %v1755 = vsub.s32 0, %v1754
    %v1756 = vadd.s32 %v1751, 1
    %vm1757 = vcmp.gt.s32.totalorder %v1756, 0
    %v1758 = vsel %vm1757, %v1756, 0
    %v1759 = vshrl.u32 %v1758, 5
    %v1760 = vand.u32 %v1758, 31
    %v1761 = vsub.s32 32, %v1760
    %v1762 = vshrl.u32 683565275, %v1761
    %v1763 = vshll.u32 683565275, %v1760
    %v1764 = vshrl.u32 2475754826, %v1761
    %v1765 = vor.u32 %v1763, %v1764
    %v1766 = vshll.u32 2475754826, %v1760
    %v1767 = vshrl.u32 2131351028, %v1761
    %v1768 = vor.u32 %v1766, %v1767
    %v1769 = vshll.u32 2131351028, %v1760
    %v1770 = vshrl.u32 2102212464, %v1761
    %v1771 = vor.u32 %v1769, %v1770
    %v1772 = vshll.u32 2102212464, %v1760
    %v1773 = vshrl.u32 920167782, %v1761
    %v1774 = vor.u32 %v1772, %v1773
    %v1775 = vshll.u32 920167782, %v1760
    %v1776 = vshrl.u32 1326507024, %v1761
    %v1777 = vor.u32 %v1775, %v1776
    %vm1778 = vcmp.lt.s32.totalorder %v1759, 1
    %vm1779 = vcmp.lt.s32.totalorder %v1759, 2
    %vm1780 = vcmp.lt.s32.totalorder %v1759, 3
    %vm1781 = vcmp.lt.s32.totalorder %v1759, 4
    %v1782 = vsel %vm1778, %v1762, %v1765
    %v1783 = vsel %vm1781, %v1771, 2102212464
    %v1784 = vsel %vm1780, %v1768, %v1783
    %v1785 = vsel %vm1779, %v1782, %v1784
    %v1786 = vsel %vm1778, %v1765, %v1768
    %v1787 = vsel %vm1781, %v1774, 920167782
    %v1788 = vsel %vm1780, %v1771, %v1787
    %v1789 = vsel %vm1779, %v1786, %v1788
    %v1790 = vsel %vm1778, %v1768, %v1771
    %v1791 = vsel %vm1781, %v1777, 1326507024
    %v1792 = vsel %vm1780, %v1774, %v1791
    %v1793 = vsel %vm1779, %v1790, %v1792
    %v1794 = vshll.u32 %v1754, 8
    %v1795 = vmul.u32.u64.compose %v1794, %v1793
    %v1796 = vextract.low.u32 %v1795
    %v1797 = vextract.high.u32 %v1795
    %v1798 = vmul.u32.u64.compose %v1794, %v1789
    %v1799 = vextract.low.u32 %v1798
    %v1800 = vextract.high.u32 %v1798
    %v1801 = vmul.u32 %v1794, %v1785
    %v1802 = vadd.s32 %v1797, %v1799
    %vm1803 = vc.u32 %v1797, %v1799
    %v1804 = vadd.s32 %v1800, 1
    %v1805 = vsel %vm1803, %v1804, %v1800
    %v1806 = vadd.s32 %v1801, %v1805
    %v1807 = vadd.s32 %v1806, 536870912
    %v1808 = vshrl.u32 %v1807, 30
    %v1809 = vshll.u32 %v1808, 30
    %v1810 = vsub.s32 %v1806, %v1809
    %vm1811 = vcmp.lt.s32.totalorder %v1810, 0
    %v1812 = vsub.s32 0, %v1810
    %v1813 = vsel %vm1811, %v1812, %v1810
    %v1814 = vclz %v1813
    %v1815 = vsub.s32 %v1814, 2
    %vm1816 = vcmp.gt.s32.totalorder 0, %v1815
    %v1817 = vsel %vm1816, 0, %v1815
    %v1818 = vsub.s32 32, %v1817
    %v1819 = vshll.u32 %v1810, %v1817
    %v1820 = vshrl.u32 %v1802, %v1818
    %v1821 = vor.u32 %v1819, %v1820
    %v1822 = vsub.s32 4294967266, %v1817
    %v1823 = vadd.s32 %v1822, 127
    %v1824 = vshll.u32 %v1823, 23
    %v1825 = vor.u32 4788187, %v1824
    %v1826 = vand.u32 2147483647, %v1825
    %v1828 = vcvt.s32.f32 %v1821
    %v1829 = vmul.f32 %v1828, %v1826
    %v1830 = vxor.u32 %v1829, 2147483648
    %v1831 = vsel %vm1748, %v1830, %v1829
    %v1832 = vsub.s32 4, %v1808
    %v1833 = vsel %vm1748, %v1832, %v1808
    %v1834 = vsel %vm1747, %v332, %v1831
    %v1835 = vsel %vm1747, 0, %v1833
    %v1836 = vcosq.f32.pop %v1834
    %v1837 = vsinq.f32.pop %v1834
    %vm1838 = vweird.f32 %v332
    %v1839 = vand.u32 %v1835, 3
    %vm1840 = vcmp.lt.s32.totalorder %v1839, 2
    %vm1841 = vcmp.eq.s32.totalorder %v1839, 0
    %v1842 = vxor.u32 %v1837, 2147483648
    %v1843 = vsel %vm1841, %v1836, %v1842
    %vm1844 = vcmp.eq.s32.totalorder %v1839, 2
    %v1845 = vxor.u32 %v1836, 2147483648
    %v1846 = vsel %vm1844, %v1845, %v1837
    %v1847 = vsel %vm1840, %v1843, %v1846
    %v1848 = vsel %vm1838, nan, %v1847
    %v1849 = vand.u32 2147483647, %v337
    %vm1850 = vcmp.le.f32.partialorder %v1849, 0.7853982
    %vm1851 = vcmp.lt.s32.totalorder %v337, 0
    %v1852 = vand.u32 %v337, 2139095040
    %v1853 = vshrl.u32 %v1852, 23
    %v1854 = vsub.s32 %v1853, 127
    %v1855 = vand.u32 2147483647, %v337
    %v1856 = vand.u32 %v1855, 8388607
    %v1857 = vor.u32 %v1856, 8388608
    %v1858 = vsub.s32 0, %v1857
    %v1859 = vadd.s32 %v1854, 1
    %vm1860 = vcmp.gt.s32.totalorder %v1859, 0
    %v1861 = vsel %vm1860, %v1859, 0
    %v1862 = vshrl.u32 %v1861, 5
    %v1863 = vand.u32 %v1861, 31
    %v1864 = vsub.s32 32, %v1863
    %v1865 = vshrl.u32 683565275, %v1864
    %v1866 = vshll.u32 683565275, %v1863
    %v1867 = vshrl.u32 2475754826, %v1864
    %v1868 = vor.u32 %v1866, %v1867
    %v1869 = vshll.u32 2475754826, %v1863
    %v1870 = vshrl.u32 2131351028, %v1864
    %v1871 = vor.u32 %v1869, %v1870
    %v1872 = vshll.u32 2131351028, %v1863
    %v1873 = vshrl.u32 2102212464, %v1864
    %v1874 = vor.u32 %v1872, %v1873
    %v1875 = vshll.u32 2102212464, %v1863
    %v1876 = vshrl.u32 920167782, %v1864
    %v1877 = vor.u32 %v1875, %v1876
    %v1878 = vshll.u32 920167782, %v1863
    %v1879 = vshrl.u32 1326507024, %v1864
    %v1880 = vor.u32 %v1878, %v1879
    %vm1881 = vcmp.lt.s32.totalorder %v1862, 1
    %vm1882 = vcmp.lt.s32.totalorder %v1862, 2
    %vm1883 = vcmp.lt.s32.totalorder %v1862, 3
    %vm1884 = vcmp.lt.s32.totalorder %v1862, 4
    %v1885 = vsel %vm1881, %v1865, %v1868
    %v1886 = vsel %vm1884, %v1874, 2102212464
    %v1887 = vsel %vm1883, %v1871, %v1886
    %v1888 = vsel %vm1882, %v1885, %v1887
    %v1889 = vsel %vm1881, %v1868, %v1871
    %v1890 = vsel %vm1884, %v1877, 920167782
    %v1891 = vsel %vm1883, %v1874, %v1890
    %v1892 = vsel %vm1882, %v1889, %v1891
    %v1893 = vsel %vm1881, %v1871, %v1874
    %v1894 = vsel %vm1884, %v1880, 1326507024
    %v1895 = vsel %vm1883, %v1877, %v1894
    %v1896 = vsel %vm1882, %v1893, %v1895
    %v1897 = vshll.u32 %v1857, 8
    %v1898 = vmul.u32.u64.compose %v1897, %v1896
    %v1899 = vextract.low.u32 %v1898
    %v1900 = vextract.high.u32 %v1898
    %v1901 = vmul.u32.u64.compose %v1897, %v1892
    %v1902 = vextract.low.u32 %v1901
    %v1903 = vextract.high.u32 %v1901
    %v1904 = vmul.u32 %v1897, %v1888
    %v1905 = vadd.s32 %v1900, %v1902
    %vm1906 = vc.u32 %v1900, %v1902
    %v1907 = vadd.s32 %v1903, 1
    %v1908 = vsel %vm1906, %v1907, %v1903
    %v1909 = vadd.s32 %v1904, %v1908
    %v1910 = vadd.s32 %v1909, 536870912
    %v1911 = vshrl.u32 %v1910, 30
    %v1912 = vshll.u32 %v1911, 30
    %v1913 = vsub.s32 %v1909, %v1912
    %vm1914 = vcmp.lt.s32.totalorder %v1913, 0
    %v1915 = vsub.s32 0, %v1913
    %v1916 = vsel %vm1914, %v1915, %v1913
    %v1917 = vclz %v1916
    %v1918 = vsub.s32 %v1917, 2
    %vm1919 = vcmp.gt.s32.totalorder 0, %v1918
    %v1920 = vsel %vm1919, 0, %v1918
    %v1921 = vsub.s32 32, %v1920
    %v1922 = vshll.u32 %v1913, %v1920
    %v1923 = vshrl.u32 %v1905, %v1921
    %v1924 = vor.u32 %v1922, %v1923
    %v1925 = vsub.s32 4294967266, %v1920
    %v1926 = vadd.s32 %v1925, 127
    %v1927 = vshll.u32 %v1926, 23
    %v1928 = vor.u32 4788187, %v1927
    %v1929 = vand.u32 2147483647, %v1928
    %v1931 = vcvt.s32.f32 %v1924
    %v1932 = vmul.f32 %v1931, %v1929
    %v1933 = vxor.u32 %v1932, 2147483648
    %v1934 = vsel %vm1851, %v1933, %v1932
    %v1935 = vsub.s32 4, %v1911
    %v1936 = vsel %vm1851, %v1935, %v1911
    %v1937 = vsel %vm1850, %v337, %v1934
    %v1938 = vsel %vm1850, 0, %v1936
    %v1939 = vcosq.f32.pop %v1937
    %v1940 = vsinq.f32.pop %v1937
    %vm1941 = vweird.f32 %v337
    %v1942 = vand.u32 %v1938, 3
    %vm1943 = vcmp.lt.s32.totalorder %v1942, 2
    %vm1944 = vcmp.eq.s32.totalorder %v1942, 0
    %v1945 = vxor.u32 %v1940, 2147483648
    %v1946 = vsel %vm1944, %v1939, %v1945
    %vm1947 = vcmp.eq.s32.totalorder %v1942, 2
    %v1948 = vxor.u32 %v1939, 2147483648
    %v1949 = vsel %vm1947, %v1948, %v1940
    %v1950 = vsel %vm1943, %v1946, %v1949
    %v1951 = vsel %vm1941, nan, %v1950
    %v1952 = vand.u32 2147483647, %v340
    %vm1953 = vcmp.le.f32.partialorder %v1952, 0.7853982
    %vm1954 = vcmp.lt.s32.totalorder %v340, 0
    %v1955 = vand.u32 %v340, 2139095040
    %v1956 = vshrl.u32 %v1955, 23
    %v1957 = vsub.s32 %v1956, 127
    %v1958 = vand.u32 2147483647, %v340
    %v1959 = vand.u32 %v1958, 8388607
    %v1960 = vor.u32 %v1959, 8388608
    %v1961 = vsub.s32 0, %v1960
    %v1962 = vadd.s32 %v1957, 1
    %vm1963 = vcmp.gt.s32.totalorder %v1962, 0
    %v1964 = vsel %vm1963, %v1962, 0
    %v1965 = vshrl.u32 %v1964, 5
    %v1966 = vand.u32 %v1964, 31
    %v1967 = vsub.s32 32, %v1966
    %v1968 = vshrl.u32 683565275, %v1967
    %v1969 = vshll.u32 683565275, %v1966
    %v1970 = vshrl.u32 2475754826, %v1967
    %v1971 = vor.u32 %v1969, %v1970
    %v1972 = vshll.u32 2475754826, %v1966
    %v1973 = vshrl.u32 2131351028, %v1967
    %v1974 = vor.u32 %v1972, %v1973
    %v1975 = vshll.u32 2131351028, %v1966
    %v1976 = vshrl.u32 2102212464, %v1967
    %v1977 = vor.u32 %v1975, %v1976
    %v1978 = vshll.u32 2102212464, %v1966
    %v1979 = vshrl.u32 920167782, %v1967
    %v1980 = vor.u32 %v1978, %v1979
    %v1981 = vshll.u32 920167782, %v1966
    %v1982 = vshrl.u32 1326507024, %v1967
    %v1983 = vor.u32 %v1981, %v1982
    %vm1984 = vcmp.lt.s32.totalorder %v1965, 1
    %vm1985 = vcmp.lt.s32.totalorder %v1965, 2
    %vm1986 = vcmp.lt.s32.totalorder %v1965, 3
    %vm1987 = vcmp.lt.s32.totalorder %v1965, 4
    %v1988 = vsel %vm1984, %v1968, %v1971
    %v1989 = vsel %vm1987, %v1977, 2102212464
    %v1990 = vsel %vm1986, %v1974, %v1989
    %v1991 = vsel %vm1985, %v1988, %v1990
    %v1992 = vsel %vm1984, %v1971, %v1974
    %v1993 = vsel %vm1987, %v1980, 920167782
    %v1994 = vsel %vm1986, %v1977, %v1993
    %v1995 = vsel %vm1985, %v1992, %v1994
    %v1996 = vsel %vm1984, %v1974, %v1977
    %v1997 = vsel %vm1987, %v1983, 1326507024
    %v1998 = vsel %vm1986, %v1980, %v1997
    %v1999 = vsel %vm1985, %v1996, %v1998
    %v2000 = vshll.u32 %v1960, 8
    %v2001 = vmul.u32.u64.compose %v2000, %v1999
    %v2002 = vextract.low.u32 %v2001
    %v2003 = vextract.high.u32 %v2001
    %v2004 = vmul.u32.u64.compose %v2000, %v1995
    %v2005 = vextract.low.u32 %v2004
    %v2006 = vextract.high.u32 %v2004
    %v2007 = vmul.u32 %v2000, %v1991
    %v2008 = vadd.s32 %v2003, %v2005
    %vm2009 = vc.u32 %v2003, %v2005
    %v2010 = vadd.s32 %v2006, 1
    %v2011 = vsel %vm2009, %v2010, %v2006
    %v2012 = vadd.s32 %v2007, %v2011
    %v2013 = vadd.s32 %v2012, 536870912
    %v2014 = vshrl.u32 %v2013, 30
    %v2015 = vshll.u32 %v2014, 30
    %v2016 = vsub.s32 %v2012, %v2015
    %vm2017 = vcmp.lt.s32.totalorder %v2016, 0
    %v2018 = vsub.s32 0, %v2016
    %v2019 = vsel %vm2017, %v2018, %v2016
    %v2020 = vclz %v2019
    %v2021 = vsub.s32 %v2020, 2
    %vm2022 = vcmp.gt.s32.totalorder 0, %v2021
    %v2023 = vsel %vm2022, 0, %v2021
    %v2024 = vsub.s32 32, %v2023
    %v2025 = vshll.u32 %v2016, %v2023
    %v2026 = vshrl.u32 %v2008, %v2024
    %v2027 = vor.u32 %v2025, %v2026
    %v2028 = vsub.s32 4294967266, %v2023
    %v2029 = vadd.s32 %v2028, 127
    %v2030 = vshll.u32 %v2029, 23
    %v2031 = vor.u32 4788187, %v2030
    %v2032 = vand.u32 2147483647, %v2031
    %v2034 = vcvt.s32.f32 %v2027
    %v2035 = vmul.f32 %v2034, %v2032
    %v2036 = vxor.u32 %v2035, 2147483648
    %v2037 = vsel %vm1954, %v2036, %v2035
    %v2038 = vsub.s32 4, %v2014
    %v2039 = vsel %vm1954, %v2038, %v2014
    %v2040 = vsel %vm1953, %v340, %v2037
    %v2041 = vsel %vm1953, 0, %v2039
    %v2042 = vcosq.f32.pop %v2040
    %v2043 = vsinq.f32.pop %v2040
    %vm2044 = vweird.f32 %v340
    %v2045 = vand.u32 %v2041, 3
    %vm2046 = vcmp.lt.s32.totalorder %v2045, 2
    %vm2047 = vcmp.eq.s32.totalorder %v2045, 0
    %v2048 = vxor.u32 %v2043, 2147483648
    %v2049 = vsel %vm2047, %v2042, %v2048
    %vm2050 = vcmp.eq.s32.totalorder %v2045, 2
    %v2051 = vxor.u32 %v2042, 2147483648
    %v2052 = vsel %vm2050, %v2051, %v2043
    %v2053 = vsel %vm2046, %v2049, %v2052
    %v2054 = vsel %vm2044, nan, %v2053
    %v2055 = vand.u32 2147483647, %v345
    %vm2056 = vcmp.le.f32.partialorder %v2055, 0.7853982
    %vm2057 = vcmp.lt.s32.totalorder %v345, 0
    %v2058 = vand.u32 %v345, 2139095040
    %v2059 = vshrl.u32 %v2058, 23
    %v2060 = vsub.s32 %v2059, 127
    %v2061 = vand.u32 2147483647, %v345
    %v2062 = vand.u32 %v2061, 8388607
    %v2063 = vor.u32 %v2062, 8388608
    %v2064 = vsub.s32 0, %v2063
    %v2065 = vadd.s32 %v2060, 1
    %vm2066 = vcmp.gt.s32.totalorder %v2065, 0
    %v2067 = vsel %vm2066, %v2065, 0
    %v2068 = vshrl.u32 %v2067, 5
    %v2069 = vand.u32 %v2067, 31
    %v2070 = vsub.s32 32, %v2069
    %v2071 = vshrl.u32 683565275, %v2070
    %v2072 = vshll.u32 683565275, %v2069
    %v2073 = vshrl.u32 2475754826, %v2070
    %v2074 = vor.u32 %v2072, %v2073
    %v2075 = vshll.u32 2475754826, %v2069
    %v2076 = vshrl.u32 2131351028, %v2070
    %v2077 = vor.u32 %v2075, %v2076
    %v2078 = vshll.u32 2131351028, %v2069
    %v2079 = vshrl.u32 2102212464, %v2070
    %v2080 = vor.u32 %v2078, %v2079
    %v2081 = vshll.u32 2102212464, %v2069
    %v2082 = vshrl.u32 920167782, %v2070
    %v2083 = vor.u32 %v2081, %v2082
    %v2084 = vshll.u32 920167782, %v2069
    %v2085 = vshrl.u32 1326507024, %v2070
    %v2086 = vor.u32 %v2084, %v2085
    %vm2087 = vcmp.lt.s32.totalorder %v2068, 1
    %vm2088 = vcmp.lt.s32.totalorder %v2068, 2
    %vm2089 = vcmp.lt.s32.totalorder %v2068, 3
    %vm2090 = vcmp.lt.s32.totalorder %v2068, 4
    %v2091 = vsel %vm2087, %v2071, %v2074
    %v2092 = vsel %vm2090, %v2080, 2102212464
    %v2093 = vsel %vm2089, %v2077, %v2092
    %v2094 = vsel %vm2088, %v2091, %v2093
    %v2095 = vsel %vm2087, %v2074, %v2077
    %v2096 = vsel %vm2090, %v2083, 920167782
    %v2097 = vsel %vm2089, %v2080, %v2096
    %v2098 = vsel %vm2088, %v2095, %v2097
    %v2099 = vsel %vm2087, %v2077, %v2080
    %v2100 = vsel %vm2090, %v2086, 1326507024
    %v2101 = vsel %vm2089, %v2083, %v2100
    %v2102 = vsel %vm2088, %v2099, %v2101
    %v2103 = vshll.u32 %v2063, 8
    %v2104 = vmul.u32.u64.compose %v2103, %v2102
    %v2105 = vextract.low.u32 %v2104
    %v2106 = vextract.high.u32 %v2104
    %v2107 = vmul.u32.u64.compose %v2103, %v2098
    %v2108 = vextract.low.u32 %v2107
    %v2109 = vextract.high.u32 %v2107
    %v2110 = vmul.u32 %v2103, %v2094
    %v2111 = vadd.s32 %v2106, %v2108
    %vm2112 = vc.u32 %v2106, %v2108
    %v2113 = vadd.s32 %v2109, 1
    %v2114 = vsel %vm2112, %v2113, %v2109
    %v2115 = vadd.s32 %v2110, %v2114
    %v2116 = vadd.s32 %v2115, 536870912
    %v2117 = vshrl.u32 %v2116, 30
    %v2118 = vshll.u32 %v2117, 30
    %v2119 = vsub.s32 %v2115, %v2118
    %vm2120 = vcmp.lt.s32.totalorder %v2119, 0
    %v2121 = vsub.s32 0, %v2119
    %v2122 = vsel %vm2120, %v2121, %v2119
    %v2123 = vclz %v2122
    %v2124 = vsub.s32 %v2123, 2
    %vm2125 = vcmp.gt.s32.totalorder 0, %v2124
    %v2126 = vsel %vm2125, 0, %v2124
    %v2127 = vsub.s32 32, %v2126
    %v2128 = vshll.u32 %v2119, %v2126
    %v2129 = vshrl.u32 %v2111, %v2127
    %v2130 = vor.u32 %v2128, %v2129
    %v2131 = vsub.s32 4294967266, %v2126
    %v2132 = vadd.s32 %v2131, 127
    %v2133 = vshll.u32 %v2132, 23
    %v2134 = vor.u32 4788187, %v2133
    %v2135 = vand.u32 2147483647, %v2134
    %v2137 = vcvt.s32.f32 %v2130
    %v2138 = vmul.f32 %v2137, %v2135
    %v2139 = vxor.u32 %v2138, 2147483648
    %v2140 = vsel %vm2057, %v2139, %v2138
    %v2141 = vsub.s32 4, %v2117
    %v2142 = vsel %vm2057, %v2141, %v2117
    %v2143 = vsel %vm2056, %v345, %v2140
    %v2144 = vsel %vm2056, 0, %v2142
    %v2145 = vcosq.f32.pop %v2143
    %v2146 = vsinq.f32.pop %v2143
    %vm2147 = vweird.f32 %v345
    %v2148 = vand.u32 %v2144, 3
    %vm2149 = vcmp.lt.s32.totalorder %v2148, 2
    %vm2150 = vcmp.eq.s32.totalorder %v2148, 0
    %v2151 = vxor.u32 %v2146, 2147483648
    %v2152 = vsel %vm2150, %v2145, %v2151
    %vm2153 = vcmp.eq.s32.totalorder %v2148, 2
    %v2154 = vxor.u32 %v2145, 2147483648
    %v2155 = vsel %vm2153, %v2154, %v2146
    %v2156 = vsel %vm2149, %v2152, %v2155
    %v2157 = vsel %vm2147, nan, %v2156
    %v2158 = vand.u32 2147483647, %v348
    %vm2159 = vcmp.le.f32.partialorder %v2158, 0.7853982
    %vm2160 = vcmp.lt.s32.totalorder %v348, 0
    %v2161 = vand.u32 %v348, 2139095040
    %v2162 = vshrl.u32 %v2161, 23
    %v2163 = vsub.s32 %v2162, 127
    %v2164 = vand.u32 2147483647, %v348
    %v2165 = vand.u32 %v2164, 8388607
    %v2166 = vor.u32 %v2165, 8388608
    %v2167 = vsub.s32 0, %v2166
    %v2168 = vadd.s32 %v2163, 1
    %vm2169 = vcmp.gt.s32.totalorder %v2168, 0
    %v2170 = vsel %vm2169, %v2168, 0
    %v2171 = vshrl.u32 %v2170, 5
    %v2172 = vand.u32 %v2170, 31
    %v2173 = vsub.s32 32, %v2172
    %v2174 = vshrl.u32 683565275, %v2173
    %v2175 = vshll.u32 683565275, %v2172
    %v2176 = vshrl.u32 2475754826, %v2173
    %v2177 = vor.u32 %v2175, %v2176
    %v2178 = vshll.u32 2475754826, %v2172
    %v2179 = vshrl.u32 2131351028, %v2173
    %v2180 = vor.u32 %v2178, %v2179
    %v2181 = vshll.u32 2131351028, %v2172
    %v2182 = vshrl.u32 2102212464, %v2173
    %v2183 = vor.u32 %v2181, %v2182
    %v2184 = vshll.u32 2102212464, %v2172
    %v2185 = vshrl.u32 920167782, %v2173
    %v2186 = vor.u32 %v2184, %v2185
    %v2187 = vshll.u32 920167782, %v2172
    %v2188 = vshrl.u32 1326507024, %v2173
    %v2189 = vor.u32 %v2187, %v2188
    %vm2190 = vcmp.lt.s32.totalorder %v2171, 1
    %vm2191 = vcmp.lt.s32.totalorder %v2171, 2
    %vm2192 = vcmp.lt.s32.totalorder %v2171, 3
    %vm2193 = vcmp.lt.s32.totalorder %v2171, 4
    %v2194 = vsel %vm2190, %v2174, %v2177
    %v2195 = vsel %vm2193, %v2183, 2102212464
    %v2196 = vsel %vm2192, %v2180, %v2195
    %v2197 = vsel %vm2191, %v2194, %v2196
    %v2198 = vsel %vm2190, %v2177, %v2180
    %v2199 = vsel %vm2193, %v2186, 920167782
    %v2200 = vsel %vm2192, %v2183, %v2199
    %v2201 = vsel %vm2191, %v2198, %v2200
    %v2202 = vsel %vm2190, %v2180, %v2183
    %v2203 = vsel %vm2193, %v2189, 1326507024
    %v2204 = vsel %vm2192, %v2186, %v2203
    %v2205 = vsel %vm2191, %v2202, %v2204
    %v2206 = vshll.u32 %v2166, 8
    %v2207 = vmul.u32.u64.compose %v2206, %v2205
    %v2208 = vextract.low.u32 %v2207
    %v2209 = vextract.high.u32 %v2207
    %v2210 = vmul.u32.u64.compose %v2206, %v2201
    %v2211 = vextract.low.u32 %v2210
    %v2212 = vextract.high.u32 %v2210
    %v2213 = vmul.u32 %v2206, %v2197
    %v2214 = vadd.s32 %v2209, %v2211
    %vm2215 = vc.u32 %v2209, %v2211
    %v2216 = vadd.s32 %v2212, 1
    %v2217 = vsel %vm2215, %v2216, %v2212
    %v2218 = vadd.s32 %v2213, %v2217
    %v2219 = vadd.s32 %v2218, 536870912
    %v2220 = vshrl.u32 %v2219, 30
    %v2221 = vshll.u32 %v2220, 30
    %v2222 = vsub.s32 %v2218, %v2221
    %vm2223 = vcmp.lt.s32.totalorder %v2222, 0
    %v2224 = vsub.s32 0, %v2222
    %v2225 = vsel %vm2223, %v2224, %v2222
    %v2226 = vclz %v2225
    %v2227 = vsub.s32 %v2226, 2
    %vm2228 = vcmp.gt.s32.totalorder 0, %v2227
    %v2229 = vsel %vm2228, 0, %v2227
    %v2230 = vsub.s32 32, %v2229
    %v2231 = vshll.u32 %v2222, %v2229
    %v2232 = vshrl.u32 %v2214, %v2230
    %v2233 = vor.u32 %v2231, %v2232
    %v2234 = vsub.s32 4294967266, %v2229
    %v2235 = vadd.s32 %v2234, 127
    %v2236 = vshll.u32 %v2235, 23
    %v2237 = vor.u32 4788187, %v2236
    %v2238 = vand.u32 2147483647, %v2237
    %v2240 = vcvt.s32.f32 %v2233
    %v2241 = vmul.f32 %v2240, %v2238
    %v2242 = vxor.u32 %v2241, 2147483648
    %v2243 = vsel %vm2160, %v2242, %v2241
    %v2244 = vsub.s32 4, %v2220
    %v2245 = vsel %vm2160, %v2244, %v2220
    %v2246 = vsel %vm2159, %v348, %v2243
    %v2247 = vsel %vm2159, 0, %v2245
    %v2248 = vcosq.f32.pop %v2246
    %v2249 = vsinq.f32.pop %v2246
    %vm2250 = vweird.f32 %v348
    %v2251 = vand.u32 %v2247, 3
    %vm2252 = vcmp.lt.s32.totalorder %v2251, 2
    %vm2253 = vcmp.eq.s32.totalorder %v2251, 0
    %v2254 = vxor.u32 %v2249, 2147483648
    %v2255 = vsel %vm2253, %v2248, %v2254
    %vm2256 = vcmp.eq.s32.totalorder %v2251, 2
    %v2257 = vxor.u32 %v2248, 2147483648
    %v2258 = vsel %vm2256, %v2257, %v2249
    %v2259 = vsel %vm2252, %v2255, %v2258
    %v2260 = vsel %vm2250, nan, %v2259
    %v2261 = vand.u32 2147483647, %v353
    %vm2262 = vcmp.le.f32.partialorder %v2261, 0.7853982
    %vm2263 = vcmp.lt.s32.totalorder %v353, 0
    %v2264 = vand.u32 %v353, 2139095040
    %v2265 = vshrl.u32 %v2264, 23
    %v2266 = vsub.s32 %v2265, 127
    %v2267 = vand.u32 2147483647, %v353
    %v2268 = vand.u32 %v2267, 8388607
    %v2269 = vor.u32 %v2268, 8388608
    %v2270 = vsub.s32 0, %v2269
    %v2271 = vadd.s32 %v2266, 1
    %vm2272 = vcmp.gt.s32.totalorder %v2271, 0
    %v2273 = vsel %vm2272, %v2271, 0
    %v2274 = vshrl.u32 %v2273, 5
    %v2275 = vand.u32 %v2273, 31
    %v2276 = vsub.s32 32, %v2275
    %v2277 = vshrl.u32 683565275, %v2276
    %v2278 = vshll.u32 683565275, %v2275
    %v2279 = vshrl.u32 2475754826, %v2276
    %v2280 = vor.u32 %v2278, %v2279
    %v2281 = vshll.u32 2475754826, %v2275
    %v2282 = vshrl.u32 2131351028, %v2276
    %v2283 = vor.u32 %v2281, %v2282
    %v2284 = vshll.u32 2131351028, %v2275
    %v2285 = vshrl.u32 2102212464, %v2276
    %v2286 = vor.u32 %v2284, %v2285
    %v2287 = vshll.u32 2102212464, %v2275
    %v2288 = vshrl.u32 920167782, %v2276
    %v2289 = vor.u32 %v2287, %v2288
    %v2290 = vshll.u32 920167782, %v2275
    %v2291 = vshrl.u32 1326507024, %v2276
    %v2292 = vor.u32 %v2290, %v2291
    %vm2293 = vcmp.lt.s32.totalorder %v2274, 1
    %vm2294 = vcmp.lt.s32.totalorder %v2274, 2
    %vm2295 = vcmp.lt.s32.totalorder %v2274, 3
    %vm2296 = vcmp.lt.s32.totalorder %v2274, 4
    %v2297 = vsel %vm2293, %v2277, %v2280
    %v2298 = vsel %vm2296, %v2286, 2102212464
    %v2299 = vsel %vm2295, %v2283, %v2298
    %v2300 = vsel %vm2294, %v2297, %v2299
    %v2301 = vsel %vm2293, %v2280, %v2283
    %v2302 = vsel %vm2296, %v2289, 920167782
    %v2303 = vsel %vm2295, %v2286, %v2302
    %v2304 = vsel %vm2294, %v2301, %v2303
    %v2305 = vsel %vm2293, %v2283, %v2286
    %v2306 = vsel %vm2296, %v2292, 1326507024
    %v2307 = vsel %vm2295, %v2289, %v2306
    %v2308 = vsel %vm2294, %v2305, %v2307
    %v2309 = vshll.u32 %v2269, 8
    %v2310 = vmul.u32.u64.compose %v2309, %v2308
    %v2311 = vextract.low.u32 %v2310
    %v2312 = vextract.high.u32 %v2310
    %v2313 = vmul.u32.u64.compose %v2309, %v2304
    %v2314 = vextract.low.u32 %v2313
    %v2315 = vextract.high.u32 %v2313
    %v2316 = vmul.u32 %v2309, %v2300
    %v2317 = vadd.s32 %v2312, %v2314
    %vm2318 = vc.u32 %v2312, %v2314
    %v2319 = vadd.s32 %v2315, 1
    %v2320 = vsel %vm2318, %v2319, %v2315
    %v2321 = vadd.s32 %v2316, %v2320
    %v2322 = vadd.s32 %v2321, 536870912
    %v2323 = vshrl.u32 %v2322, 30
    %v2324 = vshll.u32 %v2323, 30
    %v2325 = vsub.s32 %v2321, %v2324
    %vm2326 = vcmp.lt.s32.totalorder %v2325, 0
    %v2327 = vsub.s32 0, %v2325
    %v2328 = vsel %vm2326, %v2327, %v2325
    %v2329 = vclz %v2328
    %v2330 = vsub.s32 %v2329, 2
    %vm2331 = vcmp.gt.s32.totalorder 0, %v2330
    %v2332 = vsel %vm2331, 0, %v2330
    %v2333 = vsub.s32 32, %v2332
    %v2334 = vshll.u32 %v2325, %v2332
    %v2335 = vshrl.u32 %v2317, %v2333
    %v2336 = vor.u32 %v2334, %v2335
    %v2337 = vsub.s32 4294967266, %v2332
    %v2338 = vadd.s32 %v2337, 127
    %v2339 = vshll.u32 %v2338, 23
    %v2340 = vor.u32 4788187, %v2339
    %v2341 = vand.u32 2147483647, %v2340
    %v2343 = vcvt.s32.f32 %v2336
    %v2344 = vmul.f32 %v2343, %v2341
    %v2345 = vxor.u32 %v2344, 2147483648
    %v2346 = vsel %vm2263, %v2345, %v2344
    %v2347 = vsub.s32 4, %v2323
    %v2348 = vsel %vm2263, %v2347, %v2323
    %v2349 = vsel %vm2262, %v353, %v2346
    %v2350 = vsel %vm2262, 0, %v2348
    %v2351 = vcosq.f32.pop %v2349
    %v2352 = vsinq.f32.pop %v2349
    %vm2353 = vweird.f32 %v353
    %v2354 = vand.u32 %v2350, 3
    %vm2355 = vcmp.lt.s32.totalorder %v2354, 2
    %vm2356 = vcmp.eq.s32.totalorder %v2354, 0
    %v2357 = vxor.u32 %v2352, 2147483648
    %v2358 = vsel %vm2356, %v2351, %v2357
    %vm2359 = vcmp.eq.s32.totalorder %v2354, 2
    %v2360 = vxor.u32 %v2351, 2147483648
    %v2361 = vsel %vm2359, %v2360, %v2352
    %v2362 = vsel %vm2355, %v2358, %v2361
    %v2363 = vsel %vm2353, nan, %v2362
    %v2364 = vand.u32 2147483647, %v356
    %vm2365 = vcmp.le.f32.partialorder %v2364, 0.7853982
    %vm2366 = vcmp.lt.s32.totalorder %v356, 0
    %v2367 = vand.u32 %v356, 2139095040
    %v2368 = vshrl.u32 %v2367, 23
    %v2369 = vsub.s32 %v2368, 127
    %v2370 = vand.u32 2147483647, %v356
    %v2371 = vand.u32 %v2370, 8388607
    %v2372 = vor.u32 %v2371, 8388608
    %v2373 = vsub.s32 0, %v2372
    %v2374 = vadd.s32 %v2369, 1
    %vm2375 = vcmp.gt.s32.totalorder %v2374, 0
    %v2376 = vsel %vm2375, %v2374, 0
    %v2377 = vshrl.u32 %v2376, 5
    %v2378 = vand.u32 %v2376, 31
    %v2379 = vsub.s32 32, %v2378
    %v2380 = vshrl.u32 683565275, %v2379
    %v2381 = vshll.u32 683565275, %v2378
    %v2382 = vshrl.u32 2475754826, %v2379
    %v2383 = vor.u32 %v2381, %v2382
    %v2384 = vshll.u32 2475754826, %v2378
    %v2385 = vshrl.u32 2131351028, %v2379
    %v2386 = vor.u32 %v2384, %v2385
    %v2387 = vshll.u32 2131351028, %v2378
    %v2388 = vshrl.u32 2102212464, %v2379
    %v2389 = vor.u32 %v2387, %v2388
    %v2390 = vshll.u32 2102212464, %v2378
    %v2391 = vshrl.u32 920167782, %v2379
    %v2392 = vor.u32 %v2390, %v2391
    %v2393 = vshll.u32 920167782, %v2378
    %v2394 = vshrl.u32 1326507024, %v2379
    %v2395 = vor.u32 %v2393, %v2394
    %vm2396 = vcmp.lt.s32.totalorder %v2377, 1
    %vm2397 = vcmp.lt.s32.totalorder %v2377, 2
    %vm2398 = vcmp.lt.s32.totalorder %v2377, 3
    %vm2399 = vcmp.lt.s32.totalorder %v2377, 4
    %v2400 = vsel %vm2396, %v2380, %v2383
    %v2401 = vsel %vm2399, %v2389, 2102212464
    %v2402 = vsel %vm2398, %v2386, %v2401
    %v2403 = vsel %vm2397, %v2400, %v2402
    %v2404 = vsel %vm2396, %v2383, %v2386
    %v2405 = vsel %vm2399, %v2392, 920167782
    %v2406 = vsel %vm2398, %v2389, %v2405
    %v2407 = vsel %vm2397, %v2404, %v2406
    %v2408 = vsel %vm2396, %v2386, %v2389
    %v2409 = vsel %vm2399, %v2395, 1326507024
    %v2410 = vsel %vm2398, %v2392, %v2409
    %v2411 = vsel %vm2397, %v2408, %v2410
    %v2412 = vshll.u32 %v2372, 8
    %v2413 = vmul.u32.u64.compose %v2412, %v2411
    %v2414 = vextract.low.u32 %v2413
    %v2415 = vextract.high.u32 %v2413
    %v2416 = vmul.u32.u64.compose %v2412, %v2407
    %v2417 = vextract.low.u32 %v2416
    %v2418 = vextract.high.u32 %v2416
    %v2419 = vmul.u32 %v2412, %v2403
    %v2420 = vadd.s32 %v2415, %v2417
    %vm2421 = vc.u32 %v2415, %v2417
    %v2422 = vadd.s32 %v2418, 1
    %v2423 = vsel %vm2421, %v2422, %v2418
    %v2424 = vadd.s32 %v2419, %v2423
    %v2425 = vadd.s32 %v2424, 536870912
    %v2426 = vshrl.u32 %v2425, 30
    %v2427 = vshll.u32 %v2426, 30
    %v2428 = vsub.s32 %v2424, %v2427
    %vm2429 = vcmp.lt.s32.totalorder %v2428, 0
    %v2430 = vsub.s32 0, %v2428
    %v2431 = vsel %vm2429, %v2430, %v2428
    %v2432 = vclz %v2431
    %v2433 = vsub.s32 %v2432, 2
    %vm2434 = vcmp.gt.s32.totalorder 0, %v2433
    %v2435 = vsel %vm2434, 0, %v2433
    %v2436 = vsub.s32 32, %v2435
    %v2437 = vshll.u32 %v2428, %v2435
    %v2438 = vshrl.u32 %v2420, %v2436
    %v2439 = vor.u32 %v2437, %v2438
    %v2440 = vsub.s32 4294967266, %v2435
    %v2441 = vadd.s32 %v2440, 127
    %v2442 = vshll.u32 %v2441, 23
    %v2443 = vor.u32 4788187, %v2442
    %v2444 = vand.u32 2147483647, %v2443
    %v2446 = vcvt.s32.f32 %v2439
    %v2447 = vmul.f32 %v2446, %v2444
    %v2448 = vxor.u32 %v2447, 2147483648
    %v2449 = vsel %vm2366, %v2448, %v2447
    %v2450 = vsub.s32 4, %v2426
    %v2451 = vsel %vm2366, %v2450, %v2426
    %v2452 = vsel %vm2365, %v356, %v2449
    %v2453 = vsel %vm2365, 0, %v2451
    %v2454 = vcosq.f32.pop %v2452
    %v2455 = vsinq.f32.pop %v2452
    %vm2456 = vweird.f32 %v356
    %v2457 = vand.u32 %v2453, 3
    %vm2458 = vcmp.lt.s32.totalorder %v2457, 2
    %vm2459 = vcmp.eq.s32.totalorder %v2457, 0
    %v2460 = vxor.u32 %v2455, 2147483648
    %v2461 = vsel %vm2459, %v2454, %v2460
    %vm2462 = vcmp.eq.s32.totalorder %v2457, 2
    %v2463 = vxor.u32 %v2454, 2147483648
    %v2464 = vsel %vm2462, %v2463, %v2455
    %v2465 = vsel %vm2458, %v2461, %v2464
    %v2466 = vsel %vm2456, nan, %v2465
    %v2467 = vand.u32 2147483647, %v361
    %vm2468 = vcmp.le.f32.partialorder %v2467, 0.7853982
    %vm2469 = vcmp.lt.s32.totalorder %v361, 0
    %v2470 = vand.u32 %v361, 2139095040
    %v2471 = vshrl.u32 %v2470, 23
    %v2472 = vsub.s32 %v2471, 127
    %v2473 = vand.u32 2147483647, %v361
    %v2474 = vand.u32 %v2473, 8388607
    %v2475 = vor.u32 %v2474, 8388608
    %v2476 = vsub.s32 0, %v2475
    %v2477 = vadd.s32 %v2472, 1
    %vm2478 = vcmp.gt.s32.totalorder %v2477, 0
    %v2479 = vsel %vm2478, %v2477, 0
    %v2480 = vshrl.u32 %v2479, 5
    %v2481 = vand.u32 %v2479, 31
    %v2482 = vsub.s32 32, %v2481
    %v2483 = vshrl.u32 683565275, %v2482
    %v2484 = vshll.u32 683565275, %v2481
    %v2485 = vshrl.u32 2475754826, %v2482
    %v2486 = vor.u32 %v2484, %v2485
    %v2487 = vshll.u32 2475754826, %v2481
    %v2488 = vshrl.u32 2131351028, %v2482
    %v2489 = vor.u32 %v2487, %v2488
    %v2490 = vshll.u32 2131351028, %v2481
    %v2491 = vshrl.u32 2102212464, %v2482
    %v2492 = vor.u32 %v2490, %v2491
    %v2493 = vshll.u32 2102212464, %v2481
    %v2494 = vshrl.u32 920167782, %v2482
    %v2495 = vor.u32 %v2493, %v2494
    %v2496 = vshll.u32 920167782, %v2481
    %v2497 = vshrl.u32 1326507024, %v2482
    %v2498 = vor.u32 %v2496, %v2497
    %vm2499 = vcmp.lt.s32.totalorder %v2480, 1
    %vm2500 = vcmp.lt.s32.totalorder %v2480, 2
    %vm2501 = vcmp.lt.s32.totalorder %v2480, 3
    %vm2502 = vcmp.lt.s32.totalorder %v2480, 4
    %v2503 = vsel %vm2499, %v2483, %v2486
    %v2504 = vsel %vm2502, %v2492, 2102212464
    %v2505 = vsel %vm2501, %v2489, %v2504
    %v2506 = vsel %vm2500, %v2503, %v2505
    %v2507 = vsel %vm2499, %v2486, %v2489
    %v2508 = vsel %vm2502, %v2495, 920167782
    %v2509 = vsel %vm2501, %v2492, %v2508
    %v2510 = vsel %vm2500, %v2507, %v2509
    %v2511 = vsel %vm2499, %v2489, %v2492
    %v2512 = vsel %vm2502, %v2498, 1326507024
    %v2513 = vsel %vm2501, %v2495, %v2512
    %v2514 = vsel %vm2500, %v2511, %v2513
    %v2515 = vshll.u32 %v2475, 8
    %v2516 = vmul.u32.u64.compose %v2515, %v2514
    %v2517 = vextract.low.u32 %v2516
    %v2518 = vextract.high.u32 %v2516
    %v2519 = vmul.u32.u64.compose %v2515, %v2510
    %v2520 = vextract.low.u32 %v2519
    %v2521 = vextract.high.u32 %v2519
    %v2522 = vmul.u32 %v2515, %v2506
    %v2523 = vadd.s32 %v2518, %v2520
    %vm2524 = vc.u32 %v2518, %v2520
    %v2525 = vadd.s32 %v2521, 1
    %v2526 = vsel %vm2524, %v2525, %v2521
    %v2527 = vadd.s32 %v2522, %v2526
    %v2528 = vadd.s32 %v2527, 536870912
    %v2529 = vshrl.u32 %v2528, 30
    %v2530 = vshll.u32 %v2529, 30
    %v2531 = vsub.s32 %v2527, %v2530
    %vm2532 = vcmp.lt.s32.totalorder %v2531, 0
    %v2533 = vsub.s32 0, %v2531
    %v2534 = vsel %vm2532, %v2533, %v2531
    %v2535 = vclz %v2534
    %v2536 = vsub.s32 %v2535, 2
    %vm2537 = vcmp.gt.s32.totalorder 0, %v2536
    %v2538 = vsel %vm2537, 0, %v2536
    %v2539 = vsub.s32 32, %v2538
    %v2540 = vshll.u32 %v2531, %v2538
    %v2541 = vshrl.u32 %v2523, %v2539
    %v2542 = vor.u32 %v2540, %v2541
    %v2543 = vsub.s32 4294967266, %v2538
    %v2544 = vadd.s32 %v2543, 127
    %v2545 = vshll.u32 %v2544, 23
    %v2546 = vor.u32 4788187, %v2545
    %v2547 = vand.u32 2147483647, %v2546
    %v2549 = vcvt.s32.f32 %v2542
    %v2550 = vmul.f32 %v2549, %v2547
    %v2551 = vxor.u32 %v2550, 2147483648
    %v2552 = vsel %vm2469, %v2551, %v2550
    %v2553 = vsub.s32 4, %v2529
    %v2554 = vsel %vm2469, %v2553, %v2529
    %v2555 = vsel %vm2468, %v361, %v2552
    %v2556 = vsel %vm2468, 0, %v2554
    %v2557 = vcosq.f32.pop %v2555
    %v2558 = vsinq.f32.pop %v2555
    %vm2559 = vweird.f32 %v361
    %v2560 = vand.u32 %v2556, 3
    %vm2561 = vcmp.lt.s32.totalorder %v2560, 2
    %vm2562 = vcmp.eq.s32.totalorder %v2560, 0
    %v2563 = vxor.u32 %v2558, 2147483648
    %v2564 = vsel %vm2562, %v2557, %v2563
    %vm2565 = vcmp.eq.s32.totalorder %v2560, 2
    %v2566 = vxor.u32 %v2557, 2147483648
    %v2567 = vsel %vm2565, %v2566, %v2558
    %v2568 = vsel %vm2561, %v2564, %v2567
    %v2569 = vsel %vm2559, nan, %v2568
    %v2570 = vand.u32 2147483647, %v364
    %vm2571 = vcmp.le.f32.partialorder %v2570, 0.7853982
    %vm2572 = vcmp.lt.s32.totalorder %v364, 0
    %v2573 = vand.u32 %v364, 2139095040
    %v2574 = vshrl.u32 %v2573, 23
    %v2575 = vsub.s32 %v2574, 127
    %v2576 = vand.u32 2147483647, %v364
    %v2577 = vand.u32 %v2576, 8388607
    %v2578 = vor.u32 %v2577, 8388608
    %v2579 = vsub.s32 0, %v2578
    %v2580 = vadd.s32 %v2575, 1
    %vm2581 = vcmp.gt.s32.totalorder %v2580, 0
    %v2582 = vsel %vm2581, %v2580, 0
    %v2583 = vshrl.u32 %v2582, 5
    %v2584 = vand.u32 %v2582, 31
    %v2585 = vsub.s32 32, %v2584
    %v2586 = vshrl.u32 683565275, %v2585
    %v2587 = vshll.u32 683565275, %v2584
    %v2588 = vshrl.u32 2475754826, %v2585
    %v2589 = vor.u32 %v2587, %v2588
    %v2590 = vshll.u32 2475754826, %v2584
    %v2591 = vshrl.u32 2131351028, %v2585
    %v2592 = vor.u32 %v2590, %v2591
    %v2593 = vshll.u32 2131351028, %v2584
    %v2594 = vshrl.u32 2102212464, %v2585
    %v2595 = vor.u32 %v2593, %v2594
    %v2596 = vshll.u32 2102212464, %v2584
    %v2597 = vshrl.u32 920167782, %v2585
    %v2598 = vor.u32 %v2596, %v2597
    %v2599 = vshll.u32 920167782, %v2584
    %v2600 = vshrl.u32 1326507024, %v2585
    %v2601 = vor.u32 %v2599, %v2600
    %vm2602 = vcmp.lt.s32.totalorder %v2583, 1
    %vm2603 = vcmp.lt.s32.totalorder %v2583, 2
    %vm2604 = vcmp.lt.s32.totalorder %v2583, 3
    %vm2605 = vcmp.lt.s32.totalorder %v2583, 4
    %v2606 = vsel %vm2602, %v2586, %v2589
    %v2607 = vsel %vm2605, %v2595, 2102212464
    %v2608 = vsel %vm2604, %v2592, %v2607
    %v2609 = vsel %vm2603, %v2606, %v2608
    %v2610 = vsel %vm2602, %v2589, %v2592
    %v2611 = vsel %vm2605, %v2598, 920167782
    %v2612 = vsel %vm2604, %v2595, %v2611
    %v2613 = vsel %vm2603, %v2610, %v2612
    %v2614 = vsel %vm2602, %v2592, %v2595
    %v2615 = vsel %vm2605, %v2601, 1326507024
    %v2616 = vsel %vm2604, %v2598, %v2615
    %v2617 = vsel %vm2603, %v2614, %v2616
    %v2618 = vshll.u32 %v2578, 8
    %v2619 = vmul.u32.u64.compose %v2618, %v2617
    %v2620 = vextract.low.u32 %v2619
    %v2621 = vextract.high.u32 %v2619
    %v2622 = vmul.u32.u64.compose %v2618, %v2613
    %v2623 = vextract.low.u32 %v2622
    %v2624 = vextract.high.u32 %v2622
    %v2625 = vmul.u32 %v2618, %v2609
    %v2626 = vadd.s32 %v2621, %v2623
    %vm2627 = vc.u32 %v2621, %v2623
    %v2628 = vadd.s32 %v2624, 1
    %v2629 = vsel %vm2627, %v2628, %v2624
    %v2630 = vadd.s32 %v2625, %v2629
    %v2631 = vadd.s32 %v2630, 536870912
    %v2632 = vshrl.u32 %v2631, 30
    %v2633 = vshll.u32 %v2632, 30
    %v2634 = vsub.s32 %v2630, %v2633
    %vm2635 = vcmp.lt.s32.totalorder %v2634, 0
    %v2636 = vsub.s32 0, %v2634
    %v2637 = vsel %vm2635, %v2636, %v2634
    %v2638 = vclz %v2637
    %v2639 = vsub.s32 %v2638, 2
    %vm2640 = vcmp.gt.s32.totalorder 0, %v2639
    %v2641 = vsel %vm2640, 0, %v2639
    %v2642 = vsub.s32 32, %v2641
    %v2643 = vshll.u32 %v2634, %v2641
    %v2644 = vshrl.u32 %v2626, %v2642
    %v2645 = vor.u32 %v2643, %v2644
    %v2646 = vsub.s32 4294967266, %v2641
    %v2647 = vadd.s32 %v2646, 127
    %v2648 = vshll.u32 %v2647, 23
    %v2649 = vor.u32 4788187, %v2648
    %v2650 = vand.u32 2147483647, %v2649
    %v2652 = vcvt.s32.f32 %v2645
    %v2653 = vmul.f32 %v2652, %v2650
    %v2654 = vxor.u32 %v2653, 2147483648
    %v2655 = vsel %vm2572, %v2654, %v2653
    %v2656 = vsub.s32 4, %v2632
    %v2657 = vsel %vm2572, %v2656, %v2632
    %v2658 = vsel %vm2571, %v364, %v2655
    %v2659 = vsel %vm2571, 0, %v2657
    %v2660 = vcosq.f32.pop %v2658
    %v2661 = vsinq.f32.pop %v2658
    %vm2662 = vweird.f32 %v364
    %v2663 = vand.u32 %v2659, 3
    %vm2664 = vcmp.lt.s32.totalorder %v2663, 2
    %vm2665 = vcmp.eq.s32.totalorder %v2663, 0
    %v2666 = vxor.u32 %v2661, 2147483648
    %v2667 = vsel %vm2665, %v2660, %v2666
    %vm2668 = vcmp.eq.s32.totalorder %v2663, 2
    %v2669 = vxor.u32 %v2660, 2147483648
    %v2670 = vsel %vm2668, %v2669, %v2661
    %v2671 = vsel %vm2664, %v2667, %v2670
    %v2672 = vsel %vm2662, nan, %v2671
    %v2673 = vand.u32 2147483647, %v369
    %vm2674 = vcmp.le.f32.partialorder %v2673, 0.7853982
    %vm2675 = vcmp.lt.s32.totalorder %v369, 0
    %v2676 = vand.u32 %v369, 2139095040
    %v2677 = vshrl.u32 %v2676, 23
    %v2678 = vsub.s32 %v2677, 127
    %v2679 = vand.u32 2147483647, %v369
    %v2680 = vand.u32 %v2679, 8388607
    %v2681 = vor.u32 %v2680, 8388608
    %v2682 = vsub.s32 0, %v2681
    %v2683 = vadd.s32 %v2678, 1
    %vm2684 = vcmp.gt.s32.totalorder %v2683, 0
    %v2685 = vsel %vm2684, %v2683, 0
    %v2686 = vshrl.u32 %v2685, 5
    %v2687 = vand.u32 %v2685, 31
    %v2688 = vsub.s32 32, %v2687
    %v2689 = vshrl.u32 683565275, %v2688
    %v2690 = vshll.u32 683565275, %v2687
    %v2691 = vshrl.u32 2475754826, %v2688
    %v2692 = vor.u32 %v2690, %v2691
    %v2693 = vshll.u32 2475754826, %v2687
    %v2694 = vshrl.u32 2131351028, %v2688
    %v2695 = vor.u32 %v2693, %v2694
    %v2696 = vshll.u32 2131351028, %v2687
    %v2697 = vshrl.u32 2102212464, %v2688
    %v2698 = vor.u32 %v2696, %v2697
    %v2699 = vshll.u32 2102212464, %v2687
    %v2700 = vshrl.u32 920167782, %v2688
    %v2701 = vor.u32 %v2699, %v2700
    %v2702 = vshll.u32 920167782, %v2687
    %v2703 = vshrl.u32 1326507024, %v2688
    %v2704 = vor.u32 %v2702, %v2703
    %vm2705 = vcmp.lt.s32.totalorder %v2686, 1
    %vm2706 = vcmp.lt.s32.totalorder %v2686, 2
    %vm2707 = vcmp.lt.s32.totalorder %v2686, 3
    %vm2708 = vcmp.lt.s32.totalorder %v2686, 4
    %v2709 = vsel %vm2705, %v2689, %v2692
    %v2710 = vsel %vm2708, %v2698, 2102212464
    %v2711 = vsel %vm2707, %v2695, %v2710
    %v2712 = vsel %vm2706, %v2709, %v2711
    %v2713 = vsel %vm2705, %v2692, %v2695
    %v2714 = vsel %vm2708, %v2701, 920167782
    %v2715 = vsel %vm2707, %v2698, %v2714
    %v2716 = vsel %vm2706, %v2713, %v2715
    %v2717 = vsel %vm2705, %v2695, %v2698
    %v2718 = vsel %vm2708, %v2704, 1326507024
    %v2719 = vsel %vm2707, %v2701, %v2718
    %v2720 = vsel %vm2706, %v2717, %v2719
    %v2721 = vshll.u32 %v2681, 8
    %v2722 = vmul.u32.u64.compose %v2721, %v2720
    %v2723 = vextract.low.u32 %v2722
    %v2724 = vextract.high.u32 %v2722
    %v2725 = vmul.u32.u64.compose %v2721, %v2716
    %v2726 = vextract.low.u32 %v2725
    %v2727 = vextract.high.u32 %v2725
    %v2728 = vmul.u32 %v2721, %v2712
    %v2729 = vadd.s32 %v2724, %v2726
    %vm2730 = vc.u32 %v2724, %v2726
    %v2731 = vadd.s32 %v2727, 1
    %v2732 = vsel %vm2730, %v2731, %v2727
    %v2733 = vadd.s32 %v2728, %v2732
    %v2734 = vadd.s32 %v2733, 536870912
    %v2735 = vshrl.u32 %v2734, 30
    %v2736 = vshll.u32 %v2735, 30
    %v2737 = vsub.s32 %v2733, %v2736
    %vm2738 = vcmp.lt.s32.totalorder %v2737, 0
    %v2739 = vsub.s32 0, %v2737
    %v2740 = vsel %vm2738, %v2739, %v2737
    %v2741 = vclz %v2740
    %v2742 = vsub.s32 %v2741, 2
    %vm2743 = vcmp.gt.s32.totalorder 0, %v2742
    %v2744 = vsel %vm2743, 0, %v2742
    %v2745 = vsub.s32 32, %v2744
    %v2746 = vshll.u32 %v2737, %v2744
    %v2747 = vshrl.u32 %v2729, %v2745
    %v2748 = vor.u32 %v2746, %v2747
    %v2749 = vsub.s32 4294967266, %v2744
    %v2750 = vadd.s32 %v2749, 127
    %v2751 = vshll.u32 %v2750, 23
    %v2752 = vor.u32 4788187, %v2751
    %v2753 = vand.u32 2147483647, %v2752
    %v2755 = vcvt.s32.f32 %v2748
    %v2756 = vmul.f32 %v2755, %v2753
    %v2757 = vxor.u32 %v2756, 2147483648
    %v2758 = vsel %vm2675, %v2757, %v2756
    %v2759 = vsub.s32 4, %v2735
    %v2760 = vsel %vm2675, %v2759, %v2735
    %v2761 = vsel %vm2674, %v369, %v2758
    %v2762 = vsel %vm2674, 0, %v2760
    %v2763 = vcosq.f32.pop %v2761
    %v2764 = vsinq.f32.pop %v2761
    %vm2765 = vweird.f32 %v369
    %v2766 = vand.u32 %v2762, 3
    %vm2767 = vcmp.lt.s32.totalorder %v2766, 2
    %vm2768 = vcmp.eq.s32.totalorder %v2766, 0
    %v2769 = vxor.u32 %v2764, 2147483648
    %v2770 = vsel %vm2768, %v2763, %v2769
    %vm2771 = vcmp.eq.s32.totalorder %v2766, 2
    %v2772 = vxor.u32 %v2763, 2147483648
    %v2773 = vsel %vm2771, %v2772, %v2764
    %v2774 = vsel %vm2767, %v2770, %v2773
    %v2775 = vsel %vm2765, nan, %v2774
    %v2776 = vand.u32 2147483647, %v372
    %vm2777 = vcmp.le.f32.partialorder %v2776, 0.7853982
    %vm2778 = vcmp.lt.s32.totalorder %v372, 0
    %v2779 = vand.u32 %v372, 2139095040
    %v2780 = vshrl.u32 %v2779, 23
    %v2781 = vsub.s32 %v2780, 127
    %v2782 = vand.u32 2147483647, %v372
    %v2783 = vand.u32 %v2782, 8388607
    %v2784 = vor.u32 %v2783, 8388608
    %v2785 = vsub.s32 0, %v2784
    %v2786 = vadd.s32 %v2781, 1
    %vm2787 = vcmp.gt.s32.totalorder %v2786, 0
    %v2788 = vsel %vm2787, %v2786, 0
    %v2789 = vshrl.u32 %v2788, 5
    %v2790 = vand.u32 %v2788, 31
    %v2791 = vsub.s32 32, %v2790
    %v2792 = vshrl.u32 683565275, %v2791
    %v2793 = vshll.u32 683565275, %v2790
    %v2794 = vshrl.u32 2475754826, %v2791
    %v2795 = vor.u32 %v2793, %v2794
    %v2796 = vshll.u32 2475754826, %v2790
    %v2797 = vshrl.u32 2131351028, %v2791
    %v2798 = vor.u32 %v2796, %v2797
    %v2799 = vshll.u32 2131351028, %v2790
    %v2800 = vshrl.u32 2102212464, %v2791
    %v2801 = vor.u32 %v2799, %v2800
    %v2802 = vshll.u32 2102212464, %v2790
    %v2803 = vshrl.u32 920167782, %v2791
    %v2804 = vor.u32 %v2802, %v2803
    %v2805 = vshll.u32 920167782, %v2790
    %v2806 = vshrl.u32 1326507024, %v2791
    %v2807 = vor.u32 %v2805, %v2806
    %vm2808 = vcmp.lt.s32.totalorder %v2789, 1
    %vm2809 = vcmp.lt.s32.totalorder %v2789, 2
    %vm2810 = vcmp.lt.s32.totalorder %v2789, 3
    %vm2811 = vcmp.lt.s32.totalorder %v2789, 4
    %v2812 = vsel %vm2808, %v2792, %v2795
    %v2813 = vsel %vm2811, %v2801, 2102212464
    %v2814 = vsel %vm2810, %v2798, %v2813
    %v2815 = vsel %vm2809, %v2812, %v2814
    %v2816 = vsel %vm2808, %v2795, %v2798
    %v2817 = vsel %vm2811, %v2804, 920167782
    %v2818 = vsel %vm2810, %v2801, %v2817
    %v2819 = vsel %vm2809, %v2816, %v2818
    %v2820 = vsel %vm2808, %v2798, %v2801
    %v2821 = vsel %vm2811, %v2807, 1326507024
    %v2822 = vsel %vm2810, %v2804, %v2821
    %v2823 = vsel %vm2809, %v2820, %v2822
    %v2824 = vshll.u32 %v2784, 8
    %v2825 = vmul.u32.u64.compose %v2824, %v2823
    %v2826 = vextract.low.u32 %v2825
    %v2827 = vextract.high.u32 %v2825
    %v2828 = vmul.u32.u64.compose %v2824, %v2819
    %v2829 = vextract.low.u32 %v2828
    %v2830 = vextract.high.u32 %v2828
    %v2831 = vmul.u32 %v2824, %v2815
    %v2832 = vadd.s32 %v2827, %v2829
    %vm2833 = vc.u32 %v2827, %v2829
    %v2834 = vadd.s32 %v2830, 1
    %v2835 = vsel %vm2833, %v2834, %v2830
    %v2836 = vadd.s32 %v2831, %v2835
    %v2837 = vadd.s32 %v2836, 536870912
    %v2838 = vshrl.u32 %v2837, 30
    %v2839 = vshll.u32 %v2838, 30
    %v2840 = vsub.s32 %v2836, %v2839
    %vm2841 = vcmp.lt.s32.totalorder %v2840, 0
    %v2842 = vsub.s32 0, %v2840
    %v2843 = vsel %vm2841, %v2842, %v2840
    %v2844 = vclz %v2843
    %v2845 = vsub.s32 %v2844, 2
    %vm2846 = vcmp.gt.s32.totalorder 0, %v2845
    %v2847 = vsel %vm2846, 0, %v2845
    %v2848 = vsub.s32 32, %v2847
    %v2849 = vshll.u32 %v2840, %v2847
    %v2850 = vshrl.u32 %v2832, %v2848
    %v2851 = vor.u32 %v2849, %v2850
    %v2852 = vsub.s32 4294967266, %v2847
    %v2853 = vadd.s32 %v2852, 127
    %v2854 = vshll.u32 %v2853, 23
    %v2855 = vor.u32 4788187, %v2854
    %v2856 = vand.u32 2147483647, %v2855
    %v2858 = vcvt.s32.f32 %v2851
    %v2859 = vmul.f32 %v2858, %v2856
    %v2860 = vxor.u32 %v2859, 2147483648
    %v2861 = vsel %vm2778, %v2860, %v2859
    %v2862 = vsub.s32 4, %v2838
    %v2863 = vsel %vm2778, %v2862, %v2838
    %v2864 = vsel %vm2777, %v372, %v2861
    %v2865 = vsel %vm2777, 0, %v2863
    %v2866 = vcosq.f32.pop %v2864
    %v2867 = vsinq.f32.pop %v2864
    %vm2868 = vweird.f32 %v372
    %v2869 = vand.u32 %v2865, 3
    %vm2870 = vcmp.lt.s32.totalorder %v2869, 2
    %vm2871 = vcmp.eq.s32.totalorder %v2869, 0
    %v2872 = vxor.u32 %v2867, 2147483648
    %v2873 = vsel %vm2871, %v2866, %v2872
    %vm2874 = vcmp.eq.s32.totalorder %v2869, 2
    %v2875 = vxor.u32 %v2866, 2147483648
    %v2876 = vsel %vm2874, %v2875, %v2867
    %v2877 = vsel %vm2870, %v2873, %v2876
    %v2878 = vsel %vm2868, nan, %v2877
    %v2879 = vand.u32 2147483647, %v377
    %vm2880 = vcmp.le.f32.partialorder %v2879, 0.7853982
    %vm2881 = vcmp.lt.s32.totalorder %v377, 0
    %v2882 = vand.u32 %v377, 2139095040
    %v2883 = vshrl.u32 %v2882, 23
    %v2884 = vsub.s32 %v2883, 127
    %v2885 = vand.u32 2147483647, %v377
    %v2886 = vand.u32 %v2885, 8388607
    %v2887 = vor.u32 %v2886, 8388608
    %v2888 = vsub.s32 0, %v2887
    %v2889 = vadd.s32 %v2884, 1
    %vm2890 = vcmp.gt.s32.totalorder %v2889, 0
    %v2891 = vsel %vm2890, %v2889, 0
    %v2892 = vshrl.u32 %v2891, 5
    %v2893 = vand.u32 %v2891, 31
    %v2894 = vsub.s32 32, %v2893
    %v2895 = vshrl.u32 683565275, %v2894
    %v2896 = vshll.u32 683565275, %v2893
    %v2897 = vshrl.u32 2475754826, %v2894
    %v2898 = vor.u32 %v2896, %v2897
    %v2899 = vshll.u32 2475754826, %v2893
    %v2900 = vshrl.u32 2131351028, %v2894
    %v2901 = vor.u32 %v2899, %v2900
    %v2902 = vshll.u32 2131351028, %v2893
    %v2903 = vshrl.u32 2102212464, %v2894
    %v2904 = vor.u32 %v2902, %v2903
    %v2905 = vshll.u32 2102212464, %v2893
    %v2906 = vshrl.u32 920167782, %v2894
    %v2907 = vor.u32 %v2905, %v2906
    %v2908 = vshll.u32 920167782, %v2893
    %v2909 = vshrl.u32 1326507024, %v2894
    %v2910 = vor.u32 %v2908, %v2909
    %vm2911 = vcmp.lt.s32.totalorder %v2892, 1
    %vm2912 = vcmp.lt.s32.totalorder %v2892, 2
    %vm2913 = vcmp.lt.s32.totalorder %v2892, 3
    %vm2914 = vcmp.lt.s32.totalorder %v2892, 4
    %v2915 = vsel %vm2911, %v2895, %v2898
    %v2916 = vsel %vm2914, %v2904, 2102212464
    %v2917 = vsel %vm2913, %v2901, %v2916
    %v2918 = vsel %vm2912, %v2915, %v2917
    %v2919 = vsel %vm2911, %v2898, %v2901
    %v2920 = vsel %vm2914, %v2907, 920167782
    %v2921 = vsel %vm2913, %v2904, %v2920
    %v2922 = vsel %vm2912, %v2919, %v2921
    %v2923 = vsel %vm2911, %v2901, %v2904
    %v2924 = vsel %vm2914, %v2910, 1326507024
    %v2925 = vsel %vm2913, %v2907, %v2924
    %v2926 = vsel %vm2912, %v2923, %v2925
    %v2927 = vshll.u32 %v2887, 8
    %v2928 = vmul.u32.u64.compose %v2927, %v2926
    %v2929 = vextract.low.u32 %v2928
    %v2930 = vextract.high.u32 %v2928
    %v2931 = vmul.u32.u64.compose %v2927, %v2922
    %v2932 = vextract.low.u32 %v2931
    %v2933 = vextract.high.u32 %v2931
    %v2934 = vmul.u32 %v2927, %v2918
    %v2935 = vadd.s32 %v2930, %v2932
    %vm2936 = vc.u32 %v2930, %v2932
    %v2937 = vadd.s32 %v2933, 1
    %v2938 = vsel %vm2936, %v2937, %v2933
    %v2939 = vadd.s32 %v2934, %v2938
    %v2940 = vadd.s32 %v2939, 536870912
    %v2941 = vshrl.u32 %v2940, 30
    %v2942 = vshll.u32 %v2941, 30
    %v2943 = vsub.s32 %v2939, %v2942
    %vm2944 = vcmp.lt.s32.totalorder %v2943, 0
    %v2945 = vsub.s32 0, %v2943
    %v2946 = vsel %vm2944, %v2945, %v2943
    %v2947 = vclz %v2946
    %v2948 = vsub.s32 %v2947, 2
    %vm2949 = vcmp.gt.s32.totalorder 0, %v2948
    %v2950 = vsel %vm2949, 0, %v2948
    %v2951 = vsub.s32 32, %v2950
    %v2952 = vshll.u32 %v2943, %v2950
    %v2953 = vshrl.u32 %v2935, %v2951
    %v2954 = vor.u32 %v2952, %v2953
    %v2955 = vsub.s32 4294967266, %v2950
    %v2956 = vadd.s32 %v2955, 127
    %v2957 = vshll.u32 %v2956, 23
    %v2958 = vor.u32 4788187, %v2957
    %v2959 = vand.u32 2147483647, %v2958
    %v2961 = vcvt.s32.f32 %v2954
    %v2962 = vmul.f32 %v2961, %v2959
    %v2963 = vxor.u32 %v2962, 2147483648
    %v2964 = vsel %vm2881, %v2963, %v2962
    %v2965 = vsub.s32 4, %v2941
    %v2966 = vsel %vm2881, %v2965, %v2941
    %v2967 = vsel %vm2880, %v377, %v2964
    %v2968 = vsel %vm2880, 0, %v2966
    %v2969 = vcosq.f32.pop %v2967
    %v2970 = vsinq.f32.pop %v2967
    %vm2971 = vweird.f32 %v377
    %v2972 = vand.u32 %v2968, 3
    %vm2973 = vcmp.lt.s32.totalorder %v2972, 2
    %vm2974 = vcmp.eq.s32.totalorder %v2972, 0
    %v2975 = vxor.u32 %v2970, 2147483648
    %v2976 = vsel %vm2974, %v2969, %v2975
    %vm2977 = vcmp.eq.s32.totalorder %v2972, 2
    %v2978 = vxor.u32 %v2969, 2147483648
    %v2979 = vsel %vm2977, %v2978, %v2970
    %v2980 = vsel %vm2973, %v2976, %v2979
    %v2981 = vsel %vm2971, nan, %v2980
    %v2982 = vand.u32 2147483647, %v380
    %vm2983 = vcmp.le.f32.partialorder %v2982, 0.7853982
    %vm2984 = vcmp.lt.s32.totalorder %v380, 0
    %v2985 = vand.u32 %v380, 2139095040
    %v2986 = vshrl.u32 %v2985, 23
    %v2987 = vsub.s32 %v2986, 127
    %v2988 = vand.u32 2147483647, %v380
    %v2989 = vand.u32 %v2988, 8388607
    %v2990 = vor.u32 %v2989, 8388608
    %v2991 = vsub.s32 0, %v2990
    %v2992 = vadd.s32 %v2987, 1
    %vm2993 = vcmp.gt.s32.totalorder %v2992, 0
    %v2994 = vsel %vm2993, %v2992, 0
    %v2995 = vshrl.u32 %v2994, 5
    %v2996 = vand.u32 %v2994, 31
    %v2997 = vsub.s32 32, %v2996
    %v2998 = vshrl.u32 683565275, %v2997
    %v2999 = vshll.u32 683565275, %v2996
    %v3000 = vshrl.u32 2475754826, %v2997
    %v3001 = vor.u32 %v2999, %v3000
    %v3002 = vshll.u32 2475754826, %v2996
    %v3003 = vshrl.u32 2131351028, %v2997
    %v3004 = vor.u32 %v3002, %v3003
    %v3005 = vshll.u32 2131351028, %v2996
    %v3006 = vshrl.u32 2102212464, %v2997
    %v3007 = vor.u32 %v3005, %v3006
    %v3008 = vshll.u32 2102212464, %v2996
    %v3009 = vshrl.u32 920167782, %v2997
    %v3010 = vor.u32 %v3008, %v3009
    %v3011 = vshll.u32 920167782, %v2996
    %v3012 = vshrl.u32 1326507024, %v2997
    %v3013 = vor.u32 %v3011, %v3012
    %vm3014 = vcmp.lt.s32.totalorder %v2995, 1
    %vm3015 = vcmp.lt.s32.totalorder %v2995, 2
    %vm3016 = vcmp.lt.s32.totalorder %v2995, 3
    %vm3017 = vcmp.lt.s32.totalorder %v2995, 4
    %v3018 = vsel %vm3014, %v2998, %v3001
    %v3019 = vsel %vm3017, %v3007, 2102212464
    %v3020 = vsel %vm3016, %v3004, %v3019
    %v3021 = vsel %vm3015, %v3018, %v3020
    %v3022 = vsel %vm3014, %v3001, %v3004
    %v3023 = vsel %vm3017, %v3010, 920167782
    %v3024 = vsel %vm3016, %v3007, %v3023
    %v3025 = vsel %vm3015, %v3022, %v3024
    %v3026 = vsel %vm3014, %v3004, %v3007
    %v3027 = vsel %vm3017, %v3013, 1326507024
    %v3028 = vsel %vm3016, %v3010, %v3027
    %v3029 = vsel %vm3015, %v3026, %v3028
    %v3030 = vshll.u32 %v2990, 8
    %v3031 = vmul.u32.u64.compose %v3030, %v3029
    %v3032 = vextract.low.u32 %v3031
    %v3033 = vextract.high.u32 %v3031
    %v3034 = vmul.u32.u64.compose %v3030, %v3025
    %v3035 = vextract.low.u32 %v3034
    %v3036 = vextract.high.u32 %v3034
    %v3037 = vmul.u32 %v3030, %v3021
    %v3038 = vadd.s32 %v3033, %v3035
    %vm3039 = vc.u32 %v3033, %v3035
    %v3040 = vadd.s32 %v3036, 1
    %v3041 = vsel %vm3039, %v3040, %v3036
    %v3042 = vadd.s32 %v3037, %v3041
    %v3043 = vadd.s32 %v3042, 536870912
    %v3044 = vshrl.u32 %v3043, 30
    %v3045 = vshll.u32 %v3044, 30
    %v3046 = vsub.s32 %v3042, %v3045
    %vm3047 = vcmp.lt.s32.totalorder %v3046, 0
    %v3048 = vsub.s32 0, %v3046
    %v3049 = vsel %vm3047, %v3048, %v3046
    %v3050 = vclz %v3049
    %v3051 = vsub.s32 %v3050, 2
    %vm3052 = vcmp.gt.s32.totalorder 0, %v3051
    %v3053 = vsel %vm3052, 0, %v3051
    %v3054 = vsub.s32 32, %v3053
    %v3055 = vshll.u32 %v3046, %v3053
    %v3056 = vshrl.u32 %v3038, %v3054
    %v3057 = vor.u32 %v3055, %v3056
    %v3058 = vsub.s32 4294967266, %v3053
    %v3059 = vadd.s32 %v3058, 127
    %v3060 = vshll.u32 %v3059, 23
    %v3061 = vor.u32 4788187, %v3060
    %v3062 = vand.u32 2147483647, %v3061
    %v3064 = vcvt.s32.f32 %v3057
    %v3065 = vmul.f32 %v3064, %v3062
    %v3066 = vxor.u32 %v3065, 2147483648
    %v3067 = vsel %vm2984, %v3066, %v3065
    %v3068 = vsub.s32 4, %v3044
    %v3069 = vsel %vm2984, %v3068, %v3044
    %v3070 = vsel %vm2983, %v380, %v3067
    %v3071 = vsel %vm2983, 0, %v3069
    %v3072 = vcosq.f32.pop %v3070
    %v3073 = vsinq.f32.pop %v3070
    %vm3074 = vweird.f32 %v380
    %v3075 = vand.u32 %v3071, 3
    %vm3076 = vcmp.lt.s32.totalorder %v3075, 2
    %vm3077 = vcmp.eq.s32.totalorder %v3075, 0
    %v3078 = vxor.u32 %v3073, 2147483648
    %v3079 = vsel %vm3077, %v3072, %v3078
    %vm3080 = vcmp.eq.s32.totalorder %v3075, 2
    %v3081 = vxor.u32 %v3072, 2147483648
    %v3082 = vsel %vm3080, %v3081, %v3073
    %v3083 = vsel %vm3076, %v3079, %v3082
    %v3084 = vsel %vm3074, nan, %v3083
    %v3085 = vand.u32 2147483647, %v385
    %vm3086 = vcmp.le.f32.partialorder %v3085, 0.7853982
    %vm3087 = vcmp.lt.s32.totalorder %v385, 0
    %v3088 = vand.u32 %v385, 2139095040
    %v3089 = vshrl.u32 %v3088, 23
    %v3090 = vsub.s32 %v3089, 127
    %v3091 = vand.u32 2147483647, %v385
    %v3092 = vand.u32 %v3091, 8388607
    %v3093 = vor.u32 %v3092, 8388608
    %v3094 = vsub.s32 0, %v3093
    %v3095 = vadd.s32 %v3090, 1
    %vm3096 = vcmp.gt.s32.totalorder %v3095, 0
    %v3097 = vsel %vm3096, %v3095, 0
    %v3098 = vshrl.u32 %v3097, 5
    %v3099 = vand.u32 %v3097, 31
    %v3100 = vsub.s32 32, %v3099
    %v3101 = vshrl.u32 683565275, %v3100
    %v3102 = vshll.u32 683565275, %v3099
    %v3103 = vshrl.u32 2475754826, %v3100
    %v3104 = vor.u32 %v3102, %v3103
    %v3105 = vshll.u32 2475754826, %v3099
    %v3106 = vshrl.u32 2131351028, %v3100
    %v3107 = vor.u32 %v3105, %v3106
    %v3108 = vshll.u32 2131351028, %v3099
    %v3109 = vshrl.u32 2102212464, %v3100
    %v3110 = vor.u32 %v3108, %v3109
    %v3111 = vshll.u32 2102212464, %v3099
    %v3112 = vshrl.u32 920167782, %v3100
    %v3113 = vor.u32 %v3111, %v3112
    %v3114 = vshll.u32 920167782, %v3099
    %v3115 = vshrl.u32 1326507024, %v3100
    %v3116 = vor.u32 %v3114, %v3115
    %vm3117 = vcmp.lt.s32.totalorder %v3098, 1
    %vm3118 = vcmp.lt.s32.totalorder %v3098, 2
    %vm3119 = vcmp.lt.s32.totalorder %v3098, 3
    %vm3120 = vcmp.lt.s32.totalorder %v3098, 4
    %v3121 = vsel %vm3117, %v3101, %v3104
    %v3122 = vsel %vm3120, %v3110, 2102212464
    %v3123 = vsel %vm3119, %v3107, %v3122
    %v3124 = vsel %vm3118, %v3121, %v3123
    %v3125 = vsel %vm3117, %v3104, %v3107
    %v3126 = vsel %vm3120, %v3113, 920167782
    %v3127 = vsel %vm3119, %v3110, %v3126
    %v3128 = vsel %vm3118, %v3125, %v3127
    %v3129 = vsel %vm3117, %v3107, %v3110
    %v3130 = vsel %vm3120, %v3116, 1326507024
    %v3131 = vsel %vm3119, %v3113, %v3130
    %v3132 = vsel %vm3118, %v3129, %v3131
    %v3133 = vshll.u32 %v3093, 8
    %v3134 = vmul.u32.u64.compose %v3133, %v3132
    %v3135 = vextract.low.u32 %v3134
    %v3136 = vextract.high.u32 %v3134
    %v3137 = vmul.u32.u64.compose %v3133, %v3128
    %v3138 = vextract.low.u32 %v3137
    %v3139 = vextract.high.u32 %v3137
    %v3140 = vmul.u32 %v3133, %v3124
    %v3141 = vadd.s32 %v3136, %v3138
    %vm3142 = vc.u32 %v3136, %v3138
    %v3143 = vadd.s32 %v3139, 1
    %v3144 = vsel %vm3142, %v3143, %v3139
    %v3145 = vadd.s32 %v3140, %v3144
    %v3146 = vadd.s32 %v3145, 536870912
    %v3147 = vshrl.u32 %v3146, 30
    %v3148 = vshll.u32 %v3147, 30
    %v3149 = vsub.s32 %v3145, %v3148
    %vm3150 = vcmp.lt.s32.totalorder %v3149, 0
    %v3151 = vsub.s32 0, %v3149
    %v3152 = vsel %vm3150, %v3151, %v3149
    %v3153 = vclz %v3152
    %v3154 = vsub.s32 %v3153, 2
    %vm3155 = vcmp.gt.s32.totalorder 0, %v3154
    %v3156 = vsel %vm3155, 0, %v3154
    %v3157 = vsub.s32 32, %v3156
    %v3158 = vshll.u32 %v3149, %v3156
    %v3159 = vshrl.u32 %v3141, %v3157
    %v3160 = vor.u32 %v3158, %v3159
    %v3161 = vsub.s32 4294967266, %v3156
    %v3162 = vadd.s32 %v3161, 127
    %v3163 = vshll.u32 %v3162, 23
    %v3164 = vor.u32 4788187, %v3163
    %v3165 = vand.u32 2147483647, %v3164
    %v3167 = vcvt.s32.f32 %v3160
    %v3168 = vmul.f32 %v3167, %v3165
    %v3169 = vxor.u32 %v3168, 2147483648
    %v3170 = vsel %vm3087, %v3169, %v3168
    %v3171 = vsub.s32 4, %v3147
    %v3172 = vsel %vm3087, %v3171, %v3147
    %v3173 = vsel %vm3086, %v385, %v3170
    %v3174 = vsel %vm3086, 0, %v3172
    %v3175 = vcosq.f32.pop %v3173
    %v3176 = vsinq.f32.pop %v3173
    %vm3177 = vweird.f32 %v385
    %v3178 = vand.u32 %v3174, 3
    %vm3179 = vcmp.lt.s32.totalorder %v3178, 2
    %vm3180 = vcmp.eq.s32.totalorder %v3178, 0
    %v3181 = vxor.u32 %v3176, 2147483648
    %v3182 = vsel %vm3180, %v3175, %v3181
    %vm3183 = vcmp.eq.s32.totalorder %v3178, 2
    %v3184 = vxor.u32 %v3175, 2147483648
    %v3185 = vsel %vm3183, %v3184, %v3176
    %v3186 = vsel %vm3179, %v3182, %v3185
    %v3187 = vsel %vm3177, nan, %v3186
    %v3188 = vand.u32 2147483647, %v388
    %vm3189 = vcmp.le.f32.partialorder %v3188, 0.7853982
    %vm3190 = vcmp.lt.s32.totalorder %v388, 0
    %v3191 = vand.u32 %v388, 2139095040
    %v3192 = vshrl.u32 %v3191, 23
    %v3193 = vsub.s32 %v3192, 127
    %v3194 = vand.u32 2147483647, %v388
    %v3195 = vand.u32 %v3194, 8388607
    %v3196 = vor.u32 %v3195, 8388608
    %v3197 = vsub.s32 0, %v3196
    %v3198 = vadd.s32 %v3193, 1
    %vm3199 = vcmp.gt.s32.totalorder %v3198, 0
    %v3200 = vsel %vm3199, %v3198, 0
    %v3201 = vshrl.u32 %v3200, 5
    %v3202 = vand.u32 %v3200, 31
    %v3203 = vsub.s32 32, %v3202
    %v3204 = vshrl.u32 683565275, %v3203
    %v3205 = vshll.u32 683565275, %v3202
    %v3206 = vshrl.u32 2475754826, %v3203
    %v3207 = vor.u32 %v3205, %v3206
    %v3208 = vshll.u32 2475754826, %v3202
    %v3209 = vshrl.u32 2131351028, %v3203
    %v3210 = vor.u32 %v3208, %v3209
    %v3211 = vshll.u32 2131351028, %v3202
    %v3212 = vshrl.u32 2102212464, %v3203
    %v3213 = vor.u32 %v3211, %v3212
    %v3214 = vshll.u32 2102212464, %v3202
    %v3215 = vshrl.u32 920167782, %v3203
    %v3216 = vor.u32 %v3214, %v3215
    %v3217 = vshll.u32 920167782, %v3202
    %v3218 = vshrl.u32 1326507024, %v3203
    %v3219 = vor.u32 %v3217, %v3218
    %vm3220 = vcmp.lt.s32.totalorder %v3201, 1
    %vm3221 = vcmp.lt.s32.totalorder %v3201, 2
    %vm3222 = vcmp.lt.s32.totalorder %v3201, 3
    %vm3223 = vcmp.lt.s32.totalorder %v3201, 4
    %v3224 = vsel %vm3220, %v3204, %v3207
    %v3225 = vsel %vm3223, %v3213, 2102212464
    %v3226 = vsel %vm3222, %v3210, %v3225
    %v3227 = vsel %vm3221, %v3224, %v3226
    %v3228 = vsel %vm3220, %v3207, %v3210
    %v3229 = vsel %vm3223, %v3216, 920167782
    %v3230 = vsel %vm3222, %v3213, %v3229
    %v3231 = vsel %vm3221, %v3228, %v3230
    %v3232 = vsel %vm3220, %v3210, %v3213
    %v3233 = vsel %vm3223, %v3219, 1326507024
    %v3234 = vsel %vm3222, %v3216, %v3233
    %v3235 = vsel %vm3221, %v3232, %v3234
    %v3236 = vshll.u32 %v3196, 8
    %v3237 = vmul.u32.u64.compose %v3236, %v3235
    %v3238 = vextract.low.u32 %v3237
    %v3239 = vextract.high.u32 %v3237
    %v3240 = vmul.u32.u64.compose %v3236, %v3231
    %v3241 = vextract.low.u32 %v3240
    %v3242 = vextract.high.u32 %v3240
    %v3243 = vmul.u32 %v3236, %v3227
    %v3244 = vadd.s32 %v3239, %v3241
    %vm3245 = vc.u32 %v3239, %v3241
    %v3246 = vadd.s32 %v3242, 1
    %v3247 = vsel %vm3245, %v3246, %v3242
    %v3248 = vadd.s32 %v3243, %v3247
    %v3249 = vadd.s32 %v3248, 536870912
    %v3250 = vshrl.u32 %v3249, 30
    %v3251 = vshll.u32 %v3250, 30
    %v3252 = vsub.s32 %v3248, %v3251
    %vm3253 = vcmp.lt.s32.totalorder %v3252, 0
    %v3254 = vsub.s32 0, %v3252
    %v3255 = vsel %vm3253, %v3254, %v3252
    %v3256 = vclz %v3255
    %v3257 = vsub.s32 %v3256, 2
    %vm3258 = vcmp.gt.s32.totalorder 0, %v3257
    %v3259 = vsel %vm3258, 0, %v3257
    %v3260 = vsub.s32 32, %v3259
    %v3261 = vshll.u32 %v3252, %v3259
    %v3262 = vshrl.u32 %v3244, %v3260
    %v3263 = vor.u32 %v3261, %v3262
    %v3264 = vsub.s32 4294967266, %v3259
    %v3265 = vadd.s32 %v3264, 127
    %v3266 = vshll.u32 %v3265, 23
    %v3267 = vor.u32 4788187, %v3266
    %v3268 = vand.u32 2147483647, %v3267
    %v3270 = vcvt.s32.f32 %v3263
    %v3271 = vmul.f32 %v3270, %v3268
    %v3272 = vxor.u32 %v3271, 2147483648
    %v3273 = vsel %vm3190, %v3272, %v3271
    %v3274 = vsub.s32 4, %v3250
    %v3275 = vsel %vm3190, %v3274, %v3250
    %v3276 = vsel %vm3189, %v388, %v3273
    %v3277 = vsel %vm3189, 0, %v3275
    %v3278 = vcosq.f32.pop %v3276
    %v3279 = vsinq.f32.pop %v3276
    %vm3280 = vweird.f32 %v388
    %v3281 = vand.u32 %v3277, 3
    %vm3282 = vcmp.lt.s32.totalorder %v3281, 2
    %vm3283 = vcmp.eq.s32.totalorder %v3281, 0
    %v3284 = vxor.u32 %v3279, 2147483648
    %v3285 = vsel %vm3283, %v3278, %v3284
    %vm3286 = vcmp.eq.s32.totalorder %v3281, 2
    %v3287 = vxor.u32 %v3278, 2147483648
    %v3288 = vsel %vm3286, %v3287, %v3279
    %v3289 = vsel %vm3282, %v3285, %v3288
    %v3290 = vsel %vm3280, nan, %v3289
    %v3291 = vand.u32 2147483647, %v393
    %vm3292 = vcmp.le.f32.partialorder %v3291, 0.7853982
    %vm3293 = vcmp.lt.s32.totalorder %v393, 0
    %v3294 = vand.u32 %v393, 2139095040
    %v3295 = vshrl.u32 %v3294, 23
    %v3296 = vsub.s32 %v3295, 127
    %v3297 = vand.u32 2147483647, %v393
    %v3298 = vand.u32 %v3297, 8388607
    %v3299 = vor.u32 %v3298, 8388608
    %v3300 = vsub.s32 0, %v3299
    %v3301 = vadd.s32 %v3296, 1
    %vm3302 = vcmp.gt.s32.totalorder %v3301, 0
    %v3303 = vsel %vm3302, %v3301, 0
    %v3304 = vshrl.u32 %v3303, 5
    %v3305 = vand.u32 %v3303, 31
    %v3306 = vsub.s32 32, %v3305
    %v3307 = vshrl.u32 683565275, %v3306
    %v3308 = vshll.u32 683565275, %v3305
    %v3309 = vshrl.u32 2475754826, %v3306
    %v3310 = vor.u32 %v3308, %v3309
    %v3311 = vshll.u32 2475754826, %v3305
    %v3312 = vshrl.u32 2131351028, %v3306
    %v3313 = vor.u32 %v3311, %v3312
    %v3314 = vshll.u32 2131351028, %v3305
    %v3315 = vshrl.u32 2102212464, %v3306
    %v3316 = vor.u32 %v3314, %v3315
    %v3317 = vshll.u32 2102212464, %v3305
    %v3318 = vshrl.u32 920167782, %v3306
    %v3319 = vor.u32 %v3317, %v3318
    %v3320 = vshll.u32 920167782, %v3305
    %v3321 = vshrl.u32 1326507024, %v3306
    %v3322 = vor.u32 %v3320, %v3321
    %vm3323 = vcmp.lt.s32.totalorder %v3304, 1
    %vm3324 = vcmp.lt.s32.totalorder %v3304, 2
    %vm3325 = vcmp.lt.s32.totalorder %v3304, 3
    %vm3326 = vcmp.lt.s32.totalorder %v3304, 4
    %v3327 = vsel %vm3323, %v3307, %v3310
    %v3328 = vsel %vm3326, %v3316, 2102212464
    %v3329 = vsel %vm3325, %v3313, %v3328
    %v3330 = vsel %vm3324, %v3327, %v3329
    %v3331 = vsel %vm3323, %v3310, %v3313
    %v3332 = vsel %vm3326, %v3319, 920167782
    %v3333 = vsel %vm3325, %v3316, %v3332
    %v3334 = vsel %vm3324, %v3331, %v3333
    %v3335 = vsel %vm3323, %v3313, %v3316
    %v3336 = vsel %vm3326, %v3322, 1326507024
    %v3337 = vsel %vm3325, %v3319, %v3336
    %v3338 = vsel %vm3324, %v3335, %v3337
    %v3339 = vshll.u32 %v3299, 8
    %v3340 = vmul.u32.u64.compose %v3339, %v3338
    %v3341 = vextract.low.u32 %v3340
    %v3342 = vextract.high.u32 %v3340
    %v3343 = vmul.u32.u64.compose %v3339, %v3334
    %v3344 = vextract.low.u32 %v3343
    %v3345 = vextract.high.u32 %v3343
    %v3346 = vmul.u32 %v3339, %v3330
    %v3347 = vadd.s32 %v3342, %v3344
    %vm3348 = vc.u32 %v3342, %v3344
    %v3349 = vadd.s32 %v3345, 1
    %v3350 = vsel %vm3348, %v3349, %v3345
    %v3351 = vadd.s32 %v3346, %v3350
    %v3352 = vadd.s32 %v3351, 536870912
    %v3353 = vshrl.u32 %v3352, 30
    %v3354 = vshll.u32 %v3353, 30
    %v3355 = vsub.s32 %v3351, %v3354
    %vm3356 = vcmp.lt.s32.totalorder %v3355, 0
    %v3357 = vsub.s32 0, %v3355
    %v3358 = vsel %vm3356, %v3357, %v3355
    %v3359 = vclz %v3358
    %v3360 = vsub.s32 %v3359, 2
    %vm3361 = vcmp.gt.s32.totalorder 0, %v3360
    %v3362 = vsel %vm3361, 0, %v3360
    %v3363 = vsub.s32 32, %v3362
    %v3364 = vshll.u32 %v3355, %v3362
    %v3365 = vshrl.u32 %v3347, %v3363
    %v3366 = vor.u32 %v3364, %v3365
    %v3367 = vsub.s32 4294967266, %v3362
    %v3368 = vadd.s32 %v3367, 127
    %v3369 = vshll.u32 %v3368, 23
    %v3370 = vor.u32 4788187, %v3369
    %v3371 = vand.u32 2147483647, %v3370
    %v3373 = vcvt.s32.f32 %v3366
    %v3374 = vmul.f32 %v3373, %v3371
    %v3375 = vxor.u32 %v3374, 2147483648
    %v3376 = vsel %vm3293, %v3375, %v3374
    %v3377 = vsub.s32 4, %v3353
    %v3378 = vsel %vm3293, %v3377, %v3353
    %v3379 = vsel %vm3292, %v393, %v3376
    %v3380 = vsel %vm3292, 0, %v3378
    %v3381 = vcosq.f32.pop %v3379
    %v3382 = vsinq.f32.pop %v3379
    %vm3383 = vweird.f32 %v393
    %v3384 = vand.u32 %v3380, 3
    %vm3385 = vcmp.lt.s32.totalorder %v3384, 2
    %vm3386 = vcmp.eq.s32.totalorder %v3384, 0
    %v3387 = vxor.u32 %v3382, 2147483648
    %v3388 = vsel %vm3386, %v3381, %v3387
    %vm3389 = vcmp.eq.s32.totalorder %v3384, 2
    %v3390 = vxor.u32 %v3381, 2147483648
    %v3391 = vsel %vm3389, %v3390, %v3382
    %v3392 = vsel %vm3385, %v3388, %v3391
    %v3393 = vsel %vm3383, nan, %v3392
    %v3394 = vand.u32 2147483647, %v396
    %vm3395 = vcmp.le.f32.partialorder %v3394, 0.7853982
    %vm3396 = vcmp.lt.s32.totalorder %v396, 0
    %v3397 = vand.u32 %v396, 2139095040
    %v3398 = vshrl.u32 %v3397, 23
    %v3399 = vsub.s32 %v3398, 127
    %v3400 = vand.u32 2147483647, %v396
    %v3401 = vand.u32 %v3400, 8388607
    %v3402 = vor.u32 %v3401, 8388608
    %v3403 = vsub.s32 0, %v3402
    %v3404 = vadd.s32 %v3399, 1
    %vm3405 = vcmp.gt.s32.totalorder %v3404, 0
    %v3406 = vsel %vm3405, %v3404, 0
    %v3407 = vshrl.u32 %v3406, 5
    %v3408 = vand.u32 %v3406, 31
    %v3409 = vsub.s32 32, %v3408
    %v3410 = vshrl.u32 683565275, %v3409
    %v3411 = vshll.u32 683565275, %v3408
    %v3412 = vshrl.u32 2475754826, %v3409
    %v3413 = vor.u32 %v3411, %v3412
    %v3414 = vshll.u32 2475754826, %v3408
    %v3415 = vshrl.u32 2131351028, %v3409
    %v3416 = vor.u32 %v3414, %v3415
    %v3417 = vshll.u32 2131351028, %v3408
    %v3418 = vshrl.u32 2102212464, %v3409
    %v3419 = vor.u32 %v3417, %v3418
    %v3420 = vshll.u32 2102212464, %v3408
    %v3421 = vshrl.u32 920167782, %v3409
    %v3422 = vor.u32 %v3420, %v3421
    %v3423 = vshll.u32 920167782, %v3408
    %v3424 = vshrl.u32 1326507024, %v3409
    %v3425 = vor.u32 %v3423, %v3424
    %vm3426 = vcmp.lt.s32.totalorder %v3407, 1
    %vm3427 = vcmp.lt.s32.totalorder %v3407, 2
    %vm3428 = vcmp.lt.s32.totalorder %v3407, 3
    %vm3429 = vcmp.lt.s32.totalorder %v3407, 4
    %v3430 = vsel %vm3426, %v3410, %v3413
    %v3431 = vsel %vm3429, %v3419, 2102212464
    %v3432 = vsel %vm3428, %v3416, %v3431
    %v3433 = vsel %vm3427, %v3430, %v3432
    %v3434 = vsel %vm3426, %v3413, %v3416
    %v3435 = vsel %vm3429, %v3422, 920167782
    %v3436 = vsel %vm3428, %v3419, %v3435
    %v3437 = vsel %vm3427, %v3434, %v3436
    %v3438 = vsel %vm3426, %v3416, %v3419
    %v3439 = vsel %vm3429, %v3425, 1326507024
    %v3440 = vsel %vm3428, %v3422, %v3439
    %v3441 = vsel %vm3427, %v3438, %v3440
    %v3442 = vshll.u32 %v3402, 8
    %v3443 = vmul.u32.u64.compose %v3442, %v3441
    %v3444 = vextract.low.u32 %v3443
    %v3445 = vextract.high.u32 %v3443
    %v3446 = vmul.u32.u64.compose %v3442, %v3437
    %v3447 = vextract.low.u32 %v3446
    %v3448 = vextract.high.u32 %v3446
    %v3449 = vmul.u32 %v3442, %v3433
    %v3450 = vadd.s32 %v3445, %v3447
    %vm3451 = vc.u32 %v3445, %v3447
    %v3452 = vadd.s32 %v3448, 1
    %v3453 = vsel %vm3451, %v3452, %v3448
    %v3454 = vadd.s32 %v3449, %v3453
    %v3455 = vadd.s32 %v3454, 536870912
    %v3456 = vshrl.u32 %v3455, 30
    %v3457 = vshll.u32 %v3456, 30
    %v3458 = vsub.s32 %v3454, %v3457
    %vm3459 = vcmp.lt.s32.totalorder %v3458, 0
    %v3460 = vsub.s32 0, %v3458
    %v3461 = vsel %vm3459, %v3460, %v3458
    %v3462 = vclz %v3461
    %v3463 = vsub.s32 %v3462, 2
    %vm3464 = vcmp.gt.s32.totalorder 0, %v3463
    %v3465 = vsel %vm3464, 0, %v3463
    %v3466 = vsub.s32 32, %v3465
    %v3467 = vshll.u32 %v3458, %v3465
    %v3468 = vshrl.u32 %v3450, %v3466
    %v3469 = vor.u32 %v3467, %v3468
    %v3470 = vsub.s32 4294967266, %v3465
    %v3471 = vadd.s32 %v3470, 127
    %v3472 = vshll.u32 %v3471, 23
    %v3473 = vor.u32 4788187, %v3472
    %v3474 = vand.u32 2147483647, %v3473
    %v3476 = vcvt.s32.f32 %v3469
    %v3477 = vmul.f32 %v3476, %v3474
    %v3478 = vxor.u32 %v3477, 2147483648
    %v3479 = vsel %vm3396, %v3478, %v3477
    %v3480 = vsub.s32 4, %v3456
    %v3481 = vsel %vm3396, %v3480, %v3456
    %v3482 = vsel %vm3395, %v396, %v3479
    %v3483 = vsel %vm3395, 0, %v3481
    %v3484 = vcosq.f32.pop %v3482
    %v3485 = vsinq.f32.pop %v3482
    %vm3486 = vweird.f32 %v396
    %v3487 = vand.u32 %v3483, 3
    %vm3488 = vcmp.lt.s32.totalorder %v3487, 2
    %vm3489 = vcmp.eq.s32.totalorder %v3487, 0
    %v3490 = vxor.u32 %v3485, 2147483648
    %v3491 = vsel %vm3489, %v3484, %v3490
    %vm3492 = vcmp.eq.s32.totalorder %v3487, 2
    %v3493 = vxor.u32 %v3484, 2147483648
    %v3494 = vsel %vm3492, %v3493, %v3485
    %v3495 = vsel %vm3488, %v3491, %v3494
    %v3496 = vsel %vm3486, nan, %v3495
    %v3497 = vand.u32 2147483647, %v401
    %vm3498 = vcmp.le.f32.partialorder %v3497, 0.7853982
    %vm3499 = vcmp.lt.s32.totalorder %v401, 0
    %v3500 = vand.u32 %v401, 2139095040
    %v3501 = vshrl.u32 %v3500, 23
    %v3502 = vsub.s32 %v3501, 127
    %v3503 = vand.u32 2147483647, %v401
    %v3504 = vand.u32 %v3503, 8388607
    %v3505 = vor.u32 %v3504, 8388608
    %v3506 = vsub.s32 0, %v3505
    %v3507 = vadd.s32 %v3502, 1
    %vm3508 = vcmp.gt.s32.totalorder %v3507, 0
    %v3509 = vsel %vm3508, %v3507, 0
    %v3510 = vshrl.u32 %v3509, 5
    %v3511 = vand.u32 %v3509, 31
    %v3512 = vsub.s32 32, %v3511
    %v3513 = vshrl.u32 683565275, %v3512
    %v3514 = vshll.u32 683565275, %v3511
    %v3515 = vshrl.u32 2475754826, %v3512
    %v3516 = vor.u32 %v3514, %v3515
    %v3517 = vshll.u32 2475754826, %v3511
    %v3518 = vshrl.u32 2131351028, %v3512
    %v3519 = vor.u32 %v3517, %v3518
    %v3520 = vshll.u32 2131351028, %v3511
    %v3521 = vshrl.u32 2102212464, %v3512
    %v3522 = vor.u32 %v3520, %v3521
    %v3523 = vshll.u32 2102212464, %v3511
    %v3524 = vshrl.u32 920167782, %v3512
    %v3525 = vor.u32 %v3523, %v3524
    %v3526 = vshll.u32 920167782, %v3511
    %v3527 = vshrl.u32 1326507024, %v3512
    %v3528 = vor.u32 %v3526, %v3527
    %vm3529 = vcmp.lt.s32.totalorder %v3510, 1
    %vm3530 = vcmp.lt.s32.totalorder %v3510, 2
    %vm3531 = vcmp.lt.s32.totalorder %v3510, 3
    %vm3532 = vcmp.lt.s32.totalorder %v3510, 4
    %v3533 = vsel %vm3529, %v3513, %v3516
    %v3534 = vsel %vm3532, %v3522, 2102212464
    %v3535 = vsel %vm3531, %v3519, %v3534
    %v3536 = vsel %vm3530, %v3533, %v3535
    %v3537 = vsel %vm3529, %v3516, %v3519
    %v3538 = vsel %vm3532, %v3525, 920167782
    %v3539 = vsel %vm3531, %v3522, %v3538
    %v3540 = vsel %vm3530, %v3537, %v3539
    %v3541 = vsel %vm3529, %v3519, %v3522
    %v3542 = vsel %vm3532, %v3528, 1326507024
    %v3543 = vsel %vm3531, %v3525, %v3542
    %v3544 = vsel %vm3530, %v3541, %v3543
    %v3545 = vshll.u32 %v3505, 8
    %v3546 = vmul.u32.u64.compose %v3545, %v3544
    %v3547 = vextract.low.u32 %v3546
    %v3548 = vextract.high.u32 %v3546
    %v3549 = vmul.u32.u64.compose %v3545, %v3540
    %v3550 = vextract.low.u32 %v3549
    %v3551 = vextract.high.u32 %v3549
    %v3552 = vmul.u32 %v3545, %v3536
    %v3553 = vadd.s32 %v3548, %v3550
    %vm3554 = vc.u32 %v3548, %v3550
    %v3555 = vadd.s32 %v3551, 1
    %v3556 = vsel %vm3554, %v3555, %v3551
    %v3557 = vadd.s32 %v3552, %v3556
    %v3558 = vadd.s32 %v3557, 536870912
    %v3559 = vshrl.u32 %v3558, 30
    %v3560 = vshll.u32 %v3559, 30
    %v3561 = vsub.s32 %v3557, %v3560
    %vm3562 = vcmp.lt.s32.totalorder %v3561, 0
    %v3563 = vsub.s32 0, %v3561
    %v3564 = vsel %vm3562, %v3563, %v3561
    %v3565 = vclz %v3564
    %v3566 = vsub.s32 %v3565, 2
    %vm3567 = vcmp.gt.s32.totalorder 0, %v3566
    %v3568 = vsel %vm3567, 0, %v3566
    %v3569 = vsub.s32 32, %v3568
    %v3570 = vshll.u32 %v3561, %v3568
    %v3571 = vshrl.u32 %v3553, %v3569
    %v3572 = vor.u32 %v3570, %v3571
    %v3573 = vsub.s32 4294967266, %v3568
    %v3574 = vadd.s32 %v3573, 127
    %v3575 = vshll.u32 %v3574, 23
    %v3576 = vor.u32 4788187, %v3575
    %v3577 = vand.u32 2147483647, %v3576
    %v3579 = vcvt.s32.f32 %v3572
    %v3580 = vmul.f32 %v3579, %v3577
    %v3581 = vxor.u32 %v3580, 2147483648
    %v3582 = vsel %vm3499, %v3581, %v3580
    %v3583 = vsub.s32 4, %v3559
    %v3584 = vsel %vm3499, %v3583, %v3559
    %v3585 = vsel %vm3498, %v401, %v3582
    %v3586 = vsel %vm3498, 0, %v3584
    %v3587 = vcosq.f32.pop %v3585
    %v3588 = vsinq.f32.pop %v3585
    %vm3589 = vweird.f32 %v401
    %v3590 = vand.u32 %v3586, 3
    %vm3591 = vcmp.lt.s32.totalorder %v3590, 2
    %vm3592 = vcmp.eq.s32.totalorder %v3590, 0
    %v3593 = vxor.u32 %v3588, 2147483648
    %v3594 = vsel %vm3592, %v3587, %v3593
    %vm3595 = vcmp.eq.s32.totalorder %v3590, 2
    %v3596 = vxor.u32 %v3587, 2147483648
    %v3597 = vsel %vm3595, %v3596, %v3588
    %v3598 = vsel %vm3591, %v3594, %v3597
    %v3599 = vsel %vm3589, nan, %v3598
    %v3600 = vand.u32 2147483647, %v404
    %vm3601 = vcmp.le.f32.partialorder %v3600, 0.7853982
    %vm3602 = vcmp.lt.s32.totalorder %v404, 0
    %v3603 = vand.u32 %v404, 2139095040
    %v3604 = vshrl.u32 %v3603, 23
    %v3605 = vsub.s32 %v3604, 127
    %v3606 = vand.u32 2147483647, %v404
    %v3607 = vand.u32 %v3606, 8388607
    %v3608 = vor.u32 %v3607, 8388608
    %v3609 = vsub.s32 0, %v3608
    %v3610 = vadd.s32 %v3605, 1
    %vm3611 = vcmp.gt.s32.totalorder %v3610, 0
    %v3612 = vsel %vm3611, %v3610, 0
    %v3613 = vshrl.u32 %v3612, 5
    %v3614 = vand.u32 %v3612, 31
    %v3615 = vsub.s32 32, %v3614
    %v3616 = vshrl.u32 683565275, %v3615
    %v3617 = vshll.u32 683565275, %v3614
    %v3618 = vshrl.u32 2475754826, %v3615
    %v3619 = vor.u32 %v3617, %v3618
    %v3620 = vshll.u32 2475754826, %v3614
    %v3621 = vshrl.u32 2131351028, %v3615
    %v3622 = vor.u32 %v3620, %v3621
    %v3623 = vshll.u32 2131351028, %v3614
    %v3624 = vshrl.u32 2102212464, %v3615
    %v3625 = vor.u32 %v3623, %v3624
    %v3626 = vshll.u32 2102212464, %v3614
    %v3627 = vshrl.u32 920167782, %v3615
    %v3628 = vor.u32 %v3626, %v3627
    %v3629 = vshll.u32 920167782, %v3614
    %v3630 = vshrl.u32 1326507024, %v3615
    %v3631 = vor.u32 %v3629, %v3630
    %vm3632 = vcmp.lt.s32.totalorder %v3613, 1
    %vm3633 = vcmp.lt.s32.totalorder %v3613, 2
    %vm3634 = vcmp.lt.s32.totalorder %v3613, 3
    %vm3635 = vcmp.lt.s32.totalorder %v3613, 4
    %v3636 = vsel %vm3632, %v3616, %v3619
    %v3637 = vsel %vm3635, %v3625, 2102212464
    %v3638 = vsel %vm3634, %v3622, %v3637
    %v3639 = vsel %vm3633, %v3636, %v3638
    %v3640 = vsel %vm3632, %v3619, %v3622
    %v3641 = vsel %vm3635, %v3628, 920167782
    %v3642 = vsel %vm3634, %v3625, %v3641
    %v3643 = vsel %vm3633, %v3640, %v3642
    %v3644 = vsel %vm3632, %v3622, %v3625
    %v3645 = vsel %vm3635, %v3631, 1326507024
    %v3646 = vsel %vm3634, %v3628, %v3645
    %v3647 = vsel %vm3633, %v3644, %v3646
    %v3648 = vshll.u32 %v3608, 8
    %v3649 = vmul.u32.u64.compose %v3648, %v3647
    %v3650 = vextract.low.u32 %v3649
    %v3651 = vextract.high.u32 %v3649
    %v3652 = vmul.u32.u64.compose %v3648, %v3643
    %v3653 = vextract.low.u32 %v3652
    %v3654 = vextract.high.u32 %v3652
    %v3655 = vmul.u32 %v3648, %v3639
    %v3656 = vadd.s32 %v3651, %v3653
    %vm3657 = vc.u32 %v3651, %v3653
    %v3658 = vadd.s32 %v3654, 1
    %v3659 = vsel %vm3657, %v3658, %v3654
    %v3660 = vadd.s32 %v3655, %v3659
    %v3661 = vadd.s32 %v3660, 536870912
    %v3662 = vshrl.u32 %v3661, 30
    %v3663 = vshll.u32 %v3662, 30
    %v3664 = vsub.s32 %v3660, %v3663
    %vm3665 = vcmp.lt.s32.totalorder %v3664, 0
    %v3666 = vsub.s32 0, %v3664
    %v3667 = vsel %vm3665, %v3666, %v3664
    %v3668 = vclz %v3667
    %v3669 = vsub.s32 %v3668, 2
    %vm3670 = vcmp.gt.s32.totalorder 0, %v3669
    %v3671 = vsel %vm3670, 0, %v3669
    %v3672 = vsub.s32 32, %v3671
    %v3673 = vshll.u32 %v3664, %v3671
    %v3674 = vshrl.u32 %v3656, %v3672
    %v3675 = vor.u32 %v3673, %v3674
    %v3676 = vsub.s32 4294967266, %v3671
    %v3677 = vadd.s32 %v3676, 127
    %v3678 = vshll.u32 %v3677, 23
    %v3679 = vor.u32 4788187, %v3678
    %v3680 = vand.u32 2147483647, %v3679
    %v3682 = vcvt.s32.f32 %v3675
    %v3683 = vmul.f32 %v3682, %v3680
    %v3684 = vxor.u32 %v3683, 2147483648
    %v3685 = vsel %vm3602, %v3684, %v3683
    %v3686 = vsub.s32 4, %v3662
    %v3687 = vsel %vm3602, %v3686, %v3662
    %v3688 = vsel %vm3601, %v404, %v3685
    %v3689 = vsel %vm3601, 0, %v3687
    %v3690 = vcosq.f32.pop %v3688
    %v3691 = vsinq.f32.pop %v3688
    %vm3692 = vweird.f32 %v404
    %v3693 = vand.u32 %v3689, 3
    %vm3694 = vcmp.lt.s32.totalorder %v3693, 2
    %vm3695 = vcmp.eq.s32.totalorder %v3693, 0
    %v3696 = vxor.u32 %v3691, 2147483648
    %v3697 = vsel %vm3695, %v3690, %v3696
    %vm3698 = vcmp.eq.s32.totalorder %v3693, 2
    %v3699 = vxor.u32 %v3690, 2147483648
    %v3700 = vsel %vm3698, %v3699, %v3691
    %v3701 = vsel %vm3694, %v3697, %v3700
    %v3702 = vsel %vm3692, nan, %v3701
    %v3703 = vpack.c.bf16 %v612, %v509
    %v3704 = vpack.c.bf16 %v818, %v715
    %v3705 = vpack.c.bf16 %v1024, %v921
    %v3706 = vpack.c.bf16 %v1230, %v1127
    %v3707 = vpack.c.bf16 %v1436, %v1333
    %v3708 = vpack.c.bf16 %v1642, %v1539
    %v3709 = vpack.c.bf16 %v1848, %v1745
    %v3710 = vpack.c.bf16 %v2054, %v1951
    %v3711 = vpack.c.bf16 %v2260, %v2157
    %v3712 = vpack.c.bf16 %v2466, %v2363
    %v3713 = vpack.c.bf16 %v2672, %v2569
    %v3714 = vpack.c.bf16 %v2878, %v2775
    %v3715 = vpack.c.bf16 %v3084, %v2981
    %v3716 = vpack.c.bf16 %v3290, %v3187
    %v3717 = vpack.c.bf16 %v3496, %v3393
    %v3718 = vpack.c.bf16 %v3702, %v3599
    %v3720 = vlaneseq
    %v3721 = vshrl.u32 %v3720, 7
    %v3722 = vsub.s32 0, %v3721
    %v3723 = vrot.slane %v81, %v3722
    %v3741 = vunpack.c.l.b16 %v65
    %v3742 = vunpack.c.l.b16 %v66
    %v3743 = vunpack.c.l.b16 %v67
    %v3744 = vunpack.c.l.b16 %v68
    %v3745 = vunpack.c.l.b16 %v69
    %v3746 = vunpack.c.l.b16 %v70
    %v3747 = vunpack.c.l.b16 %v71
    %v3748 = vunpack.c.l.b16 %v72
    %v3749 = vunpack.c.l.b16 %v73
    %v3750 = vunpack.c.l.b16 %v74
    %v3751 = vunpack.c.l.b16 %v75
    %v3752 = vunpack.c.l.b16 %v76
    %v3753 = vunpack.c.l.b16 %v77
    %v3754 = vunpack.c.l.b16 %v78
    %v3755 = vunpack.c.l.b16 %v79
    %v3756 = vunpack.c.l.b16 %v80
    %v3757 = vpack.c.b16 %v3742, %v3741
    %v3758 = vpack.c.b16 %v3744, %v3743
    %v3759 = vpack.c.b16 %v3746, %v3745
    %v3760 = vpack.c.b16 %v3748, %v3747
    %v3761 = vpack.c.b16 %v3750, %v3749
    %v3762 = vpack.c.b16 %v3752, %v3751
    %v3763 = vpack.c.b16 %v3754, %v3753
    %v3764 = vpack.c.b16 %v3756, %v3755
    %3773 = vmatprep.subr.bf16.mxu0 0
    %3774 = vmatpush1.bf16.msra.mxu0 %v3757
    %3775 = vmatprep.subr.bf16.mxu0 0
    %3776 = vmatpush1.bf16.msra.mxu0 %v3758
    %3777 = vmatprep.subr.bf16.mxu0 0
    %3778 = vmatpush1.bf16.msra.mxu0 %v3759
    %3779 = vmatprep.subr.bf16.mxu0 0
    %3780 = vmatpush1.bf16.msra.mxu0 %v3760
    %3781 = vmatprep.subr.bf16.mxu0 0
    %3782 = vmatpush1.bf16.msra.mxu0 %v3761
    %3783 = vmatprep.subr.bf16.mxu0 0
    %3784 = vmatpush1.bf16.msra.mxu0 %v3762
    %3785 = vmatprep.subr.bf16.mxu0 0
    %3786 = vmatpush1.bf16.msra.mxu0 %v3763
    %3787 = vmatprep.subr.bf16.mxu0 0
    %3788 = vmatpush1.bf16.msra.mxu0 %v3764
    %3789 = vmatprep.subr.bf16.mxu0 0
    %3790 = vmatpush1.bf16.msra.mxu0 0
    %3791 = vmatprep.subr.bf16.mxu0 0
    %3792 = vmatpush1.bf16.msra.mxu0 0
    %3793 = vmatprep.subr.bf16.mxu0 0
    %3794 = vmatpush1.bf16.msra.mxu0 0
    %3795 = vmatprep.subr.bf16.mxu0 0
    %3796 = vmatpush1.bf16.msra.mxu0 0
    %3797 = vmatprep.subr.bf16.mxu0 0
    %3798 = vmatpush1.bf16.msra.mxu0 0
    %3799 = vmatprep.subr.bf16.mxu0 0
    %3800 = vmatpush1.bf16.msra.mxu0 0
    %3801 = vmatprep.subr.bf16.mxu0 0
    %3802 = vmatpush1.bf16.msra.mxu0 0
    %3803 = vmatprep.subr.bf16.mxu0 0
    %3804 = vmatpush1.bf16.msra.mxu0 0
    %3805 = vmatprep.mubr.bf16.mxu0 0
    %3806 = vmatmul.mubr.bf16.gmra.mrb[0].mxu0 %v3703
    %v3807 = vpop.f32.mrb[0].mxu0
    %v3808 = vadd.f32 %v3723, %v3807
    %v3809 = vpop.f32.mrb[0].mxu0
    %v3810 = vpop.f32.mrb[0].mxu0
    %v3811 = vadd.f32 %v3723, %v3810
    %v3812 = vpop.f32.mrb[0].mxu0
    %3813 = vmatprep.mubr.bf16.mxu0 0
    %3814 = vmatmul.mubr.bf16.gmra.mrb[0].mxu0 %v3704
    %v3815 = vpop.f32.mrb[0].mxu0
    %v3816 = vadd.f32 %v3723, %v3815
    %v3817 = vpop.f32.mrb[0].mxu0
    %v3818 = vpop.f32.mrb[0].mxu0
    %v3819 = vadd.f32 %v3723, %v3818
    %v3820 = vpop.f32.mrb[0].mxu0
    %3821 = vmatprep.mubr.bf16.mxu0 0
    %3822 = vmatmul.mubr.bf16.gmra.mrb[0].mxu0 %v3705
    %v3823 = vpop.f32.mrb[0].mxu0
    %v3824 = vadd.f32 %v3723, %v3823
    %v3825 = vpop.f32.mrb[0].mxu0
    %v3826 = vpop.f32.mrb[0].mxu0
    %v3827 = vadd.f32 %v3723, %v3826
    %v3828 = vpop.f32.mrb[0].mxu0
    %3829 = vmatprep.mubr.bf16.mxu0 0
    %3830 = vmatmul.mubr.bf16.gmra.mrb[0].mxu0 %v3706
    %v3831 = vpop.f32.mrb[0].mxu0
    %v3832 = vadd.f32 %v3723, %v3831
    %v3833 = vpop.f32.mrb[0].mxu0
    %v3834 = vpop.f32.mrb[0].mxu0
    %v3835 = vadd.f32 %v3723, %v3834
    %v3836 = vpop.f32.mrb[0].mxu0
    %3837 = vmatprep.mubr.bf16.mxu0 0
    %3838 = vmatmul.mubr.bf16.gmra.mrb[0].mxu0 %v3707
    %v3839 = vpop.f32.mrb[0].mxu0
    %v3840 = vadd.f32 %v3723, %v3839
    %v3841 = vpop.f32.mrb[0].mxu0
    %v3842 = vpop.f32.mrb[0].mxu0
    %v3843 = vadd.f32 %v3723, %v3842
    %v3844 = vpop.f32.mrb[0].mxu0
    %3845 = vmatprep.mubr.bf16.mxu0 0
    %3846 = vmatmul.mubr.bf16.gmra.mrb[0].mxu0 %v3708
    %v3847 = vpop.f32.mrb[0].mxu0
    %v3848 = vadd.f32 %v3723, %v3847
    %v3849 = vpop.f32.mrb[0].mxu0
    %v3850 = vpop.f32.mrb[0].mxu0
    %v3851 = vadd.f32 %v3723, %v3850
    %v3852 = vpop.f32.mrb[0].mxu0
    %3853 = vmatprep.mubr.bf16.mxu0 0
    %3854 = vmatmul.mubr.bf16.gmra.mrb[0].mxu0 %v3709
    %v3855 = vpop.f32.mrb[0].mxu0
    %v3856 = vadd.f32 %v3723, %v3855
    %v3857 = vpop.f32.mrb[0].mxu0
    %v3858 = vpop.f32.mrb[0].mxu0
    %v3859 = vadd.f32 %v3723, %v3858
    %v3860 = vpop.f32.mrb[0].mxu0
    %3861 = vmatprep.mubr.bf16.mxu0 0
    %3862 = vmatmul.mubr.bf16.gmra.mrb[0].mxu0 %v3710
    %v3863 = vpop.f32.mrb[0].mxu0
    %v3864 = vadd.f32 %v3723, %v3863
    %v3865 = vpop.f32.mrb[0].mxu0
    %v3866 = vpop.f32.mrb[0].mxu0
    %v3867 = vadd.f32 %v3723, %v3866
    %v3868 = vpop.f32.mrb[0].mxu0
    %3869 = vmatprep.mubr.bf16.mxu0 0
    %3870 = vmatmul.mubr.bf16.gmra.mrb[0].mxu0 %v3711
    %v3871 = vpop.f32.mrb[0].mxu0
    %v3872 = vadd.f32 %v3723, %v3871
    %v3873 = vpop.f32.mrb[0].mxu0
    %v3874 = vpop.f32.mrb[0].mxu0
    %v3875 = vadd.f32 %v3723, %v3874
    %v3876 = vpop.f32.mrb[0].mxu0
    %3877 = vmatprep.mubr.bf16.mxu0 0
    %3878 = vmatmul.mubr.bf16.gmra.mrb[0].mxu0 %v3712
    %v3879 = vpop.f32.mrb[0].mxu0
    %v3880 = vadd.f32 %v3723, %v3879
    %v3881 = vpop.f32.mrb[0].mxu0
    %v3882 = vpop.f32.mrb[0].mxu0
    %v3883 = vadd.f32 %v3723, %v3882
    %v3884 = vpop.f32.mrb[0].mxu0
    %3885 = vmatprep.mubr.bf16.mxu0 0
    %3886 = vmatmul.mubr.bf16.gmra.mrb[0].mxu0 %v3713
    %v3887 = vpop.f32.mrb[0].mxu0
    %v3888 = vadd.f32 %v3723, %v3887
    %v3889 = vpop.f32.mrb[0].mxu0
    %v3890 = vpop.f32.mrb[0].mxu0
    %v3891 = vadd.f32 %v3723, %v3890
    %v3892 = vpop.f32.mrb[0].mxu0
    %3893 = vmatprep.mubr.bf16.mxu0 0
    %3894 = vmatmul.mubr.bf16.gmra.mrb[0].mxu0 %v3714
    %v3895 = vpop.f32.mrb[0].mxu0
    %v3896 = vadd.f32 %v3723, %v3895
    %v3897 = vpop.f32.mrb[0].mxu0
    %v3898 = vpop.f32.mrb[0].mxu0
    %v3899 = vadd.f32 %v3723, %v3898
    %v3900 = vpop.f32.mrb[0].mxu0
    %3901 = vmatprep.mubr.bf16.mxu0 0
    %3902 = vmatmul.mubr.bf16.gmra.mrb[0].mxu0 %v3715
    %v3903 = vpop.f32.mrb[0].mxu0
    %v3904 = vadd.f32 %v3723, %v3903
    %v3905 = vpop.f32.mrb[0].mxu0
    %v3906 = vpop.f32.mrb[0].mxu0
    %v3907 = vadd.f32 %v3723, %v3906
    %v3908 = vpop.f32.mrb[0].mxu0
    %3909 = vmatprep.mubr.bf16.mxu0 0
    %3910 = vmatmul.mubr.bf16.gmra.mrb[0].mxu0 %v3716
    %v3911 = vpop.f32.mrb[0].mxu0
    %v3912 = vadd.f32 %v3723, %v3911
    %v3913 = vpop.f32.mrb[0].mxu0
    %v3914 = vpop.f32.mrb[0].mxu0
    %v3915 = vadd.f32 %v3723, %v3914
    %v3916 = vpop.f32.mrb[0].mxu0
    %3917 = vmatprep.mubr.bf16.mxu0 0
    %3918 = vmatmul.mubr.bf16.gmra.mrb[0].mxu0 %v3717
    %v3919 = vpop.f32.mrb[0].mxu0
    %v3920 = vadd.f32 %v3723, %v3919
    %v3921 = vpop.f32.mrb[0].mxu0
    %v3922 = vpop.f32.mrb[0].mxu0
    %v3923 = vadd.f32 %v3723, %v3922
    %v3924 = vpop.f32.mrb[0].mxu0
    %3925 = vmatprep.mubr.bf16.mxu0 0
    %3926 = vmatmul.mubr.bf16.gmra.mrb[0].mxu0 %v3718
    %v3927 = vpop.f32.mrb[0].mxu0
    %v3928 = vadd.f32 %v3723, %v3927
    %v3929 = vpop.f32.mrb[0].mxu0
    %v3930 = vpop.f32.mrb[0].mxu0
    %v3931 = vadd.f32 %v3723, %v3930
    %v3932 = vpop.f32.mrb[0].mxu0
    %3933 = vdwg.mxu0
    %v3934 = vand.u32 2147483647, %v3808
    %vm3935 = vcmp.le.f32.partialorder %v3934, 0.7853982
    %vm3936 = vcmp.lt.s32.totalorder %v3808, 0
    %v3937 = vand.u32 %v3808, 2139095040
    %v3938 = vshrl.u32 %v3937, 23
    %v3939 = vsub.s32 %v3938, 127
    %v3940 = vand.u32 2147483647, %v3808
    %v3941 = vand.u32 %v3940, 8388607
    %v3942 = vor.u32 %v3941, 8388608
    %v3943 = vsub.s32 0, %v3942
    %v3944 = vadd.s32 %v3939, 1
    %vm3945 = vcmp.gt.s32.totalorder %v3944, 0
    %v3946 = vsel %vm3945, %v3944, 0
    %v3947 = vshrl.u32 %v3946, 5
    %v3948 = vand.u32 %v3946, 31
    %v3949 = vsub.s32 32, %v3948
    %v3950 = vshrl.u32 683565275, %v3949
    %v3951 = vshll.u32 683565275, %v3948
    %v3952 = vshrl.u32 2475754826, %v3949
    %v3953 = vor.u32 %v3951, %v3952
    %v3954 = vshll.u32 2475754826, %v3948
    %v3955 = vshrl.u32 2131351028, %v3949
    %v3956 = vor.u32 %v3954, %v3955
    %v3957 = vshll.u32 2131351028, %v3948
    %v3958 = vshrl.u32 2102212464, %v3949
    %v3959 = vor.u32 %v3957, %v3958
    %v3960 = vshll.u32 2102212464, %v3948
    %v3961 = vshrl.u32 920167782, %v3949
    %v3962 = vor.u32 %v3960, %v3961
    %v3963 = vshll.u32 920167782, %v3948
    %v3964 = vshrl.u32 1326507024, %v3949
    %v3965 = vor.u32 %v3963, %v3964
    %vm3966 = vcmp.lt.s32.totalorder %v3947, 1
    %vm3967 = vcmp.lt.s32.totalorder %v3947, 2
    %vm3968 = vcmp.lt.s32.totalorder %v3947, 3
    %vm3969 = vcmp.lt.s32.totalorder %v3947, 4
    %v3970 = vsel %vm3966, %v3950, %v3953
    %v3971 = vsel %vm3969, %v3959, 2102212464
    %v3972 = vsel %vm3968, %v3956, %v3971
    %v3973 = vsel %vm3967, %v3970, %v3972
    %v3974 = vsel %vm3966, %v3953, %v3956
    %v3975 = vsel %vm3969, %v3962, 920167782
    %v3976 = vsel %vm3968, %v3959, %v3975
    %v3977 = vsel %vm3967, %v3974, %v3976
    %v3978 = vsel %vm3966, %v3956, %v3959
    %v3979 = vsel %vm3969, %v3965, 1326507024
    %v3980 = vsel %vm3968, %v3962, %v3979
    %v3981 = vsel %vm3967, %v3978, %v3980
    %v3982 = vshll.u32 %v3942, 8
    %v3983 = vmul.u32.u64.compose %v3982, %v3981
    %v3984 = vextract.low.u32 %v3983
    %v3985 = vextract.high.u32 %v3983
    %v3986 = vmul.u32.u64.compose %v3982, %v3977
    %v3987 = vextract.low.u32 %v3986
    %v3988 = vextract.high.u32 %v3986
    %v3989 = vmul.u32 %v3982, %v3973
    %v3990 = vadd.s32 %v3985, %v3987
    %vm3991 = vc.u32 %v3985, %v3987
    %v3992 = vadd.s32 %v3988, 1
    %v3993 = vsel %vm3991, %v3992, %v3988
    %v3994 = vadd.s32 %v3989, %v3993
    %v3995 = vadd.s32 %v3994, 536870912
    %v3996 = vshrl.u32 %v3995, 30
    %v3997 = vshll.u32 %v3996, 30
    %v3998 = vsub.s32 %v3994, %v3997
    %vm3999 = vcmp.lt.s32.totalorder %v3998, 0
    %v4000 = vsub.s32 0, %v3998
    %v4001 = vsel %vm3999, %v4000, %v3998
    %v4002 = vclz %v4001
    %v4003 = vsub.s32 %v4002, 2
    %vm4004 = vcmp.gt.s32.totalorder 0, %v4003
    %v4005 = vsel %vm4004, 0, %v4003
    %v4006 = vsub.s32 32, %v4005
    %v4007 = vshll.u32 %v3998, %v4005
    %v4008 = vshrl.u32 %v3990, %v4006
    %v4009 = vor.u32 %v4007, %v4008
    %v4010 = vsub.s32 4294967266, %v4005
    %v4011 = vadd.s32 %v4010, 127
    %v4012 = vshll.u32 %v4011, 23
    %v4013 = vor.u32 4788187, %v4012
    %v4014 = vand.u32 2147483647, %v4013
    %v4016 = vcvt.s32.f32 %v4009
    %v4017 = vmul.f32 %v4016, %v4014
    %v4018 = vxor.u32 %v4017, 2147483648
    %v4019 = vsel %vm3936, %v4018, %v4017
    %v4020 = vsub.s32 4, %v3996
    %v4021 = vsel %vm3936, %v4020, %v3996
    %v4022 = vsel %vm3935, %v3808, %v4019
    %v4023 = vsel %vm3935, 0, %v4021
    %v4024 = vcosq.f32.pop %v4022
    %v4025 = vsinq.f32.pop %v4022
    %vm4026 = vweird.f32 %v3808
    %v4027 = vand.u32 %v4023, 3
    %vm4028 = vcmp.lt.s32.totalorder %v4027, 2
    %vm4029 = vcmp.eq.s32.totalorder %v4027, 0
    %v4030 = vxor.u32 %v4025, 2147483648
    %v4031 = vsel %vm4029, %v4024, %v4030
    %vm4032 = vcmp.eq.s32.totalorder %v4027, 2
    %v4033 = vxor.u32 %v4024, 2147483648
    %v4034 = vsel %vm4032, %v4033, %v4025
    %v4035 = vsel %vm4028, %v4031, %v4034
    %v4036 = vsel %vm4026, nan, %v4035
    %v4037 = vand.u32 2147483647, %v3811
    %vm4038 = vcmp.le.f32.partialorder %v4037, 0.7853982
    %vm4039 = vcmp.lt.s32.totalorder %v3811, 0
    %v4040 = vand.u32 %v3811, 2139095040
    %v4041 = vshrl.u32 %v4040, 23
    %v4042 = vsub.s32 %v4041, 127
    %v4043 = vand.u32 2147483647, %v3811
    %v4044 = vand.u32 %v4043, 8388607
    %v4045 = vor.u32 %v4044, 8388608
    %v4046 = vsub.s32 0, %v4045
    %v4047 = vadd.s32 %v4042, 1
    %vm4048 = vcmp.gt.s32.totalorder %v4047, 0
    %v4049 = vsel %vm4048, %v4047, 0
    %v4050 = vshrl.u32 %v4049, 5
    %v4051 = vand.u32 %v4049, 31
    %v4052 = vsub.s32 32, %v4051
    %v4053 = vshrl.u32 683565275, %v4052
    %v4054 = vshll.u32 683565275, %v4051
    %v4055 = vshrl.u32 2475754826, %v4052
    %v4056 = vor.u32 %v4054, %v4055
    %v4057 = vshll.u32 2475754826, %v4051
    %v4058 = vshrl.u32 2131351028, %v4052
    %v4059 = vor.u32 %v4057, %v4058
    %v4060 = vshll.u32 2131351028, %v4051
    %v4061 = vshrl.u32 2102212464, %v4052
    %v4062 = vor.u32 %v4060, %v4061
    %v4063 = vshll.u32 2102212464, %v4051
    %v4064 = vshrl.u32 920167782, %v4052
    %v4065 = vor.u32 %v4063, %v4064
    %v4066 = vshll.u32 920167782, %v4051
    %v4067 = vshrl.u32 1326507024, %v4052
    %v4068 = vor.u32 %v4066, %v4067
    %vm4069 = vcmp.lt.s32.totalorder %v4050, 1
    %vm4070 = vcmp.lt.s32.totalorder %v4050, 2
    %vm4071 = vcmp.lt.s32.totalorder %v4050, 3
    %vm4072 = vcmp.lt.s32.totalorder %v4050, 4
    %v4073 = vsel %vm4069, %v4053, %v4056
    %v4074 = vsel %vm4072, %v4062, 2102212464
    %v4075 = vsel %vm4071, %v4059, %v4074
    %v4076 = vsel %vm4070, %v4073, %v4075
    %v4077 = vsel %vm4069, %v4056, %v4059
    %v4078 = vsel %vm4072, %v4065, 920167782
    %v4079 = vsel %vm4071, %v4062, %v4078
    %v4080 = vsel %vm4070, %v4077, %v4079
    %v4081 = vsel %vm4069, %v4059, %v4062
    %v4082 = vsel %vm4072, %v4068, 1326507024
    %v4083 = vsel %vm4071, %v4065, %v4082
    %v4084 = vsel %vm4070, %v4081, %v4083
    %v4085 = vshll.u32 %v4045, 8
    %v4086 = vmul.u32.u64.compose %v4085, %v4084
    %v4087 = vextract.low.u32 %v4086
    %v4088 = vextract.high.u32 %v4086
    %v4089 = vmul.u32.u64.compose %v4085, %v4080
    %v4090 = vextract.low.u32 %v4089
    %v4091 = vextract.high.u32 %v4089
    %v4092 = vmul.u32 %v4085, %v4076
    %v4093 = vadd.s32 %v4088, %v4090
    %vm4094 = vc.u32 %v4088, %v4090
    %v4095 = vadd.s32 %v4091, 1
    %v4096 = vsel %vm4094, %v4095, %v4091
    %v4097 = vadd.s32 %v4092, %v4096
    %v4098 = vadd.s32 %v4097, 536870912
    %v4099 = vshrl.u32 %v4098, 30
    %v4100 = vshll.u32 %v4099, 30
    %v4101 = vsub.s32 %v4097, %v4100
    %vm4102 = vcmp.lt.s32.totalorder %v4101, 0
    %v4103 = vsub.s32 0, %v4101
    %v4104 = vsel %vm4102, %v4103, %v4101
    %v4105 = vclz %v4104
    %v4106 = vsub.s32 %v4105, 2
    %vm4107 = vcmp.gt.s32.totalorder 0, %v4106
    %v4108 = vsel %vm4107, 0, %v4106
    %v4109 = vsub.s32 32, %v4108
    %v4110 = vshll.u32 %v4101, %v4108
    %v4111 = vshrl.u32 %v4093, %v4109
    %v4112 = vor.u32 %v4110, %v4111
    %v4113 = vsub.s32 4294967266, %v4108
    %v4114 = vadd.s32 %v4113, 127
    %v4115 = vshll.u32 %v4114, 23
    %v4116 = vor.u32 4788187, %v4115
    %v4117 = vand.u32 2147483647, %v4116
    %v4119 = vcvt.s32.f32 %v4112
    %v4120 = vmul.f32 %v4119, %v4117
    %v4121 = vxor.u32 %v4120, 2147483648
    %v4122 = vsel %vm4039, %v4121, %v4120
    %v4123 = vsub.s32 4, %v4099
    %v4124 = vsel %vm4039, %v4123, %v4099
    %v4125 = vsel %vm4038, %v3811, %v4122
    %v4126 = vsel %vm4038, 0, %v4124
    %v4127 = vcosq.f32.pop %v4125
    %v4128 = vsinq.f32.pop %v4125
    %vm4129 = vweird.f32 %v3811
    %v4130 = vand.u32 %v4126, 3
    %vm4131 = vcmp.lt.s32.totalorder %v4130, 2
    %vm4132 = vcmp.eq.s32.totalorder %v4130, 0
    %v4133 = vxor.u32 %v4128, 2147483648
    %v4134 = vsel %vm4132, %v4127, %v4133
    %vm4135 = vcmp.eq.s32.totalorder %v4130, 2
    %v4136 = vxor.u32 %v4127, 2147483648
    %v4137 = vsel %vm4135, %v4136, %v4128
    %v4138 = vsel %vm4131, %v4134, %v4137
    %v4139 = vsel %vm4129, nan, %v4138
    %v4140 = vand.u32 2147483647, %v3816
    %vm4141 = vcmp.le.f32.partialorder %v4140, 0.7853982
    %vm4142 = vcmp.lt.s32.totalorder %v3816, 0
    %v4143 = vand.u32 %v3816, 2139095040
    %v4144 = vshrl.u32 %v4143, 23
    %v4145 = vsub.s32 %v4144, 127
    %v4146 = vand.u32 2147483647, %v3816
    %v4147 = vand.u32 %v4146, 8388607
    %v4148 = vor.u32 %v4147, 8388608
    %v4149 = vsub.s32 0, %v4148
    %v4150 = vadd.s32 %v4145, 1
    %vm4151 = vcmp.gt.s32.totalorder %v4150, 0
    %v4152 = vsel %vm4151, %v4150, 0
    %v4153 = vshrl.u32 %v4152, 5
    %v4154 = vand.u32 %v4152, 31
    %v4155 = vsub.s32 32, %v4154
    %v4156 = vshrl.u32 683565275, %v4155
    %v4157 = vshll.u32 683565275, %v4154
    %v4158 = vshrl.u32 2475754826, %v4155
    %v4159 = vor.u32 %v4157, %v4158
    %v4160 = vshll.u32 2475754826, %v4154
    %v4161 = vshrl.u32 2131351028, %v4155
    %v4162 = vor.u32 %v4160, %v4161
    %v4163 = vshll.u32 2131351028, %v4154
    %v4164 = vshrl.u32 2102212464, %v4155
    %v4165 = vor.u32 %v4163, %v4164
    %v4166 = vshll.u32 2102212464, %v4154
    %v4167 = vshrl.u32 920167782, %v4155
    %v4168 = vor.u32 %v4166, %v4167
    %v4169 = vshll.u32 920167782, %v4154
    %v4170 = vshrl.u32 1326507024, %v4155
    %v4171 = vor.u32 %v4169, %v4170
    %vm4172 = vcmp.lt.s32.totalorder %v4153, 1
    %vm4173 = vcmp.lt.s32.totalorder %v4153, 2
    %vm4174 = vcmp.lt.s32.totalorder %v4153, 3
    %vm4175 = vcmp.lt.s32.totalorder %v4153, 4
    %v4176 = vsel %vm4172, %v4156, %v4159
    %v4177 = vsel %vm4175, %v4165, 2102212464
    %v4178 = vsel %vm4174, %v4162, %v4177
    %v4179 = vsel %vm4173, %v4176, %v4178
    %v4180 = vsel %vm4172, %v4159, %v4162
    %v4181 = vsel %vm4175, %v4168, 920167782
    %v4182 = vsel %vm4174, %v4165, %v4181
    %v4183 = vsel %vm4173, %v4180, %v4182
    %v4184 = vsel %vm4172, %v4162, %v4165
    %v4185 = vsel %vm4175, %v4171, 1326507024
    %v4186 = vsel %vm4174, %v4168, %v4185
    %v4187 = vsel %vm4173, %v4184, %v4186
    %v4188 = vshll.u32 %v4148, 8
    %v4189 = vmul.u32.u64.compose %v4188, %v4187
    %v4190 = vextract.low.u32 %v4189
    %v4191 = vextract.high.u32 %v4189
    %v4192 = vmul.u32.u64.compose %v4188, %v4183
    %v4193 = vextract.low.u32 %v4192
    %v4194 = vextract.high.u32 %v4192
    %v4195 = vmul.u32 %v4188, %v4179
    %v4196 = vadd.s32 %v4191, %v4193
    %vm4197 = vc.u32 %v4191, %v4193
    %v4198 = vadd.s32 %v4194, 1
    %v4199 = vsel %vm4197, %v4198, %v4194
    %v4200 = vadd.s32 %v4195, %v4199
    %v4201 = vadd.s32 %v4200, 536870912
    %v4202 = vshrl.u32 %v4201, 30
    %v4203 = vshll.u32 %v4202, 30
    %v4204 = vsub.s32 %v4200, %v4203
    %vm4205 = vcmp.lt.s32.totalorder %v4204, 0
    %v4206 = vsub.s32 0, %v4204
    %v4207 = vsel %vm4205, %v4206, %v4204
    %v4208 = vclz %v4207
    %v4209 = vsub.s32 %v4208, 2
    %vm4210 = vcmp.gt.s32.totalorder 0, %v4209
    %v4211 = vsel %vm4210, 0, %v4209
    %v4212 = vsub.s32 32, %v4211
    %v4213 = vshll.u32 %v4204, %v4211
    %v4214 = vshrl.u32 %v4196, %v4212
    %v4215 = vor.u32 %v4213, %v4214
    %v4216 = vsub.s32 4294967266, %v4211
    %v4217 = vadd.s32 %v4216, 127
    %v4218 = vshll.u32 %v4217, 23
    %v4219 = vor.u32 4788187, %v4218
    %v4220 = vand.u32 2147483647, %v4219
    %v4222 = vcvt.s32.f32 %v4215
    %v4223 = vmul.f32 %v4222, %v4220
    %v4224 = vxor.u32 %v4223, 2147483648
    %v4225 = vsel %vm4142, %v4224, %v4223
    %v4226 = vsub.s32 4, %v4202
    %v4227 = vsel %vm4142, %v4226, %v4202
    %v4228 = vsel %vm4141, %v3816, %v4225
    %v4229 = vsel %vm4141, 0, %v4227
    %v4230 = vcosq.f32.pop %v4228
    %v4231 = vsinq.f32.pop %v4228
    %vm4232 = vweird.f32 %v3816
    %v4233 = vand.u32 %v4229, 3
    %vm4234 = vcmp.lt.s32.totalorder %v4233, 2
    %vm4235 = vcmp.eq.s32.totalorder %v4233, 0
    %v4236 = vxor.u32 %v4231, 2147483648
    %v4237 = vsel %vm4235, %v4230, %v4236
    %vm4238 = vcmp.eq.s32.totalorder %v4233, 2
    %v4239 = vxor.u32 %v4230, 2147483648
    %v4240 = vsel %vm4238, %v4239, %v4231
    %v4241 = vsel %vm4234, %v4237, %v4240
    %v4242 = vsel %vm4232, nan, %v4241
    %v4243 = vand.u32 2147483647, %v3819
    %vm4244 = vcmp.le.f32.partialorder %v4243, 0.7853982
    %vm4245 = vcmp.lt.s32.totalorder %v3819, 0
    %v4246 = vand.u32 %v3819, 2139095040
    %v4247 = vshrl.u32 %v4246, 23
    %v4248 = vsub.s32 %v4247, 127
    %v4249 = vand.u32 2147483647, %v3819
    %v4250 = vand.u32 %v4249, 8388607
    %v4251 = vor.u32 %v4250, 8388608
    %v4252 = vsub.s32 0, %v4251
    %v4253 = vadd.s32 %v4248, 1
    %vm4254 = vcmp.gt.s32.totalorder %v4253, 0
    %v4255 = vsel %vm4254, %v4253, 0
    %v4256 = vshrl.u32 %v4255, 5
    %v4257 = vand.u32 %v4255, 31
    %v4258 = vsub.s32 32, %v4257
    %v4259 = vshrl.u32 683565275, %v4258
    %v4260 = vshll.u32 683565275, %v4257
    %v4261 = vshrl.u32 2475754826, %v4258
    %v4262 = vor.u32 %v4260, %v4261
    %v4263 = vshll.u32 2475754826, %v4257
    %v4264 = vshrl.u32 2131351028, %v4258
    %v4265 = vor.u32 %v4263, %v4264
    %v4266 = vshll.u32 2131351028, %v4257
    %v4267 = vshrl.u32 2102212464, %v4258
    %v4268 = vor.u32 %v4266, %v4267
    %v4269 = vshll.u32 2102212464, %v4257
    %v4270 = vshrl.u32 920167782, %v4258
    %v4271 = vor.u32 %v4269, %v4270
    %v4272 = vshll.u32 920167782, %v4257
    %v4273 = vshrl.u32 1326507024, %v4258
    %v4274 = vor.u32 %v4272, %v4273
    %vm4275 = vcmp.lt.s32.totalorder %v4256, 1
    %vm4276 = vcmp.lt.s32.totalorder %v4256, 2
    %vm4277 = vcmp.lt.s32.totalorder %v4256, 3
    %vm4278 = vcmp.lt.s32.totalorder %v4256, 4
    %v4279 = vsel %vm4275, %v4259, %v4262
    %v4280 = vsel %vm4278, %v4268, 2102212464
    %v4281 = vsel %vm4277, %v4265, %v4280
    %v4282 = vsel %vm4276, %v4279, %v4281
    %v4283 = vsel %vm4275, %v4262, %v4265
    %v4284 = vsel %vm4278, %v4271, 920167782
    %v4285 = vsel %vm4277, %v4268, %v4284
    %v4286 = vsel %vm4276, %v4283, %v4285
    %v4287 = vsel %vm4275, %v4265, %v4268
    %v4288 = vsel %vm4278, %v4274, 1326507024
    %v4289 = vsel %vm4277, %v4271, %v4288
    %v4290 = vsel %vm4276, %v4287, %v4289
    %v4291 = vshll.u32 %v4251, 8
    %v4292 = vmul.u32.u64.compose %v4291, %v4290
    %v4293 = vextract.low.u32 %v4292
    %v4294 = vextract.high.u32 %v4292
    %v4295 = vmul.u32.u64.compose %v4291, %v4286
    %v4296 = vextract.low.u32 %v4295
    %v4297 = vextract.high.u32 %v4295
    %v4298 = vmul.u32 %v4291, %v4282
    %v4299 = vadd.s32 %v4294, %v4296
    %vm4300 = vc.u32 %v4294, %v4296
    %v4301 = vadd.s32 %v4297, 1
    %v4302 = vsel %vm4300, %v4301, %v4297
    %v4303 = vadd.s32 %v4298, %v4302
    %v4304 = vadd.s32 %v4303, 536870912
    %v4305 = vshrl.u32 %v4304, 30
    %v4306 = vshll.u32 %v4305, 30
    %v4307 = vsub.s32 %v4303, %v4306
    %vm4308 = vcmp.lt.s32.totalorder %v4307, 0
    %v4309 = vsub.s32 0, %v4307
    %v4310 = vsel %vm4308, %v4309, %v4307
    %v4311 = vclz %v4310
    %v4312 = vsub.s32 %v4311, 2
    %vm4313 = vcmp.gt.s32.totalorder 0, %v4312
    %v4314 = vsel %vm4313, 0, %v4312
    %v4315 = vsub.s32 32, %v4314
    %v4316 = vshll.u32 %v4307, %v4314
    %v4317 = vshrl.u32 %v4299, %v4315
    %v4318 = vor.u32 %v4316, %v4317
    %v4319 = vsub.s32 4294967266, %v4314
    %v4320 = vadd.s32 %v4319, 127
    %v4321 = vshll.u32 %v4320, 23
    %v4322 = vor.u32 4788187, %v4321
    %v4323 = vand.u32 2147483647, %v4322
    %v4325 = vcvt.s32.f32 %v4318
    %v4326 = vmul.f32 %v4325, %v4323
    %v4327 = vxor.u32 %v4326, 2147483648
    %v4328 = vsel %vm4245, %v4327, %v4326
    %v4329 = vsub.s32 4, %v4305
    %v4330 = vsel %vm4245, %v4329, %v4305
    %v4331 = vsel %vm4244, %v3819, %v4328
    %v4332 = vsel %vm4244, 0, %v4330
    %v4333 = vcosq.f32.pop %v4331
    %v4334 = vsinq.f32.pop %v4331
    %vm4335 = vweird.f32 %v3819
    %v4336 = vand.u32 %v4332, 3
    %vm4337 = vcmp.lt.s32.totalorder %v4336, 2
    %vm4338 = vcmp.eq.s32.totalorder %v4336, 0
    %v4339 = vxor.u32 %v4334, 2147483648
    %v4340 = vsel %vm4338, %v4333, %v4339
    %vm4341 = vcmp.eq.s32.totalorder %v4336, 2
    %v4342 = vxor.u32 %v4333, 2147483648
    %v4343 = vsel %vm4341, %v4342, %v4334
    %v4344 = vsel %vm4337, %v4340, %v4343
    %v4345 = vsel %vm4335, nan, %v4344
    %v4346 = vand.u32 2147483647, %v3824
    %vm4347 = vcmp.le.f32.partialorder %v4346, 0.7853982
    %vm4348 = vcmp.lt.s32.totalorder %v3824, 0
    %v4349 = vand.u32 %v3824, 2139095040
    %v4350 = vshrl.u32 %v4349, 23
    %v4351 = vsub.s32 %v4350, 127
    %v4352 = vand.u32 2147483647, %v3824
    %v4353 = vand.u32 %v4352, 8388607
    %v4354 = vor.u32 %v4353, 8388608
    %v4355 = vsub.s32 0, %v4354
    %v4356 = vadd.s32 %v4351, 1
    %vm4357 = vcmp.gt.s32.totalorder %v4356, 0
    %v4358 = vsel %vm4357, %v4356, 0
    %v4359 = vshrl.u32 %v4358, 5
    %v4360 = vand.u32 %v4358, 31
    %v4361 = vsub.s32 32, %v4360
    %v4362 = vshrl.u32 683565275, %v4361
    %v4363 = vshll.u32 683565275, %v4360
    %v4364 = vshrl.u32 2475754826, %v4361
    %v4365 = vor.u32 %v4363, %v4364
    %v4366 = vshll.u32 2475754826, %v4360
    %v4367 = vshrl.u32 2131351028, %v4361
    %v4368 = vor.u32 %v4366, %v4367
    %v4369 = vshll.u32 2131351028, %v4360
    %v4370 = vshrl.u32 2102212464, %v4361
    %v4371 = vor.u32 %v4369, %v4370
    %v4372 = vshll.u32 2102212464, %v4360
    %v4373 = vshrl.u32 920167782, %v4361
    %v4374 = vor.u32 %v4372, %v4373
    %v4375 = vshll.u32 920167782, %v4360
    %v4376 = vshrl.u32 1326507024, %v4361
    %v4377 = vor.u32 %v4375, %v4376
    %vm4378 = vcmp.lt.s32.totalorder %v4359, 1
    %vm4379 = vcmp.lt.s32.totalorder %v4359, 2
    %vm4380 = vcmp.lt.s32.totalorder %v4359, 3
    %vm4381 = vcmp.lt.s32.totalorder %v4359, 4
    %v4382 = vsel %vm4378, %v4362, %v4365
    %v4383 = vsel %vm4381, %v4371, 2102212464
    %v4384 = vsel %vm4380, %v4368, %v4383
    %v4385 = vsel %vm4379, %v4382, %v4384
    %v4386 = vsel %vm4378, %v4365, %v4368
    %v4387 = vsel %vm4381, %v4374, 920167782
    %v4388 = vsel %vm4380, %v4371, %v4387
    %v4389 = vsel %vm4379, %v4386, %v4388
    %v4390 = vsel %vm4378, %v4368, %v4371
    %v4391 = vsel %vm4381, %v4377, 1326507024
    %v4392 = vsel %vm4380, %v4374, %v4391
    %v4393 = vsel %vm4379, %v4390, %v4392
    %v4394 = vshll.u32 %v4354, 8
    %v4395 = vmul.u32.u64.compose %v4394, %v4393
    %v4396 = vextract.low.u32 %v4395
    %v4397 = vextract.high.u32 %v4395
    %v4398 = vmul.u32.u64.compose %v4394, %v4389
    %v4399 = vextract.low.u32 %v4398
    %v4400 = vextract.high.u32 %v4398
    %v4401 = vmul.u32 %v4394, %v4385
    %v4402 = vadd.s32 %v4397, %v4399
    %vm4403 = vc.u32 %v4397, %v4399
    %v4404 = vadd.s32 %v4400, 1
    %v4405 = vsel %vm4403, %v4404, %v4400
    %v4406 = vadd.s32 %v4401, %v4405
    %v4407 = vadd.s32 %v4406, 536870912
    %v4408 = vshrl.u32 %v4407, 30
    %v4409 = vshll.u32 %v4408, 30
    %v4410 = vsub.s32 %v4406, %v4409
    %vm4411 = vcmp.lt.s32.totalorder %v4410, 0
    %v4412 = vsub.s32 0, %v4410
    %v4413 = vsel %vm4411, %v4412, %v4410
    %v4414 = vclz %v4413
    %v4415 = vsub.s32 %v4414, 2
    %vm4416 = vcmp.gt.s32.totalorder 0, %v4415
    %v4417 = vsel %vm4416, 0, %v4415
    %v4418 = vsub.s32 32, %v4417
    %v4419 = vshll.u32 %v4410, %v4417
    %v4420 = vshrl.u32 %v4402, %v4418
    %v4421 = vor.u32 %v4419, %v4420
    %v4422 = vsub.s32 4294967266, %v4417
    %v4423 = vadd.s32 %v4422, 127
    %v4424 = vshll.u32 %v4423, 23
    %v4425 = vor.u32 4788187, %v4424
    %v4426 = vand.u32 2147483647, %v4425
    %v4428 = vcvt.s32.f32 %v4421
    %v4429 = vmul.f32 %v4428, %v4426
    %v4430 = vxor.u32 %v4429, 2147483648
    %v4431 = vsel %vm4348, %v4430, %v4429
    %v4432 = vsub.s32 4, %v4408
    %v4433 = vsel %vm4348, %v4432, %v4408
    %v4434 = vsel %vm4347, %v3824, %v4431
    %v4435 = vsel %vm4347, 0, %v4433
    %v4436 = vcosq.f32.pop %v4434
    %v4437 = vsinq.f32.pop %v4434
    %vm4438 = vweird.f32 %v3824
    %v4439 = vand.u32 %v4435, 3
    %vm4440 = vcmp.lt.s32.totalorder %v4439, 2
    %vm4441 = vcmp.eq.s32.totalorder %v4439, 0
    %v4442 = vxor.u32 %v4437, 2147483648
    %v4443 = vsel %vm4441, %v4436, %v4442
    %vm4444 = vcmp.eq.s32.totalorder %v4439, 2
    %v4445 = vxor.u32 %v4436, 2147483648
    %v4446 = vsel %vm4444, %v4445, %v4437
    %v4447 = vsel %vm4440, %v4443, %v4446
    %v4448 = vsel %vm4438, nan, %v4447
    %v4449 = vand.u32 2147483647, %v3827
    %vm4450 = vcmp.le.f32.partialorder %v4449, 0.7853982
    %vm4451 = vcmp.lt.s32.totalorder %v3827, 0
    %v4452 = vand.u32 %v3827, 2139095040
    %v4453 = vshrl.u32 %v4452, 23
    %v4454 = vsub.s32 %v4453, 127
    %v4455 = vand.u32 2147483647, %v3827
    %v4456 = vand.u32 %v4455, 8388607
    %v4457 = vor.u32 %v4456, 8388608
    %v4458 = vsub.s32 0, %v4457
    %v4459 = vadd.s32 %v4454, 1
    %vm4460 = vcmp.gt.s32.totalorder %v4459, 0
    %v4461 = vsel %vm4460, %v4459, 0
    %v4462 = vshrl.u32 %v4461, 5
    %v4463 = vand.u32 %v4461, 31
    %v4464 = vsub.s32 32, %v4463
    %v4465 = vshrl.u32 683565275, %v4464
    %v4466 = vshll.u32 683565275, %v4463
    %v4467 = vshrl.u32 2475754826, %v4464
    %v4468 = vor.u32 %v4466, %v4467
    %v4469 = vshll.u32 2475754826, %v4463
    %v4470 = vshrl.u32 2131351028, %v4464
    %v4471 = vor.u32 %v4469, %v4470
    %v4472 = vshll.u32 2131351028, %v4463
    %v4473 = vshrl.u32 2102212464, %v4464
    %v4474 = vor.u32 %v4472, %v4473
    %v4475 = vshll.u32 2102212464, %v4463
    %v4476 = vshrl.u32 920167782, %v4464
    %v4477 = vor.u32 %v4475, %v4476
    %v4478 = vshll.u32 920167782, %v4463
    %v4479 = vshrl.u32 1326507024, %v4464
    %v4480 = vor.u32 %v4478, %v4479
    %vm4481 = vcmp.lt.s32.totalorder %v4462, 1
    %vm4482 = vcmp.lt.s32.totalorder %v4462, 2
    %vm4483 = vcmp.lt.s32.totalorder %v4462, 3
    %vm4484 = vcmp.lt.s32.totalorder %v4462, 4
    %v4485 = vsel %vm4481, %v4465, %v4468
    %v4486 = vsel %vm4484, %v4474, 2102212464
    %v4487 = vsel %vm4483, %v4471, %v4486
    %v4488 = vsel %vm4482, %v4485, %v4487
    %v4489 = vsel %vm4481, %v4468, %v4471
    %v4490 = vsel %vm4484, %v4477, 920167782
    %v4491 = vsel %vm4483, %v4474, %v4490
    %v4492 = vsel %vm4482, %v4489, %v4491
    %v4493 = vsel %vm4481, %v4471, %v4474
    %v4494 = vsel %vm4484, %v4480, 1326507024
    %v4495 = vsel %vm4483, %v4477, %v4494
    %v4496 = vsel %vm4482, %v4493, %v4495
    %v4497 = vshll.u32 %v4457, 8
    %v4498 = vmul.u32.u64.compose %v4497, %v4496
    %v4499 = vextract.low.u32 %v4498
    %v4500 = vextract.high.u32 %v4498
    %v4501 = vmul.u32.u64.compose %v4497, %v4492
    %v4502 = vextract.low.u32 %v4501
    %v4503 = vextract.high.u32 %v4501
    %v4504 = vmul.u32 %v4497, %v4488
    %v4505 = vadd.s32 %v4500, %v4502
    %vm4506 = vc.u32 %v4500, %v4502
    %v4507 = vadd.s32 %v4503, 1
    %v4508 = vsel %vm4506, %v4507, %v4503
    %v4509 = vadd.s32 %v4504, %v4508
    %v4510 = vadd.s32 %v4509, 536870912
    %v4511 = vshrl.u32 %v4510, 30
    %v4512 = vshll.u32 %v4511, 30
    %v4513 = vsub.s32 %v4509, %v4512
    %vm4514 = vcmp.lt.s32.totalorder %v4513, 0
    %v4515 = vsub.s32 0, %v4513
    %v4516 = vsel %vm4514, %v4515, %v4513
    %v4517 = vclz %v4516
    %v4518 = vsub.s32 %v4517, 2
    %vm4519 = vcmp.gt.s32.totalorder 0, %v4518
    %v4520 = vsel %vm4519, 0, %v4518
    %v4521 = vsub.s32 32, %v4520
    %v4522 = vshll.u32 %v4513, %v4520
    %v4523 = vshrl.u32 %v4505, %v4521
    %v4524 = vor.u32 %v4522, %v4523
    %v4525 = vsub.s32 4294967266, %v4520
    %v4526 = vadd.s32 %v4525, 127
    %v4527 = vshll.u32 %v4526, 23
    %v4528 = vor.u32 4788187, %v4527
    %v4529 = vand.u32 2147483647, %v4528
    %v4531 = vcvt.s32.f32 %v4524
    %v4532 = vmul.f32 %v4531, %v4529
    %v4533 = vxor.u32 %v4532, 2147483648
    %v4534 = vsel %vm4451, %v4533, %v4532
    %v4535 = vsub.s32 4, %v4511
    %v4536 = vsel %vm4451, %v4535, %v4511
    %v4537 = vsel %vm4450, %v3827, %v4534
    %v4538 = vsel %vm4450, 0, %v4536
    %v4539 = vcosq.f32.pop %v4537
    %v4540 = vsinq.f32.pop %v4537
    %vm4541 = vweird.f32 %v3827
    %v4542 = vand.u32 %v4538, 3
    %vm4543 = vcmp.lt.s32.totalorder %v4542, 2
    %vm4544 = vcmp.eq.s32.totalorder %v4542, 0
    %v4545 = vxor.u32 %v4540, 2147483648
    %v4546 = vsel %vm4544, %v4539, %v4545
    %vm4547 = vcmp.eq.s32.totalorder %v4542, 2
    %v4548 = vxor.u32 %v4539, 2147483648
    %v4549 = vsel %vm4547, %v4548, %v4540
    %v4550 = vsel %vm4543, %v4546, %v4549
    %v4551 = vsel %vm4541, nan, %v4550
    %v4552 = vand.u32 2147483647, %v3832
    %vm4553 = vcmp.le.f32.partialorder %v4552, 0.7853982
    %vm4554 = vcmp.lt.s32.totalorder %v3832, 0
    %v4555 = vand.u32 %v3832, 2139095040
    %v4556 = vshrl.u32 %v4555, 23
    %v4557 = vsub.s32 %v4556, 127
    %v4558 = vand.u32 2147483647, %v3832
    %v4559 = vand.u32 %v4558, 8388607
    %v4560 = vor.u32 %v4559, 8388608
    %v4561 = vsub.s32 0, %v4560
    %v4562 = vadd.s32 %v4557, 1
    %vm4563 = vcmp.gt.s32.totalorder %v4562, 0
    %v4564 = vsel %vm4563, %v4562, 0
    %v4565 = vshrl.u32 %v4564, 5
    %v4566 = vand.u32 %v4564, 31
    %v4567 = vsub.s32 32, %v4566
    %v4568 = vshrl.u32 683565275, %v4567
    %v4569 = vshll.u32 683565275, %v4566
    %v4570 = vshrl.u32 2475754826, %v4567
    %v4571 = vor.u32 %v4569, %v4570
    %v4572 = vshll.u32 2475754826, %v4566
    %v4573 = vshrl.u32 2131351028, %v4567
    %v4574 = vor.u32 %v4572, %v4573
    %v4575 = vshll.u32 2131351028, %v4566
    %v4576 = vshrl.u32 2102212464, %v4567
    %v4577 = vor.u32 %v4575, %v4576
    %v4578 = vshll.u32 2102212464, %v4566
    %v4579 = vshrl.u32 920167782, %v4567
    %v4580 = vor.u32 %v4578, %v4579
    %v4581 = vshll.u32 920167782, %v4566
    %v4582 = vshrl.u32 1326507024, %v4567
    %v4583 = vor.u32 %v4581, %v4582
    %vm4584 = vcmp.lt.s32.totalorder %v4565, 1
    %vm4585 = vcmp.lt.s32.totalorder %v4565, 2
    %vm4586 = vcmp.lt.s32.totalorder %v4565, 3
    %vm4587 = vcmp.lt.s32.totalorder %v4565, 4
    %v4588 = vsel %vm4584, %v4568, %v4571
    %v4589 = vsel %vm4587, %v4577, 2102212464
    %v4590 = vsel %vm4586, %v4574, %v4589
    %v4591 = vsel %vm4585, %v4588, %v4590
    %v4592 = vsel %vm4584, %v4571, %v4574
    %v4593 = vsel %vm4587, %v4580, 920167782
    %v4594 = vsel %vm4586, %v4577, %v4593
    %v4595 = vsel %vm4585, %v4592, %v4594
    %v4596 = vsel %vm4584, %v4574, %v4577
    %v4597 = vsel %vm4587, %v4583, 1326507024
    %v4598 = vsel %vm4586, %v4580, %v4597
    %v4599 = vsel %vm4585, %v4596, %v4598
    %v4600 = vshll.u32 %v4560, 8
    %v4601 = vmul.u32.u64.compose %v4600, %v4599
    %v4602 = vextract.low.u32 %v4601
    %v4603 = vextract.high.u32 %v4601
    %v4604 = vmul.u32.u64.compose %v4600, %v4595
    %v4605 = vextract.low.u32 %v4604
    %v4606 = vextract.high.u32 %v4604
    %v4607 = vmul.u32 %v4600, %v4591
    %v4608 = vadd.s32 %v4603, %v4605
    %vm4609 = vc.u32 %v4603, %v4605
    %v4610 = vadd.s32 %v4606, 1
    %v4611 = vsel %vm4609, %v4610, %v4606
    %v4612 = vadd.s32 %v4607, %v4611
    %v4613 = vadd.s32 %v4612, 536870912
    %v4614 = vshrl.u32 %v4613, 30
    %v4615 = vshll.u32 %v4614, 30
    %v4616 = vsub.s32 %v4612, %v4615
    %vm4617 = vcmp.lt.s32.totalorder %v4616, 0
    %v4618 = vsub.s32 0, %v4616
    %v4619 = vsel %vm4617, %v4618, %v4616
    %v4620 = vclz %v4619
    %v4621 = vsub.s32 %v4620, 2
    %vm4622 = vcmp.gt.s32.totalorder 0, %v4621
    %v4623 = vsel %vm4622, 0, %v4621
    %v4624 = vsub.s32 32, %v4623
    %v4625 = vshll.u32 %v4616, %v4623
    %v4626 = vshrl.u32 %v4608, %v4624
    %v4627 = vor.u32 %v4625, %v4626
    %v4628 = vsub.s32 4294967266, %v4623
    %v4629 = vadd.s32 %v4628, 127
    %v4630 = vshll.u32 %v4629, 23
    %v4631 = vor.u32 4788187, %v4630
    %v4632 = vand.u32 2147483647, %v4631
    %v4634 = vcvt.s32.f32 %v4627
    %v4635 = vmul.f32 %v4634, %v4632
    %v4636 = vxor.u32 %v4635, 2147483648
    %v4637 = vsel %vm4554, %v4636, %v4635
    %v4638 = vsub.s32 4, %v4614
    %v4639 = vsel %vm4554, %v4638, %v4614
    %v4640 = vsel %vm4553, %v3832, %v4637
    %v4641 = vsel %vm4553, 0, %v4639
    %v4642 = vcosq.f32.pop %v4640
    %v4643 = vsinq.f32.pop %v4640
    %vm4644 = vweird.f32 %v3832
    %v4645 = vand.u32 %v4641, 3
    %vm4646 = vcmp.lt.s32.totalorder %v4645, 2
    %vm4647 = vcmp.eq.s32.totalorder %v4645, 0
    %v4648 = vxor.u32 %v4643, 2147483648
    %v4649 = vsel %vm4647, %v4642, %v4648
    %vm4650 = vcmp.eq.s32.totalorder %v4645, 2
    %v4651 = vxor.u32 %v4642, 2147483648
    %v4652 = vsel %vm4650, %v4651, %v4643
    %v4653 = vsel %vm4646, %v4649, %v4652
    %v4654 = vsel %vm4644, nan, %v4653
    %v4655 = vand.u32 2147483647, %v3835
    %vm4656 = vcmp.le.f32.partialorder %v4655, 0.7853982
    %vm4657 = vcmp.lt.s32.totalorder %v3835, 0
    %v4658 = vand.u32 %v3835, 2139095040
    %v4659 = vshrl.u32 %v4658, 23
    %v4660 = vsub.s32 %v4659, 127
    %v4661 = vand.u32 2147483647, %v3835
    %v4662 = vand.u32 %v4661, 8388607
    %v4663 = vor.u32 %v4662, 8388608
    %v4664 = vsub.s32 0, %v4663
    %v4665 = vadd.s32 %v4660, 1
    %vm4666 = vcmp.gt.s32.totalorder %v4665, 0
    %v4667 = vsel %vm4666, %v4665, 0
    %v4668 = vshrl.u32 %v4667, 5
    %v4669 = vand.u32 %v4667, 31
    %v4670 = vsub.s32 32, %v4669
    %v4671 = vshrl.u32 683565275, %v4670
    %v4672 = vshll.u32 683565275, %v4669
    %v4673 = vshrl.u32 2475754826, %v4670
    %v4674 = vor.u32 %v4672, %v4673
    %v4675 = vshll.u32 2475754826, %v4669
    %v4676 = vshrl.u32 2131351028, %v4670
    %v4677 = vor.u32 %v4675, %v4676
    %v4678 = vshll.u32 2131351028, %v4669
    %v4679 = vshrl.u32 2102212464, %v4670
    %v4680 = vor.u32 %v4678, %v4679
    %v4681 = vshll.u32 2102212464, %v4669
    %v4682 = vshrl.u32 920167782, %v4670
    %v4683 = vor.u32 %v4681, %v4682
    %v4684 = vshll.u32 920167782, %v4669
    %v4685 = vshrl.u32 1326507024, %v4670
    %v4686 = vor.u32 %v4684, %v4685
    %vm4687 = vcmp.lt.s32.totalorder %v4668, 1
    %vm4688 = vcmp.lt.s32.totalorder %v4668, 2
    %vm4689 = vcmp.lt.s32.totalorder %v4668, 3
    %vm4690 = vcmp.lt.s32.totalorder %v4668, 4
    %v4691 = vsel %vm4687, %v4671, %v4674
    %v4692 = vsel %vm4690, %v4680, 2102212464
    %v4693 = vsel %vm4689, %v4677, %v4692
    %v4694 = vsel %vm4688, %v4691, %v4693
    %v4695 = vsel %vm4687, %v4674, %v4677
    %v4696 = vsel %vm4690, %v4683, 920167782
    %v4697 = vsel %vm4689, %v4680, %v4696
    %v4698 = vsel %vm4688, %v4695, %v4697
    %v4699 = vsel %vm4687, %v4677, %v4680
    %v4700 = vsel %vm4690, %v4686, 1326507024
    %v4701 = vsel %vm4689, %v4683, %v4700
    %v4702 = vsel %vm4688, %v4699, %v4701
    %v4703 = vshll.u32 %v4663, 8
    %v4704 = vmul.u32.u64.compose %v4703, %v4702
    %v4705 = vextract.low.u32 %v4704
    %v4706 = vextract.high.u32 %v4704
    %v4707 = vmul.u32.u64.compose %v4703, %v4698
    %v4708 = vextract.low.u32 %v4707
    %v4709 = vextract.high.u32 %v4707
    %v4710 = vmul.u32 %v4703, %v4694
    %v4711 = vadd.s32 %v4706, %v4708
    %vm4712 = vc.u32 %v4706, %v4708
    %v4713 = vadd.s32 %v4709, 1
    %v4714 = vsel %vm4712, %v4713, %v4709
    %v4715 = vadd.s32 %v4710, %v4714
    %v4716 = vadd.s32 %v4715, 536870912
    %v4717 = vshrl.u32 %v4716, 30
    %v4718 = vshll.u32 %v4717, 30
    %v4719 = vsub.s32 %v4715, %v4718
    %vm4720 = vcmp.lt.s32.totalorder %v4719, 0
    %v4721 = vsub.s32 0, %v4719
    %v4722 = vsel %vm4720, %v4721, %v4719
    %v4723 = vclz %v4722
    %v4724 = vsub.s32 %v4723, 2
    %vm4725 = vcmp.gt.s32.totalorder 0, %v4724
    %v4726 = vsel %vm4725, 0, %v4724
    %v4727 = vsub.s32 32, %v4726
    %v4728 = vshll.u32 %v4719, %v4726
    %v4729 = vshrl.u32 %v4711, %v4727
    %v4730 = vor.u32 %v4728, %v4729
    %v4731 = vsub.s32 4294967266, %v4726
    %v4732 = vadd.s32 %v4731, 127
    %v4733 = vshll.u32 %v4732, 23
    %v4734 = vor.u32 4788187, %v4733
    %v4735 = vand.u32 2147483647, %v4734
    %v4737 = vcvt.s32.f32 %v4730
    %v4738 = vmul.f32 %v4737, %v4735
    %v4739 = vxor.u32 %v4738, 2147483648
    %v4740 = vsel %vm4657, %v4739, %v4738
    %v4741 = vsub.s32 4, %v4717
    %v4742 = vsel %vm4657, %v4741, %v4717
    %v4743 = vsel %vm4656, %v3835, %v4740
    %v4744 = vsel %vm4656, 0, %v4742
    %v4745 = vcosq.f32.pop %v4743
    %v4746 = vsinq.f32.pop %v4743
    %vm4747 = vweird.f32 %v3835
    %v4748 = vand.u32 %v4744, 3
    %vm4749 = vcmp.lt.s32.totalorder %v4748, 2
    %vm4750 = vcmp.eq.s32.totalorder %v4748, 0
    %v4751 = vxor.u32 %v4746, 2147483648
    %v4752 = vsel %vm4750, %v4745, %v4751
    %vm4753 = vcmp.eq.s32.totalorder %v4748, 2
    %v4754 = vxor.u32 %v4745, 2147483648
    %v4755 = vsel %vm4753, %v4754, %v4746
    %v4756 = vsel %vm4749, %v4752, %v4755
    %v4757 = vsel %vm4747, nan, %v4756
    %v4758 = vand.u32 2147483647, %v3840
    %vm4759 = vcmp.le.f32.partialorder %v4758, 0.7853982
    %vm4760 = vcmp.lt.s32.totalorder %v3840, 0
    %v4761 = vand.u32 %v3840, 2139095040
    %v4762 = vshrl.u32 %v4761, 23
    %v4763 = vsub.s32 %v4762, 127
    %v4764 = vand.u32 2147483647, %v3840
    %v4765 = vand.u32 %v4764, 8388607
    %v4766 = vor.u32 %v4765, 8388608
    %v4767 = vsub.s32 0, %v4766
    %v4768 = vadd.s32 %v4763, 1
    %vm4769 = vcmp.gt.s32.totalorder %v4768, 0
    %v4770 = vsel %vm4769, %v4768, 0
    %v4771 = vshrl.u32 %v4770, 5
    %v4772 = vand.u32 %v4770, 31
    %v4773 = vsub.s32 32, %v4772
    %v4774 = vshrl.u32 683565275, %v4773
    %v4775 = vshll.u32 683565275, %v4772
    %v4776 = vshrl.u32 2475754826, %v4773
    %v4777 = vor.u32 %v4775, %v4776
    %v4778 = vshll.u32 2475754826, %v4772
    %v4779 = vshrl.u32 2131351028, %v4773
    %v4780 = vor.u32 %v4778, %v4779
    %v4781 = vshll.u32 2131351028, %v4772
    %v4782 = vshrl.u32 2102212464, %v4773
    %v4783 = vor.u32 %v4781, %v4782
    %v4784 = vshll.u32 2102212464, %v4772
    %v4785 = vshrl.u32 920167782, %v4773
    %v4786 = vor.u32 %v4784, %v4785
    %v4787 = vshll.u32 920167782, %v4772
    %v4788 = vshrl.u32 1326507024, %v4773
    %v4789 = vor.u32 %v4787, %v4788
    %vm4790 = vcmp.lt.s32.totalorder %v4771, 1
    %vm4791 = vcmp.lt.s32.totalorder %v4771, 2
    %vm4792 = vcmp.lt.s32.totalorder %v4771, 3
    %vm4793 = vcmp.lt.s32.totalorder %v4771, 4
    %v4794 = vsel %vm4790, %v4774, %v4777
    %v4795 = vsel %vm4793, %v4783, 2102212464
    %v4796 = vsel %vm4792, %v4780, %v4795
    %v4797 = vsel %vm4791, %v4794, %v4796
    %v4798 = vsel %vm4790, %v4777, %v4780
    %v4799 = vsel %vm4793, %v4786, 920167782
    %v4800 = vsel %vm4792, %v4783, %v4799
    %v4801 = vsel %vm4791, %v4798, %v4800
    %v4802 = vsel %vm4790, %v4780, %v4783
    %v4803 = vsel %vm4793, %v4789, 1326507024
    %v4804 = vsel %vm4792, %v4786, %v4803
    %v4805 = vsel %vm4791, %v4802, %v4804
    %v4806 = vshll.u32 %v4766, 8
    %v4807 = vmul.u32.u64.compose %v4806, %v4805
    %v4808 = vextract.low.u32 %v4807
    %v4809 = vextract.high.u32 %v4807
    %v4810 = vmul.u32.u64.compose %v4806, %v4801
    %v4811 = vextract.low.u32 %v4810
    %v4812 = vextract.high.u32 %v4810
    %v4813 = vmul.u32 %v4806, %v4797
    %v4814 = vadd.s32 %v4809, %v4811
    %vm4815 = vc.u32 %v4809, %v4811
    %v4816 = vadd.s32 %v4812, 1
    %v4817 = vsel %vm4815, %v4816, %v4812
    %v4818 = vadd.s32 %v4813, %v4817
    %v4819 = vadd.s32 %v4818, 536870912
    %v4820 = vshrl.u32 %v4819, 30
    %v4821 = vshll.u32 %v4820, 30
    %v4822 = vsub.s32 %v4818, %v4821
    %vm4823 = vcmp.lt.s32.totalorder %v4822, 0
    %v4824 = vsub.s32 0, %v4822
    %v4825 = vsel %vm4823, %v4824, %v4822
    %v4826 = vclz %v4825
    %v4827 = vsub.s32 %v4826, 2
    %vm4828 = vcmp.gt.s32.totalorder 0, %v4827
    %v4829 = vsel %vm4828, 0, %v4827
    %v4830 = vsub.s32 32, %v4829
    %v4831 = vshll.u32 %v4822, %v4829
    %v4832 = vshrl.u32 %v4814, %v4830
    %v4833 = vor.u32 %v4831, %v4832
    %v4834 = vsub.s32 4294967266, %v4829
    %v4835 = vadd.s32 %v4834, 127
    %v4836 = vshll.u32 %v4835, 23
    %v4837 = vor.u32 4788187, %v4836
    %v4838 = vand.u32 2147483647, %v4837
    %v4840 = vcvt.s32.f32 %v4833
    %v4841 = vmul.f32 %v4840, %v4838
    %v4842 = vxor.u32 %v4841, 2147483648
    %v4843 = vsel %vm4760, %v4842, %v4841
    %v4844 = vsub.s32 4, %v4820
    %v4845 = vsel %vm4760, %v4844, %v4820
    %v4846 = vsel %vm4759, %v3840, %v4843
    %v4847 = vsel %vm4759, 0, %v4845
    %v4848 = vcosq.f32.pop %v4846
    %v4849 = vsinq.f32.pop %v4846
    %vm4850 = vweird.f32 %v3840
    %v4851 = vand.u32 %v4847, 3
    %vm4852 = vcmp.lt.s32.totalorder %v4851, 2
    %vm4853 = vcmp.eq.s32.totalorder %v4851, 0
    %v4854 = vxor.u32 %v4849, 2147483648
    %v4855 = vsel %vm4853, %v4848, %v4854
    %vm4856 = vcmp.eq.s32.totalorder %v4851, 2
    %v4857 = vxor.u32 %v4848, 2147483648
    %v4858 = vsel %vm4856, %v4857, %v4849
    %v4859 = vsel %vm4852, %v4855, %v4858
    %v4860 = vsel %vm4850, nan, %v4859
    %v4861 = vand.u32 2147483647, %v3843
    %vm4862 = vcmp.le.f32.partialorder %v4861, 0.7853982
    %vm4863 = vcmp.lt.s32.totalorder %v3843, 0
    %v4864 = vand.u32 %v3843, 2139095040
    %v4865 = vshrl.u32 %v4864, 23
    %v4866 = vsub.s32 %v4865, 127
    %v4867 = vand.u32 2147483647, %v3843
    %v4868 = vand.u32 %v4867, 8388607
    %v4869 = vor.u32 %v4868, 8388608
    %v4870 = vsub.s32 0, %v4869
    %v4871 = vadd.s32 %v4866, 1
    %vm4872 = vcmp.gt.s32.totalorder %v4871, 0
    %v4873 = vsel %vm4872, %v4871, 0
    %v4874 = vshrl.u32 %v4873, 5
    %v4875 = vand.u32 %v4873, 31
    %v4876 = vsub.s32 32, %v4875
    %v4877 = vshrl.u32 683565275, %v4876
    %v4878 = vshll.u32 683565275, %v4875
    %v4879 = vshrl.u32 2475754826, %v4876
    %v4880 = vor.u32 %v4878, %v4879
    %v4881 = vshll.u32 2475754826, %v4875
    %v4882 = vshrl.u32 2131351028, %v4876
    %v4883 = vor.u32 %v4881, %v4882
    %v4884 = vshll.u32 2131351028, %v4875
    %v4885 = vshrl.u32 2102212464, %v4876
    %v4886 = vor.u32 %v4884, %v4885
    %v4887 = vshll.u32 2102212464, %v4875
    %v4888 = vshrl.u32 920167782, %v4876
    %v4889 = vor.u32 %v4887, %v4888
    %v4890 = vshll.u32 920167782, %v4875
    %v4891 = vshrl.u32 1326507024, %v4876
    %v4892 = vor.u32 %v4890, %v4891
    %vm4893 = vcmp.lt.s32.totalorder %v4874, 1
    %vm4894 = vcmp.lt.s32.totalorder %v4874, 2
    %vm4895 = vcmp.lt.s32.totalorder %v4874, 3
    %vm4896 = vcmp.lt.s32.totalorder %v4874, 4
    %v4897 = vsel %vm4893, %v4877, %v4880
    %v4898 = vsel %vm4896, %v4886, 2102212464
    %v4899 = vsel %vm4895, %v4883, %v4898
    %v4900 = vsel %vm4894, %v4897, %v4899
    %v4901 = vsel %vm4893, %v4880, %v4883
    %v4902 = vsel %vm4896, %v4889, 920167782
    %v4903 = vsel %vm4895, %v4886, %v4902
    %v4904 = vsel %vm4894, %v4901, %v4903
    %v4905 = vsel %vm4893, %v4883, %v4886
    %v4906 = vsel %vm4896, %v4892, 1326507024
    %v4907 = vsel %vm4895, %v4889, %v4906
    %v4908 = vsel %vm4894, %v4905, %v4907
    %v4909 = vshll.u32 %v4869, 8
    %v4910 = vmul.u32.u64.compose %v4909, %v4908
    %v4911 = vextract.low.u32 %v4910
    %v4912 = vextract.high.u32 %v4910
    %v4913 = vmul.u32.u64.compose %v4909, %v4904
    %v4914 = vextract.low.u32 %v4913
    %v4915 = vextract.high.u32 %v4913
    %v4916 = vmul.u32 %v4909, %v4900
    %v4917 = vadd.s32 %v4912, %v4914
    %vm4918 = vc.u32 %v4912, %v4914
    %v4919 = vadd.s32 %v4915, 1
    %v4920 = vsel %vm4918, %v4919, %v4915
    %v4921 = vadd.s32 %v4916, %v4920
    %v4922 = vadd.s32 %v4921, 536870912
    %v4923 = vshrl.u32 %v4922, 30
    %v4924 = vshll.u32 %v4923, 30
    %v4925 = vsub.s32 %v4921, %v4924
    %vm4926 = vcmp.lt.s32.totalorder %v4925, 0
    %v4927 = vsub.s32 0, %v4925
    %v4928 = vsel %vm4926, %v4927, %v4925
    %v4929 = vclz %v4928
    %v4930 = vsub.s32 %v4929, 2
    %vm4931 = vcmp.gt.s32.totalorder 0, %v4930
    %v4932 = vsel %vm4931, 0, %v4930
    %v4933 = vsub.s32 32, %v4932
    %v4934 = vshll.u32 %v4925, %v4932
    %v4935 = vshrl.u32 %v4917, %v4933
    %v4936 = vor.u32 %v4934, %v4935
    %v4937 = vsub.s32 4294967266, %v4932
    %v4938 = vadd.s32 %v4937, 127
    %v4939 = vshll.u32 %v4938, 23
    %v4940 = vor.u32 4788187, %v4939
    %v4941 = vand.u32 2147483647, %v4940
    %v4943 = vcvt.s32.f32 %v4936
    %v4944 = vmul.f32 %v4943, %v4941
    %v4945 = vxor.u32 %v4944, 2147483648
    %v4946 = vsel %vm4863, %v4945, %v4944
    %v4947 = vsub.s32 4, %v4923
    %v4948 = vsel %vm4863, %v4947, %v4923
    %v4949 = vsel %vm4862, %v3843, %v4946
    %v4950 = vsel %vm4862, 0, %v4948
    %v4951 = vcosq.f32.pop %v4949
    %v4952 = vsinq.f32.pop %v4949
    %vm4953 = vweird.f32 %v3843
    %v4954 = vand.u32 %v4950, 3
    %vm4955 = vcmp.lt.s32.totalorder %v4954, 2
    %vm4956 = vcmp.eq.s32.totalorder %v4954, 0
    %v4957 = vxor.u32 %v4952, 2147483648
    %v4958 = vsel %vm4956, %v4951, %v4957
    %vm4959 = vcmp.eq.s32.totalorder %v4954, 2
    %v4960 = vxor.u32 %v4951, 2147483648
    %v4961 = vsel %vm4959, %v4960, %v4952
    %v4962 = vsel %vm4955, %v4958, %v4961
    %v4963 = vsel %vm4953, nan, %v4962
    %v4964 = vand.u32 2147483647, %v3848
    %vm4965 = vcmp.le.f32.partialorder %v4964, 0.7853982
    %vm4966 = vcmp.lt.s32.totalorder %v3848, 0
    %v4967 = vand.u32 %v3848, 2139095040
    %v4968 = vshrl.u32 %v4967, 23
    %v4969 = vsub.s32 %v4968, 127
    %v4970 = vand.u32 2147483647, %v3848
    %v4971 = vand.u32 %v4970, 8388607
    %v4972 = vor.u32 %v4971, 8388608
    %v4973 = vsub.s32 0, %v4972
    %v4974 = vadd.s32 %v4969, 1
    %vm4975 = vcmp.gt.s32.totalorder %v4974, 0
    %v4976 = vsel %vm4975, %v4974, 0
    %v4977 = vshrl.u32 %v4976, 5
    %v4978 = vand.u32 %v4976, 31
    %v4979 = vsub.s32 32, %v4978
    %v4980 = vshrl.u32 683565275, %v4979
    %v4981 = vshll.u32 683565275, %v4978
    %v4982 = vshrl.u32 2475754826, %v4979
    %v4983 = vor.u32 %v4981, %v4982
    %v4984 = vshll.u32 2475754826, %v4978
    %v4985 = vshrl.u32 2131351028, %v4979
    %v4986 = vor.u32 %v4984, %v4985
    %v4987 = vshll.u32 2131351028, %v4978
    %v4988 = vshrl.u32 2102212464, %v4979
    %v4989 = vor.u32 %v4987, %v4988
    %v4990 = vshll.u32 2102212464, %v4978
    %v4991 = vshrl.u32 920167782, %v4979
    %v4992 = vor.u32 %v4990, %v4991
    %v4993 = vshll.u32 920167782, %v4978
    %v4994 = vshrl.u32 1326507024, %v4979
    %v4995 = vor.u32 %v4993, %v4994
    %vm4996 = vcmp.lt.s32.totalorder %v4977, 1
    %vm4997 = vcmp.lt.s32.totalorder %v4977, 2
    %vm4998 = vcmp.lt.s32.totalorder %v4977, 3
    %vm4999 = vcmp.lt.s32.totalorder %v4977, 4
    %v5000 = vsel %vm4996, %v4980, %v4983
    %v5001 = vsel %vm4999, %v4989, 2102212464
    %v5002 = vsel %vm4998, %v4986, %v5001
    %v5003 = vsel %vm4997, %v5000, %v5002
    %v5004 = vsel %vm4996, %v4983, %v4986
    %v5005 = vsel %vm4999, %v4992, 920167782
    %v5006 = vsel %vm4998, %v4989, %v5005
    %v5007 = vsel %vm4997, %v5004, %v5006
    %v5008 = vsel %vm4996, %v4986, %v4989
    %v5009 = vsel %vm4999, %v4995, 1326507024
    %v5010 = vsel %vm4998, %v4992, %v5009
    %v5011 = vsel %vm4997, %v5008, %v5010
    %v5012 = vshll.u32 %v4972, 8
    %v5013 = vmul.u32.u64.compose %v5012, %v5011
    %v5014 = vextract.low.u32 %v5013
    %v5015 = vextract.high.u32 %v5013
    %v5016 = vmul.u32.u64.compose %v5012, %v5007
    %v5017 = vextract.low.u32 %v5016
    %v5018 = vextract.high.u32 %v5016
    %v5019 = vmul.u32 %v5012, %v5003
    %v5020 = vadd.s32 %v5015, %v5017
    %vm5021 = vc.u32 %v5015, %v5017
    %v5022 = vadd.s32 %v5018, 1
    %v5023 = vsel %vm5021, %v5022, %v5018
    %v5024 = vadd.s32 %v5019, %v5023
    %v5025 = vadd.s32 %v5024, 536870912
    %v5026 = vshrl.u32 %v5025, 30
    %v5027 = vshll.u32 %v5026, 30
    %v5028 = vsub.s32 %v5024, %v5027
    %vm5029 = vcmp.lt.s32.totalorder %v5028, 0
    %v5030 = vsub.s32 0, %v5028
    %v5031 = vsel %vm5029, %v5030, %v5028
    %v5032 = vclz %v5031
    %v5033 = vsub.s32 %v5032, 2
    %vm5034 = vcmp.gt.s32.totalorder 0, %v5033
    %v5035 = vsel %vm5034, 0, %v5033
    %v5036 = vsub.s32 32, %v5035
    %v5037 = vshll.u32 %v5028, %v5035
    %v5038 = vshrl.u32 %v5020, %v5036
    %v5039 = vor.u32 %v5037, %v5038
    %v5040 = vsub.s32 4294967266, %v5035
    %v5041 = vadd.s32 %v5040, 127
    %v5042 = vshll.u32 %v5041, 23
    %v5043 = vor.u32 4788187, %v5042
    %v5044 = vand.u32 2147483647, %v5043
    %v5046 = vcvt.s32.f32 %v5039
    %v5047 = vmul.f32 %v5046, %v5044
    %v5048 = vxor.u32 %v5047, 2147483648
    %v5049 = vsel %vm4966, %v5048, %v5047
    %v5050 = vsub.s32 4, %v5026
    %v5051 = vsel %vm4966, %v5050, %v5026
    %v5052 = vsel %vm4965, %v3848, %v5049
    %v5053 = vsel %vm4965, 0, %v5051
    %v5054 = vcosq.f32.pop %v5052
    %v5055 = vsinq.f32.pop %v5052
    %vm5056 = vweird.f32 %v3848
    %v5057 = vand.u32 %v5053, 3
    %vm5058 = vcmp.lt.s32.totalorder %v5057, 2
    %vm5059 = vcmp.eq.s32.totalorder %v5057, 0
    %v5060 = vxor.u32 %v5055, 2147483648
    %v5061 = vsel %vm5059, %v5054, %v5060
    %vm5062 = vcmp.eq.s32.totalorder %v5057, 2
    %v5063 = vxor.u32 %v5054, 2147483648
    %v5064 = vsel %vm5062, %v5063, %v5055
    %v5065 = vsel %vm5058, %v5061, %v5064
    %v5066 = vsel %vm5056, nan, %v5065
    %v5067 = vand.u32 2147483647, %v3851
    %vm5068 = vcmp.le.f32.partialorder %v5067, 0.7853982
    %vm5069 = vcmp.lt.s32.totalorder %v3851, 0
    %v5070 = vand.u32 %v3851, 2139095040
    %v5071 = vshrl.u32 %v5070, 23
    %v5072 = vsub.s32 %v5071, 127
    %v5073 = vand.u32 2147483647, %v3851
    %v5074 = vand.u32 %v5073, 8388607
    %v5075 = vor.u32 %v5074, 8388608
    %v5076 = vsub.s32 0, %v5075
    %v5077 = vadd.s32 %v5072, 1
    %vm5078 = vcmp.gt.s32.totalorder %v5077, 0
    %v5079 = vsel %vm5078, %v5077, 0
    %v5080 = vshrl.u32 %v5079, 5
    %v5081 = vand.u32 %v5079, 31
    %v5082 = vsub.s32 32, %v5081
    %v5083 = vshrl.u32 683565275, %v5082
    %v5084 = vshll.u32 683565275, %v5081
    %v5085 = vshrl.u32 2475754826, %v5082
    %v5086 = vor.u32 %v5084, %v5085
    %v5087 = vshll.u32 2475754826, %v5081
    %v5088 = vshrl.u32 2131351028, %v5082
    %v5089 = vor.u32 %v5087, %v5088
    %v5090 = vshll.u32 2131351028, %v5081
    %v5091 = vshrl.u32 2102212464, %v5082
    %v5092 = vor.u32 %v5090, %v5091
    %v5093 = vshll.u32 2102212464, %v5081
    %v5094 = vshrl.u32 920167782, %v5082
    %v5095 = vor.u32 %v5093, %v5094
    %v5096 = vshll.u32 920167782, %v5081
    %v5097 = vshrl.u32 1326507024, %v5082
    %v5098 = vor.u32 %v5096, %v5097
    %vm5099 = vcmp.lt.s32.totalorder %v5080, 1
    %vm5100 = vcmp.lt.s32.totalorder %v5080, 2
    %vm5101 = vcmp.lt.s32.totalorder %v5080, 3
    %vm5102 = vcmp.lt.s32.totalorder %v5080, 4
    %v5103 = vsel %vm5099, %v5083, %v5086
    %v5104 = vsel %vm5102, %v5092, 2102212464
    %v5105 = vsel %vm5101, %v5089, %v5104
    %v5106 = vsel %vm5100, %v5103, %v5105
    %v5107 = vsel %vm5099, %v5086, %v5089
    %v5108 = vsel %vm5102, %v5095, 920167782
    %v5109 = vsel %vm5101, %v5092, %v5108
    %v5110 = vsel %vm5100, %v5107, %v5109
    %v5111 = vsel %vm5099, %v5089, %v5092
    %v5112 = vsel %vm5102, %v5098, 1326507024
    %v5113 = vsel %vm5101, %v5095, %v5112
    %v5114 = vsel %vm5100, %v5111, %v5113
    %v5115 = vshll.u32 %v5075, 8
    %v5116 = vmul.u32.u64.compose %v5115, %v5114
    %v5117 = vextract.low.u32 %v5116
    %v5118 = vextract.high.u32 %v5116
    %v5119 = vmul.u32.u64.compose %v5115, %v5110
    %v5120 = vextract.low.u32 %v5119
    %v5121 = vextract.high.u32 %v5119
    %v5122 = vmul.u32 %v5115, %v5106
    %v5123 = vadd.s32 %v5118, %v5120
    %vm5124 = vc.u32 %v5118, %v5120
    %v5125 = vadd.s32 %v5121, 1
    %v5126 = vsel %vm5124, %v5125, %v5121
    %v5127 = vadd.s32 %v5122, %v5126
    %v5128 = vadd.s32 %v5127, 536870912
    %v5129 = vshrl.u32 %v5128, 30
    %v5130 = vshll.u32 %v5129, 30
    %v5131 = vsub.s32 %v5127, %v5130
    %vm5132 = vcmp.lt.s32.totalorder %v5131, 0
    %v5133 = vsub.s32 0, %v5131
    %v5134 = vsel %vm5132, %v5133, %v5131
    %v5135 = vclz %v5134
    %v5136 = vsub.s32 %v5135, 2
    %vm5137 = vcmp.gt.s32.totalorder 0, %v5136
    %v5138 = vsel %vm5137, 0, %v5136
    %v5139 = vsub.s32 32, %v5138
    %v5140 = vshll.u32 %v5131, %v5138
    %v5141 = vshrl.u32 %v5123, %v5139
    %v5142 = vor.u32 %v5140, %v5141
    %v5143 = vsub.s32 4294967266, %v5138
    %v5144 = vadd.s32 %v5143, 127
    %v5145 = vshll.u32 %v5144, 23
    %v5146 = vor.u32 4788187, %v5145
    %v5147 = vand.u32 2147483647, %v5146
    %v5149 = vcvt.s32.f32 %v5142
    %v5150 = vmul.f32 %v5149, %v5147
    %v5151 = vxor.u32 %v5150, 2147483648
    %v5152 = vsel %vm5069, %v5151, %v5150
    %v5153 = vsub.s32 4, %v5129
    %v5154 = vsel %vm5069, %v5153, %v5129
    %v5155 = vsel %vm5068, %v3851, %v5152
    %v5156 = vsel %vm5068, 0, %v5154
    %v5157 = vcosq.f32.pop %v5155
    %v5158 = vsinq.f32.pop %v5155
    %vm5159 = vweird.f32 %v3851
    %v5160 = vand.u32 %v5156, 3
    %vm5161 = vcmp.lt.s32.totalorder %v5160, 2
    %vm5162 = vcmp.eq.s32.totalorder %v5160, 0
    %v5163 = vxor.u32 %v5158, 2147483648
    %v5164 = vsel %vm5162, %v5157, %v5163
    %vm5165 = vcmp.eq.s32.totalorder %v5160, 2
    %v5166 = vxor.u32 %v5157, 2147483648
    %v5167 = vsel %vm5165, %v5166, %v5158
    %v5168 = vsel %vm5161, %v5164, %v5167
    %v5169 = vsel %vm5159, nan, %v5168
    %v5170 = vand.u32 2147483647, %v3856
    %vm5171 = vcmp.le.f32.partialorder %v5170, 0.7853982
    %vm5172 = vcmp.lt.s32.totalorder %v3856, 0
    %v5173 = vand.u32 %v3856, 2139095040
    %v5174 = vshrl.u32 %v5173, 23
    %v5175 = vsub.s32 %v5174, 127
    %v5176 = vand.u32 2147483647, %v3856
    %v5177 = vand.u32 %v5176, 8388607
    %v5178 = vor.u32 %v5177, 8388608
    %v5179 = vsub.s32 0, %v5178
    %v5180 = vadd.s32 %v5175, 1
    %vm5181 = vcmp.gt.s32.totalorder %v5180, 0
    %v5182 = vsel %vm5181, %v5180, 0
    %v5183 = vshrl.u32 %v5182, 5
    %v5184 = vand.u32 %v5182, 31
    %v5185 = vsub.s32 32, %v5184
    %v5186 = vshrl.u32 683565275, %v5185
    %v5187 = vshll.u32 683565275, %v5184
    %v5188 = vshrl.u32 2475754826, %v5185
    %v5189 = vor.u32 %v5187, %v5188
    %v5190 = vshll.u32 2475754826, %v5184
    %v5191 = vshrl.u32 2131351028, %v5185
    %v5192 = vor.u32 %v5190, %v5191
    %v5193 = vshll.u32 2131351028, %v5184
    %v5194 = vshrl.u32 2102212464, %v5185
    %v5195 = vor.u32 %v5193, %v5194
    %v5196 = vshll.u32 2102212464, %v5184
    %v5197 = vshrl.u32 920167782, %v5185
    %v5198 = vor.u32 %v5196, %v5197
    %v5199 = vshll.u32 920167782, %v5184
    %v5200 = vshrl.u32 1326507024, %v5185
    %v5201 = vor.u32 %v5199, %v5200
    %vm5202 = vcmp.lt.s32.totalorder %v5183, 1
    %vm5203 = vcmp.lt.s32.totalorder %v5183, 2
    %vm5204 = vcmp.lt.s32.totalorder %v5183, 3
    %vm5205 = vcmp.lt.s32.totalorder %v5183, 4
    %v5206 = vsel %vm5202, %v5186, %v5189
    %v5207 = vsel %vm5205, %v5195, 2102212464
    %v5208 = vsel %vm5204, %v5192, %v5207
    %v5209 = vsel %vm5203, %v5206, %v5208
    %v5210 = vsel %vm5202, %v5189, %v5192
    %v5211 = vsel %vm5205, %v5198, 920167782
    %v5212 = vsel %vm5204, %v5195, %v5211
    %v5213 = vsel %vm5203, %v5210, %v5212
    %v5214 = vsel %vm5202, %v5192, %v5195
    %v5215 = vsel %vm5205, %v5201, 1326507024
    %v5216 = vsel %vm5204, %v5198, %v5215
    %v5217 = vsel %vm5203, %v5214, %v5216
    %v5218 = vshll.u32 %v5178, 8
    %v5219 = vmul.u32.u64.compose %v5218, %v5217
    %v5220 = vextract.low.u32 %v5219
    %v5221 = vextract.high.u32 %v5219
    %v5222 = vmul.u32.u64.compose %v5218, %v5213
    %v5223 = vextract.low.u32 %v5222
    %v5224 = vextract.high.u32 %v5222
    %v5225 = vmul.u32 %v5218, %v5209
    %v5226 = vadd.s32 %v5221, %v5223
    %vm5227 = vc.u32 %v5221, %v5223
    %v5228 = vadd.s32 %v5224, 1
    %v5229 = vsel %vm5227, %v5228, %v5224
    %v5230 = vadd.s32 %v5225, %v5229
    %v5231 = vadd.s32 %v5230, 536870912
    %v5232 = vshrl.u32 %v5231, 30
    %v5233 = vshll.u32 %v5232, 30
    %v5234 = vsub.s32 %v5230, %v5233
    %vm5235 = vcmp.lt.s32.totalorder %v5234, 0
    %v5236 = vsub.s32 0, %v5234
    %v5237 = vsel %vm5235, %v5236, %v5234
    %v5238 = vclz %v5237
    %v5239 = vsub.s32 %v5238, 2
    %vm5240 = vcmp.gt.s32.totalorder 0, %v5239
    %v5241 = vsel %vm5240, 0, %v5239
    %v5242 = vsub.s32 32, %v5241
    %v5243 = vshll.u32 %v5234, %v5241
    %v5244 = vshrl.u32 %v5226, %v5242
    %v5245 = vor.u32 %v5243, %v5244
    %v5246 = vsub.s32 4294967266, %v5241
    %v5247 = vadd.s32 %v5246, 127
    %v5248 = vshll.u32 %v5247, 23
    %v5249 = vor.u32 4788187, %v5248
    %v5250 = vand.u32 2147483647, %v5249
    %v5252 = vcvt.s32.f32 %v5245
    %v5253 = vmul.f32 %v5252, %v5250
    %v5254 = vxor.u32 %v5253, 2147483648
    %v5255 = vsel %vm5172, %v5254, %v5253
    %v5256 = vsub.s32 4, %v5232
    %v5257 = vsel %vm5172, %v5256, %v5232
    %v5258 = vsel %vm5171, %v3856, %v5255
    %v5259 = vsel %vm5171, 0, %v5257
    %v5260 = vcosq.f32.pop %v5258
    %v5261 = vsinq.f32.pop %v5258
    %vm5262 = vweird.f32 %v3856
    %v5263 = vand.u32 %v5259, 3
    %vm5264 = vcmp.lt.s32.totalorder %v5263, 2
    %vm5265 = vcmp.eq.s32.totalorder %v5263, 0
    %v5266 = vxor.u32 %v5261, 2147483648
    %v5267 = vsel %vm5265, %v5260, %v5266
    %vm5268 = vcmp.eq.s32.totalorder %v5263, 2
    %v5269 = vxor.u32 %v5260, 2147483648
    %v5270 = vsel %vm5268, %v5269, %v5261
    %v5271 = vsel %vm5264, %v5267, %v5270
    %v5272 = vsel %vm5262, nan, %v5271
    %v5273 = vand.u32 2147483647, %v3859
    %vm5274 = vcmp.le.f32.partialorder %v5273, 0.7853982
    %vm5275 = vcmp.lt.s32.totalorder %v3859, 0
    %v5276 = vand.u32 %v3859, 2139095040
    %v5277 = vshrl.u32 %v5276, 23
    %v5278 = vsub.s32 %v5277, 127
    %v5279 = vand.u32 2147483647, %v3859
    %v5280 = vand.u32 %v5279, 8388607
    %v5281 = vor.u32 %v5280, 8388608
    %v5282 = vsub.s32 0, %v5281
    %v5283 = vadd.s32 %v5278, 1
    %vm5284 = vcmp.gt.s32.totalorder %v5283, 0
    %v5285 = vsel %vm5284, %v5283, 0
    %v5286 = vshrl.u32 %v5285, 5
    %v5287 = vand.u32 %v5285, 31
    %v5288 = vsub.s32 32, %v5287
    %v5289 = vshrl.u32 683565275, %v5288
    %v5290 = vshll.u32 683565275, %v5287
    %v5291 = vshrl.u32 2475754826, %v5288
    %v5292 = vor.u32 %v5290, %v5291
    %v5293 = vshll.u32 2475754826, %v5287
    %v5294 = vshrl.u32 2131351028, %v5288
    %v5295 = vor.u32 %v5293, %v5294
    %v5296 = vshll.u32 2131351028, %v5287
    %v5297 = vshrl.u32 2102212464, %v5288
    %v5298 = vor.u32 %v5296, %v5297
    %v5299 = vshll.u32 2102212464, %v5287
    %v5300 = vshrl.u32 920167782, %v5288
    %v5301 = vor.u32 %v5299, %v5300
    %v5302 = vshll.u32 920167782, %v5287
    %v5303 = vshrl.u32 1326507024, %v5288
    %v5304 = vor.u32 %v5302, %v5303
    %vm5305 = vcmp.lt.s32.totalorder %v5286, 1
    %vm5306 = vcmp.lt.s32.totalorder %v5286, 2
    %vm5307 = vcmp.lt.s32.totalorder %v5286, 3
    %vm5308 = vcmp.lt.s32.totalorder %v5286, 4
    %v5309 = vsel %vm5305, %v5289, %v5292
    %v5310 = vsel %vm5308, %v5298, 2102212464
    %v5311 = vsel %vm5307, %v5295, %v5310
    %v5312 = vsel %vm5306, %v5309, %v5311
    %v5313 = vsel %vm5305, %v5292, %v5295
    %v5314 = vsel %vm5308, %v5301, 920167782
    %v5315 = vsel %vm5307, %v5298, %v5314
    %v5316 = vsel %vm5306, %v5313, %v5315
    %v5317 = vsel %vm5305, %v5295, %v5298
    %v5318 = vsel %vm5308, %v5304, 1326507024
    %v5319 = vsel %vm5307, %v5301, %v5318
    %v5320 = vsel %vm5306, %v5317, %v5319
    %v5321 = vshll.u32 %v5281, 8
    %v5322 = vmul.u32.u64.compose %v5321, %v5320
    %v5323 = vextract.low.u32 %v5322
    %v5324 = vextract.high.u32 %v5322
    %v5325 = vmul.u32.u64.compose %v5321, %v5316
    %v5326 = vextract.low.u32 %v5325
    %v5327 = vextract.high.u32 %v5325
    %v5328 = vmul.u32 %v5321, %v5312
    %v5329 = vadd.s32 %v5324, %v5326
    %vm5330 = vc.u32 %v5324, %v5326
    %v5331 = vadd.s32 %v5327, 1
    %v5332 = vsel %vm5330, %v5331, %v5327
    %v5333 = vadd.s32 %v5328, %v5332
    %v5334 = vadd.s32 %v5333, 536870912
    %v5335 = vshrl.u32 %v5334, 30
    %v5336 = vshll.u32 %v5335, 30
    %v5337 = vsub.s32 %v5333, %v5336
    %vm5338 = vcmp.lt.s32.totalorder %v5337, 0
    %v5339 = vsub.s32 0, %v5337
    %v5340 = vsel %vm5338, %v5339, %v5337
    %v5341 = vclz %v5340
    %v5342 = vsub.s32 %v5341, 2
    %vm5343 = vcmp.gt.s32.totalorder 0, %v5342
    %v5344 = vsel %vm5343, 0, %v5342
    %v5345 = vsub.s32 32, %v5344
    %v5346 = vshll.u32 %v5337, %v5344
    %v5347 = vshrl.u32 %v5329, %v5345
    %v5348 = vor.u32 %v5346, %v5347
    %v5349 = vsub.s32 4294967266, %v5344
    %v5350 = vadd.s32 %v5349, 127
    %v5351 = vshll.u32 %v5350, 23
    %v5352 = vor.u32 4788187, %v5351
    %v5353 = vand.u32 2147483647, %v5352
    %v5355 = vcvt.s32.f32 %v5348
    %v5356 = vmul.f32 %v5355, %v5353
    %v5357 = vxor.u32 %v5356, 2147483648
    %v5358 = vsel %vm5275, %v5357, %v5356
    %v5359 = vsub.s32 4, %v5335
    %v5360 = vsel %vm5275, %v5359, %v5335
    %v5361 = vsel %vm5274, %v3859, %v5358
    %v5362 = vsel %vm5274, 0, %v5360
    %v5363 = vcosq.f32.pop %v5361
    %v5364 = vsinq.f32.pop %v5361
    %vm5365 = vweird.f32 %v3859
    %v5366 = vand.u32 %v5362, 3
    %vm5367 = vcmp.lt.s32.totalorder %v5366, 2
    %vm5368 = vcmp.eq.s32.totalorder %v5366, 0
    %v5369 = vxor.u32 %v5364, 2147483648
    %v5370 = vsel %vm5368, %v5363, %v5369
    %vm5371 = vcmp.eq.s32.totalorder %v5366, 2
    %v5372 = vxor.u32 %v5363, 2147483648
    %v5373 = vsel %vm5371, %v5372, %v5364
    %v5374 = vsel %vm5367, %v5370, %v5373
    %v5375 = vsel %vm5365, nan, %v5374
    %v5376 = vand.u32 2147483647, %v3864
    %vm5377 = vcmp.le.f32.partialorder %v5376, 0.7853982
    %vm5378 = vcmp.lt.s32.totalorder %v3864, 0
    %v5379 = vand.u32 %v3864, 2139095040
    %v5380 = vshrl.u32 %v5379, 23
    %v5381 = vsub.s32 %v5380, 127
    %v5382 = vand.u32 2147483647, %v3864
    %v5383 = vand.u32 %v5382, 8388607
    %v5384 = vor.u32 %v5383, 8388608
    %v5385 = vsub.s32 0, %v5384
    %v5386 = vadd.s32 %v5381, 1
    %vm5387 = vcmp.gt.s32.totalorder %v5386, 0
    %v5388 = vsel %vm5387, %v5386, 0
    %v5389 = vshrl.u32 %v5388, 5
    %v5390 = vand.u32 %v5388, 31
    %v5391 = vsub.s32 32, %v5390
    %v5392 = vshrl.u32 683565275, %v5391
    %v5393 = vshll.u32 683565275, %v5390
    %v5394 = vshrl.u32 2475754826, %v5391
    %v5395 = vor.u32 %v5393, %v5394
    %v5396 = vshll.u32 2475754826, %v5390
    %v5397 = vshrl.u32 2131351028, %v5391
    %v5398 = vor.u32 %v5396, %v5397
    %v5399 = vshll.u32 2131351028, %v5390
    %v5400 = vshrl.u32 2102212464, %v5391
    %v5401 = vor.u32 %v5399, %v5400
    %v5402 = vshll.u32 2102212464, %v5390
    %v5403 = vshrl.u32 920167782, %v5391
    %v5404 = vor.u32 %v5402, %v5403
    %v5405 = vshll.u32 920167782, %v5390
    %v5406 = vshrl.u32 1326507024, %v5391
    %v5407 = vor.u32 %v5405, %v5406
    %vm5408 = vcmp.lt.s32.totalorder %v5389, 1
    %vm5409 = vcmp.lt.s32.totalorder %v5389, 2
    %vm5410 = vcmp.lt.s32.totalorder %v5389, 3
    %vm5411 = vcmp.lt.s32.totalorder %v5389, 4
    %v5412 = vsel %vm5408, %v5392, %v5395
    %v5413 = vsel %vm5411, %v5401, 2102212464
    %v5414 = vsel %vm5410, %v5398, %v5413
    %v5415 = vsel %vm5409, %v5412, %v5414
    %v5416 = vsel %vm5408, %v5395, %v5398
    %v5417 = vsel %vm5411, %v5404, 920167782
    %v5418 = vsel %vm5410, %v5401, %v5417
    %v5419 = vsel %vm5409, %v5416, %v5418
    %v5420 = vsel %vm5408, %v5398, %v5401
    %v5421 = vsel %vm5411, %v5407, 1326507024
    %v5422 = vsel %vm5410, %v5404, %v5421
    %v5423 = vsel %vm5409, %v5420, %v5422
    %v5424 = vshll.u32 %v5384, 8
    %v5425 = vmul.u32.u64.compose %v5424, %v5423
    %v5426 = vextract.low.u32 %v5425
    %v5427 = vextract.high.u32 %v5425
    %v5428 = vmul.u32.u64.compose %v5424, %v5419
    %v5429 = vextract.low.u32 %v5428
    %v5430 = vextract.high.u32 %v5428
    %v5431 = vmul.u32 %v5424, %v5415
    %v5432 = vadd.s32 %v5427, %v5429
    %vm5433 = vc.u32 %v5427, %v5429
    %v5434 = vadd.s32 %v5430, 1
    %v5435 = vsel %vm5433, %v5434, %v5430
    %v5436 = vadd.s32 %v5431, %v5435
    %v5437 = vadd.s32 %v5436, 536870912
    %v5438 = vshrl.u32 %v5437, 30
    %v5439 = vshll.u32 %v5438, 30
    %v5440 = vsub.s32 %v5436, %v5439
    %vm5441 = vcmp.lt.s32.totalorder %v5440, 0
    %v5442 = vsub.s32 0, %v5440
    %v5443 = vsel %vm5441, %v5442, %v5440
    %v5444 = vclz %v5443
    %v5445 = vsub.s32 %v5444, 2
    %vm5446 = vcmp.gt.s32.totalorder 0, %v5445
    %v5447 = vsel %vm5446, 0, %v5445
    %v5448 = vsub.s32 32, %v5447
    %v5449 = vshll.u32 %v5440, %v5447
    %v5450 = vshrl.u32 %v5432, %v5448
    %v5451 = vor.u32 %v5449, %v5450
    %v5452 = vsub.s32 4294967266, %v5447
    %v5453 = vadd.s32 %v5452, 127
    %v5454 = vshll.u32 %v5453, 23
    %v5455 = vor.u32 4788187, %v5454
    %v5456 = vand.u32 2147483647, %v5455
    %v5458 = vcvt.s32.f32 %v5451
    %v5459 = vmul.f32 %v5458, %v5456
    %v5460 = vxor.u32 %v5459, 2147483648
    %v5461 = vsel %vm5378, %v5460, %v5459
    %v5462 = vsub.s32 4, %v5438
    %v5463 = vsel %vm5378, %v5462, %v5438
    %v5464 = vsel %vm5377, %v3864, %v5461
    %v5465 = vsel %vm5377, 0, %v5463
    %v5466 = vcosq.f32.pop %v5464
    %v5467 = vsinq.f32.pop %v5464
    %vm5468 = vweird.f32 %v3864
    %v5469 = vand.u32 %v5465, 3
    %vm5470 = vcmp.lt.s32.totalorder %v5469, 2
    %vm5471 = vcmp.eq.s32.totalorder %v5469, 0
    %v5472 = vxor.u32 %v5467, 2147483648
    %v5473 = vsel %vm5471, %v5466, %v5472
    %vm5474 = vcmp.eq.s32.totalorder %v5469, 2
    %v5475 = vxor.u32 %v5466, 2147483648
    %v5476 = vsel %vm5474, %v5475, %v5467
    %v5477 = vsel %vm5470, %v5473, %v5476
    %v5478 = vsel %vm5468, nan, %v5477
    %v5479 = vand.u32 2147483647, %v3867
    %vm5480 = vcmp.le.f32.partialorder %v5479, 0.7853982
    %vm5481 = vcmp.lt.s32.totalorder %v3867, 0
    %v5482 = vand.u32 %v3867, 2139095040
    %v5483 = vshrl.u32 %v5482, 23
    %v5484 = vsub.s32 %v5483, 127
    %v5485 = vand.u32 2147483647, %v3867
    %v5486 = vand.u32 %v5485, 8388607
    %v5487 = vor.u32 %v5486, 8388608
    %v5488 = vsub.s32 0, %v5487
    %v5489 = vadd.s32 %v5484, 1
    %vm5490 = vcmp.gt.s32.totalorder %v5489, 0
    %v5491 = vsel %vm5490, %v5489, 0
    %v5492 = vshrl.u32 %v5491, 5
    %v5493 = vand.u32 %v5491, 31
    %v5494 = vsub.s32 32, %v5493
    %v5495 = vshrl.u32 683565275, %v5494
    %v5496 = vshll.u32 683565275, %v5493
    %v5497 = vshrl.u32 2475754826, %v5494
    %v5498 = vor.u32 %v5496, %v5497
    %v5499 = vshll.u32 2475754826, %v5493
    %v5500 = vshrl.u32 2131351028, %v5494
    %v5501 = vor.u32 %v5499, %v5500
    %v5502 = vshll.u32 2131351028, %v5493
    %v5503 = vshrl.u32 2102212464, %v5494
    %v5504 = vor.u32 %v5502, %v5503
    %v5505 = vshll.u32 2102212464, %v5493
    %v5506 = vshrl.u32 920167782, %v5494
    %v5507 = vor.u32 %v5505, %v5506
    %v5508 = vshll.u32 920167782, %v5493
    %v5509 = vshrl.u32 1326507024, %v5494
    %v5510 = vor.u32 %v5508, %v5509
    %vm5511 = vcmp.lt.s32.totalorder %v5492, 1
    %vm5512 = vcmp.lt.s32.totalorder %v5492, 2
    %vm5513 = vcmp.lt.s32.totalorder %v5492, 3
    %vm5514 = vcmp.lt.s32.totalorder %v5492, 4
    %v5515 = vsel %vm5511, %v5495, %v5498
    %v5516 = vsel %vm5514, %v5504, 2102212464
    %v5517 = vsel %vm5513, %v5501, %v5516
    %v5518 = vsel %vm5512, %v5515, %v5517
    %v5519 = vsel %vm5511, %v5498, %v5501
    %v5520 = vsel %vm5514, %v5507, 920167782
    %v5521 = vsel %vm5513, %v5504, %v5520
    %v5522 = vsel %vm5512, %v5519, %v5521
    %v5523 = vsel %vm5511, %v5501, %v5504
    %v5524 = vsel %vm5514, %v5510, 1326507024
    %v5525 = vsel %vm5513, %v5507, %v5524
    %v5526 = vsel %vm5512, %v5523, %v5525
    %v5527 = vshll.u32 %v5487, 8
    %v5528 = vmul.u32.u64.compose %v5527, %v5526
    %v5529 = vextract.low.u32 %v5528
    %v5530 = vextract.high.u32 %v5528
    %v5531 = vmul.u32.u64.compose %v5527, %v5522
    %v5532 = vextract.low.u32 %v5531
    %v5533 = vextract.high.u32 %v5531
    %v5534 = vmul.u32 %v5527, %v5518
    %v5535 = vadd.s32 %v5530, %v5532
    %vm5536 = vc.u32 %v5530, %v5532
    %v5537 = vadd.s32 %v5533, 1
    %v5538 = vsel %vm5536, %v5537, %v5533
    %v5539 = vadd.s32 %v5534, %v5538
    %v5540 = vadd.s32 %v5539, 536870912
    %v5541 = vshrl.u32 %v5540, 30
    %v5542 = vshll.u32 %v5541, 30
    %v5543 = vsub.s32 %v5539, %v5542
    %vm5544 = vcmp.lt.s32.totalorder %v5543, 0
    %v5545 = vsub.s32 0, %v5543
    %v5546 = vsel %vm5544, %v5545, %v5543
    %v5547 = vclz %v5546
    %v5548 = vsub.s32 %v5547, 2
    %vm5549 = vcmp.gt.s32.totalorder 0, %v5548
    %v5550 = vsel %vm5549, 0, %v5548
    %v5551 = vsub.s32 32, %v5550
    %v5552 = vshll.u32 %v5543, %v5550
    %v5553 = vshrl.u32 %v5535, %v5551
    %v5554 = vor.u32 %v5552, %v5553
    %v5555 = vsub.s32 4294967266, %v5550
    %v5556 = vadd.s32 %v5555, 127
    %v5557 = vshll.u32 %v5556, 23
    %v5558 = vor.u32 4788187, %v5557
    %v5559 = vand.u32 2147483647, %v5558
    %v5561 = vcvt.s32.f32 %v5554
    %v5562 = vmul.f32 %v5561, %v5559
    %v5563 = vxor.u32 %v5562, 2147483648
    %v5564 = vsel %vm5481, %v5563, %v5562
    %v5565 = vsub.s32 4, %v5541
    %v5566 = vsel %vm5481, %v5565, %v5541
    %v5567 = vsel %vm5480, %v3867, %v5564
    %v5568 = vsel %vm5480, 0, %v5566
    %v5569 = vcosq.f32.pop %v5567
    %v5570 = vsinq.f32.pop %v5567
    %vm5571 = vweird.f32 %v3867
    %v5572 = vand.u32 %v5568, 3
    %vm5573 = vcmp.lt.s32.totalorder %v5572, 2
    %vm5574 = vcmp.eq.s32.totalorder %v5572, 0
    %v5575 = vxor.u32 %v5570, 2147483648
    %v5576 = vsel %vm5574, %v5569, %v5575
    %vm5577 = vcmp.eq.s32.totalorder %v5572, 2
    %v5578 = vxor.u32 %v5569, 2147483648
    %v5579 = vsel %vm5577, %v5578, %v5570
    %v5580 = vsel %vm5573, %v5576, %v5579
    %v5581 = vsel %vm5571, nan, %v5580
    %v5582 = vand.u32 2147483647, %v3872
    %vm5583 = vcmp.le.f32.partialorder %v5582, 0.7853982
    %vm5584 = vcmp.lt.s32.totalorder %v3872, 0
    %v5585 = vand.u32 %v3872, 2139095040
    %v5586 = vshrl.u32 %v5585, 23
    %v5587 = vsub.s32 %v5586, 127
    %v5588 = vand.u32 2147483647, %v3872
    %v5589 = vand.u32 %v5588, 8388607
    %v5590 = vor.u32 %v5589, 8388608
    %v5591 = vsub.s32 0, %v5590
    %v5592 = vadd.s32 %v5587, 1
    %vm5593 = vcmp.gt.s32.totalorder %v5592, 0
    %v5594 = vsel %vm5593, %v5592, 0
    %v5595 = vshrl.u32 %v5594, 5
    %v5596 = vand.u32 %v5594, 31
    %v5597 = vsub.s32 32, %v5596
    %v5598 = vshrl.u32 683565275, %v5597
    %v5599 = vshll.u32 683565275, %v5596
    %v5600 = vshrl.u32 2475754826, %v5597
    %v5601 = vor.u32 %v5599, %v5600
    %v5602 = vshll.u32 2475754826, %v5596
    %v5603 = vshrl.u32 2131351028, %v5597
    %v5604 = vor.u32 %v5602, %v5603
    %v5605 = vshll.u32 2131351028, %v5596
    %v5606 = vshrl.u32 2102212464, %v5597
    %v5607 = vor.u32 %v5605, %v5606
    %v5608 = vshll.u32 2102212464, %v5596
    %v5609 = vshrl.u32 920167782, %v5597
    %v5610 = vor.u32 %v5608, %v5609
    %v5611 = vshll.u32 920167782, %v5596
    %v5612 = vshrl.u32 1326507024, %v5597
    %v5613 = vor.u32 %v5611, %v5612
    %vm5614 = vcmp.lt.s32.totalorder %v5595, 1
    %vm5615 = vcmp.lt.s32.totalorder %v5595, 2
    %vm5616 = vcmp.lt.s32.totalorder %v5595, 3
    %vm5617 = vcmp.lt.s32.totalorder %v5595, 4
    %v5618 = vsel %vm5614, %v5598, %v5601
    %v5619 = vsel %vm5617, %v5607, 2102212464
    %v5620 = vsel %vm5616, %v5604, %v5619
    %v5621 = vsel %vm5615, %v5618, %v5620
    %v5622 = vsel %vm5614, %v5601, %v5604
    %v5623 = vsel %vm5617, %v5610, 920167782
    %v5624 = vsel %vm5616, %v5607, %v5623
    %v5625 = vsel %vm5615, %v5622, %v5624
    %v5626 = vsel %vm5614, %v5604, %v5607
    %v5627 = vsel %vm5617, %v5613, 1326507024
    %v5628 = vsel %vm5616, %v5610, %v5627
    %v5629 = vsel %vm5615, %v5626, %v5628
    %v5630 = vshll.u32 %v5590, 8
    %v5631 = vmul.u32.u64.compose %v5630, %v5629
    %v5632 = vextract.low.u32 %v5631
    %v5633 = vextract.high.u32 %v5631
    %v5634 = vmul.u32.u64.compose %v5630, %v5625
    %v5635 = vextract.low.u32 %v5634
    %v5636 = vextract.high.u32 %v5634
    %v5637 = vmul.u32 %v5630, %v5621
    %v5638 = vadd.s32 %v5633, %v5635
    %vm5639 = vc.u32 %v5633, %v5635
    %v5640 = vadd.s32 %v5636, 1
    %v5641 = vsel %vm5639, %v5640, %v5636
    %v5642 = vadd.s32 %v5637, %v5641
    %v5643 = vadd.s32 %v5642, 536870912
    %v5644 = vshrl.u32 %v5643, 30
    %v5645 = vshll.u32 %v5644, 30
    %v5646 = vsub.s32 %v5642, %v5645
    %vm5647 = vcmp.lt.s32.totalorder %v5646, 0
    %v5648 = vsub.s32 0, %v5646
    %v5649 = vsel %vm5647, %v5648, %v5646
    %v5650 = vclz %v5649
    %v5651 = vsub.s32 %v5650, 2
    %vm5652 = vcmp.gt.s32.totalorder 0, %v5651
    %v5653 = vsel %vm5652, 0, %v5651
    %v5654 = vsub.s32 32, %v5653
    %v5655 = vshll.u32 %v5646, %v5653
    %v5656 = vshrl.u32 %v5638, %v5654
    %v5657 = vor.u32 %v5655, %v5656
    %v5658 = vsub.s32 4294967266, %v5653
    %v5659 = vadd.s32 %v5658, 127
    %v5660 = vshll.u32 %v5659, 23
    %v5661 = vor.u32 4788187, %v5660
    %v5662 = vand.u32 2147483647, %v5661
    %v5664 = vcvt.s32.f32 %v5657
    %v5665 = vmul.f32 %v5664, %v5662
    %v5666 = vxor.u32 %v5665, 2147483648
    %v5667 = vsel %vm5584, %v5666, %v5665
    %v5668 = vsub.s32 4, %v5644
    %v5669 = vsel %vm5584, %v5668, %v5644
    %v5670 = vsel %vm5583, %v3872, %v5667
    %v5671 = vsel %vm5583, 0, %v5669
    %v5672 = vcosq.f32.pop %v5670
    %v5673 = vsinq.f32.pop %v5670
    %vm5674 = vweird.f32 %v3872
    %v5675 = vand.u32 %v5671, 3
    %vm5676 = vcmp.lt.s32.totalorder %v5675, 2
    %vm5677 = vcmp.eq.s32.totalorder %v5675, 0
    %v5678 = vxor.u32 %v5673, 2147483648
    %v5679 = vsel %vm5677, %v5672, %v5678
    %vm5680 = vcmp.eq.s32.totalorder %v5675, 2
    %v5681 = vxor.u32 %v5672, 2147483648
    %v5682 = vsel %vm5680, %v5681, %v5673
    %v5683 = vsel %vm5676, %v5679, %v5682
    %v5684 = vsel %vm5674, nan, %v5683
    %v5685 = vand.u32 2147483647, %v3875
    %vm5686 = vcmp.le.f32.partialorder %v5685, 0.7853982
    %vm5687 = vcmp.lt.s32.totalorder %v3875, 0
    %v5688 = vand.u32 %v3875, 2139095040
    %v5689 = vshrl.u32 %v5688, 23
    %v5690 = vsub.s32 %v5689, 127
    %v5691 = vand.u32 2147483647, %v3875
    %v5692 = vand.u32 %v5691, 8388607
    %v5693 = vor.u32 %v5692, 8388608
    %v5694 = vsub.s32 0, %v5693
    %v5695 = vadd.s32 %v5690, 1
    %vm5696 = vcmp.gt.s32.totalorder %v5695, 0
    %v5697 = vsel %vm5696, %v5695, 0
    %v5698 = vshrl.u32 %v5697, 5
    %v5699 = vand.u32 %v5697, 31
    %v5700 = vsub.s32 32, %v5699
    %v5701 = vshrl.u32 683565275, %v5700
    %v5702 = vshll.u32 683565275, %v5699
    %v5703 = vshrl.u32 2475754826, %v5700
    %v5704 = vor.u32 %v5702, %v5703
    %v5705 = vshll.u32 2475754826, %v5699
    %v5706 = vshrl.u32 2131351028, %v5700
    %v5707 = vor.u32 %v5705, %v5706
    %v5708 = vshll.u32 2131351028, %v5699
    %v5709 = vshrl.u32 2102212464, %v5700
    %v5710 = vor.u32 %v5708, %v5709
    %v5711 = vshll.u32 2102212464, %v5699
    %v5712 = vshrl.u32 920167782, %v5700
    %v5713 = vor.u32 %v5711, %v5712
    %v5714 = vshll.u32 920167782, %v5699
    %v5715 = vshrl.u32 1326507024, %v5700
    %v5716 = vor.u32 %v5714, %v5715
    %vm5717 = vcmp.lt.s32.totalorder %v5698, 1
    %vm5718 = vcmp.lt.s32.totalorder %v5698, 2
    %vm5719 = vcmp.lt.s32.totalorder %v5698, 3
    %vm5720 = vcmp.lt.s32.totalorder %v5698, 4
    %v5721 = vsel %vm5717, %v5701, %v5704
    %v5722 = vsel %vm5720, %v5710, 2102212464
    %v5723 = vsel %vm5719, %v5707, %v5722
    %v5724 = vsel %vm5718, %v5721, %v5723
    %v5725 = vsel %vm5717, %v5704, %v5707
    %v5726 = vsel %vm5720, %v5713, 920167782
    %v5727 = vsel %vm5719, %v5710, %v5726
    %v5728 = vsel %vm5718, %v5725, %v5727
    %v5729 = vsel %vm5717, %v5707, %v5710
    %v5730 = vsel %vm5720, %v5716, 1326507024
    %v5731 = vsel %vm5719, %v5713, %v5730
    %v5732 = vsel %vm5718, %v5729, %v5731
    %v5733 = vshll.u32 %v5693, 8
    %v5734 = vmul.u32.u64.compose %v5733, %v5732
    %v5735 = vextract.low.u32 %v5734
    %v5736 = vextract.high.u32 %v5734
    %v5737 = vmul.u32.u64.compose %v5733, %v5728
    %v5738 = vextract.low.u32 %v5737
    %v5739 = vextract.high.u32 %v5737
    %v5740 = vmul.u32 %v5733, %v5724
    %v5741 = vadd.s32 %v5736, %v5738
    %vm5742 = vc.u32 %v5736, %v5738
    %v5743 = vadd.s32 %v5739, 1
    %v5744 = vsel %vm5742, %v5743, %v5739
    %v5745 = vadd.s32 %v5740, %v5744
    %v5746 = vadd.s32 %v5745, 536870912
    %v5747 = vshrl.u32 %v5746, 30
    %v5748 = vshll.u32 %v5747, 30
    %v5749 = vsub.s32 %v5745, %v5748
    %vm5750 = vcmp.lt.s32.totalorder %v5749, 0
    %v5751 = vsub.s32 0, %v5749
    %v5752 = vsel %vm5750, %v5751, %v5749
    %v5753 = vclz %v5752
    %v5754 = vsub.s32 %v5753, 2
    %vm5755 = vcmp.gt.s32.totalorder 0, %v5754
    %v5756 = vsel %vm5755, 0, %v5754
    %v5757 = vsub.s32 32, %v5756
    %v5758 = vshll.u32 %v5749, %v5756
    %v5759 = vshrl.u32 %v5741, %v5757
    %v5760 = vor.u32 %v5758, %v5759
    %v5761 = vsub.s32 4294967266, %v5756
    %v5762 = vadd.s32 %v5761, 127
    %v5763 = vshll.u32 %v5762, 23
    %v5764 = vor.u32 4788187, %v5763
    %v5765 = vand.u32 2147483647, %v5764
    %v5767 = vcvt.s32.f32 %v5760
    %v5768 = vmul.f32 %v5767, %v5765
    %v5769 = vxor.u32 %v5768, 2147483648
    %v5770 = vsel %vm5687, %v5769, %v5768
    %v5771 = vsub.s32 4, %v5747
    %v5772 = vsel %vm5687, %v5771, %v5747
    %v5773 = vsel %vm5686, %v3875, %v5770
    %v5774 = vsel %vm5686, 0, %v5772
    %v5775 = vcosq.f32.pop %v5773
    %v5776 = vsinq.f32.pop %v5773
    %vm5777 = vweird.f32 %v3875
    %v5778 = vand.u32 %v5774, 3
    %vm5779 = vcmp.lt.s32.totalorder %v5778, 2
    %vm5780 = vcmp.eq.s32.totalorder %v5778, 0
    %v5781 = vxor.u32 %v5776, 2147483648
    %v5782 = vsel %vm5780, %v5775, %v5781
    %vm5783 = vcmp.eq.s32.totalorder %v5778, 2
    %v5784 = vxor.u32 %v5775, 2147483648
    %v5785 = vsel %vm5783, %v5784, %v5776
    %v5786 = vsel %vm5779, %v5782, %v5785
    %v5787 = vsel %vm5777, nan, %v5786
    %v5788 = vand.u32 2147483647, %v3880
    %vm5789 = vcmp.le.f32.partialorder %v5788, 0.7853982
    %vm5790 = vcmp.lt.s32.totalorder %v3880, 0
    %v5791 = vand.u32 %v3880, 2139095040
    %v5792 = vshrl.u32 %v5791, 23
    %v5793 = vsub.s32 %v5792, 127
    %v5794 = vand.u32 2147483647, %v3880
    %v5795 = vand.u32 %v5794, 8388607
    %v5796 = vor.u32 %v5795, 8388608
    %v5797 = vsub.s32 0, %v5796
    %v5798 = vadd.s32 %v5793, 1
    %vm5799 = vcmp.gt.s32.totalorder %v5798, 0
    %v5800 = vsel %vm5799, %v5798, 0
    %v5801 = vshrl.u32 %v5800, 5
    %v5802 = vand.u32 %v5800, 31
    %v5803 = vsub.s32 32, %v5802
    %v5804 = vshrl.u32 683565275, %v5803
    %v5805 = vshll.u32 683565275, %v5802
    %v5806 = vshrl.u32 2475754826, %v5803
    %v5807 = vor.u32 %v5805, %v5806
    %v5808 = vshll.u32 2475754826, %v5802
    %v5809 = vshrl.u32 2131351028, %v5803
    %v5810 = vor.u32 %v5808, %v5809
    %v5811 = vshll.u32 2131351028, %v5802
    %v5812 = vshrl.u32 2102212464, %v5803
    %v5813 = vor.u32 %v5811, %v5812
    %v5814 = vshll.u32 2102212464, %v5802
    %v5815 = vshrl.u32 920167782, %v5803
    %v5816 = vor.u32 %v5814, %v5815
    %v5817 = vshll.u32 920167782, %v5802
    %v5818 = vshrl.u32 1326507024, %v5803
    %v5819 = vor.u32 %v5817, %v5818
    %vm5820 = vcmp.lt.s32.totalorder %v5801, 1
    %vm5821 = vcmp.lt.s32.totalorder %v5801, 2
    %vm5822 = vcmp.lt.s32.totalorder %v5801, 3
    %vm5823 = vcmp.lt.s32.totalorder %v5801, 4
    %v5824 = vsel %vm5820, %v5804, %v5807
    %v5825 = vsel %vm5823, %v5813, 2102212464
    %v5826 = vsel %vm5822, %v5810, %v5825
    %v5827 = vsel %vm5821, %v5824, %v5826
    %v5828 = vsel %vm5820, %v5807, %v5810
    %v5829 = vsel %vm5823, %v5816, 920167782
    %v5830 = vsel %vm5822, %v5813, %v5829
    %v5831 = vsel %vm5821, %v5828, %v5830
    %v5832 = vsel %vm5820, %v5810, %v5813
    %v5833 = vsel %vm5823, %v5819, 1326507024
    %v5834 = vsel %vm5822, %v5816, %v5833
    %v5835 = vsel %vm5821, %v5832, %v5834
    %v5836 = vshll.u32 %v5796, 8
    %v5837 = vmul.u32.u64.compose %v5836, %v5835
    %v5838 = vextract.low.u32 %v5837
    %v5839 = vextract.high.u32 %v5837
    %v5840 = vmul.u32.u64.compose %v5836, %v5831
    %v5841 = vextract.low.u32 %v5840
    %v5842 = vextract.high.u32 %v5840
    %v5843 = vmul.u32 %v5836, %v5827
    %v5844 = vadd.s32 %v5839, %v5841
    %vm5845 = vc.u32 %v5839, %v5841
    %v5846 = vadd.s32 %v5842, 1
    %v5847 = vsel %vm5845, %v5846, %v5842
    %v5848 = vadd.s32 %v5843, %v5847
    %v5849 = vadd.s32 %v5848, 536870912
    %v5850 = vshrl.u32 %v5849, 30
    %v5851 = vshll.u32 %v5850, 30
    %v5852 = vsub.s32 %v5848, %v5851
    %vm5853 = vcmp.lt.s32.totalorder %v5852, 0
    %v5854 = vsub.s32 0, %v5852
    %v5855 = vsel %vm5853, %v5854, %v5852
    %v5856 = vclz %v5855
    %v5857 = vsub.s32 %v5856, 2
    %vm5858 = vcmp.gt.s32.totalorder 0, %v5857
    %v5859 = vsel %vm5858, 0, %v5857
    %v5860 = vsub.s32 32, %v5859
    %v5861 = vshll.u32 %v5852, %v5859
    %v5862 = vshrl.u32 %v5844, %v5860
    %v5863 = vor.u32 %v5861, %v5862
    %v5864 = vsub.s32 4294967266, %v5859
    %v5865 = vadd.s32 %v5864, 127
    %v5866 = vshll.u32 %v5865, 23
    %v5867 = vor.u32 4788187, %v5866
    %v5868 = vand.u32 2147483647, %v5867
    %v5870 = vcvt.s32.f32 %v5863
    %v5871 = vmul.f32 %v5870, %v5868
    %v5872 = vxor.u32 %v5871, 2147483648
    %v5873 = vsel %vm5790, %v5872, %v5871
    %v5874 = vsub.s32 4, %v5850
    %v5875 = vsel %vm5790, %v5874, %v5850
    %v5876 = vsel %vm5789, %v3880, %v5873
    %v5877 = vsel %vm5789, 0, %v5875
    %v5878 = vcosq.f32.pop %v5876
    %v5879 = vsinq.f32.pop %v5876
    %vm5880 = vweird.f32 %v3880
    %v5881 = vand.u32 %v5877, 3
    %vm5882 = vcmp.lt.s32.totalorder %v5881, 2
    %vm5883 = vcmp.eq.s32.totalorder %v5881, 0
    %v5884 = vxor.u32 %v5879, 2147483648
    %v5885 = vsel %vm5883, %v5878, %v5884
    %vm5886 = vcmp.eq.s32.totalorder %v5881, 2
    %v5887 = vxor.u32 %v5878, 2147483648
    %v5888 = vsel %vm5886, %v5887, %v5879
    %v5889 = vsel %vm5882, %v5885, %v5888
    %v5890 = vsel %vm5880, nan, %v5889
    %v5891 = vand.u32 2147483647, %v3883
    %vm5892 = vcmp.le.f32.partialorder %v5891, 0.7853982
    %vm5893 = vcmp.lt.s32.totalorder %v3883, 0
    %v5894 = vand.u32 %v3883, 2139095040
    %v5895 = vshrl.u32 %v5894, 23
    %v5896 = vsub.s32 %v5895, 127
    %v5897 = vand.u32 2147483647, %v3883
    %v5898 = vand.u32 %v5897, 8388607
    %v5899 = vor.u32 %v5898, 8388608
    %v5900 = vsub.s32 0, %v5899
    %v5901 = vadd.s32 %v5896, 1
    %vm5902 = vcmp.gt.s32.totalorder %v5901, 0
    %v5903 = vsel %vm5902, %v5901, 0
    %v5904 = vshrl.u32 %v5903, 5
    %v5905 = vand.u32 %v5903, 31
    %v5906 = vsub.s32 32, %v5905
    %v5907 = vshrl.u32 683565275, %v5906
    %v5908 = vshll.u32 683565275, %v5905
    %v5909 = vshrl.u32 2475754826, %v5906
    %v5910 = vor.u32 %v5908, %v5909
    %v5911 = vshll.u32 2475754826, %v5905
    %v5912 = vshrl.u32 2131351028, %v5906
    %v5913 = vor.u32 %v5911, %v5912
    %v5914 = vshll.u32 2131351028, %v5905
    %v5915 = vshrl.u32 2102212464, %v5906
    %v5916 = vor.u32 %v5914, %v5915
    %v5917 = vshll.u32 2102212464, %v5905
    %v5918 = vshrl.u32 920167782, %v5906
    %v5919 = vor.u32 %v5917, %v5918
    %v5920 = vshll.u32 920167782, %v5905
    %v5921 = vshrl.u32 1326507024, %v5906
    %v5922 = vor.u32 %v5920, %v5921
    %vm5923 = vcmp.lt.s32.totalorder %v5904, 1
    %vm5924 = vcmp.lt.s32.totalorder %v5904, 2
    %vm5925 = vcmp.lt.s32.totalorder %v5904, 3
    %vm5926 = vcmp.lt.s32.totalorder %v5904, 4
    %v5927 = vsel %vm5923, %v5907, %v5910
    %v5928 = vsel %vm5926, %v5916, 2102212464
    %v5929 = vsel %vm5925, %v5913, %v5928
    %v5930 = vsel %vm5924, %v5927, %v5929
    %v5931 = vsel %vm5923, %v5910, %v5913
    %v5932 = vsel %vm5926, %v5919, 920167782
    %v5933 = vsel %vm5925, %v5916, %v5932
    %v5934 = vsel %vm5924, %v5931, %v5933
    %v5935 = vsel %vm5923, %v5913, %v5916
    %v5936 = vsel %vm5926, %v5922, 1326507024
    %v5937 = vsel %vm5925, %v5919, %v5936
    %v5938 = vsel %vm5924, %v5935, %v5937
    %v5939 = vshll.u32 %v5899, 8
    %v5940 = vmul.u32.u64.compose %v5939, %v5938
    %v5941 = vextract.low.u32 %v5940
    %v5942 = vextract.high.u32 %v5940
    %v5943 = vmul.u32.u64.compose %v5939, %v5934
    %v5944 = vextract.low.u32 %v5943
    %v5945 = vextract.high.u32 %v5943
    %v5946 = vmul.u32 %v5939, %v5930
    %v5947 = vadd.s32 %v5942, %v5944
    %vm5948 = vc.u32 %v5942, %v5944
    %v5949 = vadd.s32 %v5945, 1
    %v5950 = vsel %vm5948, %v5949, %v5945
    %v5951 = vadd.s32 %v5946, %v5950
    %v5952 = vadd.s32 %v5951, 536870912
    %v5953 = vshrl.u32 %v5952, 30
    %v5954 = vshll.u32 %v5953, 30
    %v5955 = vsub.s32 %v5951, %v5954
    %vm5956 = vcmp.lt.s32.totalorder %v5955, 0
    %v5957 = vsub.s32 0, %v5955
    %v5958 = vsel %vm5956, %v5957, %v5955
    %v5959 = vclz %v5958
    %v5960 = vsub.s32 %v5959, 2
    %vm5961 = vcmp.gt.s32.totalorder 0, %v5960
    %v5962 = vsel %vm5961, 0, %v5960
    %v5963 = vsub.s32 32, %v5962
    %v5964 = vshll.u32 %v5955, %v5962
    %v5965 = vshrl.u32 %v5947, %v5963
    %v5966 = vor.u32 %v5964, %v5965
    %v5967 = vsub.s32 4294967266, %v5962
    %v5968 = vadd.s32 %v5967, 127
    %v5969 = vshll.u32 %v5968, 23
    %v5970 = vor.u32 4788187, %v5969
    %v5971 = vand.u32 2147483647, %v5970
    %v5973 = vcvt.s32.f32 %v5966
    %v5974 = vmul.f32 %v5973, %v5971
    %v5975 = vxor.u32 %v5974, 2147483648
    %v5976 = vsel %vm5893, %v5975, %v5974
    %v5977 = vsub.s32 4, %v5953
    %v5978 = vsel %vm5893, %v5977, %v5953
    %v5979 = vsel %vm5892, %v3883, %v5976
    %v5980 = vsel %vm5892, 0, %v5978
    %v5981 = vcosq.f32.pop %v5979
    %v5982 = vsinq.f32.pop %v5979
    %vm5983 = vweird.f32 %v3883
    %v5984 = vand.u32 %v5980, 3
    %vm5985 = vcmp.lt.s32.totalorder %v5984, 2
    %vm5986 = vcmp.eq.s32.totalorder %v5984, 0
    %v5987 = vxor.u32 %v5982, 2147483648
    %v5988 = vsel %vm5986, %v5981, %v5987
    %vm5989 = vcmp.eq.s32.totalorder %v5984, 2
    %v5990 = vxor.u32 %v5981, 2147483648
    %v5991 = vsel %vm5989, %v5990, %v5982
    %v5992 = vsel %vm5985, %v5988, %v5991
    %v5993 = vsel %vm5983, nan, %v5992
    %v5994 = vand.u32 2147483647, %v3888
    %vm5995 = vcmp.le.f32.partialorder %v5994, 0.7853982
    %vm5996 = vcmp.lt.s32.totalorder %v3888, 0
    %v5997 = vand.u32 %v3888, 2139095040
    %v5998 = vshrl.u32 %v5997, 23
    %v5999 = vsub.s32 %v5998, 127
    %v6000 = vand.u32 2147483647, %v3888
    %v6001 = vand.u32 %v6000, 8388607
    %v6002 = vor.u32 %v6001, 8388608
    %v6003 = vsub.s32 0, %v6002
    %v6004 = vadd.s32 %v5999, 1
    %vm6005 = vcmp.gt.s32.totalorder %v6004, 0
    %v6006 = vsel %vm6005, %v6004, 0
    %v6007 = vshrl.u32 %v6006, 5
    %v6008 = vand.u32 %v6006, 31
    %v6009 = vsub.s32 32, %v6008
    %v6010 = vshrl.u32 683565275, %v6009
    %v6011 = vshll.u32 683565275, %v6008
    %v6012 = vshrl.u32 2475754826, %v6009
    %v6013 = vor.u32 %v6011, %v6012
    %v6014 = vshll.u32 2475754826, %v6008
    %v6015 = vshrl.u32 2131351028, %v6009
    %v6016 = vor.u32 %v6014, %v6015
    %v6017 = vshll.u32 2131351028, %v6008
    %v6018 = vshrl.u32 2102212464, %v6009
    %v6019 = vor.u32 %v6017, %v6018
    %v6020 = vshll.u32 2102212464, %v6008
    %v6021 = vshrl.u32 920167782, %v6009
    %v6022 = vor.u32 %v6020, %v6021
    %v6023 = vshll.u32 920167782, %v6008
    %v6024 = vshrl.u32 1326507024, %v6009
    %v6025 = vor.u32 %v6023, %v6024
    %vm6026 = vcmp.lt.s32.totalorder %v6007, 1
    %vm6027 = vcmp.lt.s32.totalorder %v6007, 2
    %vm6028 = vcmp.lt.s32.totalorder %v6007, 3
    %vm6029 = vcmp.lt.s32.totalorder %v6007, 4
    %v6030 = vsel %vm6026, %v6010, %v6013
    %v6031 = vsel %vm6029, %v6019, 2102212464
    %v6032 = vsel %vm6028, %v6016, %v6031
    %v6033 = vsel %vm6027, %v6030, %v6032
    %v6034 = vsel %vm6026, %v6013, %v6016
    %v6035 = vsel %vm6029, %v6022, 920167782
    %v6036 = vsel %vm6028, %v6019, %v6035
    %v6037 = vsel %vm6027, %v6034, %v6036
    %v6038 = vsel %vm6026, %v6016, %v6019
    %v6039 = vsel %vm6029, %v6025, 1326507024
    %v6040 = vsel %vm6028, %v6022, %v6039
    %v6041 = vsel %vm6027, %v6038, %v6040
    %v6042 = vshll.u32 %v6002, 8
    %v6043 = vmul.u32.u64.compose %v6042, %v6041
    %v6044 = vextract.low.u32 %v6043
    %v6045 = vextract.high.u32 %v6043
    %v6046 = vmul.u32.u64.compose %v6042, %v6037
    %v6047 = vextract.low.u32 %v6046
    %v6048 = vextract.high.u32 %v6046
    %v6049 = vmul.u32 %v6042, %v6033
    %v6050 = vadd.s32 %v6045, %v6047
    %vm6051 = vc.u32 %v6045, %v6047
    %v6052 = vadd.s32 %v6048, 1
    %v6053 = vsel %vm6051, %v6052, %v6048
    %v6054 = vadd.s32 %v6049, %v6053
    %v6055 = vadd.s32 %v6054, 536870912
    %v6056 = vshrl.u32 %v6055, 30
    %v6057 = vshll.u32 %v6056, 30
    %v6058 = vsub.s32 %v6054, %v6057
    %vm6059 = vcmp.lt.s32.totalorder %v6058, 0
    %v6060 = vsub.s32 0, %v6058
    %v6061 = vsel %vm6059, %v6060, %v6058
    %v6062 = vclz %v6061
    %v6063 = vsub.s32 %v6062, 2
    %vm6064 = vcmp.gt.s32.totalorder 0, %v6063
    %v6065 = vsel %vm6064, 0, %v6063
    %v6066 = vsub.s32 32, %v6065
    %v6067 = vshll.u32 %v6058, %v6065
    %v6068 = vshrl.u32 %v6050, %v6066
    %v6069 = vor.u32 %v6067, %v6068
    %v6070 = vsub.s32 4294967266, %v6065
    %v6071 = vadd.s32 %v6070, 127
    %v6072 = vshll.u32 %v6071, 23
    %v6073 = vor.u32 4788187, %v6072
    %v6074 = vand.u32 2147483647, %v6073
    %v6076 = vcvt.s32.f32 %v6069
    %v6077 = vmul.f32 %v6076, %v6074
    %v6078 = vxor.u32 %v6077, 2147483648
    %v6079 = vsel %vm5996, %v6078, %v6077
    %v6080 = vsub.s32 4, %v6056
    %v6081 = vsel %vm5996, %v6080, %v6056
    %v6082 = vsel %vm5995, %v3888, %v6079
    %v6083 = vsel %vm5995, 0, %v6081
    %v6084 = vcosq.f32.pop %v6082
    %v6085 = vsinq.f32.pop %v6082
    %vm6086 = vweird.f32 %v3888
    %v6087 = vand.u32 %v6083, 3
    %vm6088 = vcmp.lt.s32.totalorder %v6087, 2
    %vm6089 = vcmp.eq.s32.totalorder %v6087, 0
    %v6090 = vxor.u32 %v6085, 2147483648
    %v6091 = vsel %vm6089, %v6084, %v6090
    %vm6092 = vcmp.eq.s32.totalorder %v6087, 2
    %v6093 = vxor.u32 %v6084, 2147483648
    %v6094 = vsel %vm6092, %v6093, %v6085
    %v6095 = vsel %vm6088, %v6091, %v6094
    %v6096 = vsel %vm6086, nan, %v6095
    %v6097 = vand.u32 2147483647, %v3891
    %vm6098 = vcmp.le.f32.partialorder %v6097, 0.7853982
    %vm6099 = vcmp.lt.s32.totalorder %v3891, 0
    %v6100 = vand.u32 %v3891, 2139095040
    %v6101 = vshrl.u32 %v6100, 23
    %v6102 = vsub.s32 %v6101, 127
    %v6103 = vand.u32 2147483647, %v3891
    %v6104 = vand.u32 %v6103, 8388607
    %v6105 = vor.u32 %v6104, 8388608
    %v6106 = vsub.s32 0, %v6105
    %v6107 = vadd.s32 %v6102, 1
    %vm6108 = vcmp.gt.s32.totalorder %v6107, 0
    %v6109 = vsel %vm6108, %v6107, 0
    %v6110 = vshrl.u32 %v6109, 5
    %v6111 = vand.u32 %v6109, 31
    %v6112 = vsub.s32 32, %v6111
    %v6113 = vshrl.u32 683565275, %v6112
    %v6114 = vshll.u32 683565275, %v6111
    %v6115 = vshrl.u32 2475754826, %v6112
    %v6116 = vor.u32 %v6114, %v6115
    %v6117 = vshll.u32 2475754826, %v6111
    %v6118 = vshrl.u32 2131351028, %v6112
    %v6119 = vor.u32 %v6117, %v6118
    %v6120 = vshll.u32 2131351028, %v6111
    %v6121 = vshrl.u32 2102212464, %v6112
    %v6122 = vor.u32 %v6120, %v6121
    %v6123 = vshll.u32 2102212464, %v6111
    %v6124 = vshrl.u32 920167782, %v6112
    %v6125 = vor.u32 %v6123, %v6124
    %v6126 = vshll.u32 920167782, %v6111
    %v6127 = vshrl.u32 1326507024, %v6112
    %v6128 = vor.u32 %v6126, %v6127
    %vm6129 = vcmp.lt.s32.totalorder %v6110, 1
    %vm6130 = vcmp.lt.s32.totalorder %v6110, 2
    %vm6131 = vcmp.lt.s32.totalorder %v6110, 3
    %vm6132 = vcmp.lt.s32.totalorder %v6110, 4
    %v6133 = vsel %vm6129, %v6113, %v6116
    %v6134 = vsel %vm6132, %v6122, 2102212464
    %v6135 = vsel %vm6131, %v6119, %v6134
    %v6136 = vsel %vm6130, %v6133, %v6135
    %v6137 = vsel %vm6129, %v6116, %v6119
    %v6138 = vsel %vm6132, %v6125, 920167782
    %v6139 = vsel %vm6131, %v6122, %v6138
    %v6140 = vsel %vm6130, %v6137, %v6139
    %v6141 = vsel %vm6129, %v6119, %v6122
    %v6142 = vsel %vm6132, %v6128, 1326507024
    %v6143 = vsel %vm6131, %v6125, %v6142
    %v6144 = vsel %vm6130, %v6141, %v6143
    %v6145 = vshll.u32 %v6105, 8
    %v6146 = vmul.u32.u64.compose %v6145, %v6144
    %v6147 = vextract.low.u32 %v6146
    %v6148 = vextract.high.u32 %v6146
    %v6149 = vmul.u32.u64.compose %v6145, %v6140
    %v6150 = vextract.low.u32 %v6149
    %v6151 = vextract.high.u32 %v6149
    %v6152 = vmul.u32 %v6145, %v6136
    %v6153 = vadd.s32 %v6148, %v6150
    %vm6154 = vc.u32 %v6148, %v6150
    %v6155 = vadd.s32 %v6151, 1
    %v6156 = vsel %vm6154, %v6155, %v6151
    %v6157 = vadd.s32 %v6152, %v6156
    %v6158 = vadd.s32 %v6157, 536870912
    %v6159 = vshrl.u32 %v6158, 30
    %v6160 = vshll.u32 %v6159, 30
    %v6161 = vsub.s32 %v6157, %v6160
    %vm6162 = vcmp.lt.s32.totalorder %v6161, 0
    %v6163 = vsub.s32 0, %v6161
    %v6164 = vsel %vm6162, %v6163, %v6161
    %v6165 = vclz %v6164
    %v6166 = vsub.s32 %v6165, 2
    %vm6167 = vcmp.gt.s32.totalorder 0, %v6166
    %v6168 = vsel %vm6167, 0, %v6166
    %v6169 = vsub.s32 32, %v6168
    %v6170 = vshll.u32 %v6161, %v6168
    %v6171 = vshrl.u32 %v6153, %v6169
    %v6172 = vor.u32 %v6170, %v6171
    %v6173 = vsub.s32 4294967266, %v6168
    %v6174 = vadd.s32 %v6173, 127
    %v6175 = vshll.u32 %v6174, 23
    %v6176 = vor.u32 4788187, %v6175
    %v6177 = vand.u32 2147483647, %v6176
    %v6179 = vcvt.s32.f32 %v6172
    %v6180 = vmul.f32 %v6179, %v6177
    %v6181 = vxor.u32 %v6180, 2147483648
    %v6182 = vsel %vm6099, %v6181, %v6180
    %v6183 = vsub.s32 4, %v6159
    %v6184 = vsel %vm6099, %v6183, %v6159
    %v6185 = vsel %vm6098, %v3891, %v6182
    %v6186 = vsel %vm6098, 0, %v6184
    %v6187 = vcosq.f32.pop %v6185
    %v6188 = vsinq.f32.pop %v6185
    %vm6189 = vweird.f32 %v3891
    %v6190 = vand.u32 %v6186, 3
    %vm6191 = vcmp.lt.s32.totalorder %v6190, 2
    %vm6192 = vcmp.eq.s32.totalorder %v6190, 0
    %v6193 = vxor.u32 %v6188, 2147483648
    %v6194 = vsel %vm6192, %v6187, %v6193
    %vm6195 = vcmp.eq.s32.totalorder %v6190, 2
    %v6196 = vxor.u32 %v6187, 2147483648
    %v6197 = vsel %vm6195, %v6196, %v6188
    %v6198 = vsel %vm6191, %v6194, %v6197
    %v6199 = vsel %vm6189, nan, %v6198
    %v6200 = vand.u32 2147483647, %v3896
    %vm6201 = vcmp.le.f32.partialorder %v6200, 0.7853982
    %vm6202 = vcmp.lt.s32.totalorder %v3896, 0
    %v6203 = vand.u32 %v3896, 2139095040
    %v6204 = vshrl.u32 %v6203, 23
    %v6205 = vsub.s32 %v6204, 127
    %v6206 = vand.u32 2147483647, %v3896
    %v6207 = vand.u32 %v6206, 8388607
    %v6208 = vor.u32 %v6207, 8388608
    %v6209 = vsub.s32 0, %v6208
    %v6210 = vadd.s32 %v6205, 1
    %vm6211 = vcmp.gt.s32.totalorder %v6210, 0
    %v6212 = vsel %vm6211, %v6210, 0
    %v6213 = vshrl.u32 %v6212, 5
    %v6214 = vand.u32 %v6212, 31
    %v6215 = vsub.s32 32, %v6214
    %v6216 = vshrl.u32 683565275, %v6215
    %v6217 = vshll.u32 683565275, %v6214
    %v6218 = vshrl.u32 2475754826, %v6215
    %v6219 = vor.u32 %v6217, %v6218
    %v6220 = vshll.u32 2475754826, %v6214
    %v6221 = vshrl.u32 2131351028, %v6215
    %v6222 = vor.u32 %v6220, %v6221
    %v6223 = vshll.u32 2131351028, %v6214
    %v6224 = vshrl.u32 2102212464, %v6215
    %v6225 = vor.u32 %v6223, %v6224
    %v6226 = vshll.u32 2102212464, %v6214
    %v6227 = vshrl.u32 920167782, %v6215
    %v6228 = vor.u32 %v6226, %v6227
    %v6229 = vshll.u32 920167782, %v6214
    %v6230 = vshrl.u32 1326507024, %v6215
    %v6231 = vor.u32 %v6229, %v6230
    %vm6232 = vcmp.lt.s32.totalorder %v6213, 1
    %vm6233 = vcmp.lt.s32.totalorder %v6213, 2
    %vm6234 = vcmp.lt.s32.totalorder %v6213, 3
    %vm6235 = vcmp.lt.s32.totalorder %v6213, 4
    %v6236 = vsel %vm6232, %v6216, %v6219
    %v6237 = vsel %vm6235, %v6225, 2102212464
    %v6238 = vsel %vm6234, %v6222, %v6237
    %v6239 = vsel %vm6233, %v6236, %v6238
    %v6240 = vsel %vm6232, %v6219, %v6222
    %v6241 = vsel %vm6235, %v6228, 920167782
    %v6242 = vsel %vm6234, %v6225, %v6241
    %v6243 = vsel %vm6233, %v6240, %v6242
    %v6244 = vsel %vm6232, %v6222, %v6225
    %v6245 = vsel %vm6235, %v6231, 1326507024
    %v6246 = vsel %vm6234, %v6228, %v6245
    %v6247 = vsel %vm6233, %v6244, %v6246
    %v6248 = vshll.u32 %v6208, 8
    %v6249 = vmul.u32.u64.compose %v6248, %v6247
    %v6250 = vextract.low.u32 %v6249
    %v6251 = vextract.high.u32 %v6249
    %v6252 = vmul.u32.u64.compose %v6248, %v6243
    %v6253 = vextract.low.u32 %v6252
    %v6254 = vextract.high.u32 %v6252
    %v6255 = vmul.u32 %v6248, %v6239
    %v6256 = vadd.s32 %v6251, %v6253
    %vm6257 = vc.u32 %v6251, %v6253
    %v6258 = vadd.s32 %v6254, 1
    %v6259 = vsel %vm6257, %v6258, %v6254
    %v6260 = vadd.s32 %v6255, %v6259
    %v6261 = vadd.s32 %v6260, 536870912
    %v6262 = vshrl.u32 %v6261, 30
    %v6263 = vshll.u32 %v6262, 30
    %v6264 = vsub.s32 %v6260, %v6263
    %vm6265 = vcmp.lt.s32.totalorder %v6264, 0
    %v6266 = vsub.s32 0, %v6264
    %v6267 = vsel %vm6265, %v6266, %v6264
    %v6268 = vclz %v6267
    %v6269 = vsub.s32 %v6268, 2
    %vm6270 = vcmp.gt.s32.totalorder 0, %v6269
    %v6271 = vsel %vm6270, 0, %v6269
    %v6272 = vsub.s32 32, %v6271
    %v6273 = vshll.u32 %v6264, %v6271
    %v6274 = vshrl.u32 %v6256, %v6272
    %v6275 = vor.u32 %v6273, %v6274
    %v6276 = vsub.s32 4294967266, %v6271
    %v6277 = vadd.s32 %v6276, 127
    %v6278 = vshll.u32 %v6277, 23
    %v6279 = vor.u32 4788187, %v6278
    %v6280 = vand.u32 2147483647, %v6279
    %v6282 = vcvt.s32.f32 %v6275
    %v6283 = vmul.f32 %v6282, %v6280
    %v6284 = vxor.u32 %v6283, 2147483648
    %v6285 = vsel %vm6202, %v6284, %v6283
    %v6286 = vsub.s32 4, %v6262
    %v6287 = vsel %vm6202, %v6286, %v6262
    %v6288 = vsel %vm6201, %v3896, %v6285
    %v6289 = vsel %vm6201, 0, %v6287
    %v6290 = vcosq.f32.pop %v6288
    %v6291 = vsinq.f32.pop %v6288
    %vm6292 = vweird.f32 %v3896
    %v6293 = vand.u32 %v6289, 3
    %vm6294 = vcmp.lt.s32.totalorder %v6293, 2
    %vm6295 = vcmp.eq.s32.totalorder %v6293, 0
    %v6296 = vxor.u32 %v6291, 2147483648
    %v6297 = vsel %vm6295, %v6290, %v6296
    %vm6298 = vcmp.eq.s32.totalorder %v6293, 2
    %v6299 = vxor.u32 %v6290, 2147483648
    %v6300 = vsel %vm6298, %v6299, %v6291
    %v6301 = vsel %vm6294, %v6297, %v6300
    %v6302 = vsel %vm6292, nan, %v6301
    %v6303 = vand.u32 2147483647, %v3899
    %vm6304 = vcmp.le.f32.partialorder %v6303, 0.7853982
    %vm6305 = vcmp.lt.s32.totalorder %v3899, 0
    %v6306 = vand.u32 %v3899, 2139095040
    %v6307 = vshrl.u32 %v6306, 23
    %v6308 = vsub.s32 %v6307, 127
    %v6309 = vand.u32 2147483647, %v3899
    %v6310 = vand.u32 %v6309, 8388607
    %v6311 = vor.u32 %v6310, 8388608
    %v6312 = vsub.s32 0, %v6311
    %v6313 = vadd.s32 %v6308, 1
    %vm6314 = vcmp.gt.s32.totalorder %v6313, 0
    %v6315 = vsel %vm6314, %v6313, 0
    %v6316 = vshrl.u32 %v6315, 5
    %v6317 = vand.u32 %v6315, 31
    %v6318 = vsub.s32 32, %v6317
    %v6319 = vshrl.u32 683565275, %v6318
    %v6320 = vshll.u32 683565275, %v6317
    %v6321 = vshrl.u32 2475754826, %v6318
    %v6322 = vor.u32 %v6320, %v6321
    %v6323 = vshll.u32 2475754826, %v6317
    %v6324 = vshrl.u32 2131351028, %v6318
    %v6325 = vor.u32 %v6323, %v6324
    %v6326 = vshll.u32 2131351028, %v6317
    %v6327 = vshrl.u32 2102212464, %v6318
    %v6328 = vor.u32 %v6326, %v6327
    %v6329 = vshll.u32 2102212464, %v6317
    %v6330 = vshrl.u32 920167782, %v6318
    %v6331 = vor.u32 %v6329, %v6330
    %v6332 = vshll.u32 920167782, %v6317
    %v6333 = vshrl.u32 1326507024, %v6318
    %v6334 = vor.u32 %v6332, %v6333
    %vm6335 = vcmp.lt.s32.totalorder %v6316, 1
    %vm6336 = vcmp.lt.s32.totalorder %v6316, 2
    %vm6337 = vcmp.lt.s32.totalorder %v6316, 3
    %vm6338 = vcmp.lt.s32.totalorder %v6316, 4
    %v6339 = vsel %vm6335, %v6319, %v6322
    %v6340 = vsel %vm6338, %v6328, 2102212464
    %v6341 = vsel %vm6337, %v6325, %v6340
    %v6342 = vsel %vm6336, %v6339, %v6341
    %v6343 = vsel %vm6335, %v6322, %v6325
    %v6344 = vsel %vm6338, %v6331, 920167782
    %v6345 = vsel %vm6337, %v6328, %v6344
    %v6346 = vsel %vm6336, %v6343, %v6345
    %v6347 = vsel %vm6335, %v6325, %v6328
    %v6348 = vsel %vm6338, %v6334, 1326507024
    %v6349 = vsel %vm6337, %v6331, %v6348
    %v6350 = vsel %vm6336, %v6347, %v6349
    %v6351 = vshll.u32 %v6311, 8
    %v6352 = vmul.u32.u64.compose %v6351, %v6350
    %v6353 = vextract.low.u32 %v6352
    %v6354 = vextract.high.u32 %v6352
    %v6355 = vmul.u32.u64.compose %v6351, %v6346
    %v6356 = vextract.low.u32 %v6355
    %v6357 = vextract.high.u32 %v6355
    %v6358 = vmul.u32 %v6351, %v6342
    %v6359 = vadd.s32 %v6354, %v6356
    %vm6360 = vc.u32 %v6354, %v6356
    %v6361 = vadd.s32 %v6357, 1
    %v6362 = vsel %vm6360, %v6361, %v6357
    %v6363 = vadd.s32 %v6358, %v6362
    %v6364 = vadd.s32 %v6363, 536870912
    %v6365 = vshrl.u32 %v6364, 30
    %v6366 = vshll.u32 %v6365, 30
    %v6367 = vsub.s32 %v6363, %v6366
    %vm6368 = vcmp.lt.s32.totalorder %v6367, 0
    %v6369 = vsub.s32 0, %v6367
    %v6370 = vsel %vm6368, %v6369, %v6367
    %v6371 = vclz %v6370
    %v6372 = vsub.s32 %v6371, 2
    %vm6373 = vcmp.gt.s32.totalorder 0, %v6372
    %v6374 = vsel %vm6373, 0, %v6372
    %v6375 = vsub.s32 32, %v6374
    %v6376 = vshll.u32 %v6367, %v6374
    %v6377 = vshrl.u32 %v6359, %v6375
    %v6378 = vor.u32 %v6376, %v6377
    %v6379 = vsub.s32 4294967266, %v6374
    %v6380 = vadd.s32 %v6379, 127
    %v6381 = vshll.u32 %v6380, 23
    %v6382 = vor.u32 4788187, %v6381
    %v6383 = vand.u32 2147483647, %v6382
    %v6385 = vcvt.s32.f32 %v6378
    %v6386 = vmul.f32 %v6385, %v6383
    %v6387 = vxor.u32 %v6386, 2147483648
    %v6388 = vsel %vm6305, %v6387, %v6386
    %v6389 = vsub.s32 4, %v6365
    %v6390 = vsel %vm6305, %v6389, %v6365
    %v6391 = vsel %vm6304, %v3899, %v6388
    %v6392 = vsel %vm6304, 0, %v6390
    %v6393 = vcosq.f32.pop %v6391
    %v6394 = vsinq.f32.pop %v6391
    %vm6395 = vweird.f32 %v3899
    %v6396 = vand.u32 %v6392, 3
    %vm6397 = vcmp.lt.s32.totalorder %v6396, 2
    %vm6398 = vcmp.eq.s32.totalorder %v6396, 0
    %v6399 = vxor.u32 %v6394, 2147483648
    %v6400 = vsel %vm6398, %v6393, %v6399
    %vm6401 = vcmp.eq.s32.totalorder %v6396, 2
    %v6402 = vxor.u32 %v6393, 2147483648
    %v6403 = vsel %vm6401, %v6402, %v6394
    %v6404 = vsel %vm6397, %v6400, %v6403
    %v6405 = vsel %vm6395, nan, %v6404
    %v6406 = vand.u32 2147483647, %v3904
    %vm6407 = vcmp.le.f32.partialorder %v6406, 0.7853982
    %vm6408 = vcmp.lt.s32.totalorder %v3904, 0
    %v6409 = vand.u32 %v3904, 2139095040
    %v6410 = vshrl.u32 %v6409, 23
    %v6411 = vsub.s32 %v6410, 127
    %v6412 = vand.u32 2147483647, %v3904
    %v6413 = vand.u32 %v6412, 8388607
    %v6414 = vor.u32 %v6413, 8388608
    %v6415 = vsub.s32 0, %v6414
    %v6416 = vadd.s32 %v6411, 1
    %vm6417 = vcmp.gt.s32.totalorder %v6416, 0
    %v6418 = vsel %vm6417, %v6416, 0
    %v6419 = vshrl.u32 %v6418, 5
    %v6420 = vand.u32 %v6418, 31
    %v6421 = vsub.s32 32, %v6420
    %v6422 = vshrl.u32 683565275, %v6421
    %v6423 = vshll.u32 683565275, %v6420
    %v6424 = vshrl.u32 2475754826, %v6421
    %v6425 = vor.u32 %v6423, %v6424
    %v6426 = vshll.u32 2475754826, %v6420
    %v6427 = vshrl.u32 2131351028, %v6421
    %v6428 = vor.u32 %v6426, %v6427
    %v6429 = vshll.u32 2131351028, %v6420
    %v6430 = vshrl.u32 2102212464, %v6421
    %v6431 = vor.u32 %v6429, %v6430
    %v6432 = vshll.u32 2102212464, %v6420
    %v6433 = vshrl.u32 920167782, %v6421
    %v6434 = vor.u32 %v6432, %v6433
    %v6435 = vshll.u32 920167782, %v6420
    %v6436 = vshrl.u32 1326507024, %v6421
    %v6437 = vor.u32 %v6435, %v6436
    %vm6438 = vcmp.lt.s32.totalorder %v6419, 1
    %vm6439 = vcmp.lt.s32.totalorder %v6419, 2
    %vm6440 = vcmp.lt.s32.totalorder %v6419, 3
    %vm6441 = vcmp.lt.s32.totalorder %v6419, 4
    %v6442 = vsel %vm6438, %v6422, %v6425
    %v6443 = vsel %vm6441, %v6431, 2102212464
    %v6444 = vsel %vm6440, %v6428, %v6443
    %v6445 = vsel %vm6439, %v6442, %v6444
    %v6446 = vsel %vm6438, %v6425, %v6428
    %v6447 = vsel %vm6441, %v6434, 920167782
    %v6448 = vsel %vm6440, %v6431, %v6447
    %v6449 = vsel %vm6439, %v6446, %v6448
    %v6450 = vsel %vm6438, %v6428, %v6431
    %v6451 = vsel %vm6441, %v6437, 1326507024
    %v6452 = vsel %vm6440, %v6434, %v6451
    %v6453 = vsel %vm6439, %v6450, %v6452
    %v6454 = vshll.u32 %v6414, 8
    %v6455 = vmul.u32.u64.compose %v6454, %v6453
    %v6456 = vextract.low.u32 %v6455
    %v6457 = vextract.high.u32 %v6455
    %v6458 = vmul.u32.u64.compose %v6454, %v6449
    %v6459 = vextract.low.u32 %v6458
    %v6460 = vextract.high.u32 %v6458
    %v6461 = vmul.u32 %v6454, %v6445
    %v6462 = vadd.s32 %v6457, %v6459
    %vm6463 = vc.u32 %v6457, %v6459
    %v6464 = vadd.s32 %v6460, 1
    %v6465 = vsel %vm6463, %v6464, %v6460
    %v6466 = vadd.s32 %v6461, %v6465
    %v6467 = vadd.s32 %v6466, 536870912
    %v6468 = vshrl.u32 %v6467, 30
    %v6469 = vshll.u32 %v6468, 30
    %v6470 = vsub.s32 %v6466, %v6469
    %vm6471 = vcmp.lt.s32.totalorder %v6470, 0
    %v6472 = vsub.s32 0, %v6470
    %v6473 = vsel %vm6471, %v6472, %v6470
    %v6474 = vclz %v6473
    %v6475 = vsub.s32 %v6474, 2
    %vm6476 = vcmp.gt.s32.totalorder 0, %v6475
    %v6477 = vsel %vm6476, 0, %v6475
    %v6478 = vsub.s32 32, %v6477
    %v6479 = vshll.u32 %v6470, %v6477
    %v6480 = vshrl.u32 %v6462, %v6478
    %v6481 = vor.u32 %v6479, %v6480
    %v6482 = vsub.s32 4294967266, %v6477
    %v6483 = vadd.s32 %v6482, 127
    %v6484 = vshll.u32 %v6483, 23
    %v6485 = vor.u32 4788187, %v6484
    %v6486 = vand.u32 2147483647, %v6485
    %v6488 = vcvt.s32.f32 %v6481
    %v6489 = vmul.f32 %v6488, %v6486
    %v6490 = vxor.u32 %v6489, 2147483648
    %v6491 = vsel %vm6408, %v6490, %v6489
    %v6492 = vsub.s32 4, %v6468
    %v6493 = vsel %vm6408, %v6492, %v6468
    %v6494 = vsel %vm6407, %v3904, %v6491
    %v6495 = vsel %vm6407, 0, %v6493
    %v6496 = vcosq.f32.pop %v6494
    %v6497 = vsinq.f32.pop %v6494
    %vm6498 = vweird.f32 %v3904
    %v6499 = vand.u32 %v6495, 3
    %vm6500 = vcmp.lt.s32.totalorder %v6499, 2
    %vm6501 = vcmp.eq.s32.totalorder %v6499, 0
    %v6502 = vxor.u32 %v6497, 2147483648
    %v6503 = vsel %vm6501, %v6496, %v6502
    %vm6504 = vcmp.eq.s32.totalorder %v6499, 2
    %v6505 = vxor.u32 %v6496, 2147483648
    %v6506 = vsel %vm6504, %v6505, %v6497
    %v6507 = vsel %vm6500, %v6503, %v6506
    %v6508 = vsel %vm6498, nan, %v6507
    %v6509 = vand.u32 2147483647, %v3907
    %vm6510 = vcmp.le.f32.partialorder %v6509, 0.7853982
    %vm6511 = vcmp.lt.s32.totalorder %v3907, 0
    %v6512 = vand.u32 %v3907, 2139095040
    %v6513 = vshrl.u32 %v6512, 23
    %v6514 = vsub.s32 %v6513, 127
    %v6515 = vand.u32 2147483647, %v3907
    %v6516 = vand.u32 %v6515, 8388607
    %v6517 = vor.u32 %v6516, 8388608
    %v6518 = vsub.s32 0, %v6517
    %v6519 = vadd.s32 %v6514, 1
    %vm6520 = vcmp.gt.s32.totalorder %v6519, 0
    %v6521 = vsel %vm6520, %v6519, 0
    %v6522 = vshrl.u32 %v6521, 5
    %v6523 = vand.u32 %v6521, 31
    %v6524 = vsub.s32 32, %v6523
    %v6525 = vshrl.u32 683565275, %v6524
    %v6526 = vshll.u32 683565275, %v6523
    %v6527 = vshrl.u32 2475754826, %v6524
    %v6528 = vor.u32 %v6526, %v6527
    %v6529 = vshll.u32 2475754826, %v6523
    %v6530 = vshrl.u32 2131351028, %v6524
    %v6531 = vor.u32 %v6529, %v6530
    %v6532 = vshll.u32 2131351028, %v6523
    %v6533 = vshrl.u32 2102212464, %v6524
    %v6534 = vor.u32 %v6532, %v6533
    %v6535 = vshll.u32 2102212464, %v6523
    %v6536 = vshrl.u32 920167782, %v6524
    %v6537 = vor.u32 %v6535, %v6536
    %v6538 = vshll.u32 920167782, %v6523
    %v6539 = vshrl.u32 1326507024, %v6524
    %v6540 = vor.u32 %v6538, %v6539
    %vm6541 = vcmp.lt.s32.totalorder %v6522, 1
    %vm6542 = vcmp.lt.s32.totalorder %v6522, 2
    %vm6543 = vcmp.lt.s32.totalorder %v6522, 3
    %vm6544 = vcmp.lt.s32.totalorder %v6522, 4
    %v6545 = vsel %vm6541, %v6525, %v6528
    %v6546 = vsel %vm6544, %v6534, 2102212464
    %v6547 = vsel %vm6543, %v6531, %v6546
    %v6548 = vsel %vm6542, %v6545, %v6547
    %v6549 = vsel %vm6541, %v6528, %v6531
    %v6550 = vsel %vm6544, %v6537, 920167782
    %v6551 = vsel %vm6543, %v6534, %v6550
    %v6552 = vsel %vm6542, %v6549, %v6551
    %v6553 = vsel %vm6541, %v6531, %v6534
    %v6554 = vsel %vm6544, %v6540, 1326507024
    %v6555 = vsel %vm6543, %v6537, %v6554
    %v6556 = vsel %vm6542, %v6553, %v6555
    %v6557 = vshll.u32 %v6517, 8
    %v6558 = vmul.u32.u64.compose %v6557, %v6556
    %v6559 = vextract.low.u32 %v6558
    %v6560 = vextract.high.u32 %v6558
    %v6561 = vmul.u32.u64.compose %v6557, %v6552
    %v6562 = vextract.low.u32 %v6561
    %v6563 = vextract.high.u32 %v6561
    %v6564 = vmul.u32 %v6557, %v6548
    %v6565 = vadd.s32 %v6560, %v6562
    %vm6566 = vc.u32 %v6560, %v6562
    %v6567 = vadd.s32 %v6563, 1
    %v6568 = vsel %vm6566, %v6567, %v6563
    %v6569 = vadd.s32 %v6564, %v6568
    %v6570 = vadd.s32 %v6569, 536870912
    %v6571 = vshrl.u32 %v6570, 30
    %v6572 = vshll.u32 %v6571, 30
    %v6573 = vsub.s32 %v6569, %v6572
    %vm6574 = vcmp.lt.s32.totalorder %v6573, 0
    %v6575 = vsub.s32 0, %v6573
    %v6576 = vsel %vm6574, %v6575, %v6573
    %v6577 = vclz %v6576
    %v6578 = vsub.s32 %v6577, 2
    %vm6579 = vcmp.gt.s32.totalorder 0, %v6578
    %v6580 = vsel %vm6579, 0, %v6578
    %v6581 = vsub.s32 32, %v6580
    %v6582 = vshll.u32 %v6573, %v6580
    %v6583 = vshrl.u32 %v6565, %v6581
    %v6584 = vor.u32 %v6582, %v6583
    %v6585 = vsub.s32 4294967266, %v6580
    %v6586 = vadd.s32 %v6585, 127
    %v6587 = vshll.u32 %v6586, 23
    %v6588 = vor.u32 4788187, %v6587
    %v6589 = vand.u32 2147483647, %v6588
    %v6591 = vcvt.s32.f32 %v6584
    %v6592 = vmul.f32 %v6591, %v6589
    %v6593 = vxor.u32 %v6592, 2147483648
    %v6594 = vsel %vm6511, %v6593, %v6592
    %v6595 = vsub.s32 4, %v6571
    %v6596 = vsel %vm6511, %v6595, %v6571
    %v6597 = vsel %vm6510, %v3907, %v6594
    %v6598 = vsel %vm6510, 0, %v6596
    %v6599 = vcosq.f32.pop %v6597
    %v6600 = vsinq.f32.pop %v6597
    %vm6601 = vweird.f32 %v3907
    %v6602 = vand.u32 %v6598, 3
    %vm6603 = vcmp.lt.s32.totalorder %v6602, 2
    %vm6604 = vcmp.eq.s32.totalorder %v6602, 0
    %v6605 = vxor.u32 %v6600, 2147483648
    %v6606 = vsel %vm6604, %v6599, %v6605
    %vm6607 = vcmp.eq.s32.totalorder %v6602, 2
    %v6608 = vxor.u32 %v6599, 2147483648
    %v6609 = vsel %vm6607, %v6608, %v6600
    %v6610 = vsel %vm6603, %v6606, %v6609
    %v6611 = vsel %vm6601, nan, %v6610
    %v6612 = vand.u32 2147483647, %v3912
    %vm6613 = vcmp.le.f32.partialorder %v6612, 0.7853982
    %vm6614 = vcmp.lt.s32.totalorder %v3912, 0
    %v6615 = vand.u32 %v3912, 2139095040
    %v6616 = vshrl.u32 %v6615, 23
    %v6617 = vsub.s32 %v6616, 127
    %v6618 = vand.u32 2147483647, %v3912
    %v6619 = vand.u32 %v6618, 8388607
    %v6620 = vor.u32 %v6619, 8388608
    %v6621 = vsub.s32 0, %v6620
    %v6622 = vadd.s32 %v6617, 1
    %vm6623 = vcmp.gt.s32.totalorder %v6622, 0
    %v6624 = vsel %vm6623, %v6622, 0
    %v6625 = vshrl.u32 %v6624, 5
    %v6626 = vand.u32 %v6624, 31
    %v6627 = vsub.s32 32, %v6626
    %v6628 = vshrl.u32 683565275, %v6627
    %v6629 = vshll.u32 683565275, %v6626
    %v6630 = vshrl.u32 2475754826, %v6627
    %v6631 = vor.u32 %v6629, %v6630
    %v6632 = vshll.u32 2475754826, %v6626
    %v6633 = vshrl.u32 2131351028, %v6627
    %v6634 = vor.u32 %v6632, %v6633
    %v6635 = vshll.u32 2131351028, %v6626
    %v6636 = vshrl.u32 2102212464, %v6627
    %v6637 = vor.u32 %v6635, %v6636
    %v6638 = vshll.u32 2102212464, %v6626
    %v6639 = vshrl.u32 920167782, %v6627
    %v6640 = vor.u32 %v6638, %v6639
    %v6641 = vshll.u32 920167782, %v6626
    %v6642 = vshrl.u32 1326507024, %v6627
    %v6643 = vor.u32 %v6641, %v6642
    %vm6644 = vcmp.lt.s32.totalorder %v6625, 1
    %vm6645 = vcmp.lt.s32.totalorder %v6625, 2
    %vm6646 = vcmp.lt.s32.totalorder %v6625, 3
    %vm6647 = vcmp.lt.s32.totalorder %v6625, 4
    %v6648 = vsel %vm6644, %v6628, %v6631
    %v6649 = vsel %vm6647, %v6637, 2102212464
    %v6650 = vsel %vm6646, %v6634, %v6649
    %v6651 = vsel %vm6645, %v6648, %v6650
    %v6652 = vsel %vm6644, %v6631, %v6634
    %v6653 = vsel %vm6647, %v6640, 920167782
    %v6654 = vsel %vm6646, %v6637, %v6653
    %v6655 = vsel %vm6645, %v6652, %v6654
    %v6656 = vsel %vm6644, %v6634, %v6637
    %v6657 = vsel %vm6647, %v6643, 1326507024
    %v6658 = vsel %vm6646, %v6640, %v6657
    %v6659 = vsel %vm6645, %v6656, %v6658
    %v6660 = vshll.u32 %v6620, 8
    %v6661 = vmul.u32.u64.compose %v6660, %v6659
    %v6662 = vextract.low.u32 %v6661
    %v6663 = vextract.high.u32 %v6661
    %v6664 = vmul.u32.u64.compose %v6660, %v6655
    %v6665 = vextract.low.u32 %v6664
    %v6666 = vextract.high.u32 %v6664
    %v6667 = vmul.u32 %v6660, %v6651
    %v6668 = vadd.s32 %v6663, %v6665
    %vm6669 = vc.u32 %v6663, %v6665
    %v6670 = vadd.s32 %v6666, 1
    %v6671 = vsel %vm6669, %v6670, %v6666
    %v6672 = vadd.s32 %v6667, %v6671
    %v6673 = vadd.s32 %v6672, 536870912
    %v6674 = vshrl.u32 %v6673, 30
    %v6675 = vshll.u32 %v6674, 30
    %v6676 = vsub.s32 %v6672, %v6675
    %vm6677 = vcmp.lt.s32.totalorder %v6676, 0
    %v6678 = vsub.s32 0, %v6676
    %v6679 = vsel %vm6677, %v6678, %v6676
    %v6680 = vclz %v6679
    %v6681 = vsub.s32 %v6680, 2
    %vm6682 = vcmp.gt.s32.totalorder 0, %v6681
    %v6683 = vsel %vm6682, 0, %v6681
    %v6684 = vsub.s32 32, %v6683
    %v6685 = vshll.u32 %v6676, %v6683
    %v6686 = vshrl.u32 %v6668, %v6684
    %v6687 = vor.u32 %v6685, %v6686
    %v6688 = vsub.s32 4294967266, %v6683
    %v6689 = vadd.s32 %v6688, 127
    %v6690 = vshll.u32 %v6689, 23
    %v6691 = vor.u32 4788187, %v6690
    %v6692 = vand.u32 2147483647, %v6691
    %v6694 = vcvt.s32.f32 %v6687
    %v6695 = vmul.f32 %v6694, %v6692
    %v6696 = vxor.u32 %v6695, 2147483648
    %v6697 = vsel %vm6614, %v6696, %v6695
    %v6698 = vsub.s32 4, %v6674
    %v6699 = vsel %vm6614, %v6698, %v6674
    %v6700 = vsel %vm6613, %v3912, %v6697
    %v6701 = vsel %vm6613, 0, %v6699
    %v6702 = vcosq.f32.pop %v6700
    %v6703 = vsinq.f32.pop %v6700
    %vm6704 = vweird.f32 %v3912
    %v6705 = vand.u32 %v6701, 3
    %vm6706 = vcmp.lt.s32.totalorder %v6705, 2
    %vm6707 = vcmp.eq.s32.totalorder %v6705, 0
    %v6708 = vxor.u32 %v6703, 2147483648
    %v6709 = vsel %vm6707, %v6702, %v6708
    %vm6710 = vcmp.eq.s32.totalorder %v6705, 2
    %v6711 = vxor.u32 %v6702, 2147483648
    %v6712 = vsel %vm6710, %v6711, %v6703
    %v6713 = vsel %vm6706, %v6709, %v6712
    %v6714 = vsel %vm6704, nan, %v6713
    %v6715 = vand.u32 2147483647, %v3915
    %vm6716 = vcmp.le.f32.partialorder %v6715, 0.7853982
    %vm6717 = vcmp.lt.s32.totalorder %v3915, 0
    %v6718 = vand.u32 %v3915, 2139095040
    %v6719 = vshrl.u32 %v6718, 23
    %v6720 = vsub.s32 %v6719, 127
    %v6721 = vand.u32 2147483647, %v3915
    %v6722 = vand.u32 %v6721, 8388607
    %v6723 = vor.u32 %v6722, 8388608
    %v6724 = vsub.s32 0, %v6723
    %v6725 = vadd.s32 %v6720, 1
    %vm6726 = vcmp.gt.s32.totalorder %v6725, 0
    %v6727 = vsel %vm6726, %v6725, 0
    %v6728 = vshrl.u32 %v6727, 5
    %v6729 = vand.u32 %v6727, 31
    %v6730 = vsub.s32 32, %v6729
    %v6731 = vshrl.u32 683565275, %v6730
    %v6732 = vshll.u32 683565275, %v6729
    %v6733 = vshrl.u32 2475754826, %v6730
    %v6734 = vor.u32 %v6732, %v6733
    %v6735 = vshll.u32 2475754826, %v6729
    %v6736 = vshrl.u32 2131351028, %v6730
    %v6737 = vor.u32 %v6735, %v6736
    %v6738 = vshll.u32 2131351028, %v6729
    %v6739 = vshrl.u32 2102212464, %v6730
    %v6740 = vor.u32 %v6738, %v6739
    %v6741 = vshll.u32 2102212464, %v6729
    %v6742 = vshrl.u32 920167782, %v6730
    %v6743 = vor.u32 %v6741, %v6742
    %v6744 = vshll.u32 920167782, %v6729
    %v6745 = vshrl.u32 1326507024, %v6730
    %v6746 = vor.u32 %v6744, %v6745
    %vm6747 = vcmp.lt.s32.totalorder %v6728, 1
    %vm6748 = vcmp.lt.s32.totalorder %v6728, 2
    %vm6749 = vcmp.lt.s32.totalorder %v6728, 3
    %vm6750 = vcmp.lt.s32.totalorder %v6728, 4
    %v6751 = vsel %vm6747, %v6731, %v6734
    %v6752 = vsel %vm6750, %v6740, 2102212464
    %v6753 = vsel %vm6749, %v6737, %v6752
    %v6754 = vsel %vm6748, %v6751, %v6753
    %v6755 = vsel %vm6747, %v6734, %v6737
    %v6756 = vsel %vm6750, %v6743, 920167782
    %v6757 = vsel %vm6749, %v6740, %v6756
    %v6758 = vsel %vm6748, %v6755, %v6757
    %v6759 = vsel %vm6747, %v6737, %v6740
    %v6760 = vsel %vm6750, %v6746, 1326507024
    %v6761 = vsel %vm6749, %v6743, %v6760
    %v6762 = vsel %vm6748, %v6759, %v6761
    %v6763 = vshll.u32 %v6723, 8
    %v6764 = vmul.u32.u64.compose %v6763, %v6762
    %v6765 = vextract.low.u32 %v6764
    %v6766 = vextract.high.u32 %v6764
    %v6767 = vmul.u32.u64.compose %v6763, %v6758
    %v6768 = vextract.low.u32 %v6767
    %v6769 = vextract.high.u32 %v6767
    %v6770 = vmul.u32 %v6763, %v6754
    %v6771 = vadd.s32 %v6766, %v6768
    %vm6772 = vc.u32 %v6766, %v6768
    %v6773 = vadd.s32 %v6769, 1
    %v6774 = vsel %vm6772, %v6773, %v6769
    %v6775 = vadd.s32 %v6770, %v6774
    %v6776 = vadd.s32 %v6775, 536870912
    %v6777 = vshrl.u32 %v6776, 30
    %v6778 = vshll.u32 %v6777, 30
    %v6779 = vsub.s32 %v6775, %v6778
    %vm6780 = vcmp.lt.s32.totalorder %v6779, 0
    %v6781 = vsub.s32 0, %v6779
    %v6782 = vsel %vm6780, %v6781, %v6779
    %v6783 = vclz %v6782
    %v6784 = vsub.s32 %v6783, 2
    %vm6785 = vcmp.gt.s32.totalorder 0, %v6784
    %v6786 = vsel %vm6785, 0, %v6784
    %v6787 = vsub.s32 32, %v6786
    %v6788 = vshll.u32 %v6779, %v6786
    %v6789 = vshrl.u32 %v6771, %v6787
    %v6790 = vor.u32 %v6788, %v6789
    %v6791 = vsub.s32 4294967266, %v6786
    %v6792 = vadd.s32 %v6791, 127
    %v6793 = vshll.u32 %v6792, 23
    %v6794 = vor.u32 4788187, %v6793
    %v6795 = vand.u32 2147483647, %v6794
    %v6797 = vcvt.s32.f32 %v6790
    %v6798 = vmul.f32 %v6797, %v6795
    %v6799 = vxor.u32 %v6798, 2147483648
    %v6800 = vsel %vm6717, %v6799, %v6798
    %v6801 = vsub.s32 4, %v6777
    %v6802 = vsel %vm6717, %v6801, %v6777
    %v6803 = vsel %vm6716, %v3915, %v6800
    %v6804 = vsel %vm6716, 0, %v6802
    %v6805 = vcosq.f32.pop %v6803
    %v6806 = vsinq.f32.pop %v6803
    %vm6807 = vweird.f32 %v3915
    %v6808 = vand.u32 %v6804, 3
    %vm6809 = vcmp.lt.s32.totalorder %v6808, 2
    %vm6810 = vcmp.eq.s32.totalorder %v6808, 0
    %v6811 = vxor.u32 %v6806, 2147483648
    %v6812 = vsel %vm6810, %v6805, %v6811
    %vm6813 = vcmp.eq.s32.totalorder %v6808, 2
    %v6814 = vxor.u32 %v6805, 2147483648
    %v6815 = vsel %vm6813, %v6814, %v6806
    %v6816 = vsel %vm6809, %v6812, %v6815
    %v6817 = vsel %vm6807, nan, %v6816
    %v6818 = vand.u32 2147483647, %v3920
    %vm6819 = vcmp.le.f32.partialorder %v6818, 0.7853982
    %vm6820 = vcmp.lt.s32.totalorder %v3920, 0
    %v6821 = vand.u32 %v3920, 2139095040
    %v6822 = vshrl.u32 %v6821, 23
    %v6823 = vsub.s32 %v6822, 127
    %v6824 = vand.u32 2147483647, %v3920
    %v6825 = vand.u32 %v6824, 8388607
    %v6826 = vor.u32 %v6825, 8388608
    %v6827 = vsub.s32 0, %v6826
    %v6828 = vadd.s32 %v6823, 1
    %vm6829 = vcmp.gt.s32.totalorder %v6828, 0
    %v6830 = vsel %vm6829, %v6828, 0
    %v6831 = vshrl.u32 %v6830, 5
    %v6832 = vand.u32 %v6830, 31
    %v6833 = vsub.s32 32, %v6832
    %v6834 = vshrl.u32 683565275, %v6833
    %v6835 = vshll.u32 683565275, %v6832
    %v6836 = vshrl.u32 2475754826, %v6833
    %v6837 = vor.u32 %v6835, %v6836
    %v6838 = vshll.u32 2475754826, %v6832
    %v6839 = vshrl.u32 2131351028, %v6833
    %v6840 = vor.u32 %v6838, %v6839
    %v6841 = vshll.u32 2131351028, %v6832
    %v6842 = vshrl.u32 2102212464, %v6833
    %v6843 = vor.u32 %v6841, %v6842
    %v6844 = vshll.u32 2102212464, %v6832
    %v6845 = vshrl.u32 920167782, %v6833
    %v6846 = vor.u32 %v6844, %v6845
    %v6847 = vshll.u32 920167782, %v6832
    %v6848 = vshrl.u32 1326507024, %v6833
    %v6849 = vor.u32 %v6847, %v6848
    %vm6850 = vcmp.lt.s32.totalorder %v6831, 1
    %vm6851 = vcmp.lt.s32.totalorder %v6831, 2
    %vm6852 = vcmp.lt.s32.totalorder %v6831, 3
    %vm6853 = vcmp.lt.s32.totalorder %v6831, 4
    %v6854 = vsel %vm6850, %v6834, %v6837
    %v6855 = vsel %vm6853, %v6843, 2102212464
    %v6856 = vsel %vm6852, %v6840, %v6855
    %v6857 = vsel %vm6851, %v6854, %v6856
    %v6858 = vsel %vm6850, %v6837, %v6840
    %v6859 = vsel %vm6853, %v6846, 920167782
    %v6860 = vsel %vm6852, %v6843, %v6859
    %v6861 = vsel %vm6851, %v6858, %v6860
    %v6862 = vsel %vm6850, %v6840, %v6843
    %v6863 = vsel %vm6853, %v6849, 1326507024
    %v6864 = vsel %vm6852, %v6846, %v6863
    %v6865 = vsel %vm6851, %v6862, %v6864
    %v6866 = vshll.u32 %v6826, 8
    %v6867 = vmul.u32.u64.compose %v6866, %v6865
    %v6868 = vextract.low.u32 %v6867
    %v6869 = vextract.high.u32 %v6867
    %v6870 = vmul.u32.u64.compose %v6866, %v6861
    %v6871 = vextract.low.u32 %v6870
    %v6872 = vextract.high.u32 %v6870
    %v6873 = vmul.u32 %v6866, %v6857
    %v6874 = vadd.s32 %v6869, %v6871
    %vm6875 = vc.u32 %v6869, %v6871
    %v6876 = vadd.s32 %v6872, 1
    %v6877 = vsel %vm6875, %v6876, %v6872
    %v6878 = vadd.s32 %v6873, %v6877
    %v6879 = vadd.s32 %v6878, 536870912
    %v6880 = vshrl.u32 %v6879, 30
    %v6881 = vshll.u32 %v6880, 30
    %v6882 = vsub.s32 %v6878, %v6881
    %vm6883 = vcmp.lt.s32.totalorder %v6882, 0
    %v6884 = vsub.s32 0, %v6882
    %v6885 = vsel %vm6883, %v6884, %v6882
    %v6886 = vclz %v6885
    %v6887 = vsub.s32 %v6886, 2
    %vm6888 = vcmp.gt.s32.totalorder 0, %v6887
    %v6889 = vsel %vm6888, 0, %v6887
    %v6890 = vsub.s32 32, %v6889
    %v6891 = vshll.u32 %v6882, %v6889
    %v6892 = vshrl.u32 %v6874, %v6890
    %v6893 = vor.u32 %v6891, %v6892
    %v6894 = vsub.s32 4294967266, %v6889
    %v6895 = vadd.s32 %v6894, 127
    %v6896 = vshll.u32 %v6895, 23
    %v6897 = vor.u32 4788187, %v6896
    %v6898 = vand.u32 2147483647, %v6897
    %v6900 = vcvt.s32.f32 %v6893
    %v6901 = vmul.f32 %v6900, %v6898
    %v6902 = vxor.u32 %v6901, 2147483648
    %v6903 = vsel %vm6820, %v6902, %v6901
    %v6904 = vsub.s32 4, %v6880
    %v6905 = vsel %vm6820, %v6904, %v6880
    %v6906 = vsel %vm6819, %v3920, %v6903
    %v6907 = vsel %vm6819, 0, %v6905
    %v6908 = vcosq.f32.pop %v6906
    %v6909 = vsinq.f32.pop %v6906
    %vm6910 = vweird.f32 %v3920
    %v6911 = vand.u32 %v6907, 3
    %vm6912 = vcmp.lt.s32.totalorder %v6911, 2
    %vm6913 = vcmp.eq.s32.totalorder %v6911, 0
    %v6914 = vxor.u32 %v6909, 2147483648
    %v6915 = vsel %vm6913, %v6908, %v6914
    %vm6916 = vcmp.eq.s32.totalorder %v6911, 2
    %v6917 = vxor.u32 %v6908, 2147483648
    %v6918 = vsel %vm6916, %v6917, %v6909
    %v6919 = vsel %vm6912, %v6915, %v6918
    %v6920 = vsel %vm6910, nan, %v6919
    %v6921 = vand.u32 2147483647, %v3923
    %vm6922 = vcmp.le.f32.partialorder %v6921, 0.7853982
    %vm6923 = vcmp.lt.s32.totalorder %v3923, 0
    %v6924 = vand.u32 %v3923, 2139095040
    %v6925 = vshrl.u32 %v6924, 23
    %v6926 = vsub.s32 %v6925, 127
    %v6927 = vand.u32 2147483647, %v3923
    %v6928 = vand.u32 %v6927, 8388607
    %v6929 = vor.u32 %v6928, 8388608
    %v6930 = vsub.s32 0, %v6929
    %v6931 = vadd.s32 %v6926, 1
    %vm6932 = vcmp.gt.s32.totalorder %v6931, 0
    %v6933 = vsel %vm6932, %v6931, 0
    %v6934 = vshrl.u32 %v6933, 5
    %v6935 = vand.u32 %v6933, 31
    %v6936 = vsub.s32 32, %v6935
    %v6937 = vshrl.u32 683565275, %v6936
    %v6938 = vshll.u32 683565275, %v6935
    %v6939 = vshrl.u32 2475754826, %v6936
    %v6940 = vor.u32 %v6938, %v6939
    %v6941 = vshll.u32 2475754826, %v6935
    %v6942 = vshrl.u32 2131351028, %v6936
    %v6943 = vor.u32 %v6941, %v6942
    %v6944 = vshll.u32 2131351028, %v6935
    %v6945 = vshrl.u32 2102212464, %v6936
    %v6946 = vor.u32 %v6944, %v6945
    %v6947 = vshll.u32 2102212464, %v6935
    %v6948 = vshrl.u32 920167782, %v6936
    %v6949 = vor.u32 %v6947, %v6948
    %v6950 = vshll.u32 920167782, %v6935
    %v6951 = vshrl.u32 1326507024, %v6936
    %v6952 = vor.u32 %v6950, %v6951
    %vm6953 = vcmp.lt.s32.totalorder %v6934, 1
    %vm6954 = vcmp.lt.s32.totalorder %v6934, 2
    %vm6955 = vcmp.lt.s32.totalorder %v6934, 3
    %vm6956 = vcmp.lt.s32.totalorder %v6934, 4
    %v6957 = vsel %vm6953, %v6937, %v6940
    %v6958 = vsel %vm6956, %v6946, 2102212464
    %v6959 = vsel %vm6955, %v6943, %v6958
    %v6960 = vsel %vm6954, %v6957, %v6959
    %v6961 = vsel %vm6953, %v6940, %v6943
    %v6962 = vsel %vm6956, %v6949, 920167782
    %v6963 = vsel %vm6955, %v6946, %v6962
    %v6964 = vsel %vm6954, %v6961, %v6963
    %v6965 = vsel %vm6953, %v6943, %v6946
    %v6966 = vsel %vm6956, %v6952, 1326507024
    %v6967 = vsel %vm6955, %v6949, %v6966
    %v6968 = vsel %vm6954, %v6965, %v6967
    %v6969 = vshll.u32 %v6929, 8
    %v6970 = vmul.u32.u64.compose %v6969, %v6968
    %v6971 = vextract.low.u32 %v6970
    %v6972 = vextract.high.u32 %v6970
    %v6973 = vmul.u32.u64.compose %v6969, %v6964
    %v6974 = vextract.low.u32 %v6973
    %v6975 = vextract.high.u32 %v6973
    %v6976 = vmul.u32 %v6969, %v6960
    %v6977 = vadd.s32 %v6972, %v6974
    %vm6978 = vc.u32 %v6972, %v6974
    %v6979 = vadd.s32 %v6975, 1
    %v6980 = vsel %vm6978, %v6979, %v6975
    %v6981 = vadd.s32 %v6976, %v6980
    %v6982 = vadd.s32 %v6981, 536870912
    %v6983 = vshrl.u32 %v6982, 30
    %v6984 = vshll.u32 %v6983, 30
    %v6985 = vsub.s32 %v6981, %v6984
    %vm6986 = vcmp.lt.s32.totalorder %v6985, 0
    %v6987 = vsub.s32 0, %v6985
    %v6988 = vsel %vm6986, %v6987, %v6985
    %v6989 = vclz %v6988
    %v6990 = vsub.s32 %v6989, 2
    %vm6991 = vcmp.gt.s32.totalorder 0, %v6990
    %v6992 = vsel %vm6991, 0, %v6990
    %v6993 = vsub.s32 32, %v6992
    %v6994 = vshll.u32 %v6985, %v6992
    %v6995 = vshrl.u32 %v6977, %v6993
    %v6996 = vor.u32 %v6994, %v6995
    %v6997 = vsub.s32 4294967266, %v6992
    %v6998 = vadd.s32 %v6997, 127
    %v6999 = vshll.u32 %v6998, 23
    %v7000 = vor.u32 4788187, %v6999
    %v7001 = vand.u32 2147483647, %v7000
    %v7003 = vcvt.s32.f32 %v6996
    %v7004 = vmul.f32 %v7003, %v7001
    %v7005 = vxor.u32 %v7004, 2147483648
    %v7006 = vsel %vm6923, %v7005, %v7004
    %v7007 = vsub.s32 4, %v6983
    %v7008 = vsel %vm6923, %v7007, %v6983
    %v7009 = vsel %vm6922, %v3923, %v7006
    %v7010 = vsel %vm6922, 0, %v7008
    %v7011 = vcosq.f32.pop %v7009
    %v7012 = vsinq.f32.pop %v7009
    %vm7013 = vweird.f32 %v3923
    %v7014 = vand.u32 %v7010, 3
    %vm7015 = vcmp.lt.s32.totalorder %v7014, 2
    %vm7016 = vcmp.eq.s32.totalorder %v7014, 0
    %v7017 = vxor.u32 %v7012, 2147483648
    %v7018 = vsel %vm7016, %v7011, %v7017
    %vm7019 = vcmp.eq.s32.totalorder %v7014, 2
    %v7020 = vxor.u32 %v7011, 2147483648
    %v7021 = vsel %vm7019, %v7020, %v7012
    %v7022 = vsel %vm7015, %v7018, %v7021
    %v7023 = vsel %vm7013, nan, %v7022
    %v7024 = vand.u32 2147483647, %v3928
    %vm7025 = vcmp.le.f32.partialorder %v7024, 0.7853982
    %vm7026 = vcmp.lt.s32.totalorder %v3928, 0
    %v7027 = vand.u32 %v3928, 2139095040
    %v7028 = vshrl.u32 %v7027, 23
    %v7029 = vsub.s32 %v7028, 127
    %v7030 = vand.u32 2147483647, %v3928
    %v7031 = vand.u32 %v7030, 8388607
    %v7032 = vor.u32 %v7031, 8388608
    %v7033 = vsub.s32 0, %v7032
    %v7034 = vadd.s32 %v7029, 1
    %vm7035 = vcmp.gt.s32.totalorder %v7034, 0
    %v7036 = vsel %vm7035, %v7034, 0
    %v7037 = vshrl.u32 %v7036, 5
    %v7038 = vand.u32 %v7036, 31
    %v7039 = vsub.s32 32, %v7038
    %v7040 = vshrl.u32 683565275, %v7039
    %v7041 = vshll.u32 683565275, %v7038
    %v7042 = vshrl.u32 2475754826, %v7039
    %v7043 = vor.u32 %v7041, %v7042
    %v7044 = vshll.u32 2475754826, %v7038
    %v7045 = vshrl.u32 2131351028, %v7039
    %v7046 = vor.u32 %v7044, %v7045
    %v7047 = vshll.u32 2131351028, %v7038
    %v7048 = vshrl.u32 2102212464, %v7039
    %v7049 = vor.u32 %v7047, %v7048
    %v7050 = vshll.u32 2102212464, %v7038
    %v7051 = vshrl.u32 920167782, %v7039
    %v7052 = vor.u32 %v7050, %v7051
    %v7053 = vshll.u32 920167782, %v7038
    %v7054 = vshrl.u32 1326507024, %v7039
    %v7055 = vor.u32 %v7053, %v7054
    %vm7056 = vcmp.lt.s32.totalorder %v7037, 1
    %vm7057 = vcmp.lt.s32.totalorder %v7037, 2
    %vm7058 = vcmp.lt.s32.totalorder %v7037, 3
    %vm7059 = vcmp.lt.s32.totalorder %v7037, 4
    %v7060 = vsel %vm7056, %v7040, %v7043
    %v7061 = vsel %vm7059, %v7049, 2102212464
    %v7062 = vsel %vm7058, %v7046, %v7061
    %v7063 = vsel %vm7057, %v7060, %v7062
    %v7064 = vsel %vm7056, %v7043, %v7046
    %v7065 = vsel %vm7059, %v7052, 920167782
    %v7066 = vsel %vm7058, %v7049, %v7065
    %v7067 = vsel %vm7057, %v7064, %v7066
    %v7068 = vsel %vm7056, %v7046, %v7049
    %v7069 = vsel %vm7059, %v7055, 1326507024
    %v7070 = vsel %vm7058, %v7052, %v7069
    %v7071 = vsel %vm7057, %v7068, %v7070
    %v7072 = vshll.u32 %v7032, 8
    %v7073 = vmul.u32.u64.compose %v7072, %v7071
    %v7074 = vextract.low.u32 %v7073
    %v7075 = vextract.high.u32 %v7073
    %v7076 = vmul.u32.u64.compose %v7072, %v7067
    %v7077 = vextract.low.u32 %v7076
    %v7078 = vextract.high.u32 %v7076
    %v7079 = vmul.u32 %v7072, %v7063
    %v7080 = vadd.s32 %v7075, %v7077
    %vm7081 = vc.u32 %v7075, %v7077
    %v7082 = vadd.s32 %v7078, 1
    %v7083 = vsel %vm7081, %v7082, %v7078
    %v7084 = vadd.s32 %v7079, %v7083
    %v7085 = vadd.s32 %v7084, 536870912
    %v7086 = vshrl.u32 %v7085, 30
    %v7087 = vshll.u32 %v7086, 30
    %v7088 = vsub.s32 %v7084, %v7087
    %vm7089 = vcmp.lt.s32.totalorder %v7088, 0
    %v7090 = vsub.s32 0, %v7088
    %v7091 = vsel %vm7089, %v7090, %v7088
    %v7092 = vclz %v7091
    %v7093 = vsub.s32 %v7092, 2
    %vm7094 = vcmp.gt.s32.totalorder 0, %v7093
    %v7095 = vsel %vm7094, 0, %v7093
    %v7096 = vsub.s32 32, %v7095
    %v7097 = vshll.u32 %v7088, %v7095
    %v7098 = vshrl.u32 %v7080, %v7096
    %v7099 = vor.u32 %v7097, %v7098
    %v7100 = vsub.s32 4294967266, %v7095
    %v7101 = vadd.s32 %v7100, 127
    %v7102 = vshll.u32 %v7101, 23
    %v7103 = vor.u32 4788187, %v7102
    %v7104 = vand.u32 2147483647, %v7103
    %v7106 = vcvt.s32.f32 %v7099
    %v7107 = vmul.f32 %v7106, %v7104
    %v7108 = vxor.u32 %v7107, 2147483648
    %v7109 = vsel %vm7026, %v7108, %v7107
    %v7110 = vsub.s32 4, %v7086
    %v7111 = vsel %vm7026, %v7110, %v7086
    %v7112 = vsel %vm7025, %v3928, %v7109
    %v7113 = vsel %vm7025, 0, %v7111
    %v7114 = vcosq.f32.pop %v7112
    %v7115 = vsinq.f32.pop %v7112
    %vm7116 = vweird.f32 %v3928
    %v7117 = vand.u32 %v7113, 3
    %vm7118 = vcmp.lt.s32.totalorder %v7117, 2
    %vm7119 = vcmp.eq.s32.totalorder %v7117, 0
    %v7120 = vxor.u32 %v7115, 2147483648
    %v7121 = vsel %vm7119, %v7114, %v7120
    %vm7122 = vcmp.eq.s32.totalorder %v7117, 2
    %v7123 = vxor.u32 %v7114, 2147483648
    %v7124 = vsel %vm7122, %v7123, %v7115
    %v7125 = vsel %vm7118, %v7121, %v7124
    %v7126 = vsel %vm7116, nan, %v7125
    %v7127 = vand.u32 2147483647, %v3931
    %vm7128 = vcmp.le.f32.partialorder %v7127, 0.7853982
    %vm7129 = vcmp.lt.s32.totalorder %v3931, 0
    %v7130 = vand.u32 %v3931, 2139095040
    %v7131 = vshrl.u32 %v7130, 23
    %v7132 = vsub.s32 %v7131, 127
    %v7133 = vand.u32 2147483647, %v3931
    %v7134 = vand.u32 %v7133, 8388607
    %v7135 = vor.u32 %v7134, 8388608
    %v7136 = vsub.s32 0, %v7135
    %v7137 = vadd.s32 %v7132, 1
    %vm7138 = vcmp.gt.s32.totalorder %v7137, 0
    %v7139 = vsel %vm7138, %v7137, 0
    %v7140 = vshrl.u32 %v7139, 5
    %v7141 = vand.u32 %v7139, 31
    %v7142 = vsub.s32 32, %v7141
    %v7143 = vshrl.u32 683565275, %v7142
    %v7144 = vshll.u32 683565275, %v7141
    %v7145 = vshrl.u32 2475754826, %v7142
    %v7146 = vor.u32 %v7144, %v7145
    %v7147 = vshll.u32 2475754826, %v7141
    %v7148 = vshrl.u32 2131351028, %v7142
    %v7149 = vor.u32 %v7147, %v7148
    %v7150 = vshll.u32 2131351028, %v7141
    %v7151 = vshrl.u32 2102212464, %v7142
    %v7152 = vor.u32 %v7150, %v7151
    %v7153 = vshll.u32 2102212464, %v7141
    %v7154 = vshrl.u32 920167782, %v7142
    %v7155 = vor.u32 %v7153, %v7154
    %v7156 = vshll.u32 920167782, %v7141
    %v7157 = vshrl.u32 1326507024, %v7142
    %v7158 = vor.u32 %v7156, %v7157
    %vm7159 = vcmp.lt.s32.totalorder %v7140, 1
    %vm7160 = vcmp.lt.s32.totalorder %v7140, 2
    %vm7161 = vcmp.lt.s32.totalorder %v7140, 3
    %vm7162 = vcmp.lt.s32.totalorder %v7140, 4
    %v7163 = vsel %vm7159, %v7143, %v7146
    %v7164 = vsel %vm7162, %v7152, 2102212464
    %v7165 = vsel %vm7161, %v7149, %v7164
    %v7166 = vsel %vm7160, %v7163, %v7165
    %v7167 = vsel %vm7159, %v7146, %v7149
    %v7168 = vsel %vm7162, %v7155, 920167782
    %v7169 = vsel %vm7161, %v7152, %v7168
    %v7170 = vsel %vm7160, %v7167, %v7169
    %v7171 = vsel %vm7159, %v7149, %v7152
    %v7172 = vsel %vm7162, %v7158, 1326507024
    %v7173 = vsel %vm7161, %v7155, %v7172
    %v7174 = vsel %vm7160, %v7171, %v7173
    %v7175 = vshll.u32 %v7135, 8
    %v7176 = vmul.u32.u64.compose %v7175, %v7174
    %v7177 = vextract.low.u32 %v7176
    %v7178 = vextract.high.u32 %v7176
    %v7179 = vmul.u32.u64.compose %v7175, %v7170
    %v7180 = vextract.low.u32 %v7179
    %v7181 = vextract.high.u32 %v7179
    %v7182 = vmul.u32 %v7175, %v7166
    %v7183 = vadd.s32 %v7178, %v7180
    %vm7184 = vc.u32 %v7178, %v7180
    %v7185 = vadd.s32 %v7181, 1
    %v7186 = vsel %vm7184, %v7185, %v7181
    %v7187 = vadd.s32 %v7182, %v7186
    %v7188 = vadd.s32 %v7187, 536870912
    %v7189 = vshrl.u32 %v7188, 30
    %v7190 = vshll.u32 %v7189, 30
    %v7191 = vsub.s32 %v7187, %v7190
    %vm7192 = vcmp.lt.s32.totalorder %v7191, 0
    %v7193 = vsub.s32 0, %v7191
    %v7194 = vsel %vm7192, %v7193, %v7191
    %v7195 = vclz %v7194
    %v7196 = vsub.s32 %v7195, 2
    %vm7197 = vcmp.gt.s32.totalorder 0, %v7196
    %v7198 = vsel %vm7197, 0, %v7196
    %v7199 = vsub.s32 32, %v7198
    %v7200 = vshll.u32 %v7191, %v7198
    %v7201 = vshrl.u32 %v7183, %v7199
    %v7202 = vor.u32 %v7200, %v7201
    %v7203 = vsub.s32 4294967266, %v7198
    %v7204 = vadd.s32 %v7203, 127
    %v7205 = vshll.u32 %v7204, 23
    %v7206 = vor.u32 4788187, %v7205
    %v7207 = vand.u32 2147483647, %v7206
    %v7209 = vcvt.s32.f32 %v7202
    %v7210 = vmul.f32 %v7209, %v7207
    %v7211 = vxor.u32 %v7210, 2147483648
    %v7212 = vsel %vm7129, %v7211, %v7210
    %v7213 = vsub.s32 4, %v7189
    %v7214 = vsel %vm7129, %v7213, %v7189
    %v7215 = vsel %vm7128, %v3931, %v7212
    %v7216 = vsel %vm7128, 0, %v7214
    %v7217 = vcosq.f32.pop %v7215
    %v7218 = vsinq.f32.pop %v7215
    %vm7219 = vweird.f32 %v3931
    %v7220 = vand.u32 %v7216, 3
    %vm7221 = vcmp.lt.s32.totalorder %v7220, 2
    %vm7222 = vcmp.eq.s32.totalorder %v7220, 0
    %v7223 = vxor.u32 %v7218, 2147483648
    %v7224 = vsel %vm7222, %v7217, %v7223
    %vm7225 = vcmp.eq.s32.totalorder %v7220, 2
    %v7226 = vxor.u32 %v7217, 2147483648
    %v7227 = vsel %vm7225, %v7226, %v7218
    %v7228 = vsel %vm7221, %v7224, %v7227
    %v7229 = vsel %vm7219, nan, %v7228
    %v7230 = vpack.c.bf16 %v4139, %v4036
    %v7231 = vpack.c.bf16 %v4345, %v4242
    %v7232 = vpack.c.bf16 %v4551, %v4448
    %v7233 = vpack.c.bf16 %v4757, %v4654
    %v7234 = vpack.c.bf16 %v4963, %v4860
    %v7235 = vpack.c.bf16 %v5169, %v5066
    %v7236 = vpack.c.bf16 %v5375, %v5272
    %v7237 = vpack.c.bf16 %v5581, %v5478
    %v7238 = vpack.c.bf16 %v5787, %v5684
    %v7239 = vpack.c.bf16 %v5993, %v5890
    %v7240 = vpack.c.bf16 %v6199, %v6096
    %v7241 = vpack.c.bf16 %v6405, %v6302
    %v7242 = vpack.c.bf16 %v6611, %v6508
    %v7243 = vpack.c.bf16 %v6817, %v6714
    %v7244 = vpack.c.bf16 %v7023, %v6920
    %v7245 = vpack.c.bf16 %v7229, %v7126
    %v7247 = vlaneseq
    %v7248 = vshrl.u32 %v7247, 7
    %v7249 = vsub.s32 0, %v7248
    %v7250 = vrot.slane %v98, %v7249
    %v7268 = vunpack.c.l.b16 %v82
    %v7269 = vunpack.c.l.b16 %v83
    %v7270 = vunpack.c.l.b16 %v84
    %v7271 = vunpack.c.l.b16 %v85
    %v7272 = vunpack.c.l.b16 %v86
    %v7273 = vunpack.c.l.b16 %v87
    %v7274 = vunpack.c.l.b16 %v88
    %v7275 = vunpack.c.l.b16 %v89
    %v7276 = vunpack.c.l.b16 %v90
    %v7277 = vunpack.c.l.b16 %v91
    %v7278 = vunpack.c.l.b16 %v92
    %v7279 = vunpack.c.l.b16 %v93
    %v7280 = vunpack.c.l.b16 %v94
    %v7281 = vunpack.c.l.b16 %v95
    %v7282 = vunpack.c.l.b16 %v96
    %v7283 = vunpack.c.l.b16 %v97
    %v7284 = vpack.c.b16 %v7269, %v7268
    %v7285 = vpack.c.b16 %v7271, %v7270
    %v7286 = vpack.c.b16 %v7273, %v7272
    %v7287 = vpack.c.b16 %v7275, %v7274
    %v7288 = vpack.c.b16 %v7277, %v7276
    %v7289 = vpack.c.b16 %v7279, %v7278
    %v7290 = vpack.c.b16 %v7281, %v7280
    %v7291 = vpack.c.b16 %v7283, %v7282
    %7300 = vmatprep.subr.bf16.mxu0 0
    %7301 = vmatpush1.bf16.msra.mxu0 %v7284
    %7302 = vmatprep.subr.bf16.mxu0 0
    %7303 = vmatpush1.bf16.msra.mxu0 %v7285
    %7304 = vmatprep.subr.bf16.mxu0 0
    %7305 = vmatpush1.bf16.msra.mxu0 %v7286
    %7306 = vmatprep.subr.bf16.mxu0 0
    %7307 = vmatpush1.bf16.msra.mxu0 %v7287
    %7308 = vmatprep.subr.bf16.mxu0 0
    %7309 = vmatpush1.bf16.msra.mxu0 %v7288
    %7310 = vmatprep.subr.bf16.mxu0 0
    %7311 = vmatpush1.bf16.msra.mxu0 %v7289
    %7312 = vmatprep.subr.bf16.mxu0 0
    %7313 = vmatpush1.bf16.msra.mxu0 %v7290
    %7314 = vmatprep.subr.bf16.mxu0 0
    %7315 = vmatpush1.bf16.msra.mxu0 %v7291
    %7316 = vmatprep.subr.bf16.mxu0 0
    %7317 = vmatpush1.bf16.msra.mxu0 0
    %7318 = vmatprep.subr.bf16.mxu0 0
    %7319 = vmatpush1.bf16.msra.mxu0 0
    %7320 = vmatprep.subr.bf16.mxu0 0
    %7321 = vmatpush1.bf16.msra.mxu0 0
    %7322 = vmatprep.subr.bf16.mxu0 0
    %7323 = vmatpush1.bf16.msra.mxu0 0
    %7324 = vmatprep.subr.bf16.mxu0 0
    %7325 = vmatpush1.bf16.msra.mxu0 0
    %7326 = vmatprep.subr.bf16.mxu0 0
    %7327 = vmatpush1.bf16.msra.mxu0 0
    %7328 = vmatprep.subr.bf16.mxu0 0
    %7329 = vmatpush1.bf16.msra.mxu0 0
    %7330 = vmatprep.subr.bf16.mxu0 0
    %7331 = vmatpush1.bf16.msra.mxu0 0
    %7332 = vmatprep.mubr.bf16.mxu0 0
    %7333 = vmatmul.mubr.bf16.gmra.mrb[0].mxu0 %v7230
    %v7334 = vpop.f32.mrb[0].mxu0
    %v7335 = vadd.f32 %v7250, %v7334
    %v7336 = vpop.f32.mrb[0].mxu0
    %v7337 = vpop.f32.mrb[0].mxu0
    %v7338 = vadd.f32 %v7250, %v7337
    %v7339 = vpop.f32.mrb[0].mxu0
    %7340 = vmatprep.mubr.bf16.mxu0 0
    %7341 = vmatmul.mubr.bf16.gmra.mrb[0].mxu0 %v7231
    %v7342 = vpop.f32.mrb[0].mxu0
    %v7343 = vadd.f32 %v7250, %v7342
    %v7344 = vpop.f32.mrb[0].mxu0
    %v7345 = vpop.f32.mrb[0].mxu0
    %v7346 = vadd.f32 %v7250, %v7345
    %v7347 = vpop.f32.mrb[0].mxu0
    %7348 = vmatprep.mubr.bf16.mxu0 0
    %7349 = vmatmul.mubr.bf16.gmra.mrb[0].mxu0 %v7232
    %v7350 = vpop.f32.mrb[0].mxu0
    %v7351 = vadd.f32 %v7250, %v7350
    %v7352 = vpop.f32.mrb[0].mxu0
    %v7353 = vpop.f32.mrb[0].mxu0
    %v7354 = vadd.f32 %v7250, %v7353
    %v7355 = vpop.f32.mrb[0].mxu0
    %7356 = vmatprep.mubr.bf16.mxu0 0
    %7357 = vmatmul.mubr.bf16.gmra.mrb[0].mxu0 %v7233
    %v7358 = vpop.f32.mrb[0].mxu0
    %v7359 = vadd.f32 %v7250, %v7358
    %v7360 = vpop.f32.mrb[0].mxu0
    %v7361 = vpop.f32.mrb[0].mxu0
    %v7362 = vadd.f32 %v7250, %v7361
    %v7363 = vpop.f32.mrb[0].mxu0
    %7364 = vmatprep.mubr.bf16.mxu0 0
    %7365 = vmatmul.mubr.bf16.gmra.mrb[0].mxu0 %v7234
    %v7366 = vpop.f32.mrb[0].mxu0
    %v7367 = vadd.f32 %v7250, %v7366
    %v7368 = vpop.f32.mrb[0].mxu0
    %v7369 = vpop.f32.mrb[0].mxu0
    %v7370 = vadd.f32 %v7250, %v7369
    %v7371 = vpop.f32.mrb[0].mxu0
    %7372 = vmatprep.mubr.bf16.mxu0 0
    %7373 = vmatmul.mubr.bf16.gmra.mrb[0].mxu0 %v7235
    %v7374 = vpop.f32.mrb[0].mxu0
    %v7375 = vadd.f32 %v7250, %v7374
    %v7376 = vpop.f32.mrb[0].mxu0
    %v7377 = vpop.f32.mrb[0].mxu0
    %v7378 = vadd.f32 %v7250, %v7377
    %v7379 = vpop.f32.mrb[0].mxu0
    %7380 = vmatprep.mubr.bf16.mxu0 0
    %7381 = vmatmul.mubr.bf16.gmra.mrb[0].mxu0 %v7236
    %v7382 = vpop.f32.mrb[0].mxu0
    %v7383 = vadd.f32 %v7250, %v7382
    %v7384 = vpop.f32.mrb[0].mxu0
    %v7385 = vpop.f32.mrb[0].mxu0
    %v7386 = vadd.f32 %v7250, %v7385
    %v7387 = vpop.f32.mrb[0].mxu0
    %7388 = vmatprep.mubr.bf16.mxu0 0
    %7389 = vmatmul.mubr.bf16.gmra.mrb[0].mxu0 %v7237
    %v7390 = vpop.f32.mrb[0].mxu0
    %v7391 = vadd.f32 %v7250, %v7390
    %v7392 = vpop.f32.mrb[0].mxu0
    %v7393 = vpop.f32.mrb[0].mxu0
    %v7394 = vadd.f32 %v7250, %v7393
    %v7395 = vpop.f32.mrb[0].mxu0
    %7396 = vmatprep.mubr.bf16.mxu0 0
    %7397 = vmatmul.mubr.bf16.gmra.mrb[0].mxu0 %v7238
    %v7398 = vpop.f32.mrb[0].mxu0
    %v7399 = vadd.f32 %v7250, %v7398
    %v7400 = vpop.f32.mrb[0].mxu0
    %v7401 = vpop.f32.mrb[0].mxu0
    %v7402 = vadd.f32 %v7250, %v7401
    %v7403 = vpop.f32.mrb[0].mxu0
    %7404 = vmatprep.mubr.bf16.mxu0 0
    %7405 = vmatmul.mubr.bf16.gmra.mrb[0].mxu0 %v7239
    %v7406 = vpop.f32.mrb[0].mxu0
    %v7407 = vadd.f32 %v7250, %v7406
    %v7408 = vpop.f32.mrb[0].mxu0
    %v7409 = vpop.f32.mrb[0].mxu0
    %v7410 = vadd.f32 %v7250, %v7409
    %v7411 = vpop.f32.mrb[0].mxu0
    %7412 = vmatprep.mubr.bf16.mxu0 0
    %7413 = vmatmul.mubr.bf16.gmra.mrb[0].mxu0 %v7240
    %v7414 = vpop.f32.mrb[0].mxu0
    %v7415 = vadd.f32 %v7250, %v7414
    %v7416 = vpop.f32.mrb[0].mxu0
    %v7417 = vpop.f32.mrb[0].mxu0
    %v7418 = vadd.f32 %v7250, %v7417
    %v7419 = vpop.f32.mrb[0].mxu0
    %7420 = vmatprep.mubr.bf16.mxu0 0
    %7421 = vmatmul.mubr.bf16.gmra.mrb[0].mxu0 %v7241
    %v7422 = vpop.f32.mrb[0].mxu0
    %v7423 = vadd.f32 %v7250, %v7422
    %v7424 = vpop.f32.mrb[0].mxu0
    %v7425 = vpop.f32.mrb[0].mxu0
    %v7426 = vadd.f32 %v7250, %v7425
    %v7427 = vpop.f32.mrb[0].mxu0
    %7428 = vmatprep.mubr.bf16.mxu0 0
    %7429 = vmatmul.mubr.bf16.gmra.mrb[0].mxu0 %v7242
    %v7430 = vpop.f32.mrb[0].mxu0
    %v7431 = vadd.f32 %v7250, %v7430
    %v7432 = vpop.f32.mrb[0].mxu0
    %v7433 = vpop.f32.mrb[0].mxu0
    %v7434 = vadd.f32 %v7250, %v7433
    %v7435 = vpop.f32.mrb[0].mxu0
    %7436 = vmatprep.mubr.bf16.mxu0 0
    %7437 = vmatmul.mubr.bf16.gmra.mrb[0].mxu0 %v7243
    %v7438 = vpop.f32.mrb[0].mxu0
    %v7439 = vadd.f32 %v7250, %v7438
    %v7440 = vpop.f32.mrb[0].mxu0
    %v7441 = vpop.f32.mrb[0].mxu0
    %v7442 = vadd.f32 %v7250, %v7441
    %v7443 = vpop.f32.mrb[0].mxu0
    %7444 = vmatprep.mubr.bf16.mxu0 0
    %7445 = vmatmul.mubr.bf16.gmra.mrb[0].mxu0 %v7244
    %v7446 = vpop.f32.mrb[0].mxu0
    %v7447 = vadd.f32 %v7250, %v7446
    %v7448 = vpop.f32.mrb[0].mxu0
    %v7449 = vpop.f32.mrb[0].mxu0
    %v7450 = vadd.f32 %v7250, %v7449
    %v7451 = vpop.f32.mrb[0].mxu0
    %7452 = vmatprep.mubr.bf16.mxu0 0
    %7453 = vmatmul.mubr.bf16.gmra.mrb[0].mxu0 %v7245
    %v7454 = vpop.f32.mrb[0].mxu0
    %v7455 = vadd.f32 %v7250, %v7454
    %v7456 = vpop.f32.mrb[0].mxu0
    %v7457 = vpop.f32.mrb[0].mxu0
    %v7458 = vadd.f32 %v7250, %v7457
    %v7459 = vpop.f32.mrb[0].mxu0
    %7460 = vdwg.mxu0
    %v7461 = vpack.c.bf16 %v7338, %v7335
    %v7462 = vpack.c.bf16 %v7346, %v7343
    %v7463 = vpack.c.bf16 %v7354, %v7351
    %v7464 = vpack.c.bf16 %v7362, %v7359
    %v7465 = vpack.c.bf16 %v7370, %v7367
    %v7466 = vpack.c.bf16 %v7378, %v7375
    %v7467 = vpack.c.bf16 %v7386, %v7383
    %v7468 = vpack.c.bf16 %v7394, %v7391
    %v7469 = vpack.c.bf16 %v7402, %v7399
    %v7470 = vpack.c.bf16 %v7410, %v7407
    %v7471 = vpack.c.bf16 %v7418, %v7415
    %v7472 = vpack.c.bf16 %v7426, %v7423
    %v7473 = vpack.c.bf16 %v7434, %v7431
    %v7474 = vpack.c.bf16 %v7442, %v7439
    %v7475 = vpack.c.bf16 %v7450, %v7447
    %v7476 = vpack.c.bf16 %v7458, %v7455
    %v7493 = vunpack.c.l.b16 %v7461
    %v7494 = vunpack.c.h.b16 %v7461
    %v7495 = vunpack.c.l.b16 %v7462
    %v7496 = vunpack.c.h.b16 %v7462
    %v7497 = vunpack.c.l.b16 %v7463
    %v7498 = vunpack.c.h.b16 %v7463
    %v7499 = vunpack.c.l.b16 %v7464
    %v7500 = vunpack.c.h.b16 %v7464
    %v7501 = vunpack.c.l.b16 %v7465
    %v7502 = vunpack.c.h.b16 %v7465
    %v7503 = vunpack.c.l.b16 %v7466
    %v7504 = vunpack.c.h.b16 %v7466
    %v7505 = vunpack.c.l.b16 %v7467
    %v7506 = vunpack.c.h.b16 %v7467
    %v7507 = vunpack.c.l.b16 %v7468
    %v7508 = vunpack.c.h.b16 %v7468
    %v7509 = vunpack.c.l.b16 %v7469
    %v7510 = vunpack.c.h.b16 %v7469
    %v7511 = vunpack.c.l.b16 %v7470
    %v7512 = vunpack.c.h.b16 %v7470
    %v7513 = vunpack.c.l.b16 %v7471
    %v7514 = vunpack.c.h.b16 %v7471
    %v7515 = vunpack.c.l.b16 %v7472
    %v7516 = vunpack.c.h.b16 %v7472
    %v7517 = vunpack.c.l.b16 %v7473
    %v7518 = vunpack.c.h.b16 %v7473
    %v7519 = vunpack.c.l.b16 %v7474
    %v7520 = vunpack.c.h.b16 %v7474
    %v7521 = vunpack.c.l.b16 %v7475
    %v7522 = vunpack.c.h.b16 %v7475
    %v7523 = vunpack.c.l.b16 %v7476
    %v7524 = vunpack.c.h.b16 %v7476
    %v7525 = vpack.c.b16 %v7493, %v7493
    %v7526 = vpack.c.b16 %v7494, %v7494
    %v7527 = vpack.c.b16 %v7495, %v7495
    %v7528 = vpack.c.b16 %v7496, %v7496
    %v7529 = vpack.c.b16 %v7497, %v7497
    %v7530 = vpack.c.b16 %v7498, %v7498
    %v7531 = vpack.c.b16 %v7499, %v7499
    %v7532 = vpack.c.b16 %v7500, %v7500
    %v7533 = vpack.c.b16 %v7501, %v7501
    %v7534 = vpack.c.b16 %v7502, %v7502
    %v7535 = vpack.c.b16 %v7503, %v7503
    %v7536 = vpack.c.b16 %v7504, %v7504
    %v7537 = vpack.c.b16 %v7505, %v7505
    %v7538 = vpack.c.b16 %v7506, %v7506
    %v7539 = vpack.c.b16 %v7507, %v7507
    %v7540 = vpack.c.b16 %v7508, %v7508
    %v7541 = vpack.c.b16 %v7509, %v7509
    %v7542 = vpack.c.b16 %v7510, %v7510
    %v7543 = vpack.c.b16 %v7511, %v7511
    %v7544 = vpack.c.b16 %v7512, %v7512
    %v7545 = vpack.c.b16 %v7513, %v7513
    %v7546 = vpack.c.b16 %v7514, %v7514
    %v7547 = vpack.c.b16 %v7515, %v7515
    %v7548 = vpack.c.b16 %v7516, %v7516
    %v7549 = vpack.c.b16 %v7517, %v7517
    %v7550 = vpack.c.b16 %v7518, %v7518
    %v7551 = vpack.c.b16 %v7519, %v7519
    %v7552 = vpack.c.b16 %v7520, %v7520
    %v7553 = vpack.c.b16 %v7521, %v7521
    %v7554 = vpack.c.b16 %v7522, %v7522
    %v7555 = vpack.c.b16 %v7523, %v7523
    %v7556 = vpack.c.b16 %v7524, %v7524
    %7589 = vst [vmem:[#allocation2] sm:$0xf] %v7525
    %7590 = vst [vmem:[#allocation2 + $0x4] sm:$0xf] %v7526
    %7591 = vst [vmem:[#allocation2 + $0x8] sm:$0xf] %v7527
    %7592 = vst [vmem:[#allocation2 + $0xc] sm:$0xf] %v7528
    %7593 = vst [vmem:[#allocation2 + $0x10] sm:$0xf] %v7529
    %7594 = vst [vmem:[#allocation2 + $0x14] sm:$0xf] %v7530
    %7595 = vst [vmem:[#allocation2 + $0x18] sm:$0xf] %v7531
    %7596 = vst [vmem:[#allocation2 + $0x1c] sm:$0xf] %v7532
    %7597 = vst [vmem:[#allocation2 + $0x20] sm:$0xf] %v7533
    %7598 = vst [vmem:[#allocation2 + $0x24] sm:$0xf] %v7534
    %7599 = vst [vmem:[#allocation2 + $0x28] sm:$0xf] %v7535
    %7600 = vst [vmem:[#allocation2 + $0x2c] sm:$0xf] %v7536
    %7601 = vst [vmem:[#allocation2 + $0x30] sm:$0xf] %v7537
    %7602 = vst [vmem:[#allocation2 + $0x34] sm:$0xf] %v7538
    %7603 = vst [vmem:[#allocation2 + $0x38] sm:$0xf] %v7539
    %7604 = vst [vmem:[#allocation2 + $0x3c] sm:$0xf] %v7540
    %7605 = vst [vmem:[#allocation2 + $0x40] sm:$0xf] %v7541
    %7606 = vst [vmem:[#allocation2 + $0x44] sm:$0xf] %v7542
    %7607 = vst [vmem:[#allocation2 + $0x48] sm:$0xf] %v7543
    %7608 = vst [vmem:[#allocation2 + $0x4c] sm:$0xf] %v7544
    %7609 = vst [vmem:[#allocation2 + $0x50] sm:$0xf] %v7545
    %7610 = vst [vmem:[#allocation2 + $0x54] sm:$0xf] %v7546
    %7611 = vst [vmem:[#allocation2 + $0x58] sm:$0xf] %v7547
    %7612 = vst [vmem:[#allocation2 + $0x5c] sm:$0xf] %v7548
    %7613 = vst [vmem:[#allocation2 + $0x60] sm:$0xf] %v7549
    %7614 = vst [vmem:[#allocation2 + $0x64] sm:$0xf] %v7550
    %7615 = vst [vmem:[#allocation2 + $0x68] sm:$0xf] %v7551
    %7616 = vst [vmem:[#allocation2 + $0x6c] sm:$0xf] %v7552
    %7617 = vst [vmem:[#allocation2 + $0x70] sm:$0xf] %v7553
    %7618 = vst [vmem:[#allocation2 + $0x74] sm:$0xf] %v7554
    %7619 = vst [vmem:[#allocation2 + $0x78] sm:$0xf] %v7555
    %7620 = vst [vmem:[#allocation2 + $0x7c] sm:$0xf] %v7556
    // Predicated region
    $region30: #{tpu_custom_call.1} parent=1 // pred_check
      _
    $region31: #{tpu_custom_call.1} parent=1 // pred_check_branch
      %7622 = sbr.rel (0) target = $region33
    $region32: #{tpu_custom_call.1} parent=1 // pred_region
      %s7624 = ssub.s32 2048, 2048
      %7625 = vsyncadd [#allocation3], %s7624
      %s7626 = sshll.u32 [#allocation2], 4
      %s7627 = int_to_ptr.vmem [resolvable:$true] %s7626
      %7632 = dma.vmem_to_hbm [thread:$0]  %s7627, 2048, %s7, [#allocation3], 64, 64, 4
    $region33: #{tpu_custom_call.1} parent=1 // pred_fallthru
      _
    // Predicated region
    $region34: #{tpu_custom_call.1} parent=1 // pred_check
      _
    $region35: #{tpu_custom_call.1} parent=1 // pred_check_branch
      %7634 = sbr.rel (0) target = $region37
    $region36: #{tpu_custom_call.1} parent=1 // pred_region
      %7635 = dma.done [#allocation3], 2048
    $region37: #{tpu_custom_call.1} parent=1 // pred_fallthru
      _
    %7636 = vsyncpa [#allocation3], 1

</llo_original>
